<compile_context>
chip_gen: v5e
topology: v5e:2x2
jax: 0.10.0
libtpu: 0.0.40
codegen_flags: <defaults>
</compile_context>

<pallas_src>
import functools

import jax
import jax.numpy as jnp
import numpy as np
from jax.experimental import pallas as pl
from jax.experimental.pallas import tpu as pltpu

CODE_DIM = 48        # 304 - 256 : width of the `spatial` code
HIDDEN = 256
OUT_PAD = 128        # lane-dense padded output width (real out_dim sliced off)
NEG_SLOPE = 0.2


def _leaky(x):
    # LeakyReLU(0.2): max(x, 0.2*x) is exact for slope in (0, 1).
    return jnp.maximum(x, NEG_SLOPE * x)


def nmlp_kernel(x_ref, code_ref, w1_ref, b1_ref, w2x_ref, w2c_ref,
                w3_ref, b3_ref, o_ref):
    bf16 = jnp.bfloat16
    x = x_ref[...]            # (TM, in_dim)   bf16
    code = code_ref[...]      # (TM, 49)       bf16 (last column == 1: bias fold)

    # lin1 + LeakyReLU (bf16 operands, f32 accumulation)
    h = jnp.dot(x, w1_ref[...], preferred_element_type=jnp.float32) + b1_ref[...]
    h = _leaky(h)

    # 4 residual blocks, each using lin2[2j] and lin2[2j+1].
    # The per-step code projection (with folded bias) is computed inside the
    # loop: it does not depend on `h`, so it is independent MXU filler work.
    for j in range(4):
        res = h
        for step in (2 * j, 2 * j + 1):
            col = step * HIDDEN
            cp = jnp.dot(code, w2c_ref[:, col:col + HIDDEN],
                         preferred_element_type=jnp.float32)
            h = (jnp.dot(h.astype(bf16), w2x_ref[step],
                         preferred_element_type=jnp.float32) + cp)
            if step == 2 * j:
                h = _leaky(h)
        h = res + h
        h = _leaky(h)

    # lin3 (output columns padded to 128 lanes -> unmasked, lane-dense store)
    out = (jnp.dot(h.astype(bf16), w3_ref[...],
                   preferred_element_type=jnp.float32) + b3_ref[...])
    o_ref[...] = out.astype(o_ref.dtype)


def _prepare_params(params):
    """Cast/reshape/pad the f32 parameter dict into kernel operands."""
    bf16 = jnp.bfloat16
    out_dim = params["w3"].shape[-1]

    w1 = params["w1"].astype(bf16)                                # (in_dim, 256)
    b1 = params["b1"].astype(jnp.float32)                         # (1, 256)
    w2x = params["w2x"].astype(bf16)                              # (8, 256, 256)
    # (8, 48, 256) -> (48, 8*256); column block k == w2c[k].
    w2c = (jnp.transpose(params["w2c"], (1, 0, 2))
           .reshape(CODE_DIM, 8 * HIDDEN))
    b2 = params["b2"].reshape(1, 8 * HIDDEN)
    # Fold the 8 lin2 biases in as an extra K-row (matched by the ones column
    # appended to `code` in the wrapper).
    w2c = jnp.concatenate([w2c, b2], axis=0).astype(bf16)         # (49, 2048)
    w3 = jnp.pad(params["w3"],
                 ((0, 0), (0, OUT_PAD - out_dim))).astype(bf16)   # (256, 128)
    b3 = jnp.pad(params["b3"],
                 ((0, 0), (0, OUT_PAD - out_dim))).astype(jnp.float32)
    return w1, b1, w2x, w2c, w3, b3


def _pick_tm(n_rows):
    """Largest row tile that still leaves >= 2 grid steps (v7x dual-TC)."""
    for tm in (1024, 512, 256):
        if n_rows >= 2 * tm:
            return tm
    return 256


def nmlp_forward(x, spatial, params, *, tm=None):
    """x: (*shape, in_dim); spatial: (*shape, 48). Returns (*shape, out_dim) f32."""
    in_dim = x.shape[-1]
    shape = x.shape[:-1]
    out_dim = params["w3"].shape[-1]

    xf = x.reshape(-1, in_dim).astype(jnp.bfloat16)
    cf = spatial.reshape(-1, CODE_DIM).astype(jnp.bfloat16)
    n = xf.shape[0]
    # Ones column pairs with the bias row appended to w2c (bias fold).
    cf = jnp.concatenate([cf, jnp.ones((n, 1), jnp.bfloat16)], axis=-1)

    if tm is None:
        tm = _pick_tm(n)
    n_pad = (-n) % tm
    if n_pad:
        xf = jnp.pad(xf, ((0, n_pad), (0, 0)))
        cf = jnp.pad(cf, ((0, n_pad), (0, 0)))
    n_rows = n + n_pad

    w1, b1, w2x, w2c, w3, b3 = _prepare_params(params)

    out = pl.pallas_call(
        nmlp_kernel,
        out_shape=jax.ShapeDtypeStruct((n_rows, OUT_PAD), jnp.bfloat16),
        grid_spec=pltpu.PrefetchScalarGridSpec(
            num_scalar_prefetch=0,
            grid=(n_rows // tm,),
            in_specs=[
                pl.BlockSpec((tm, in_dim), lambda i: (i, 0)),
                pl.BlockSpec((tm, CODE_DIM + 1), lambda i: (i, 0)),
                pl.BlockSpec((in_dim, HIDDEN), lambda i: (0, 0)),
                pl.BlockSpec((1, HIDDEN), lambda i: (0, 0)),
                pl.BlockSpec((8, HIDDEN, HIDDEN), lambda i: (0, 0, 0)),
                pl.BlockSpec((CODE_DIM + 1, 8 * HIDDEN), lambda i: (0, 0)),
                pl.BlockSpec((HIDDEN, OUT_PAD), lambda i: (0, 0)),
                pl.BlockSpec((1, OUT_PAD), lambda i: (0, 0)),
            ],
            out_specs=pl.BlockSpec((tm, OUT_PAD), lambda i: (i, 0)),
        ),
        compiler_params=pltpu.CompilerParams(
            dimension_semantics=("parallel",),
            vmem_limit_bytes=32 * 1024 * 1024),
    )(xf, cf, w1, b1, w2x, w2c, w3, b3)

    out = out[:n, :out_dim].astype(jnp.float32)
    return out.reshape(*shape, out_dim)


def make_params(key, in_dim, out_dim):
    """Deterministic synthetic parameters (shapes match the torch module)."""
    ks = jax.random.split(key, 8)

    def u(k, shape, fan_in):
        bound = 1.0 / np.sqrt(fan_in)
        return jax.random.uniform(k, shape, jnp.float32, -bound, bound)

    # lin1: Linear(in_dim, 256)   -> stored transposed (in_dim, 256)
    w1 = u(ks[0], (in_dim, HIDDEN), in_dim)
    b1 = u(ks[1], (1, HIDDEN), in_dim)
    # lin2: 8 x Linear(304, 256); split into x-part (256) and code-part (48)
    w2x = u(ks[2], (8, HIDDEN, HIDDEN), HIDDEN + CODE_DIM)
    w2c = u(ks[3], (8, CODE_DIM, HIDDEN), HIDDEN + CODE_DIM)
    b2 = u(ks[4], (8, HIDDEN), HIDDEN + CODE_DIM)
    # lin3: Linear(256, out_dim)
    w3 = u(ks[5], (HIDDEN, out_dim), HIDDEN)
    b3 = u(ks[6], (1, out_dim), HIDDEN)
    return dict(w1=w1, b1=b1, w2x=w2x, w2c=w2c, b2=b2, w3=w3, b3=b3)


def nmlp_reference(x, spatial, params):
    """Pure-JAX reference mirroring the torch forward (concat form), using the
    same bf16-operand / f32-accumulation matmul numerics as the kernel."""
    bf16 = jnp.bfloat16
    in_dim = x.shape[-1]
    shape = x.shape[:-1]
    xf = x.reshape(-1, in_dim)
    code = spatial.reshape(-1, CODE_DIM)

    def mm(a, w):
        return jnp.dot(a.astype(bf16), w.astype(bf16),
                       preferred_element_type=jnp.float32)

    h = mm(xf, params["w1"]) + params["b1"]
    h = _leaky(h)
    # reassemble the full (304, 256) weights exactly as torch would see them
    for j in range(4):
        res = h
        for step in (2 * j, 2 * j + 1):
            w_full = jnp.concatenate(
                [params["w2x"][step], params["w2c"][step]], axis=0)
            hc = jnp.concatenate([h.astype(bf16), code.astype(bf16)], axis=-1)
            h = mm(hc, w_full) + params["b2"][step]
            if step == 2 * j:
                h = _leaky(h)
        h = res + h
        h = _leaky(h)
    out = mm(h, params["w3"]) + params["b3"]
    return out.reshape(*shape, -1)


if __name__ == "__main__":
    key = jax.random.PRNGKey(0)
    k_p, k_x, k_c, k_x2, k_c2 = jax.random.split(key, 5)

    in_dim, out_dim = 32, 3
    params = make_params(k_p, in_dim, out_dim)
    run = jax.jit(functools.partial(nmlp_forward))

    # Case 1: small batch (N=64 < tm, exercises row padding / single grid step)
    shape1 = (4, 16)
    x1 = jax.random.normal(k_x, (*shape1, in_dim), jnp.float32)
    c1 = jax.random.normal(k_c, (*shape1, CODE_DIM), jnp.float32)
    out1 = jax.block_until_ready(run(x1, c1, params))
    ref1 = nmlp_reference(x1, c1, params)
    np.testing.assert_allclose(np.asarray(out1), np.asarray(ref1),
                               rtol=1e-2, atol=1e-2)

    # Case 2: larger batch (N=1024 -> tm=512, 2 parallel grid steps)
    shape2 = (4, 256)
    x2 = jax.random.normal(k_x2, (*shape2, in_dim), jnp.float32)
    c2 = jax.random.normal(k_c2, (*shape2, CODE_DIM), jnp.float32)
    out2 = jax.block_until_ready(run(x2, c2, params))
    ref2 = nmlp_reference(x2, c2, params)
    np.testing.assert_allclose(np.asarray(out2), np.asarray(ref2),
                               rtol=1e-2, atol=1e-2)

    print("KERNEL_OK")
</pallas_src>

<mosaic_0001>
module attributes {stable_mosaic.version = 11 : i64} {
  func.func @nmlp_kernel(%arg0: i32, %arg1: memref<256x32xbf16, #tpu.memory_space<vmem>>, %arg2: memref<256x49xbf16, #tpu.memory_space<vmem>>, %arg3: memref<32x256xbf16, #tpu.memory_space<vmem>>, %arg4: memref<1x256xf32, #tpu.memory_space<vmem>>, %arg5: memref<8x256x256xbf16, #tpu.memory_space<vmem>>, %arg6: memref<49x2048xbf16, #tpu.memory_space<vmem>>, %arg7: memref<256x128xbf16, #tpu.memory_space<vmem>>, %arg8: memref<1x128xf32, #tpu.memory_space<vmem>>, %arg9: memref<256x128xbf16, #tpu.memory_space<vmem>>) attributes {dimension_semantics = [#tpu.dimension_semantics<parallel>], iteration_bounds = array<i64: 1>, scalar_prefetch = 0 : i64, scratch_operands = 0 : i64, tpu.core_type = #tpu.core_type<tc>, window_params = [{transform_indices = @transform_0, window_bounds = array<i64: 256, 32>}, {transform_indices = @transform_1, window_bounds = array<i64: 256, 49>}, {pipeline_mode = #tpu.pipeline_mode<synchronous>, transform_indices = @transform_2, window_bounds = array<i64: 32, 256>}, {pipeline_mode = #tpu.pipeline_mode<synchronous>, transform_indices = @transform_3, window_bounds = array<i64: 1, 256>}, {pipeline_mode = #tpu.pipeline_mode<synchronous>, transform_indices = @transform_4, window_bounds = array<i64: 8, 256, 256>}, {pipeline_mode = #tpu.pipeline_mode<synchronous>, transform_indices = @transform_5, window_bounds = array<i64: 49, 2048>}, {pipeline_mode = #tpu.pipeline_mode<synchronous>, transform_indices = @transform_6, window_bounds = array<i64: 256, 128>}, {pipeline_mode = #tpu.pipeline_mode<synchronous>, transform_indices = @transform_7, window_bounds = array<i64: 1, 128>}, {transform_indices = @transform_8, window_bounds = array<i64: 256, 128>}]} {
    %c0 = arith.constant 0 : index
    %c0_0 = arith.constant 0 : index
    %0 = vector.load %arg1[%c0, %c0_0] : memref<256x32xbf16, #tpu.memory_space<vmem>>, vector<256x32xbf16>
    %c0_1 = arith.constant 0 : index
    %c0_2 = arith.constant 0 : index
    %1 = vector.load %arg2[%c0_1, %c0_2] : memref<256x49xbf16, #tpu.memory_space<vmem>>, vector<256x49xbf16>
    %c0_3 = arith.constant 0 : index
    %c0_4 = arith.constant 0 : index
    %2 = vector.load %arg3[%c0_3, %c0_4] : memref<32x256xbf16, #tpu.memory_space<vmem>>, vector<32x256xbf16>
    %cst = arith.constant dense<0.000000e+00> : vector<256x256xf32>
    %3 = tpu.matmul %0, %2, %cst {dimension_numbers = #tpu.dot_dimension_numbers<[1], [0], [0], [1], [0, 0, 1, 1], [], []>} : vector<256x32xbf16>, vector<32x256xbf16>, vector<256x256xf32> -> vector<256x256xf32>
    %c0_5 = arith.constant 0 : index
    %c0_6 = arith.constant 0 : index
    %4 = vector.load %arg4[%c0_5, %c0_6] : memref<1x256xf32, #tpu.memory_space<vmem>>, vector<1x256xf32>
    %5 = vector.broadcast %4 : vector<1x256xf32> to vector<256x256xf32>
    %6 = arith.addf %3, %5 : vector<256x256xf32>
    %cst_7 = arith.constant 2.000000e-01 : f32
    %7 = vector.broadcast %cst_7 : f32 to vector<256x256xf32>
    %8 = arith.mulf %7, %6 : vector<256x256xf32>
    %9 = arith.maximumf %6, %8 : vector<256x256xf32>
    %c0_8 = arith.constant 0 : index
    %c0_9 = arith.constant 0 : index
    %10 = vector.load %arg6[%c0_8, %c0_9] : memref<49x2048xbf16, #tpu.memory_space<vmem>>, vector<49x256xbf16>
    %cst_10 = arith.constant dense<0.000000e+00> : vector<256x256xf32>
    %11 = tpu.matmul %1, %10, %cst_10 {dimension_numbers = #tpu.dot_dimension_numbers<[1], [0], [0], [1], [0, 0, 1, 1], [], []>} : vector<256x49xbf16>, vector<49x256xbf16>, vector<256x256xf32> -> vector<256x256xf32>
    %12 = arith.truncf %9 : vector<256x256xf32> to vector<256x256xbf16>
    %c0_11 = arith.constant 0 : index
    %c0_12 = arith.constant 0 : index
    %c0_13 = arith.constant 0 : index
    %13 = vector.load %arg5[%c0_11, %c0_12, %c0_13] : memref<8x256x256xbf16, #tpu.memory_space<vmem>>, vector<1x256x256xbf16>
    %14 = vector.shape_cast %13 : vector<1x256x256xbf16> to vector<256x256xbf16>
    %cst_14 = arith.constant dense<0.000000e+00> : vector<256x256xf32>
    %15 = tpu.matmul %12, %14, %cst_14 {dimension_numbers = #tpu.dot_dimension_numbers<[1], [0], [0], [1], [0, 0, 1, 1], [], []>} : vector<256x256xbf16>, vector<256x256xbf16>, vector<256x256xf32> -> vector<256x256xf32>
    %16 = arith.addf %15, %11 : vector<256x256xf32>
    %cst_15 = arith.constant 2.000000e-01 : f32
    %17 = vector.broadcast %cst_15 : f32 to vector<256x256xf32>
    %18 = arith.mulf %17, %16 : vector<256x256xf32>
    %19 = arith.maximumf %16, %18 : vector<256x256xf32>
    %c0_16 = arith.constant 0 : index
    %c256 = arith.constant 256 : index
    %20 = vector.load %arg6[%c0_16, %c256] : memref<49x2048xbf16, #tpu.memory_space<vmem>>, vector<49x256xbf16>
    %cst_17 = arith.constant dense<0.000000e+00> : vector<256x256xf32>
    %21 = tpu.matmul %1, %20, %cst_17 {dimension_numbers = #tpu.dot_dimension_numbers<[1], [0], [0], [1], [0, 0, 1, 1], [], []>} : vector<256x49xbf16>, vector<49x256xbf16>, vector<256x256xf32> -> vector<256x256xf32>
    %22 = arith.truncf %19 : vector<256x256xf32> to vector<256x256xbf16>
    %c1 = arith.constant 1 : index
    %c0_18 = arith.constant 0 : index
    %c0_19 = arith.constant 0 : index
    %23 = vector.load %arg5[%c1, %c0_18, %c0_19] : memref<8x256x256xbf16, #tpu.memory_space<vmem>>, vector<1x256x256xbf16>
    %24 = vector.shape_cast %23 : vector<1x256x256xbf16> to vector<256x256xbf16>
    %cst_20 = arith.constant dense<0.000000e+00> : vector<256x256xf32>
    %25 = tpu.matmul %22, %24, %cst_20 {dimension_numbers = #tpu.dot_dimension_numbers<[1], [0], [0], [1], [0, 0, 1, 1], [], []>} : vector<256x256xbf16>, vector<256x256xbf16>, vector<256x256xf32> -> vector<256x256xf32>
    %26 = arith.addf %25, %21 : vector<256x256xf32>
    %27 = arith.addf %9, %26 : vector<256x256xf32>
    %cst_21 = arith.constant 2.000000e-01 : f32
    %28 = vector.broadcast %cst_21 : f32 to vector<256x256xf32>
    %29 = arith.mulf %28, %27 : vector<256x256xf32>
    %30 = arith.maximumf %27, %29 : vector<256x256xf32>
    %c0_22 = arith.constant 0 : index
    %c512 = arith.constant 512 : index
    %31 = vector.load %arg6[%c0_22, %c512] : memref<49x2048xbf16, #tpu.memory_space<vmem>>, vector<49x256xbf16>
    %cst_23 = arith.constant dense<0.000000e+00> : vector<256x256xf32>
    %32 = tpu.matmul %1, %31, %cst_23 {dimension_numbers = #tpu.dot_dimension_numbers<[1], [0], [0], [1], [0, 0, 1, 1], [], []>} : vector<256x49xbf16>, vector<49x256xbf16>, vector<256x256xf32> -> vector<256x256xf32>
    %33 = arith.truncf %30 : vector<256x256xf32> to vector<256x256xbf16>
    %c2 = arith.constant 2 : index
    %c0_24 = arith.constant 0 : index
    %c0_25 = arith.constant 0 : index
    %34 = vector.load %arg5[%c2, %c0_24, %c0_25] : memref<8x256x256xbf16, #tpu.memory_space<vmem>>, vector<1x256x256xbf16>
    %35 = vector.shape_cast %34 : vector<1x256x256xbf16> to vector<256x256xbf16>
    %cst_26 = arith.constant dense<0.000000e+00> : vector<256x256xf32>
    %36 = tpu.matmul %33, %35, %cst_26 {dimension_numbers = #tpu.dot_dimension_numbers<[1], [0], [0], [1], [0, 0, 1, 1], [], []>} : vector<256x256xbf16>, vector<256x256xbf16>, vector<256x256xf32> -> vector<256x256xf32>
    %37 = arith.addf %36, %32 : vector<256x256xf32>
    %cst_27 = arith.constant 2.000000e-01 : f32
    %38 = vector.broadcast %cst_27 : f32 to vector<256x256xf32>
    %39 = arith.mulf %38, %37 : vector<256x256xf32>
    %40 = arith.maximumf %37, %39 : vector<256x256xf32>
    %c0_28 = arith.constant 0 : index
    %c768 = arith.constant 768 : index
    %41 = vector.load %arg6[%c0_28, %c768] : memref<49x2048xbf16, #tpu.memory_space<vmem>>, vector<49x256xbf16>
    %cst_29 = arith.constant dense<0.000000e+00> : vector<256x256xf32>
    %42 = tpu.matmul %1, %41, %cst_29 {dimension_numbers = #tpu.dot_dimension_numbers<[1], [0], [0], [1], [0, 0, 1, 1], [], []>} : vector<256x49xbf16>, vector<49x256xbf16>, vector<256x256xf32> -> vector<256x256xf32>
    %43 = arith.truncf %40 : vector<256x256xf32> to vector<256x256xbf16>
    %c3 = arith.constant 3 : index
    %c0_30 = arith.constant 0 : index
    %c0_31 = arith.constant 0 : index
    %44 = vector.load %arg5[%c3, %c0_30, %c0_31] : memref<8x256x256xbf16, #tpu.memory_space<vmem>>, vector<1x256x256xbf16>
    %45 = vector.shape_cast %44 : vector<1x256x256xbf16> to vector<256x256xbf16>
    %cst_32 = arith.constant dense<0.000000e+00> : vector<256x256xf32>
    %46 = tpu.matmul %43, %45, %cst_32 {dimension_numbers = #tpu.dot_dimension_numbers<[1], [0], [0], [1], [0, 0, 1, 1], [], []>} : vector<256x256xbf16>, vector<256x256xbf16>, vector<256x256xf32> -> vector<256x256xf32>
    %47 = arith.addf %46, %42 : vector<256x256xf32>
    %48 = arith.addf %30, %47 : vector<256x256xf32>
    %cst_33 = arith.constant 2.000000e-01 : f32
    %49 = vector.broadcast %cst_33 : f32 to vector<256x256xf32>
    %50 = arith.mulf %49, %48 : vector<256x256xf32>
    %51 = arith.maximumf %48, %50 : vector<256x256xf32>
    %c0_34 = arith.constant 0 : index
    %c1024 = arith.constant 1024 : index
    %52 = vector.load %arg6[%c0_34, %c1024] : memref<49x2048xbf16, #tpu.memory_space<vmem>>, vector<49x256xbf16>
    %cst_35 = arith.constant dense<0.000000e+00> : vector<256x256xf32>
    %53 = tpu.matmul %1, %52, %cst_35 {dimension_numbers = #tpu.dot_dimension_numbers<[1], [0], [0], [1], [0, 0, 1, 1], [], []>} : vector<256x49xbf16>, vector<49x256xbf16>, vector<256x256xf32> -> vector<256x256xf32>
    %54 = arith.truncf %51 : vector<256x256xf32> to vector<256x256xbf16>
    %c4 = arith.constant 4 : index
    %c0_36 = arith.constant 0 : index
    %c0_37 = arith.constant 0 : index
    %55 = vector.load %arg5[%c4, %c0_36, %c0_37] : memref<8x256x256xbf16, #tpu.memory_space<vmem>>, vector<1x256x256xbf16>
    %56 = vector.shape_cast %55 : vector<1x256x256xbf16> to vector<256x256xbf16>
    %cst_38 = arith.constant dense<0.000000e+00> : vector<256x256xf32>
    %57 = tpu.matmul %54, %56, %cst_38 {dimension_numbers = #tpu.dot_dimension_numbers<[1], [0], [0], [1], [0, 0, 1, 1], [], []>} : vector<256x256xbf16>, vector<256x256xbf16>, vector<256x256xf32> -> vector<256x256xf32>
    %58 = arith.addf %57, %53 : vector<256x256xf32>
    %cst_39 = arith.constant 2.000000e-01 : f32
    %59 = vector.broadcast %cst_39 : f32 to vector<256x256xf32>
    %60 = arith.mulf %59, %58 : vector<256x256xf32>
    %61 = arith.maximumf %58, %60 : vector<256x256xf32>
    %c0_40 = arith.constant 0 : index
    %c1280 = arith.constant 1280 : index
    %62 = vector.load %arg6[%c0_40, %c1280] : memref<49x2048xbf16, #tpu.memory_space<vmem>>, vector<49x256xbf16>
    %cst_41 = arith.constant dense<0.000000e+00> : vector<256x256xf32>
    %63 = tpu.matmul %1, %62, %cst_41 {dimension_numbers = #tpu.dot_dimension_numbers<[1], [0], [0], [1], [0, 0, 1, 1], [], []>} : vector<256x49xbf16>, vector<49x256xbf16>, vector<256x256xf32> -> vector<256x256xf32>
    %64 = arith.truncf %61 : vector<256x256xf32> to vector<256x256xbf16>
    %c5 = arith.constant 5 : index
    %c0_42 = arith.constant 0 : index
    %c0_43 = arith.constant 0 : index
    %65 = vector.load %arg5[%c5, %c0_42, %c0_43] : memref<8x256x256xbf16, #tpu.memory_space<vmem>>, vector<1x256x256xbf16>
    %66 = vector.shape_cast %65 : vector<1x256x256xbf16> to vector<256x256xbf16>
    %cst_44 = arith.constant dense<0.000000e+00> : vector<256x256xf32>
    %67 = tpu.matmul %64, %66, %cst_44 {dimension_numbers = #tpu.dot_dimension_numbers<[1], [0], [0], [1], [0, 0, 1, 1], [], []>} : vector<256x256xbf16>, vector<256x256xbf16>, vector<256x256xf32> -> vector<256x256xf32>
    %68 = arith.addf %67, %63 : vector<256x256xf32>
    %69 = arith.addf %51, %68 : vector<256x256xf32>
    %cst_45 = arith.constant 2.000000e-01 : f32
    %70 = vector.broadcast %cst_45 : f32 to vector<256x256xf32>
    %71 = arith.mulf %70, %69 : vector<256x256xf32>
    %72 = arith.maximumf %69, %71 : vector<256x256xf32>
    %c0_46 = arith.constant 0 : index
    %c1536 = arith.constant 1536 : index
    %73 = vector.load %arg6[%c0_46, %c1536] : memref<49x2048xbf16, #tpu.memory_space<vmem>>, vector<49x256xbf16>
    %cst_47 = arith.constant dense<0.000000e+00> : vector<256x256xf32>
    %74 = tpu.matmul %1, %73, %cst_47 {dimension_numbers = #tpu.dot_dimension_numbers<[1], [0], [0], [1], [0, 0, 1, 1], [], []>} : vector<256x49xbf16>, vector<49x256xbf16>, vector<256x256xf32> -> vector<256x256xf32>
    %75 = arith.truncf %72 : vector<256x256xf32> to vector<256x256xbf16>
    %c6 = arith.constant 6 : index
    %c0_48 = arith.constant 0 : index
    %c0_49 = arith.constant 0 : index
    %76 = vector.load %arg5[%c6, %c0_48, %c0_49] : memref<8x256x256xbf16, #tpu.memory_space<vmem>>, vector<1x256x256xbf16>
    %77 = vector.shape_cast %76 : vector<1x256x256xbf16> to vector<256x256xbf16>
    %cst_50 = arith.constant dense<0.000000e+00> : vector<256x256xf32>
    %78 = tpu.matmul %75, %77, %cst_50 {dimension_numbers = #tpu.dot_dimension_numbers<[1], [0], [0], [1], [0, 0, 1, 1], [], []>} : vector<256x256xbf16>, vector<256x256xbf16>, vector<256x256xf32> -> vector<256x256xf32>
    %79 = arith.addf %78, %74 : vector<256x256xf32>
    %cst_51 = arith.constant 2.000000e-01 : f32
    %80 = vector.broadcast %cst_51 : f32 to vector<256x256xf32>
    %81 = arith.mulf %80, %79 : vector<256x256xf32>
    %82 = arith.maximumf %79, %81 : vector<256x256xf32>
    %c0_52 = arith.constant 0 : index
    %c1792 = arith.constant 1792 : index
    %83 = vector.load %arg6[%c0_52, %c1792] : memref<49x2048xbf16, #tpu.memory_space<vmem>>, vector<49x256xbf16>
    %cst_53 = arith.constant dense<0.000000e+00> : vector<256x256xf32>
    %84 = tpu.matmul %1, %83, %cst_53 {dimension_numbers = #tpu.dot_dimension_numbers<[1], [0], [0], [1], [0, 0, 1, 1], [], []>} : vector<256x49xbf16>, vector<49x256xbf16>, vector<256x256xf32> -> vector<256x256xf32>
    %85 = arith.truncf %82 : vector<256x256xf32> to vector<256x256xbf16>
    %c7 = arith.constant 7 : index
    %c0_54 = arith.constant 0 : index
    %c0_55 = arith.constant 0 : index
    %86 = vector.load %arg5[%c7, %c0_54, %c0_55] : memref<8x256x256xbf16, #tpu.memory_space<vmem>>, vector<1x256x256xbf16>
    %87 = vector.shape_cast %86 : vector<1x256x256xbf16> to vector<256x256xbf16>
    %cst_56 = arith.constant dense<0.000000e+00> : vector<256x256xf32>
    %88 = tpu.matmul %85, %87, %cst_56 {dimension_numbers = #tpu.dot_dimension_numbers<[1], [0], [0], [1], [0, 0, 1, 1], [], []>} : vector<256x256xbf16>, vector<256x256xbf16>, vector<256x256xf32> -> vector<256x256xf32>
    %89 = arith.addf %88, %84 : vector<256x256xf32>
    %90 = arith.addf %72, %89 : vector<256x256xf32>
    %cst_57 = arith.constant 2.000000e-01 : f32
    %91 = vector.broadcast %cst_57 : f32 to vector<256x256xf32>
    %92 = arith.mulf %91, %90 : vector<256x256xf32>
    %93 = arith.maximumf %90, %92 : vector<256x256xf32>
    %94 = arith.truncf %93 : vector<256x256xf32> to vector<256x256xbf16>
    %c0_58 = arith.constant 0 : index
    %c0_59 = arith.constant 0 : index
    %95 = vector.load %arg7[%c0_58, %c0_59] : memref<256x128xbf16, #tpu.memory_space<vmem>>, vector<256x128xbf16>
    %cst_60 = arith.constant dense<0.000000e+00> : vector<256x128xf32>
    %96 = tpu.matmul %94, %95, %cst_60 {dimension_numbers = #tpu.dot_dimension_numbers<[1], [0], [0], [1], [0, 0, 1, 1], [], []>} : vector<256x256xbf16>, vector<256x128xbf16>, vector<256x128xf32> -> vector<256x128xf32>
    %c0_61 = arith.constant 0 : index
    %c0_62 = arith.constant 0 : index
    %97 = vector.load %arg8[%c0_61, %c0_62] : memref<1x128xf32, #tpu.memory_space<vmem>>, vector<1x128xf32>
    %98 = vector.broadcast %97 : vector<1x128xf32> to vector<256x128xf32>
    %99 = arith.addf %96, %98 : vector<256x128xf32>
    %100 = arith.truncf %99 : vector<256x128xf32> to vector<256x128xbf16>
    %c0_63 = arith.constant 0 : index
    %c0_64 = arith.constant 0 : index
    %101 = vector.load %arg9[%c0_63, %c0_64] : memref<256x128xbf16, #tpu.memory_space<vmem>>, vector<256x128xbf16>
    tpu.vector_store %arg9[%c0_63, %c0_64], %100 {strides = array<i32>} : memref<256x128xbf16, #tpu.memory_space<vmem>>, vector<256x128xbf16>,
    return
  }
  func.func @transform_0(%arg0: i32) -> (i32, i32) {
    %c0_i32 = arith.constant 0 : i32
    %c0_i32_0 = arith.constant 0 : i32
    return %arg0, %c0_i32 : i32, i32
  }
  func.func @transform_1(%arg0: i32) -> (i32, i32) {
    %c0_i32 = arith.constant 0 : i32
    %c0_i32_0 = arith.constant 0 : i32
    return %arg0, %c0_i32 : i32, i32
  }
  func.func @transform_2(%arg0: i32) -> (i32, i32) {
    %c0_i32 = arith.constant 0 : i32
    %c0_i32_0 = arith.constant 0 : i32
    %c0_i32_1 = arith.constant 0 : i32
    return %c0_i32, %c0_i32_0 : i32, i32
  }
  func.func @transform_3(%arg0: i32) -> (i32, i32) {
    %c0_i32 = arith.constant 0 : i32
    %c0_i32_0 = arith.constant 0 : i32
    %c0_i32_1 = arith.constant 0 : i32
    return %c0_i32, %c0_i32_0 : i32, i32
  }
  func.func @transform_4(%arg0: i32) -> (i32, i32, i32) {
    %c0_i32 = arith.constant 0 : i32
    %c0_i32_0 = arith.constant 0 : i32
    %c0_i32_1 = arith.constant 0 : i32
    %c0_i32_2 = arith.constant 0 : i32
    return %c0_i32, %c0_i32_0, %c0_i32_1 : i32, i32, i32
  }
  func.func @transform_5(%arg0: i32) -> (i32, i32) {
    %c0_i32 = arith.constant 0 : i32
    %c0_i32_0 = arith.constant 0 : i32
    %c0_i32_1 = arith.constant 0 : i32
    return %c0_i32, %c0_i32_0 : i32, i32
  }
  func.func @transform_6(%arg0: i32) -> (i32, i32) {
    %c0_i32 = arith.constant 0 : i32
    %c0_i32_0 = arith.constant 0 : i32
    %c0_i32_1 = arith.constant 0 : i32
    return %c0_i32, %c0_i32_0 : i32, i32
  }
  func.func @transform_7(%arg0: i32) -> (i32, i32) {
    %c0_i32 = arith.constant 0 : i32
    %c0_i32_0 = arith.constant 0 : i32
    %c0_i32_1 = arith.constant 0 : i32
    return %c0_i32, %c0_i32_0 : i32, i32
  }
  func.func @transform_8(%arg0: i32) -> (i32, i32) {
    %c0_i32 = arith.constant 0 : i32
    %c0_i32_0 = arith.constant 0 : i32
    return %arg0, %c0_i32 : i32, i32
  }
}

</mosaic_0001>

<llo_original>
// kernel: nmlp_forward.1
$region0: #{nmlp_forward.1}
  #allocation0 [shape = 'u32[]', space=smem, size = 0x4, offset = 0x4, fixed_abs, tag = 'smem constant byte address 0x4 - core index']
  #allocation1 [shape = 'u32[72,128]{1,0:T(1,128)}', space=vmem, size = 0x9000, scoped, tag = 'internal scratch']
  %s0 = inlined_call_operand.vmem [shape: bf16[256,32], index: 0, kind: input, shape index: {}]
  %s1 = inlined_call_operand.vmem [shape: bf16[256,49], index: 1, kind: input, shape index: {}]
  %s2 = inlined_call_operand.vmem [shape: bf16[32,256], index: 2, kind: input, shape index: {}]
  %s3 = inlined_call_operand.vmem [shape: f32[1,256], index: 3, kind: input, shape index: {}]
  %s4 = inlined_call_operand.vmem [shape: bf16[8,256,256], index: 4, kind: input, shape index: {}]
  %s5 = inlined_call_operand.vmem [shape: bf16[49,2048], index: 5, kind: input, shape index: {}]
  %s6 = inlined_call_operand.vmem [shape: bf16[256,128], index: 6, kind: input, shape index: {}]
  %s7 = inlined_call_operand.vmem [shape: f32[1,128], index: 7, kind: input, shape index: {}]
  %s8 = inlined_call_operand.vmem [shape: bf16[256,128], index: 8, kind: output, shape index: {}]
  %s9 = sld [smem:[#allocation0]]
  $region42: #{nmlp_forward.1} parent=0
    _
  %s11 = ssub.s32 1, %s9
  %s12 = scalar_select 0, %s11, %s9
  // Predicated region
  $region2: #{nmlp_forward.1} parent=0 // pred_check
    _
  $region3: #{nmlp_forward.1} parent=0 // pred_check_branch
    %14 = sbr.rel (0) target = $region5
  $region4: #{nmlp_forward.1} parent=0 // pred_region
    _
  $region5: #{nmlp_forward.1} parent=0 // pred_fallthru
    _
  // Predicated region
  $region6: #{nmlp_forward.1} parent=0 // pred_check
    _
  $region7: #{nmlp_forward.1} parent=0 // pred_check_branch
    %16 = sbr.rel (0) target = $region9
  $region8: #{nmlp_forward.1} parent=0 // pred_region
    _
  $region9: #{nmlp_forward.1} parent=0 // pred_fallthru
    _
  // Predicated region
  $region10: #{nmlp_forward.1} parent=0 // pred_check
    _
  $region11: #{nmlp_forward.1} parent=0 // pred_check_branch
    %18 = sbr.rel (0) target = $region13
  $region12: #{nmlp_forward.1} parent=0 // pred_region
    _
  $region13: #{nmlp_forward.1} parent=0 // pred_fallthru
    _
  // Predicated region
  $region14: #{nmlp_forward.1} parent=0 // pred_check
    _
  $region15: #{nmlp_forward.1} parent=0 // pred_check_branch
    %20 = sbr.rel (0) target = $region17
  $region16: #{nmlp_forward.1} parent=0 // pred_region
    _
  $region17: #{nmlp_forward.1} parent=0 // pred_fallthru
    _
  // Predicated region
  $region18: #{nmlp_forward.1} parent=0 // pred_check
    _
  $region19: #{nmlp_forward.1} parent=0 // pred_check_branch
    %22 = sbr.rel (0) target = $region21
  $region20: #{nmlp_forward.1} parent=0 // pred_region
    _
  $region21: #{nmlp_forward.1} parent=0 // pred_fallthru
    _
  // Predicated region
  $region22: #{nmlp_forward.1} parent=0 // pred_check
    _
  $region23: #{nmlp_forward.1} parent=0 // pred_check_branch
    %24 = sbr.rel (0) target = $region25
  $region24: #{nmlp_forward.1} parent=0 // pred_region
    _
  $region25: #{nmlp_forward.1} parent=0 // pred_fallthru
    _
  // Predicated region
  $region26: #{nmlp_forward.1} parent=0 // pred_check
    _
  $region27: #{nmlp_forward.1} parent=0 // pred_check_branch
    %26 = sbr.rel (0) target = $region29
  $region28: #{nmlp_forward.1} parent=0 // pred_region
    _
  $region29: #{nmlp_forward.1} parent=0 // pred_fallthru
    _
  // Predicated region
  $region30: #{nmlp_forward.1} parent=0 // pred_check
    _
  $region31: #{nmlp_forward.1} parent=0 // pred_check_branch
    %28 = sbr.rel (0) target = $region33
  $region32: #{nmlp_forward.1} parent=0 // pred_region
    _
  $region33: #{nmlp_forward.1} parent=0 // pred_fallthru
    _
  %v30 = vld [vmem:[%s0] sm:$0xf]
  %v31 = vld [vmem:[%s0 + $0x4] sm:$0xf]
  %v32 = vld [vmem:[%s0 + $0x8] sm:$0xf]
  %v33 = vld [vmem:[%s0 + $0xc] sm:$0xf]
  %v34 = vld [vmem:[%s0 + $0x10] sm:$0xf]
  %v35 = vld [vmem:[%s0 + $0x14] sm:$0xf]
  %v36 = vld [vmem:[%s0 + $0x18] sm:$0xf]
  %v37 = vld [vmem:[%s0 + $0x1c] sm:$0xf]
  %v38 = vld [vmem:[%s0 + $0x20] sm:$0xf]
  %v39 = vld [vmem:[%s0 + $0x24] sm:$0xf]
  %v40 = vld [vmem:[%s0 + $0x28] sm:$0xf]
  %v41 = vld [vmem:[%s0 + $0x2c] sm:$0xf]
  %v42 = vld [vmem:[%s0 + $0x30] sm:$0xf]
  %v43 = vld [vmem:[%s0 + $0x34] sm:$0xf]
  %v44 = vld [vmem:[%s0 + $0x38] sm:$0xf]
  %v45 = vld [vmem:[%s0 + $0x3c] sm:$0xf]
  %v46 = vld [vmem:[%s0 + $0x40] sm:$0xf]
  %v47 = vld [vmem:[%s0 + $0x44] sm:$0xf]
  %v48 = vld [vmem:[%s0 + $0x48] sm:$0xf]
  %v49 = vld [vmem:[%s0 + $0x4c] sm:$0xf]
  %v50 = vld [vmem:[%s0 + $0x50] sm:$0xf]
  %v51 = vld [vmem:[%s0 + $0x54] sm:$0xf]
  %v52 = vld [vmem:[%s0 + $0x58] sm:$0xf]
  %v53 = vld [vmem:[%s0 + $0x5c] sm:$0xf]
  %v54 = vld [vmem:[%s0 + $0x60] sm:$0xf]
  %v55 = vld [vmem:[%s0 + $0x64] sm:$0xf]
  %v56 = vld [vmem:[%s0 + $0x68] sm:$0xf]
  %v57 = vld [vmem:[%s0 + $0x6c] sm:$0xf]
  %v58 = vld [vmem:[%s0 + $0x70] sm:$0xf]
  %v59 = vld [vmem:[%s0 + $0x74] sm:$0xf]
  %v60 = vld [vmem:[%s0 + $0x78] sm:$0xf]
  %v61 = vld [vmem:[%s0 + $0x7c] sm:$0xf]
  %v62 = vld [vmem:[%s1] sm:$0xf]
  %v63 = vld [vmem:[%s1 + $0x4] sm:$0xf]
  %v64 = vld [vmem:[%s1 + $0x8] sm:$0xf]
  %v65 = vld [vmem:[%s1 + $0xc] sm:$0xf]
  %v66 = vld [vmem:[%s1 + $0x10] sm:$0xf]
  %v67 = vld [vmem:[%s1 + $0x14] sm:$0xf]
  %v68 = vld [vmem:[%s1 + $0x18] sm:$0xf]
  %v69 = vld [vmem:[%s1 + $0x1c] sm:$0xf]
  %v70 = vld [vmem:[%s1 + $0x20] sm:$0xf]
  %v71 = vld [vmem:[%s1 + $0x24] sm:$0xf]
  %v72 = vld [vmem:[%s1 + $0x28] sm:$0xf]
  %v73 = vld [vmem:[%s1 + $0x2c] sm:$0xf]
  %v74 = vld [vmem:[%s1 + $0x30] sm:$0xf]
  %v75 = vld [vmem:[%s1 + $0x34] sm:$0xf]
  %v76 = vld [vmem:[%s1 + $0x38] sm:$0xf]
  %v77 = vld [vmem:[%s1 + $0x3c] sm:$0xf]
  %v78 = vld [vmem:[%s1 + $0x40] sm:$0xf]
  %v79 = vld [vmem:[%s1 + $0x44] sm:$0xf]
  %v80 = vld [vmem:[%s1 + $0x48] sm:$0xf]
  %v81 = vld [vmem:[%s1 + $0x4c] sm:$0xf]
  %v82 = vld [vmem:[%s1 + $0x50] sm:$0xf]
  %v83 = vld [vmem:[%s1 + $0x54] sm:$0xf]
  %v84 = vld [vmem:[%s1 + $0x58] sm:$0xf]
  %v85 = vld [vmem:[%s1 + $0x5c] sm:$0xf]
  %v86 = vld [vmem:[%s1 + $0x60] sm:$0xf]
  %v87 = vld [vmem:[%s1 + $0x64] sm:$0xf]
  %v88 = vld [vmem:[%s1 + $0x68] sm:$0xf]
  %v89 = vld [vmem:[%s1 + $0x6c] sm:$0xf]
  %v90 = vld [vmem:[%s1 + $0x70] sm:$0xf]
  %v91 = vld [vmem:[%s1 + $0x74] sm:$0xf]
  %v92 = vld [vmem:[%s1 + $0x78] sm:$0xf]
  %v93 = vld [vmem:[%s1 + $0x7c] sm:$0xf]
  %v94 = vld [vmem:[%s2] sm:$0xff]
  %v95 = vld [vmem:[%s2 + $0x8] sm:$0xff]
  %v96 = vld [vmem:[%s2 + $0x10] sm:$0xff]
  %v97 = vld [vmem:[%s2 + $0x18] sm:$0xff]
  %v98 = vld [vmem:[%s3] sm:$0x3]
  %v100 = vperm.slane %v98, 0
  %v101 = vperm.slane %v98, 1
  %v136 = vunpack.c.l.b16 %v30
  %v137 = vunpack.c.l.b16 %v31
  %v138 = vunpack.c.l.b16 %v32
  %v139 = vunpack.c.l.b16 %v33
  %v140 = vunpack.c.l.b16 %v34
  %v141 = vunpack.c.l.b16 %v35
  %v142 = vunpack.c.l.b16 %v36
  %v143 = vunpack.c.l.b16 %v37
  %v144 = vunpack.c.l.b16 %v38
  %v145 = vunpack.c.l.b16 %v39
  %v146 = vunpack.c.l.b16 %v40
  %v147 = vunpack.c.l.b16 %v41
  %v148 = vunpack.c.l.b16 %v42
  %v149 = vunpack.c.l.b16 %v43
  %v150 = vunpack.c.l.b16 %v44
  %v151 = vunpack.c.l.b16 %v45
  %v152 = vunpack.c.l.b16 %v46
  %v153 = vunpack.c.l.b16 %v47
  %v154 = vunpack.c.l.b16 %v48
  %v155 = vunpack.c.l.b16 %v49
  %v156 = vunpack.c.l.b16 %v50
  %v157 = vunpack.c.l.b16 %v51
  %v158 = vunpack.c.l.b16 %v52
  %v159 = vunpack.c.l.b16 %v53
  %v160 = vunpack.c.l.b16 %v54
  %v161 = vunpack.c.l.b16 %v55
  %v162 = vunpack.c.l.b16 %v56
  %v163 = vunpack.c.l.b16 %v57
  %v164 = vunpack.c.l.b16 %v58
  %v165 = vunpack.c.l.b16 %v59
  %v166 = vunpack.c.l.b16 %v60
  %v167 = vunpack.c.l.b16 %v61
  %v168 = vpack.c.b16 %v137, %v136
  %v169 = vpack.c.b16 %v139, %v138
  %v170 = vpack.c.b16 %v141, %v140
  %v171 = vpack.c.b16 %v143, %v142
  %v172 = vpack.c.b16 %v145, %v144
  %v173 = vpack.c.b16 %v147, %v146
  %v174 = vpack.c.b16 %v149, %v148
  %v175 = vpack.c.b16 %v151, %v150
  %v176 = vpack.c.b16 %v153, %v152
  %v177 = vpack.c.b16 %v155, %v154
  %v178 = vpack.c.b16 %v157, %v156
  %v179 = vpack.c.b16 %v159, %v158
  %v180 = vpack.c.b16 %v161, %v160
  %v181 = vpack.c.b16 %v163, %v162
  %v182 = vpack.c.b16 %v165, %v164
  %v183 = vpack.c.b16 %v167, %v166
  %v188 = vunpack.c.l.b16 %v94
  %v189 = vunpack.c.h.b16 %v94
  %v190 = vunpack.c.l.b16 %v95
  %v191 = vunpack.c.h.b16 %v95
  %v192 = vunpack.c.l.b16 %v96
  %v193 = vunpack.c.h.b16 %v96
  %v194 = vunpack.c.l.b16 %v97
  %v195 = vunpack.c.h.b16 %v97
  %v196 = vpack.c.b16 %v190, %v188
  %v197 = vpack.c.b16 %v191, %v189
  %v198 = vpack.c.b16 %v194, %v192
  %v199 = vpack.c.b16 %v195, %v193
  %vm204 = vcmask 261120
  %v206 = vsel %vm204, %v168, 0
  %v209 = vsel %vm204, %v169, 0
  %v212 = vsel %vm204, %v170, 0
  %v215 = vsel %vm204, %v171, 0
  %v218 = vsel %vm204, %v172, 0
  %v221 = vsel %vm204, %v173, 0
  %v224 = vsel %vm204, %v174, 0
  %v227 = vsel %vm204, %v175, 0
  %v230 = vsel %vm204, %v176, 0
  %v233 = vsel %vm204, %v177, 0
  %v236 = vsel %vm204, %v178, 0
  %v239 = vsel %vm204, %v179, 0
  %v242 = vsel %vm204, %v180, 0
  %v245 = vsel %vm204, %v181, 0
  %v248 = vsel %vm204, %v182, 0
  %v251 = vsel %vm204, %v183, 0
  %253 = vmatpush.bf16.msra.mxu0 0
  %254 = vmatpush.bf16.msra.mxu0 0
  %255 = vmatpush.bf16.msra.mxu0 0
  %256 = vmatpush.bf16.msra.mxu0 0
  %257 = vmatpush.bf16.msra.mxu0 0
  %258 = vmatpush.bf16.msra.mxu0 0
  %259 = vmatpush.bf16.msra.mxu0 %v198
  %260 = vmatpush.bf16.msra.mxu0 %v196
  %261 = vmatmul.bf16.gmra.mxu0 %v206
  %v262 = vpop.f32.mrf.mxu0
  %v263 = vadd.f32 %v100, %v262
  %v264 = vpop.f32.mrf.mxu0
  %v265 = vadd.f32 %v100, %v264
  %266 = vmatmul.bf16.gmra.mxu0 %v209
  %v267 = vpop.f32.mrf.mxu0
  %v268 = vadd.f32 %v100, %v267
  %v269 = vpop.f32.mrf.mxu0
  %v270 = vadd.f32 %v100, %v269
  %271 = vmatmul.bf16.gmra.mxu0 %v212
  %v272 = vpop.f32.mrf.mxu0
  %v273 = vadd.f32 %v100, %v272
  %v274 = vpop.f32.mrf.mxu0
  %v275 = vadd.f32 %v100, %v274
  %276 = vmatmul.bf16.gmra.mxu0 %v215
  %v277 = vpop.f32.mrf.mxu0
  %v278 = vadd.f32 %v100, %v277
  %v279 = vpop.f32.mrf.mxu0
  %v280 = vadd.f32 %v100, %v279
  %281 = vmatmul.bf16.gmra.mxu0 %v218
  %v282 = vpop.f32.mrf.mxu0
  %v283 = vadd.f32 %v100, %v282
  %v284 = vpop.f32.mrf.mxu0
  %v285 = vadd.f32 %v100, %v284
  %286 = vmatmul.bf16.gmra.mxu0 %v221
  %v287 = vpop.f32.mrf.mxu0
  %v288 = vadd.f32 %v100, %v287
  %v289 = vpop.f32.mrf.mxu0
  %v290 = vadd.f32 %v100, %v289
  %291 = vmatmul.bf16.gmra.mxu0 %v224
  %v292 = vpop.f32.mrf.mxu0
  %v293 = vadd.f32 %v100, %v292
  %v294 = vpop.f32.mrf.mxu0
  %v295 = vadd.f32 %v100, %v294
  %296 = vmatmul.bf16.gmra.mxu0 %v227
  %v297 = vpop.f32.mrf.mxu0
  %v298 = vadd.f32 %v100, %v297
  %v299 = vpop.f32.mrf.mxu0
  %v300 = vadd.f32 %v100, %v299
  %301 = vmatmul.bf16.gmra.mxu0 %v230
  %v302 = vpop.f32.mrf.mxu0
  %v303 = vadd.f32 %v100, %v302
  %v304 = vpop.f32.mrf.mxu0
  %v305 = vadd.f32 %v100, %v304
  %306 = vmatmul.bf16.gmra.mxu0 %v233
  %v307 = vpop.f32.mrf.mxu0
  %v308 = vadd.f32 %v100, %v307
  %v309 = vpop.f32.mrf.mxu0
  %v310 = vadd.f32 %v100, %v309
  %311 = vmatmul.bf16.gmra.mxu0 %v236
  %v312 = vpop.f32.mrf.mxu0
  %v313 = vadd.f32 %v100, %v312
  %v314 = vpop.f32.mrf.mxu0
  %v315 = vadd.f32 %v100, %v314
  %316 = vmatmul.bf16.gmra.mxu0 %v239
  %v317 = vpop.f32.mrf.mxu0
  %v318 = vadd.f32 %v100, %v317
  %v319 = vpop.f32.mrf.mxu0
  %v320 = vadd.f32 %v100, %v319
  %321 = vmatmul.bf16.gmra.mxu0 %v242
  %v322 = vpop.f32.mrf.mxu0
  %v323 = vadd.f32 %v100, %v322
  %v324 = vpop.f32.mrf.mxu0
  %v325 = vadd.f32 %v100, %v324
  %326 = vmatmul.bf16.gmra.mxu0 %v245
  %v327 = vpop.f32.mrf.mxu0
  %v328 = vadd.f32 %v100, %v327
  %v329 = vpop.f32.mrf.mxu0
  %v330 = vadd.f32 %v100, %v329
  %331 = vmatmul.bf16.gmra.mxu0 %v248
  %v332 = vpop.f32.mrf.mxu0
  %v333 = vadd.f32 %v100, %v332
  %v334 = vpop.f32.mrf.mxu0
  %v335 = vadd.f32 %v100, %v334
  %336 = vmatmul.bf16.gmra.mxu0 %v251
  %v337 = vpop.f32.mrf.mxu0
  %v338 = vadd.f32 %v100, %v337
  %v339 = vpop.f32.mrf.mxu0
  %v340 = vadd.f32 %v100, %v339
  %341 = vdwg.mxu0
  %342 = vmatpush.bf16.msra.mxu0 0
  %343 = vmatpush.bf16.msra.mxu0 0
  %344 = vmatpush.bf16.msra.mxu0 0
  %345 = vmatpush.bf16.msra.mxu0 0
  %346 = vmatpush.bf16.msra.mxu0 0
  %347 = vmatpush.bf16.msra.mxu0 0
  %348 = vmatpush.bf16.msra.mxu0 %v199
  %349 = vmatpush.bf16.msra.mxu0 %v197
  %350 = vmatmul.bf16.gmra.mxu0 %v206
  %v351 = vpop.f32.mrf.mxu0
  %v352 = vadd.f32 %v101, %v351
  %v353 = vpop.f32.mrf.mxu0
  %v354 = vadd.f32 %v101, %v353
  %355 = vmatmul.bf16.gmra.mxu0 %v209
  %v356 = vpop.f32.mrf.mxu0
  %v357 = vadd.f32 %v101, %v356
  %v358 = vpop.f32.mrf.mxu0
  %v359 = vadd.f32 %v101, %v358
  %360 = vmatmul.bf16.gmra.mxu0 %v212
  %v361 = vpop.f32.mrf.mxu0
  %v362 = vadd.f32 %v101, %v361
  %v363 = vpop.f32.mrf.mxu0
  %v364 = vadd.f32 %v101, %v363
  %365 = vmatmul.bf16.gmra.mxu0 %v215
  %v366 = vpop.f32.mrf.mxu0
  %v367 = vadd.f32 %v101, %v366
  %v368 = vpop.f32.mrf.mxu0
  %v369 = vadd.f32 %v101, %v368
  %370 = vmatmul.bf16.gmra.mxu0 %v218
  %v371 = vpop.f32.mrf.mxu0
  %v372 = vadd.f32 %v101, %v371
  %v373 = vpop.f32.mrf.mxu0
  %v374 = vadd.f32 %v101, %v373
  %375 = vmatmul.bf16.gmra.mxu0 %v221
  %v376 = vpop.f32.mrf.mxu0
  %v377 = vadd.f32 %v101, %v376
  %v378 = vpop.f32.mrf.mxu0
  %v379 = vadd.f32 %v101, %v378
  %380 = vmatmul.bf16.gmra.mxu0 %v224
  %v381 = vpop.f32.mrf.mxu0
  %v382 = vadd.f32 %v101, %v381
  %v383 = vpop.f32.mrf.mxu0
  %v384 = vadd.f32 %v101, %v383
  %385 = vmatmul.bf16.gmra.mxu0 %v227
  %v386 = vpop.f32.mrf.mxu0
  %v387 = vadd.f32 %v101, %v386
  %v388 = vpop.f32.mrf.mxu0
  %v389 = vadd.f32 %v101, %v388
  %390 = vmatmul.bf16.gmra.mxu0 %v230
  %v391 = vpop.f32.mrf.mxu0
  %v392 = vadd.f32 %v101, %v391
  %v393 = vpop.f32.mrf.mxu0
  %v394 = vadd.f32 %v101, %v393
  %395 = vmatmul.bf16.gmra.mxu0 %v233
  %v396 = vpop.f32.mrf.mxu0
  %v397 = vadd.f32 %v101, %v396
  %v398 = vpop.f32.mrf.mxu0
  %v399 = vadd.f32 %v101, %v398
  %400 = vmatmul.bf16.gmra.mxu0 %v236
  %v401 = vpop.f32.mrf.mxu0
  %v402 = vadd.f32 %v101, %v401
  %v403 = vpop.f32.mrf.mxu0
  %v404 = vadd.f32 %v101, %v403
  %405 = vmatmul.bf16.gmra.mxu0 %v239
  %v406 = vpop.f32.mrf.mxu0
  %v407 = vadd.f32 %v101, %v406
  %v408 = vpop.f32.mrf.mxu0
  %v409 = vadd.f32 %v101, %v408
  %410 = vmatmul.bf16.gmra.mxu0 %v242
  %v411 = vpop.f32.mrf.mxu0
  %v412 = vadd.f32 %v101, %v411
  %v413 = vpop.f32.mrf.mxu0
  %v414 = vadd.f32 %v101, %v413
  %415 = vmatmul.bf16.gmra.mxu0 %v245
  %v416 = vpop.f32.mrf.mxu0
  %v417 = vadd.f32 %v101, %v416
  %v418 = vpop.f32.mrf.mxu0
  %v419 = vadd.f32 %v101, %v418
  %420 = vmatmul.bf16.gmra.mxu0 %v248
  %v421 = vpop.f32.mrf.mxu0
  %v422 = vadd.f32 %v101, %v421
  %v423 = vpop.f32.mrf.mxu0
  %v424 = vadd.f32 %v101, %v423
  %425 = vmatmul.bf16.gmra.mxu0 %v251
  %v426 = vpop.f32.mrf.mxu0
  %v427 = vadd.f32 %v101, %v426
  %v428 = vpop.f32.mrf.mxu0
  %v429 = vadd.f32 %v101, %v428
  %430 = vdwg.mxu0
  %v431 = vmul.f32 %v263, 0.2
  %v432 = vmul.f32 %v352, 0.2
  %v433 = vmul.f32 %v265, 0.2
  %v434 = vmul.f32 %v354, 0.2
  %v435 = vmul.f32 %v268, 0.2
  %v436 = vmul.f32 %v357, 0.2
  %v437 = vmul.f32 %v270, 0.2
  %v438 = vmul.f32 %v359, 0.2
  %v439 = vmul.f32 %v273, 0.2
  %v440 = vmul.f32 %v362, 0.2
  %v441 = vmul.f32 %v275, 0.2
  %v442 = vmul.f32 %v364, 0.2
  %v443 = vmul.f32 %v278, 0.2
  %v444 = vmul.f32 %v367, 0.2
  %v445 = vmul.f32 %v280, 0.2
  %v446 = vmul.f32 %v369, 0.2
  %v447 = vmul.f32 %v283, 0.2
  %v448 = vmul.f32 %v372, 0.2
  %v449 = vmul.f32 %v285, 0.2
  %v450 = vmul.f32 %v374, 0.2
  %v451 = vmul.f32 %v288, 0.2
  %v452 = vmul.f32 %v377, 0.2
  %v453 = vmul.f32 %v290, 0.2
  %v454 = vmul.f32 %v379, 0.2
  %v455 = vmul.f32 %v293, 0.2
  %v456 = vmul.f32 %v382, 0.2
  %v457 = vmul.f32 %v295, 0.2
  %v458 = vmul.f32 %v384, 0.2
  %v459 = vmul.f32 %v298, 0.2
  %v460 = vmul.f32 %v387, 0.2
  %v461 = vmul.f32 %v300, 0.2
  %v462 = vmul.f32 %v389, 0.2
  %v463 = vmul.f32 %v303, 0.2
  %v464 = vmul.f32 %v392, 0.2
  %v465 = vmul.f32 %v305, 0.2
  %v466 = vmul.f32 %v394, 0.2
  %v467 = vmul.f32 %v308, 0.2
  %v468 = vmul.f32 %v397, 0.2
  %v469 = vmul.f32 %v310, 0.2
  %v470 = vmul.f32 %v399, 0.2
  %v471 = vmul.f32 %v313, 0.2
  %v472 = vmul.f32 %v402, 0.2
  %v473 = vmul.f32 %v315, 0.2
  %v474 = vmul.f32 %v404, 0.2
  %v475 = vmul.f32 %v318, 0.2
  %v476 = vmul.f32 %v407, 0.2
  %v477 = vmul.f32 %v320, 0.2
  %v478 = vmul.f32 %v409, 0.2
  %v479 = vmul.f32 %v323, 0.2
  %v480 = vmul.f32 %v412, 0.2
  %v481 = vmul.f32 %v325, 0.2
  %v482 = vmul.f32 %v414, 0.2
  %v483 = vmul.f32 %v328, 0.2
  %v484 = vmul.f32 %v417, 0.2
  %v485 = vmul.f32 %v330, 0.2
  %v486 = vmul.f32 %v419, 0.2
  %v487 = vmul.f32 %v333, 0.2
  %v488 = vmul.f32 %v422, 0.2
  %v489 = vmul.f32 %v335, 0.2
  %v490 = vmul.f32 %v424, 0.2
  %v491 = vmul.f32 %v338, 0.2
  %v492 = vmul.f32 %v427, 0.2
  %v493 = vmul.f32 %v340, 0.2
  %v494 = vmul.f32 %v429, 0.2
  %v495 = vmax.f32 %v263, %v431
  %v496 = vmax.f32 %v352, %v432
  %v497 = vmax.f32 %v265, %v433
  %v498 = vmax.f32 %v354, %v434
  %v499 = vmax.f32 %v268, %v435
  %v500 = vmax.f32 %v357, %v436
  %v501 = vmax.f32 %v270, %v437
  %v502 = vmax.f32 %v359, %v438
  %v503 = vmax.f32 %v273, %v439
  %v504 = vmax.f32 %v362, %v440
  %v505 = vmax.f32 %v275, %v441
  %v506 = vmax.f32 %v364, %v442
  %v507 = vmax.f32 %v278, %v443
  %v508 = vmax.f32 %v367, %v444
  %v509 = vmax.f32 %v280, %v445
  %v510 = vmax.f32 %v369, %v446
  %v511 = vmax.f32 %v283, %v447
  %v512 = vmax.f32 %v372, %v448
  %v513 = vmax.f32 %v285, %v449
  %v514 = vmax.f32 %v374, %v450
  %v515 = vmax.f32 %v288, %v451
  %v516 = vmax.f32 %v377, %v452
  %v517 = vmax.f32 %v290, %v453
  %v518 = vmax.f32 %v379, %v454
  %v519 = vmax.f32 %v293, %v455
  %v520 = vmax.f32 %v382, %v456
  %v521 = vmax.f32 %v295, %v457
  %v522 = vmax.f32 %v384, %v458
  %v523 = vmax.f32 %v298, %v459
  %v524 = vmax.f32 %v387, %v460
  %v525 = vmax.f32 %v300, %v461
  %v526 = vmax.f32 %v389, %v462
  %v527 = vmax.f32 %v303, %v463
  %v528 = vmax.f32 %v392, %v464
  %v529 = vmax.f32 %v305, %v465
  %v530 = vmax.f32 %v394, %v466
  %v531 = vmax.f32 %v308, %v467
  %v532 = vmax.f32 %v397, %v468
  %v533 = vmax.f32 %v310, %v469
  %v534 = vmax.f32 %v399, %v470
  %v535 = vmax.f32 %v313, %v471
  %v536 = vmax.f32 %v402, %v472
  %v537 = vmax.f32 %v315, %v473
  %v538 = vmax.f32 %v404, %v474
  %v539 = vmax.f32 %v318, %v475
  %v540 = vmax.f32 %v407, %v476
  %v541 = vmax.f32 %v320, %v477
  %v542 = vmax.f32 %v409, %v478
  %v543 = vmax.f32 %v323, %v479
  %v544 = vmax.f32 %v412, %v480
  %v545 = vmax.f32 %v325, %v481
  %v546 = vmax.f32 %v414, %v482
  %v547 = vmax.f32 %v328, %v483
  %v548 = vmax.f32 %v417, %v484
  %v549 = vmax.f32 %v330, %v485
  %v550 = vmax.f32 %v419, %v486
  %v551 = vmax.f32 %v333, %v487
  %v552 = vmax.f32 %v422, %v488
  %v553 = vmax.f32 %v335, %v489
  %v554 = vmax.f32 %v424, %v490
  %v555 = vmax.f32 %v338, %v491
  %v556 = vmax.f32 %v427, %v492
  %v557 = vmax.f32 %v340, %v493
  %v558 = vmax.f32 %v429, %v494
  %v559 = vld [vmem:[%s5] sm:$0xff]
  %v560 = vld [vmem:[%s5 + $0x40] sm:$0xff]
  %v561 = vld [vmem:[%s5 + $0x80] sm:$0xff]
  %v562 = vld [vmem:[%s5 + $0xc0] sm:$0xff]
  %v563 = vld [vmem:[%s5 + $0x100] sm:$0xff]
  %v564 = vld [vmem:[%s5 + $0x140] sm:$0xff]
  %v565 = vld [vmem:[%s5 + $0x180] sm:$0x11]
  %v598 = vunpack.c.l.b16 %v62
  %v599 = vunpack.c.l.b16 %v63
  %v600 = vunpack.c.l.b16 %v64
  %v601 = vunpack.c.l.b16 %v65
  %v602 = vunpack.c.l.b16 %v66
  %v603 = vunpack.c.l.b16 %v67
  %v604 = vunpack.c.l.b16 %v68
  %v605 = vunpack.c.l.b16 %v69
  %v606 = vunpack.c.l.b16 %v70
  %v607 = vunpack.c.l.b16 %v71
  %v608 = vunpack.c.l.b16 %v72
  %v609 = vunpack.c.l.b16 %v73
  %v610 = vunpack.c.l.b16 %v74
  %v611 = vunpack.c.l.b16 %v75
  %v612 = vunpack.c.l.b16 %v76
  %v613 = vunpack.c.l.b16 %v77
  %v614 = vunpack.c.l.b16 %v78
  %v615 = vunpack.c.l.b16 %v79
  %v616 = vunpack.c.l.b16 %v80
  %v617 = vunpack.c.l.b16 %v81
  %v618 = vunpack.c.l.b16 %v82
  %v619 = vunpack.c.l.b16 %v83
  %v620 = vunpack.c.l.b16 %v84
  %v621 = vunpack.c.l.b16 %v85
  %v622 = vunpack.c.l.b16 %v86
  %v623 = vunpack.c.l.b16 %v87
  %v624 = vunpack.c.l.b16 %v88
  %v625 = vunpack.c.l.b16 %v89
  %v626 = vunpack.c.l.b16 %v90
  %v627 = vunpack.c.l.b16 %v91
  %v628 = vunpack.c.l.b16 %v92
  %v629 = vunpack.c.l.b16 %v93
  %v630 = vpack.c.b16 %v599, %v598
  %v631 = vpack.c.b16 %v601, %v600
  %v632 = vpack.c.b16 %v603, %v602
  %v633 = vpack.c.b16 %v605, %v604
  %v634 = vpack.c.b16 %v607, %v606
  %v635 = vpack.c.b16 %v609, %v608
  %v636 = vpack.c.b16 %v611, %v610
  %v637 = vpack.c.b16 %v613, %v612
  %v638 = vpack.c.b16 %v615, %v614
  %v639 = vpack.c.b16 %v617, %v616
  %v640 = vpack.c.b16 %v619, %v618
  %v641 = vpack.c.b16 %v621, %v620
  %v642 = vpack.c.b16 %v623, %v622
  %v643 = vpack.c.b16 %v625, %v624
  %v644 = vpack.c.b16 %v627, %v626
  %v645 = vpack.c.b16 %v629, %v628
  %v653 = vunpack.c.l.b16 %v559
  %v654 = vunpack.c.h.b16 %v559
  %v655 = vunpack.c.l.b16 %v560
  %v656 = vunpack.c.h.b16 %v560
  %v657 = vunpack.c.l.b16 %v561
  %v658 = vunpack.c.h.b16 %v561
  %v659 = vunpack.c.l.b16 %v562
  %v660 = vunpack.c.h.b16 %v562
  %v661 = vunpack.c.l.b16 %v563
  %v662 = vunpack.c.h.b16 %v563
  %v663 = vunpack.c.l.b16 %v564
  %v664 = vunpack.c.h.b16 %v564
  %v665 = vunpack.c.l.b16 %v565
  %v666 = vunpack.c.h.b16 %v565
  %v667 = vpack.c.b16 %v655, %v653
  %v668 = vpack.c.b16 %v656, %v654
  %v669 = vpack.c.b16 %v659, %v657
  %v670 = vpack.c.b16 %v660, %v658
  %v671 = vpack.c.b16 %v663, %v661
  %v672 = vpack.c.b16 %v664, %v662
  %v673 = vpack.c.b16 %v665, %v665
  %v674 = vpack.c.b16 %v666, %v666
  %vm681 = vcmask 400384
  %v683 = vsel %vm681, %v630, 0
  %v686 = vsel %vm681, %v631, 0
  %v689 = vsel %vm681, %v632, 0
  %v692 = vsel %vm681, %v633, 0
  %v695 = vsel %vm681, %v634, 0
  %v698 = vsel %vm681, %v635, 0
  %v701 = vsel %vm681, %v636, 0
  %v704 = vsel %vm681, %v637, 0
  %v707 = vsel %vm681, %v638, 0
  %v710 = vsel %vm681, %v639, 0
  %v713 = vsel %vm681, %v640, 0
  %v716 = vsel %vm681, %v641, 0
  %v719 = vsel %vm681, %v642, 0
  %v722 = vsel %vm681, %v643, 0
  %v725 = vsel %vm681, %v644, 0
  %v728 = vsel %vm681, %v645, 0
  %vm730 = vcmask 1040384
  %v731 = vsel 0, 4294967295, 65535
  %v732 = vsel %vm730, %v731, 0
  %v734 = vand.u32 %v673, %v732
  %v737 = vand.u32 %v674, %v732
  %739 = vmatpush.bf16.msra.mxu0 0
  %740 = vmatpush.bf16.msra.mxu0 0
  %741 = vmatpush.bf16.msra.mxu0 0
  %742 = vmatpush.bf16.msra.mxu0 0
  %743 = vmatpush.bf16.msra.mxu0 %v734
  %744 = vmatpush.bf16.msra.mxu0 %v671
  %745 = vmatpush.bf16.msra.mxu0 %v669
  %746 = vmatpush.bf16.msra.mxu0 %v667
  %747 = vmatmul.bf16.gmra.mxu0 %v683
  %v748 = vpop.f32.mrf.mxu0
  %v749 = vadd.f32 0.0, %v748
  %v750 = vpop.f32.mrf.mxu0
  %v751 = vadd.f32 0.0, %v750
  %752 = vmatmul.bf16.gmra.mxu0 %v686
  %v753 = vpop.f32.mrf.mxu0
  %v754 = vadd.f32 0.0, %v753
  %v755 = vpop.f32.mrf.mxu0
  %v756 = vadd.f32 0.0, %v755
  %757 = vmatmul.bf16.gmra.mxu0 %v689
  %v758 = vpop.f32.mrf.mxu0
  %v759 = vadd.f32 0.0, %v758
  %v760 = vpop.f32.mrf.mxu0
  %v761 = vadd.f32 0.0, %v760
  %762 = vmatmul.bf16.gmra.mxu0 %v692
  %v763 = vpop.f32.mrf.mxu0
  %v764 = vadd.f32 0.0, %v763
  %v765 = vpop.f32.mrf.mxu0
  %v766 = vadd.f32 0.0, %v765
  %767 = vmatmul.bf16.gmra.mxu0 %v695
  %v768 = vpop.f32.mrf.mxu0
  %v769 = vadd.f32 0.0, %v768
  %v770 = vpop.f32.mrf.mxu0
  %v771 = vadd.f32 0.0, %v770
  %772 = vmatmul.bf16.gmra.mxu0 %v698
  %v773 = vpop.f32.mrf.mxu0
  %v774 = vadd.f32 0.0, %v773
  %v775 = vpop.f32.mrf.mxu0
  %v776 = vadd.f32 0.0, %v775
  %777 = vmatmul.bf16.gmra.mxu0 %v701
  %v778 = vpop.f32.mrf.mxu0
  %v779 = vadd.f32 0.0, %v778
  %v780 = vpop.f32.mrf.mxu0
  %v781 = vadd.f32 0.0, %v780
  %782 = vmatmul.bf16.gmra.mxu0 %v704
  %v783 = vpop.f32.mrf.mxu0
  %v784 = vadd.f32 0.0, %v783
  %v785 = vpop.f32.mrf.mxu0
  %v786 = vadd.f32 0.0, %v785
  %787 = vmatmul.bf16.gmra.mxu0 %v707
  %v788 = vpop.f32.mrf.mxu0
  %v789 = vadd.f32 0.0, %v788
  %v790 = vpop.f32.mrf.mxu0
  %v791 = vadd.f32 0.0, %v790
  %792 = vmatmul.bf16.gmra.mxu0 %v710
  %v793 = vpop.f32.mrf.mxu0
  %v794 = vadd.f32 0.0, %v793
  %v795 = vpop.f32.mrf.mxu0
  %v796 = vadd.f32 0.0, %v795
  %797 = vmatmul.bf16.gmra.mxu0 %v713
  %v798 = vpop.f32.mrf.mxu0
  %v799 = vadd.f32 0.0, %v798
  %v800 = vpop.f32.mrf.mxu0
  %v801 = vadd.f32 0.0, %v800
  %802 = vmatmul.bf16.gmra.mxu0 %v716
  %v803 = vpop.f32.mrf.mxu0
  %v804 = vadd.f32 0.0, %v803
  %v805 = vpop.f32.mrf.mxu0
  %v806 = vadd.f32 0.0, %v805
  %807 = vmatmul.bf16.gmra.mxu0 %v719
  %v808 = vpop.f32.mrf.mxu0
  %v809 = vadd.f32 0.0, %v808
  %v810 = vpop.f32.mrf.mxu0
  %v811 = vadd.f32 0.0, %v810
  %812 = vmatmul.bf16.gmra.mxu0 %v722
  %v813 = vpop.f32.mrf.mxu0
  %v814 = vadd.f32 0.0, %v813
  %v815 = vpop.f32.mrf.mxu0
  %v816 = vadd.f32 0.0, %v815
  %817 = vmatmul.bf16.gmra.mxu0 %v725
  %v818 = vpop.f32.mrf.mxu0
  %v819 = vadd.f32 0.0, %v818
  %v820 = vpop.f32.mrf.mxu0
  %v821 = vadd.f32 0.0, %v820
  %822 = vmatmul.bf16.gmra.mxu0 %v728
  %v823 = vpop.f32.mrf.mxu0
  %v824 = vadd.f32 0.0, %v823
  %v825 = vpop.f32.mrf.mxu0
  %v826 = vadd.f32 0.0, %v825
  %827 = vdwg.mxu0
  %828 = vmatpush.bf16.msra.mxu0 0
  %829 = vmatpush.bf16.msra.mxu0 0
  %830 = vmatpush.bf16.msra.mxu0 0
  %831 = vmatpush.bf16.msra.mxu0 0
  %832 = vmatpush.bf16.msra.mxu0 %v737
  %833 = vmatpush.bf16.msra.mxu0 %v672
  %834 = vmatpush.bf16.msra.mxu0 %v670
  %835 = vmatpush.bf16.msra.mxu0 %v668
  %836 = vmatmul.bf16.gmra.mxu0 %v683
  %v837 = vpop.f32.mrf.mxu0
  %v838 = vadd.f32 0.0, %v837
  %v839 = vpop.f32.mrf.mxu0
  %v840 = vadd.f32 0.0, %v839
  %841 = vmatmul.bf16.gmra.mxu0 %v686
  %v842 = vpop.f32.mrf.mxu0
  %v843 = vadd.f32 0.0, %v842
  %v844 = vpop.f32.mrf.mxu0
  %v845 = vadd.f32 0.0, %v844
  %846 = vmatmul.bf16.gmra.mxu0 %v689
  %v847 = vpop.f32.mrf.mxu0
  %v848 = vadd.f32 0.0, %v847
  %v849 = vpop.f32.mrf.mxu0
  %v850 = vadd.f32 0.0, %v849
  %851 = vmatmul.bf16.gmra.mxu0 %v692
  %v852 = vpop.f32.mrf.mxu0
  %v853 = vadd.f32 0.0, %v852
  %v854 = vpop.f32.mrf.mxu0
  %v855 = vadd.f32 0.0, %v854
  %856 = vmatmul.bf16.gmra.mxu0 %v695
  %v857 = vpop.f32.mrf.mxu0
  %v858 = vadd.f32 0.0, %v857
  %v859 = vpop.f32.mrf.mxu0
  %v860 = vadd.f32 0.0, %v859
  %861 = vmatmul.bf16.gmra.mxu0 %v698
  %v862 = vpop.f32.mrf.mxu0
  %v863 = vadd.f32 0.0, %v862
  %v864 = vpop.f32.mrf.mxu0
  %v865 = vadd.f32 0.0, %v864
  %866 = vmatmul.bf16.gmra.mxu0 %v701
  %v867 = vpop.f32.mrf.mxu0
  %v868 = vadd.f32 0.0, %v867
  %v869 = vpop.f32.mrf.mxu0
  %v870 = vadd.f32 0.0, %v869
  %871 = vmatmul.bf16.gmra.mxu0 %v704
  %v872 = vpop.f32.mrf.mxu0
  %v873 = vadd.f32 0.0, %v872
  %v874 = vpop.f32.mrf.mxu0
  %v875 = vadd.f32 0.0, %v874
  %876 = vmatmul.bf16.gmra.mxu0 %v707
  %v877 = vpop.f32.mrf.mxu0
  %v878 = vadd.f32 0.0, %v877
  %v879 = vpop.f32.mrf.mxu0
  %v880 = vadd.f32 0.0, %v879
  %881 = vmatmul.bf16.gmra.mxu0 %v710
  %v882 = vpop.f32.mrf.mxu0
  %v883 = vadd.f32 0.0, %v882
  %v884 = vpop.f32.mrf.mxu0
  %v885 = vadd.f32 0.0, %v884
  %886 = vmatmul.bf16.gmra.mxu0 %v713
  %v887 = vpop.f32.mrf.mxu0
  %v888 = vadd.f32 0.0, %v887
  %v889 = vpop.f32.mrf.mxu0
  %v890 = vadd.f32 0.0, %v889
  %891 = vmatmul.bf16.gmra.mxu0 %v716
  %v892 = vpop.f32.mrf.mxu0
  %v893 = vadd.f32 0.0, %v892
  %v894 = vpop.f32.mrf.mxu0
  %v895 = vadd.f32 0.0, %v894
  %896 = vmatmul.bf16.gmra.mxu0 %v719
  %v897 = vpop.f32.mrf.mxu0
  %v898 = vadd.f32 0.0, %v897
  %v899 = vpop.f32.mrf.mxu0
  %v900 = vadd.f32 0.0, %v899
  %901 = vmatmul.bf16.gmra.mxu0 %v722
  %v902 = vpop.f32.mrf.mxu0
  %v903 = vadd.f32 0.0, %v902
  %v904 = vpop.f32.mrf.mxu0
  %v905 = vadd.f32 0.0, %v904
  %906 = vmatmul.bf16.gmra.mxu0 %v725
  %v907 = vpop.f32.mrf.mxu0
  %v908 = vadd.f32 0.0, %v907
  %v909 = vpop.f32.mrf.mxu0
  %v910 = vadd.f32 0.0, %v909
  %911 = vmatmul.bf16.gmra.mxu0 %v728
  %v912 = vpop.f32.mrf.mxu0
  %v913 = vadd.f32 0.0, %v912
  %v914 = vpop.f32.mrf.mxu0
  %v915 = vadd.f32 0.0, %v914
  %916 = vdwg.mxu0
  %v917 = vpack.c.bf16 %v497, %v495
  %v918 = vpack.c.bf16 %v498, %v496
  %v919 = vpack.c.bf16 %v501, %v499
  %v920 = vpack.c.bf16 %v502, %v500
  %v921 = vpack.c.bf16 %v505, %v503
  %v922 = vpack.c.bf16 %v506, %v504
  %v923 = vpack.c.bf16 %v509, %v507
  %v924 = vpack.c.bf16 %v510, %v508
  %v925 = vpack.c.bf16 %v513, %v511
  %v926 = vpack.c.bf16 %v514, %v512
  %v927 = vpack.c.bf16 %v517, %v515
  %v928 = vpack.c.bf16 %v518, %v516
  %v929 = vpack.c.bf16 %v521, %v519
  %v930 = vpack.c.bf16 %v522, %v520
  %v931 = vpack.c.bf16 %v525, %v523
  %v932 = vpack.c.bf16 %v526, %v524
  %v933 = vpack.c.bf16 %v529, %v527
  %v934 = vpack.c.bf16 %v530, %v528
  %v935 = vpack.c.bf16 %v533, %v531
  %v936 = vpack.c.bf16 %v534, %v532
  %v937 = vpack.c.bf16 %v537, %v535
  %v938 = vpack.c.bf16 %v538, %v536
  %v939 = vpack.c.bf16 %v541, %v539
  %v940 = vpack.c.bf16 %v542, %v540
  %v941 = vpack.c.bf16 %v545, %v543
  %v942 = vpack.c.bf16 %v546, %v544
  %v943 = vpack.c.bf16 %v549, %v547
  %v944 = vpack.c.bf16 %v550, %v548
  %v945 = vpack.c.bf16 %v553, %v551
  %v946 = vpack.c.bf16 %v554, %v552
  %v947 = vpack.c.bf16 %v557, %v555
  %v948 = vpack.c.bf16 %v558, %v556
  %v949 = vld [vmem:[%s4] sm:$0xff]
  %v950 = vld [vmem:[%s4 + $0x8] sm:$0xff]
  %v951 = vld [vmem:[%s4 + $0x10] sm:$0xff]
  %v952 = vld [vmem:[%s4 + $0x18] sm:$0xff]
  %v953 = vld [vmem:[%s4 + $0x20] sm:$0xff]
  %v954 = vld [vmem:[%s4 + $0x28] sm:$0xff]
  %v955 = vld [vmem:[%s4 + $0x30] sm:$0xff]
  %v956 = vld [vmem:[%s4 + $0x38] sm:$0xff]
  %v957 = vld [vmem:[%s4 + $0x40] sm:$0xff]
  %v958 = vld [vmem:[%s4 + $0x48] sm:$0xff]
  %v959 = vld [vmem:[%s4 + $0x50] sm:$0xff]
  %v960 = vld [vmem:[%s4 + $0x58] sm:$0xff]
  %v961 = vld [vmem:[%s4 + $0x60] sm:$0xff]
  %v962 = vld [vmem:[%s4 + $0x68] sm:$0xff]
  %v963 = vld [vmem:[%s4 + $0x70] sm:$0xff]
  %v964 = vld [vmem:[%s4 + $0x78] sm:$0xff]
  %v965 = vld [vmem:[%s4 + $0x80] sm:$0xff]
  %v966 = vld [vmem:[%s4 + $0x88] sm:$0xff]
  %v967 = vld [vmem:[%s4 + $0x90] sm:$0xff]
  %v968 = vld [vmem:[%s4 + $0x98] sm:$0xff]
  %v969 = vld [vmem:[%s4 + $0xa0] sm:$0xff]
  %v970 = vld [vmem:[%s4 + $0xa8] sm:$0xff]
  %v971 = vld [vmem:[%s4 + $0xb0] sm:$0xff]
  %v972 = vld [vmem:[%s4 + $0xb8] sm:$0xff]
  %v973 = vld [vmem:[%s4 + $0xc0] sm:$0xff]
  %v974 = vld [vmem:[%s4 + $0xc8] sm:$0xff]
  %v975 = vld [vmem:[%s4 + $0xd0] sm:$0xff]
  %v976 = vld [vmem:[%s4 + $0xd8] sm:$0xff]
  %v977 = vld [vmem:[%s4 + $0xe0] sm:$0xff]
  %v978 = vld [vmem:[%s4 + $0xe8] sm:$0xff]
  %v979 = vld [vmem:[%s4 + $0xf0] sm:$0xff]
  %v980 = vld [vmem:[%s4 + $0xf8] sm:$0xff]
  %v1013 = vunpack.c.l.b16 %v949
  %v1014 = vunpack.c.h.b16 %v949
  %v1015 = vunpack.c.l.b16 %v950
  %v1016 = vunpack.c.h.b16 %v950
  %v1017 = vunpack.c.l.b16 %v951
  %v1018 = vunpack.c.h.b16 %v951
  %v1019 = vunpack.c.l.b16 %v952
  %v1020 = vunpack.c.h.b16 %v952
  %v1021 = vunpack.c.l.b16 %v953
  %v1022 = vunpack.c.h.b16 %v953
  %v1023 = vunpack.c.l.b16 %v954
  %v1024 = vunpack.c.h.b16 %v954
  %v1025 = vunpack.c.l.b16 %v955
  %v1026 = vunpack.c.h.b16 %v955
  %v1027 = vunpack.c.l.b16 %v956
  %v1028 = vunpack.c.h.b16 %v956
  %v1029 = vunpack.c.l.b16 %v957
  %v1030 = vunpack.c.h.b16 %v957
  %v1031 = vunpack.c.l.b16 %v958
  %v1032 = vunpack.c.h.b16 %v958
  %v1033 = vunpack.c.l.b16 %v959
  %v1034 = vunpack.c.h.b16 %v959
  %v1035 = vunpack.c.l.b16 %v960
  %v1036 = vunpack.c.h.b16 %v960
  %v1037 = vunpack.c.l.b16 %v961
  %v1038 = vunpack.c.h.b16 %v961
  %v1039 = vunpack.c.l.b16 %v962
  %v1040 = vunpack.c.h.b16 %v962
  %v1041 = vunpack.c.l.b16 %v963
  %v1042 = vunpack.c.h.b16 %v963
  %v1043 = vunpack.c.l.b16 %v964
  %v1044 = vunpack.c.h.b16 %v964
  %v1045 = vunpack.c.l.b16 %v965
  %v1046 = vunpack.c.h.b16 %v965
  %v1047 = vunpack.c.l.b16 %v966
  %v1048 = vunpack.c.h.b16 %v966
  %v1049 = vunpack.c.l.b16 %v967
  %v1050 = vunpack.c.h.b16 %v967
  %v1051 = vunpack.c.l.b16 %v968
  %v1052 = vunpack.c.h.b16 %v968
  %v1053 = vunpack.c.l.b16 %v969
  %v1054 = vunpack.c.h.b16 %v969
  %v1055 = vunpack.c.l.b16 %v970
  %v1056 = vunpack.c.h.b16 %v970
  %v1057 = vunpack.c.l.b16 %v971
  %v1058 = vunpack.c.h.b16 %v971
  %v1059 = vunpack.c.l.b16 %v972
  %v1060 = vunpack.c.h.b16 %v972
  %v1061 = vunpack.c.l.b16 %v973
  %v1062 = vunpack.c.h.b16 %v973
  %v1063 = vunpack.c.l.b16 %v974
  %v1064 = vunpack.c.h.b16 %v974
  %v1065 = vunpack.c.l.b16 %v975
  %v1066 = vunpack.c.h.b16 %v975
  %v1067 = vunpack.c.l.b16 %v976
  %v1068 = vunpack.c.h.b16 %v976
  %v1069 = vunpack.c.l.b16 %v977
  %v1070 = vunpack.c.h.b16 %v977
  %v1071 = vunpack.c.l.b16 %v978
  %v1072 = vunpack.c.h.b16 %v978
  %v1073 = vunpack.c.l.b16 %v979
  %v1074 = vunpack.c.h.b16 %v979
  %v1075 = vunpack.c.l.b16 %v980
  %v1076 = vunpack.c.h.b16 %v980
  %v1077 = vpack.c.b16 %v1015, %v1013
  %v1078 = vpack.c.b16 %v1016, %v1014
  %v1079 = vpack.c.b16 %v1019, %v1017
  %v1080 = vpack.c.b16 %v1020, %v1018
  %v1081 = vpack.c.b16 %v1023, %v1021
  %v1082 = vpack.c.b16 %v1024, %v1022
  %v1083 = vpack.c.b16 %v1027, %v1025
  %v1084 = vpack.c.b16 %v1028, %v1026
  %v1085 = vpack.c.b16 %v1031, %v1029
  %v1086 = vpack.c.b16 %v1032, %v1030
  %v1087 = vpack.c.b16 %v1035, %v1033
  %v1088 = vpack.c.b16 %v1036, %v1034
  %v1089 = vpack.c.b16 %v1039, %v1037
  %v1090 = vpack.c.b16 %v1040, %v1038
  %v1091 = vpack.c.b16 %v1043, %v1041
  %v1092 = vpack.c.b16 %v1044, %v1042
  %v1093 = vpack.c.b16 %v1047, %v1045
  %v1094 = vpack.c.b16 %v1048, %v1046
  %v1095 = vpack.c.b16 %v1051, %v1049
  %v1096 = vpack.c.b16 %v1052, %v1050
  %v1097 = vpack.c.b16 %v1055, %v1053
  %v1098 = vpack.c.b16 %v1056, %v1054
  %v1099 = vpack.c.b16 %v1059, %v1057
  %v1100 = vpack.c.b16 %v1060, %v1058
  %v1101 = vpack.c.b16 %v1063, %v1061
  %v1102 = vpack.c.b16 %v1064, %v1062
  %v1103 = vpack.c.b16 %v1067, %v1065
  %v1104 = vpack.c.b16 %v1068, %v1066
  %v1105 = vpack.c.b16 %v1071, %v1069
  %v1106 = vpack.c.b16 %v1072, %v1070
  %v1107 = vpack.c.b16 %v1075, %v1073
  %v1108 = vpack.c.b16 %v1076, %v1074
  %1141 = vmatpush.bf16.msra.mxu0 %v1091
  %1142 = vmatpush.bf16.msra.mxu0 %v1089
  %1143 = vmatpush.bf16.msra.mxu0 %v1087
  %1144 = vmatpush.bf16.msra.mxu0 %v1085
  %1145 = vmatpush.bf16.msra.mxu0 %v1083
  %1146 = vmatpush.bf16.msra.mxu0 %v1081
  %1147 = vmatpush.bf16.msra.mxu0 %v1079
  %1148 = vmatpush.bf16.msra.mxu0 %v1077
  %1149 = vmatmul.bf16.gmra.mxu0 %v917
  %v1150 = vpop.f32.mrf.mxu0
  %v1151 = vadd.f32 %v749, %v1150
  %v1152 = vpop.f32.mrf.mxu0
  %v1153 = vadd.f32 %v751, %v1152
  %1154 = vmatmul.bf16.gmra.mxu0 %v919
  %v1155 = vpop.f32.mrf.mxu0
  %v1156 = vadd.f32 %v754, %v1155
  %v1157 = vpop.f32.mrf.mxu0
  %v1158 = vadd.f32 %v756, %v1157
  %1159 = vmatmul.bf16.gmra.mxu0 %v921
  %v1160 = vpop.f32.mrf.mxu0
  %v1161 = vadd.f32 %v759, %v1160
  %v1162 = vpop.f32.mrf.mxu0
  %v1163 = vadd.f32 %v761, %v1162
  %1164 = vmatmul.bf16.gmra.mxu0 %v923
  %v1165 = vpop.f32.mrf.mxu0
  %v1166 = vadd.f32 %v764, %v1165
  %v1167 = vpop.f32.mrf.mxu0
  %v1168 = vadd.f32 %v766, %v1167
  %1169 = vmatmul.bf16.gmra.mxu0 %v925
  %v1170 = vpop.f32.mrf.mxu0
  %v1171 = vadd.f32 %v769, %v1170
  %v1172 = vpop.f32.mrf.mxu0
  %v1173 = vadd.f32 %v771, %v1172
  %1174 = vmatmul.bf16.gmra.mxu0 %v927
  %v1175 = vpop.f32.mrf.mxu0
  %v1176 = vadd.f32 %v774, %v1175
  %v1177 = vpop.f32.mrf.mxu0
  %v1178 = vadd.f32 %v776, %v1177
  %1179 = vmatmul.bf16.gmra.mxu0 %v929
  %v1180 = vpop.f32.mrf.mxu0
  %v1181 = vadd.f32 %v779, %v1180
  %v1182 = vpop.f32.mrf.mxu0
  %v1183 = vadd.f32 %v781, %v1182
  %1184 = vmatmul.bf16.gmra.mxu0 %v931
  %v1185 = vpop.f32.mrf.mxu0
  %v1186 = vadd.f32 %v784, %v1185
  %v1187 = vpop.f32.mrf.mxu0
  %v1188 = vadd.f32 %v786, %v1187
  %1189 = vmatmul.bf16.gmra.mxu0 %v933
  %v1190 = vpop.f32.mrf.mxu0
  %v1191 = vadd.f32 %v789, %v1190
  %v1192 = vpop.f32.mrf.mxu0
  %v1193 = vadd.f32 %v791, %v1192
  %1194 = vmatmul.bf16.gmra.mxu0 %v935
  %v1195 = vpop.f32.mrf.mxu0
  %v1196 = vadd.f32 %v794, %v1195
  %v1197 = vpop.f32.mrf.mxu0
  %v1198 = vadd.f32 %v796, %v1197
  %1199 = vmatmul.bf16.gmra.mxu0 %v937
  %v1200 = vpop.f32.mrf.mxu0
  %v1201 = vadd.f32 %v799, %v1200
  %v1202 = vpop.f32.mrf.mxu0
  %v1203 = vadd.f32 %v801, %v1202
  %1204 = vmatmul.bf16.gmra.mxu0 %v939
  %v1205 = vpop.f32.mrf.mxu0
  %v1206 = vadd.f32 %v804, %v1205
  %v1207 = vpop.f32.mrf.mxu0
  %v1208 = vadd.f32 %v806, %v1207
  %1209 = vmatmul.bf16.gmra.mxu0 %v941
  %v1210 = vpop.f32.mrf.mxu0
  %v1211 = vadd.f32 %v809, %v1210
  %v1212 = vpop.f32.mrf.mxu0
  %v1213 = vadd.f32 %v811, %v1212
  %1214 = vmatmul.bf16.gmra.mxu0 %v943
  %v1215 = vpop.f32.mrf.mxu0
  %v1216 = vadd.f32 %v814, %v1215
  %v1217 = vpop.f32.mrf.mxu0
  %v1218 = vadd.f32 %v816, %v1217
  %1219 = vmatmul.bf16.gmra.mxu0 %v945
  %v1220 = vpop.f32.mrf.mxu0
  %v1221 = vadd.f32 %v819, %v1220
  %v1222 = vpop.f32.mrf.mxu0
  %v1223 = vadd.f32 %v821, %v1222
  %1224 = vmatmul.bf16.gmra.mxu0 %v947
  %v1225 = vpop.f32.mrf.mxu0
  %v1226 = vadd.f32 %v824, %v1225
  %v1227 = vpop.f32.mrf.mxu0
  %v1228 = vadd.f32 %v826, %v1227
  %1229 = vdwg.mxu0
  %1230 = vmatpush.bf16.msra.mxu0 %v1107
  %1231 = vmatpush.bf16.msra.mxu0 %v1105
  %1232 = vmatpush.bf16.msra.mxu0 %v1103
  %1233 = vmatpush.bf16.msra.mxu0 %v1101
  %1234 = vmatpush.bf16.msra.mxu0 %v1099
  %1235 = vmatpush.bf16.msra.mxu0 %v1097
  %1236 = vmatpush.bf16.msra.mxu0 %v1095
  %1237 = vmatpush.bf16.msra.mxu0 %v1093
  %1238 = vmatmul.bf16.gmra.mxu0 %v918
  %v1239 = vpop.f32.mrf.mxu0
  %v1240 = vadd.f32 %v1151, %v1239
  %v1241 = vpop.f32.mrf.mxu0
  %v1242 = vadd.f32 %v1153, %v1241
  %1243 = vmatmul.bf16.gmra.mxu0 %v920
  %v1244 = vpop.f32.mrf.mxu0
  %v1245 = vadd.f32 %v1156, %v1244
  %v1246 = vpop.f32.mrf.mxu0
  %v1247 = vadd.f32 %v1158, %v1246
  %1248 = vmatmul.bf16.gmra.mxu0 %v922
  %v1249 = vpop.f32.mrf.mxu0
  %v1250 = vadd.f32 %v1161, %v1249
  %v1251 = vpop.f32.mrf.mxu0
  %v1252 = vadd.f32 %v1163, %v1251
  %1253 = vmatmul.bf16.gmra.mxu0 %v924
  %v1254 = vpop.f32.mrf.mxu0
  %v1255 = vadd.f32 %v1166, %v1254
  %v1256 = vpop.f32.mrf.mxu0
  %v1257 = vadd.f32 %v1168, %v1256
  %1258 = vmatmul.bf16.gmra.mxu0 %v926
  %v1259 = vpop.f32.mrf.mxu0
  %v1260 = vadd.f32 %v1171, %v1259
  %v1261 = vpop.f32.mrf.mxu0
  %v1262 = vadd.f32 %v1173, %v1261
  %1263 = vmatmul.bf16.gmra.mxu0 %v928
  %v1264 = vpop.f32.mrf.mxu0
  %v1265 = vadd.f32 %v1176, %v1264
  %v1266 = vpop.f32.mrf.mxu0
  %v1267 = vadd.f32 %v1178, %v1266
  %1268 = vmatmul.bf16.gmra.mxu0 %v930
  %v1269 = vpop.f32.mrf.mxu0
  %v1270 = vadd.f32 %v1181, %v1269
  %v1271 = vpop.f32.mrf.mxu0
  %v1272 = vadd.f32 %v1183, %v1271
  %1273 = vmatmul.bf16.gmra.mxu0 %v932
  %v1274 = vpop.f32.mrf.mxu0
  %v1275 = vadd.f32 %v1186, %v1274
  %v1276 = vpop.f32.mrf.mxu0
  %v1277 = vadd.f32 %v1188, %v1276
  %1278 = vmatmul.bf16.gmra.mxu0 %v934
  %v1279 = vpop.f32.mrf.mxu0
  %v1280 = vadd.f32 %v1191, %v1279
  %v1281 = vpop.f32.mrf.mxu0
  %v1282 = vadd.f32 %v1193, %v1281
  %1283 = vmatmul.bf16.gmra.mxu0 %v936
  %v1284 = vpop.f32.mrf.mxu0
  %v1285 = vadd.f32 %v1196, %v1284
  %v1286 = vpop.f32.mrf.mxu0
  %v1287 = vadd.f32 %v1198, %v1286
  %1288 = vmatmul.bf16.gmra.mxu0 %v938
  %v1289 = vpop.f32.mrf.mxu0
  %v1290 = vadd.f32 %v1201, %v1289
  %v1291 = vpop.f32.mrf.mxu0
  %v1292 = vadd.f32 %v1203, %v1291
  %1293 = vmatmul.bf16.gmra.mxu0 %v940
  %v1294 = vpop.f32.mrf.mxu0
  %v1295 = vadd.f32 %v1206, %v1294
  %v1296 = vpop.f32.mrf.mxu0
  %v1297 = vadd.f32 %v1208, %v1296
  %1298 = vmatmul.bf16.gmra.mxu0 %v942
  %v1299 = vpop.f32.mrf.mxu0
  %v1300 = vadd.f32 %v1211, %v1299
  %v1301 = vpop.f32.mrf.mxu0
  %v1302 = vadd.f32 %v1213, %v1301
  %1303 = vmatmul.bf16.gmra.mxu0 %v944
  %v1304 = vpop.f32.mrf.mxu0
  %v1305 = vadd.f32 %v1216, %v1304
  %v1306 = vpop.f32.mrf.mxu0
  %v1307 = vadd.f32 %v1218, %v1306
  %1308 = vmatmul.bf16.gmra.mxu0 %v946
  %v1309 = vpop.f32.mrf.mxu0
  %v1310 = vadd.f32 %v1221, %v1309
  %v1311 = vpop.f32.mrf.mxu0
  %v1312 = vadd.f32 %v1223, %v1311
  %1313 = vmatmul.bf16.gmra.mxu0 %v948
  %v1314 = vpop.f32.mrf.mxu0
  %v1315 = vadd.f32 %v1226, %v1314
  %v1316 = vpop.f32.mrf.mxu0
  %v1317 = vadd.f32 %v1228, %v1316
  %1318 = vdwg.mxu0
  %1319 = vmatpush.bf16.msra.mxu0 %v1092
  %1320 = vmatpush.bf16.msra.mxu0 %v1090
  %1321 = vmatpush.bf16.msra.mxu0 %v1088
  %1322 = vmatpush.bf16.msra.mxu0 %v1086
  %1323 = vmatpush.bf16.msra.mxu0 %v1084
  %1324 = vmatpush.bf16.msra.mxu0 %v1082
  %1325 = vmatpush.bf16.msra.mxu0 %v1080
  %1326 = vmatpush.bf16.msra.mxu0 %v1078
  %1327 = vmatmul.bf16.gmra.mxu0 %v917
  %v1328 = vpop.f32.mrf.mxu0
  %v1329 = vadd.f32 %v838, %v1328
  %v1330 = vpop.f32.mrf.mxu0
  %v1331 = vadd.f32 %v840, %v1330
  %1332 = vmatmul.bf16.gmra.mxu0 %v919
  %v1333 = vpop.f32.mrf.mxu0
  %v1334 = vadd.f32 %v843, %v1333
  %v1335 = vpop.f32.mrf.mxu0
  %v1336 = vadd.f32 %v845, %v1335
  %1337 = vmatmul.bf16.gmra.mxu0 %v921
  %v1338 = vpop.f32.mrf.mxu0
  %v1339 = vadd.f32 %v848, %v1338
  %v1340 = vpop.f32.mrf.mxu0
  %v1341 = vadd.f32 %v850, %v1340
  %1342 = vmatmul.bf16.gmra.mxu0 %v923
  %v1343 = vpop.f32.mrf.mxu0
  %v1344 = vadd.f32 %v853, %v1343
  %v1345 = vpop.f32.mrf.mxu0
  %v1346 = vadd.f32 %v855, %v1345
  %1347 = vmatmul.bf16.gmra.mxu0 %v925
  %v1348 = vpop.f32.mrf.mxu0
  %v1349 = vadd.f32 %v858, %v1348
  %v1350 = vpop.f32.mrf.mxu0
  %v1351 = vadd.f32 %v860, %v1350
  %1352 = vmatmul.bf16.gmra.mxu0 %v927
  %v1353 = vpop.f32.mrf.mxu0
  %v1354 = vadd.f32 %v863, %v1353
  %v1355 = vpop.f32.mrf.mxu0
  %v1356 = vadd.f32 %v865, %v1355
  %1357 = vmatmul.bf16.gmra.mxu0 %v929
  %v1358 = vpop.f32.mrf.mxu0
  %v1359 = vadd.f32 %v868, %v1358
  %v1360 = vpop.f32.mrf.mxu0
  %v1361 = vadd.f32 %v870, %v1360
  %1362 = vmatmul.bf16.gmra.mxu0 %v931
  %v1363 = vpop.f32.mrf.mxu0
  %v1364 = vadd.f32 %v873, %v1363
  %v1365 = vpop.f32.mrf.mxu0
  %v1366 = vadd.f32 %v875, %v1365
  %1367 = vmatmul.bf16.gmra.mxu0 %v933
  %v1368 = vpop.f32.mrf.mxu0
  %v1369 = vadd.f32 %v878, %v1368
  %v1370 = vpop.f32.mrf.mxu0
  %v1371 = vadd.f32 %v880, %v1370
  %1372 = vmatmul.bf16.gmra.mxu0 %v935
  %v1373 = vpop.f32.mrf.mxu0
  %v1374 = vadd.f32 %v883, %v1373
  %v1375 = vpop.f32.mrf.mxu0
  %v1376 = vadd.f32 %v885, %v1375
  %1377 = vmatmul.bf16.gmra.mxu0 %v937
  %v1378 = vpop.f32.mrf.mxu0
  %v1379 = vadd.f32 %v888, %v1378
  %v1380 = vpop.f32.mrf.mxu0
  %v1381 = vadd.f32 %v890, %v1380
  %1382 = vmatmul.bf16.gmra.mxu0 %v939
  %v1383 = vpop.f32.mrf.mxu0
  %v1384 = vadd.f32 %v893, %v1383
  %v1385 = vpop.f32.mrf.mxu0
  %v1386 = vadd.f32 %v895, %v1385
  %1387 = vmatmul.bf16.gmra.mxu0 %v941
  %v1388 = vpop.f32.mrf.mxu0
  %v1389 = vadd.f32 %v898, %v1388
  %v1390 = vpop.f32.mrf.mxu0
  %v1391 = vadd.f32 %v900, %v1390
  %1392 = vmatmul.bf16.gmra.mxu0 %v943
  %v1393 = vpop.f32.mrf.mxu0
  %v1394 = vadd.f32 %v903, %v1393
  %v1395 = vpop.f32.mrf.mxu0
  %v1396 = vadd.f32 %v905, %v1395
  %1397 = vmatmul.bf16.gmra.mxu0 %v945
  %v1398 = vpop.f32.mrf.mxu0
  %v1399 = vadd.f32 %v908, %v1398
  %v1400 = vpop.f32.mrf.mxu0
  %v1401 = vadd.f32 %v910, %v1400
  %1402 = vmatmul.bf16.gmra.mxu0 %v947
  %v1403 = vpop.f32.mrf.mxu0
  %v1404 = vadd.f32 %v913, %v1403
  %v1405 = vpop.f32.mrf.mxu0
  %v1406 = vadd.f32 %v915, %v1405
  %1407 = vdwg.mxu0
  %1408 = vmatpush.bf16.msra.mxu0 %v1108
  %1409 = vmatpush.bf16.msra.mxu0 %v1106
  %1410 = vmatpush.bf16.msra.mxu0 %v1104
  %1411 = vmatpush.bf16.msra.mxu0 %v1102
  %1412 = vmatpush.bf16.msra.mxu0 %v1100
  %1413 = vmatpush.bf16.msra.mxu0 %v1098
  %1414 = vmatpush.bf16.msra.mxu0 %v1096
  %1415 = vmatpush.bf16.msra.mxu0 %v1094
  %1416 = vmatmul.bf16.gmra.mxu0 %v918
  %v1417 = vpop.f32.mrf.mxu0
  %v1418 = vadd.f32 %v1329, %v1417
  %v1419 = vpop.f32.mrf.mxu0
  %v1420 = vadd.f32 %v1331, %v1419
  %1421 = vmatmul.bf16.gmra.mxu0 %v920
  %v1422 = vpop.f32.mrf.mxu0
  %v1423 = vadd.f32 %v1334, %v1422
  %v1424 = vpop.f32.mrf.mxu0
  %v1425 = vadd.f32 %v1336, %v1424
  %1426 = vmatmul.bf16.gmra.mxu0 %v922
  %v1427 = vpop.f32.mrf.mxu0
  %v1428 = vadd.f32 %v1339, %v1427
  %v1429 = vpop.f32.mrf.mxu0
  %v1430 = vadd.f32 %v1341, %v1429
  %1431 = vmatmul.bf16.gmra.mxu0 %v924
  %v1432 = vpop.f32.mrf.mxu0
  %v1433 = vadd.f32 %v1344, %v1432
  %v1434 = vpop.f32.mrf.mxu0
  %v1435 = vadd.f32 %v1346, %v1434
  %1436 = vmatmul.bf16.gmra.mxu0 %v926
  %v1437 = vpop.f32.mrf.mxu0
  %v1438 = vadd.f32 %v1349, %v1437
  %v1439 = vpop.f32.mrf.mxu0
  %v1440 = vadd.f32 %v1351, %v1439
  %1441 = vmatmul.bf16.gmra.mxu0 %v928
  %v1442 = vpop.f32.mrf.mxu0
  %v1443 = vadd.f32 %v1354, %v1442
  %v1444 = vpop.f32.mrf.mxu0
  %v1445 = vadd.f32 %v1356, %v1444
  %1446 = vmatmul.bf16.gmra.mxu0 %v930
  %v1447 = vpop.f32.mrf.mxu0
  %v1448 = vadd.f32 %v1359, %v1447
  %v1449 = vpop.f32.mrf.mxu0
  %v1450 = vadd.f32 %v1361, %v1449
  %1451 = vmatmul.bf16.gmra.mxu0 %v932
  %v1452 = vpop.f32.mrf.mxu0
  %v1453 = vadd.f32 %v1364, %v1452
  %v1454 = vpop.f32.mrf.mxu0
  %v1455 = vadd.f32 %v1366, %v1454
  %1456 = vmatmul.bf16.gmra.mxu0 %v934
  %v1457 = vpop.f32.mrf.mxu0
  %v1458 = vadd.f32 %v1369, %v1457
  %v1459 = vpop.f32.mrf.mxu0
  %v1460 = vadd.f32 %v1371, %v1459
  %1461 = vmatmul.bf16.gmra.mxu0 %v936
  %v1462 = vpop.f32.mrf.mxu0
  %v1463 = vadd.f32 %v1374, %v1462
  %v1464 = vpop.f32.mrf.mxu0
  %v1465 = vadd.f32 %v1376, %v1464
  %1466 = vmatmul.bf16.gmra.mxu0 %v938
  %v1467 = vpop.f32.mrf.mxu0
  %v1468 = vadd.f32 %v1379, %v1467
  %v1469 = vpop.f32.mrf.mxu0
  %v1470 = vadd.f32 %v1381, %v1469
  %1471 = vmatmul.bf16.gmra.mxu0 %v940
  %v1472 = vpop.f32.mrf.mxu0
  %v1473 = vadd.f32 %v1384, %v1472
  %v1474 = vpop.f32.mrf.mxu0
  %v1475 = vadd.f32 %v1386, %v1474
  %1476 = vmatmul.bf16.gmra.mxu0 %v942
  %v1477 = vpop.f32.mrf.mxu0
  %v1478 = vadd.f32 %v1389, %v1477
  %v1479 = vpop.f32.mrf.mxu0
  %v1480 = vadd.f32 %v1391, %v1479
  %1481 = vmatmul.bf16.gmra.mxu0 %v944
  %v1482 = vpop.f32.mrf.mxu0
  %v1483 = vadd.f32 %v1394, %v1482
  %v1484 = vpop.f32.mrf.mxu0
  %v1485 = vadd.f32 %v1396, %v1484
  %1486 = vmatmul.bf16.gmra.mxu0 %v946
  %v1487 = vpop.f32.mrf.mxu0
  %v1488 = vadd.f32 %v1399, %v1487
  %v1489 = vpop.f32.mrf.mxu0
  %v1490 = vadd.f32 %v1401, %v1489
  %1491 = vmatmul.bf16.gmra.mxu0 %v948
  %v1492 = vpop.f32.mrf.mxu0
  %v1493 = vadd.f32 %v1404, %v1492
  %v1494 = vpop.f32.mrf.mxu0
  %v1495 = vadd.f32 %v1406, %v1494
  %1496 = vdwg.mxu0
  %v1497 = vmul.f32 %v1240, 0.2
  %v1498 = vmul.f32 %v1418, 0.2
  %v1499 = vmul.f32 %v1242, 0.2
  %v1500 = vmul.f32 %v1420, 0.2
  %v1501 = vmul.f32 %v1245, 0.2
  %v1502 = vmul.f32 %v1423, 0.2
  %v1503 = vmul.f32 %v1247, 0.2
  %v1504 = vmul.f32 %v1425, 0.2
  %v1505 = vmul.f32 %v1250, 0.2
  %v1506 = vmul.f32 %v1428, 0.2
  %v1507 = vmul.f32 %v1252, 0.2
  %v1508 = vmul.f32 %v1430, 0.2
  %v1509 = vmul.f32 %v1255, 0.2
  %v1510 = vmul.f32 %v1433, 0.2
  %v1511 = vmul.f32 %v1257, 0.2
  %v1512 = vmul.f32 %v1435, 0.2
  %v1513 = vmul.f32 %v1260, 0.2
  %v1514 = vmul.f32 %v1438, 0.2
  %v1515 = vmul.f32 %v1262, 0.2
  %v1516 = vmul.f32 %v1440, 0.2
  %v1517 = vmul.f32 %v1265, 0.2
  %v1518 = vmul.f32 %v1443, 0.2
  %v1519 = vmul.f32 %v1267, 0.2
  %v1520 = vmul.f32 %v1445, 0.2
  %v1521 = vmul.f32 %v1270, 0.2
  %v1522 = vmul.f32 %v1448, 0.2
  %v1523 = vmul.f32 %v1272, 0.2
  %v1524 = vmul.f32 %v1450, 0.2
  %v1525 = vmul.f32 %v1275, 0.2
  %v1526 = vmul.f32 %v1453, 0.2
  %v1527 = vmul.f32 %v1277, 0.2
  %v1528 = vmul.f32 %v1455, 0.2
  %v1529 = vmul.f32 %v1280, 0.2
  %v1530 = vmul.f32 %v1458, 0.2
  %v1531 = vmul.f32 %v1282, 0.2
  %v1532 = vmul.f32 %v1460, 0.2
  %v1533 = vmul.f32 %v1285, 0.2
  %v1534 = vmul.f32 %v1463, 0.2
  %v1535 = vmul.f32 %v1287, 0.2
  %v1536 = vmul.f32 %v1465, 0.2
  %v1537 = vmul.f32 %v1290, 0.2
  %v1538 = vmul.f32 %v1468, 0.2
  %v1539 = vmul.f32 %v1292, 0.2
  %v1540 = vmul.f32 %v1470, 0.2
  %v1541 = vmul.f32 %v1295, 0.2
  %v1542 = vmul.f32 %v1473, 0.2
  %v1543 = vmul.f32 %v1297, 0.2
  %v1544 = vmul.f32 %v1475, 0.2
  %v1545 = vmul.f32 %v1300, 0.2
  %v1546 = vmul.f32 %v1478, 0.2
  %v1547 = vmul.f32 %v1302, 0.2
  %v1548 = vmul.f32 %v1480, 0.2
  %v1549 = vmul.f32 %v1305, 0.2
  %v1550 = vmul.f32 %v1483, 0.2
  %v1551 = vmul.f32 %v1307, 0.2
  %v1552 = vmul.f32 %v1485, 0.2
  %v1553 = vmul.f32 %v1310, 0.2
  %v1554 = vmul.f32 %v1488, 0.2
  %v1555 = vmul.f32 %v1312, 0.2
  %v1556 = vmul.f32 %v1490, 0.2
  %v1557 = vmul.f32 %v1315, 0.2
  %v1558 = vmul.f32 %v1493, 0.2
  %v1559 = vmul.f32 %v1317, 0.2
  %v1560 = vmul.f32 %v1495, 0.2
  %v1561 = vmax.f32 %v1240, %v1497
  %v1562 = vmax.f32 %v1418, %v1498
  %v1563 = vmax.f32 %v1242, %v1499
  %v1564 = vmax.f32 %v1420, %v1500
  %v1565 = vmax.f32 %v1245, %v1501
  %v1566 = vmax.f32 %v1423, %v1502
  %v1567 = vmax.f32 %v1247, %v1503
  %v1568 = vmax.f32 %v1425, %v1504
  %v1569 = vmax.f32 %v1250, %v1505
  %v1570 = vmax.f32 %v1428, %v1506
  %v1571 = vmax.f32 %v1252, %v1507
  %v1572 = vmax.f32 %v1430, %v1508
  %v1573 = vmax.f32 %v1255, %v1509
  %v1574 = vmax.f32 %v1433, %v1510
  %v1575 = vmax.f32 %v1257, %v1511
  %v1576 = vmax.f32 %v1435, %v1512
  %v1577 = vmax.f32 %v1260, %v1513
  %v1578 = vmax.f32 %v1438, %v1514
  %v1579 = vmax.f32 %v1262, %v1515
  %v1580 = vmax.f32 %v1440, %v1516
  %v1581 = vmax.f32 %v1265, %v1517
  %v1582 = vmax.f32 %v1443, %v1518
  %v1583 = vmax.f32 %v1267, %v1519
  %v1584 = vmax.f32 %v1445, %v1520
  %v1585 = vmax.f32 %v1270, %v1521
  %v1586 = vmax.f32 %v1448, %v1522
  %v1587 = vmax.f32 %v1272, %v1523
  %v1588 = vmax.f32 %v1450, %v1524
  %v1589 = vmax.f32 %v1275, %v1525
  %v1590 = vmax.f32 %v1453, %v1526
  %v1591 = vmax.f32 %v1277, %v1527
  %v1592 = vmax.f32 %v1455, %v1528
  %v1593 = vmax.f32 %v1280, %v1529
  %v1594 = vmax.f32 %v1458, %v1530
  %v1595 = vmax.f32 %v1282, %v1531
  %v1596 = vmax.f32 %v1460, %v1532
  %v1597 = vmax.f32 %v1285, %v1533
  %v1598 = vmax.f32 %v1463, %v1534
  %v1599 = vmax.f32 %v1287, %v1535
  %v1600 = vmax.f32 %v1465, %v1536
  %v1601 = vmax.f32 %v1290, %v1537
  %v1602 = vmax.f32 %v1468, %v1538
  %v1603 = vmax.f32 %v1292, %v1539
  %v1604 = vmax.f32 %v1470, %v1540
  %v1605 = vmax.f32 %v1295, %v1541
  %v1606 = vmax.f32 %v1473, %v1542
  %v1607 = vmax.f32 %v1297, %v1543
  %v1608 = vmax.f32 %v1475, %v1544
  %v1609 = vmax.f32 %v1300, %v1545
  %v1610 = vmax.f32 %v1478, %v1546
  %v1611 = vmax.f32 %v1302, %v1547
  %v1612 = vmax.f32 %v1480, %v1548
  %v1613 = vmax.f32 %v1305, %v1549
  %v1614 = vmax.f32 %v1483, %v1550
  %v1615 = vmax.f32 %v1307, %v1551
  %v1616 = vmax.f32 %v1485, %v1552
  %v1617 = vmax.f32 %v1310, %v1553
  %v1618 = vmax.f32 %v1488, %v1554
  %v1619 = vmax.f32 %v1312, %v1555
  %v1620 = vmax.f32 %v1490, %v1556
  %v1621 = vmax.f32 %v1315, %v1557
  %v1622 = vmax.f32 %v1493, %v1558
  %v1623 = vmax.f32 %v1317, %v1559
  %v1624 = vmax.f32 %v1495, %v1560
  %v1625 = vld [vmem:[%s5 + $0x8] sm:$0xff]
  %v1626 = vld [vmem:[%s5 + $0x48] sm:$0xff]
  %v1627 = vld [vmem:[%s5 + $0x88] sm:$0xff]
  %v1628 = vld [vmem:[%s5 + $0xc8] sm:$0xff]
  %v1629 = vld [vmem:[%s5 + $0x108] sm:$0xff]
  %v1630 = vld [vmem:[%s5 + $0x148] sm:$0xff]
  %v1631 = vld [vmem:[%s5 + $0x188] sm:$0x11]
  %v1639 = vunpack.c.l.b16 %v1625
  %v1640 = vunpack.c.h.b16 %v1625
  %v1641 = vunpack.c.l.b16 %v1626
  %v1642 = vunpack.c.h.b16 %v1626
  %v1643 = vunpack.c.l.b16 %v1627
  %v1644 = vunpack.c.h.b16 %v1627
  %v1645 = vunpack.c.l.b16 %v1628
  %v1646 = vunpack.c.h.b16 %v1628
  %v1647 = vunpack.c.l.b16 %v1629
  %v1648 = vunpack.c.h.b16 %v1629
  %v1649 = vunpack.c.l.b16 %v1630
  %v1650 = vunpack.c.h.b16 %v1630
  %v1651 = vunpack.c.l.b16 %v1631
  %v1652 = vunpack.c.h.b16 %v1631
  %v1653 = vpack.c.b16 %v1641, %v1639
  %v1654 = vpack.c.b16 %v1642, %v1640
  %v1655 = vpack.c.b16 %v1645, %v1643
  %v1656 = vpack.c.b16 %v1646, %v1644
  %v1657 = vpack.c.b16 %v1649, %v1647
  %v1658 = vpack.c.b16 %v1650, %v1648
  %v1659 = vpack.c.b16 %v1651, %v1651
  %v1660 = vpack.c.b16 %v1652, %v1652
  %v1668 = vand.u32 %v1659, %v732
  %v1671 = vand.u32 %v1660, %v732
  %1673 = vmatpush.bf16.msra.mxu0 0
  %1674 = vmatpush.bf16.msra.mxu0 0
  %1675 = vmatpush.bf16.msra.mxu0 0
  %1676 = vmatpush.bf16.msra.mxu0 0
  %1677 = vmatpush.bf16.msra.mxu0 %v1668
  %1678 = vmatpush.bf16.msra.mxu0 %v1657
  %1679 = vmatpush.bf16.msra.mxu0 %v1655
  %1680 = vmatpush.bf16.msra.mxu0 %v1653
  %1681 = vmatmul.bf16.gmra.mxu0 %v683
  %v1682 = vpop.f32.mrf.mxu0
  %v1683 = vadd.f32 0.0, %v1682
  %v1684 = vpop.f32.mrf.mxu0
  %v1685 = vadd.f32 0.0, %v1684
  %1686 = vmatmul.bf16.gmra.mxu0 %v686
  %v1687 = vpop.f32.mrf.mxu0
  %v1688 = vadd.f32 0.0, %v1687
  %v1689 = vpop.f32.mrf.mxu0
  %v1690 = vadd.f32 0.0, %v1689
  %1691 = vmatmul.bf16.gmra.mxu0 %v689
  %v1692 = vpop.f32.mrf.mxu0
  %v1693 = vadd.f32 0.0, %v1692
  %v1694 = vpop.f32.mrf.mxu0
  %v1695 = vadd.f32 0.0, %v1694
  %1696 = vmatmul.bf16.gmra.mxu0 %v692
  %v1697 = vpop.f32.mrf.mxu0
  %v1698 = vadd.f32 0.0, %v1697
  %v1699 = vpop.f32.mrf.mxu0
  %v1700 = vadd.f32 0.0, %v1699
  %1701 = vmatmul.bf16.gmra.mxu0 %v695
  %v1702 = vpop.f32.mrf.mxu0
  %v1703 = vadd.f32 0.0, %v1702
  %v1704 = vpop.f32.mrf.mxu0
  %v1705 = vadd.f32 0.0, %v1704
  %1706 = vmatmul.bf16.gmra.mxu0 %v698
  %v1707 = vpop.f32.mrf.mxu0
  %v1708 = vadd.f32 0.0, %v1707
  %v1709 = vpop.f32.mrf.mxu0
  %v1710 = vadd.f32 0.0, %v1709
  %1711 = vmatmul.bf16.gmra.mxu0 %v701
  %v1712 = vpop.f32.mrf.mxu0
  %v1713 = vadd.f32 0.0, %v1712
  %v1714 = vpop.f32.mrf.mxu0
  %v1715 = vadd.f32 0.0, %v1714
  %1716 = vmatmul.bf16.gmra.mxu0 %v704
  %v1717 = vpop.f32.mrf.mxu0
  %v1718 = vadd.f32 0.0, %v1717
  %v1719 = vpop.f32.mrf.mxu0
  %v1720 = vadd.f32 0.0, %v1719
  %1721 = vmatmul.bf16.gmra.mxu0 %v707
  %v1722 = vpop.f32.mrf.mxu0
  %v1723 = vadd.f32 0.0, %v1722
  %v1724 = vpop.f32.mrf.mxu0
  %v1725 = vadd.f32 0.0, %v1724
  %1726 = vmatmul.bf16.gmra.mxu0 %v710
  %v1727 = vpop.f32.mrf.mxu0
  %v1728 = vadd.f32 0.0, %v1727
  %v1729 = vpop.f32.mrf.mxu0
  %v1730 = vadd.f32 0.0, %v1729
  %1731 = vmatmul.bf16.gmra.mxu0 %v713
  %v1732 = vpop.f32.mrf.mxu0
  %v1733 = vadd.f32 0.0, %v1732
  %v1734 = vpop.f32.mrf.mxu0
  %v1735 = vadd.f32 0.0, %v1734
  %1736 = vmatmul.bf16.gmra.mxu0 %v716
  %v1737 = vpop.f32.mrf.mxu0
  %v1738 = vadd.f32 0.0, %v1737
  %v1739 = vpop.f32.mrf.mxu0
  %v1740 = vadd.f32 0.0, %v1739
  %1741 = vmatmul.bf16.gmra.mxu0 %v719
  %v1742 = vpop.f32.mrf.mxu0
  %v1743 = vadd.f32 0.0, %v1742
  %v1744 = vpop.f32.mrf.mxu0
  %v1745 = vadd.f32 0.0, %v1744
  %1746 = vmatmul.bf16.gmra.mxu0 %v722
  %v1747 = vpop.f32.mrf.mxu0
  %v1748 = vadd.f32 0.0, %v1747
  %v1749 = vpop.f32.mrf.mxu0
  %v1750 = vadd.f32 0.0, %v1749
  %1751 = vmatmul.bf16.gmra.mxu0 %v725
  %v1752 = vpop.f32.mrf.mxu0
  %v1753 = vadd.f32 0.0, %v1752
  %v1754 = vpop.f32.mrf.mxu0
  %v1755 = vadd.f32 0.0, %v1754
  %1756 = vmatmul.bf16.gmra.mxu0 %v728
  %v1757 = vpop.f32.mrf.mxu0
  %v1758 = vadd.f32 0.0, %v1757
  %v1759 = vpop.f32.mrf.mxu0
  %v1760 = vadd.f32 0.0, %v1759
  %1761 = vdwg.mxu0
  %1762 = vmatpush.bf16.msra.mxu0 0
  %1763 = vmatpush.bf16.msra.mxu0 0
  %1764 = vmatpush.bf16.msra.mxu0 0
  %1765 = vmatpush.bf16.msra.mxu0 0
  %1766 = vmatpush.bf16.msra.mxu0 %v1671
  %1767 = vmatpush.bf16.msra.mxu0 %v1658
  %1768 = vmatpush.bf16.msra.mxu0 %v1656
  %1769 = vmatpush.bf16.msra.mxu0 %v1654
  %1770 = vmatmul.bf16.gmra.mxu0 %v683
  %v1771 = vpop.f32.mrf.mxu0
  %v1772 = vadd.f32 0.0, %v1771
  %v1773 = vpop.f32.mrf.mxu0
  %v1774 = vadd.f32 0.0, %v1773
  %1775 = vmatmul.bf16.gmra.mxu0 %v686
  %v1776 = vpop.f32.mrf.mxu0
  %v1777 = vadd.f32 0.0, %v1776
  %v1778 = vpop.f32.mrf.mxu0
  %v1779 = vadd.f32 0.0, %v1778
  %1780 = vmatmul.bf16.gmra.mxu0 %v689
  %v1781 = vpop.f32.mrf.mxu0
  %v1782 = vadd.f32 0.0, %v1781
  %v1783 = vpop.f32.mrf.mxu0
  %v1784 = vadd.f32 0.0, %v1783
  %1785 = vmatmul.bf16.gmra.mxu0 %v692
  %v1786 = vpop.f32.mrf.mxu0
  %v1787 = vadd.f32 0.0, %v1786
  %v1788 = vpop.f32.mrf.mxu0
  %v1789 = vadd.f32 0.0, %v1788
  %1790 = vmatmul.bf16.gmra.mxu0 %v695
  %v1791 = vpop.f32.mrf.mxu0
  %v1792 = vadd.f32 0.0, %v1791
  %v1793 = vpop.f32.mrf.mxu0
  %v1794 = vadd.f32 0.0, %v1793
  %1795 = vmatmul.bf16.gmra.mxu0 %v698
  %v1796 = vpop.f32.mrf.mxu0
  %v1797 = vadd.f32 0.0, %v1796
  %v1798 = vpop.f32.mrf.mxu0
  %v1799 = vadd.f32 0.0, %v1798
  %1800 = vmatmul.bf16.gmra.mxu0 %v701
  %v1801 = vpop.f32.mrf.mxu0
  %v1802 = vadd.f32 0.0, %v1801
  %v1803 = vpop.f32.mrf.mxu0
  %v1804 = vadd.f32 0.0, %v1803
  %1805 = vmatmul.bf16.gmra.mxu0 %v704
  %v1806 = vpop.f32.mrf.mxu0
  %v1807 = vadd.f32 0.0, %v1806
  %v1808 = vpop.f32.mrf.mxu0
  %v1809 = vadd.f32 0.0, %v1808
  %1810 = vmatmul.bf16.gmra.mxu0 %v707
  %v1811 = vpop.f32.mrf.mxu0
  %v1812 = vadd.f32 0.0, %v1811
  %v1813 = vpop.f32.mrf.mxu0
  %v1814 = vadd.f32 0.0, %v1813
  %1815 = vmatmul.bf16.gmra.mxu0 %v710
  %v1816 = vpop.f32.mrf.mxu0
  %v1817 = vadd.f32 0.0, %v1816
  %v1818 = vpop.f32.mrf.mxu0
  %v1819 = vadd.f32 0.0, %v1818
  %1820 = vmatmul.bf16.gmra.mxu0 %v713
  %v1821 = vpop.f32.mrf.mxu0
  %v1822 = vadd.f32 0.0, %v1821
  %v1823 = vpop.f32.mrf.mxu0
  %v1824 = vadd.f32 0.0, %v1823
  %1825 = vmatmul.bf16.gmra.mxu0 %v716
  %v1826 = vpop.f32.mrf.mxu0
  %v1827 = vadd.f32 0.0, %v1826
  %v1828 = vpop.f32.mrf.mxu0
  %v1829 = vadd.f32 0.0, %v1828
  %1830 = vmatmul.bf16.gmra.mxu0 %v719
  %v1831 = vpop.f32.mrf.mxu0
  %v1832 = vadd.f32 0.0, %v1831
  %v1833 = vpop.f32.mrf.mxu0
  %v1834 = vadd.f32 0.0, %v1833
  %1835 = vmatmul.bf16.gmra.mxu0 %v722
  %v1836 = vpop.f32.mrf.mxu0
  %v1837 = vadd.f32 0.0, %v1836
  %v1838 = vpop.f32.mrf.mxu0
  %v1839 = vadd.f32 0.0, %v1838
  %1840 = vmatmul.bf16.gmra.mxu0 %v725
  %v1841 = vpop.f32.mrf.mxu0
  %v1842 = vadd.f32 0.0, %v1841
  %v1843 = vpop.f32.mrf.mxu0
  %v1844 = vadd.f32 0.0, %v1843
  %1845 = vmatmul.bf16.gmra.mxu0 %v728
  %v1846 = vpop.f32.mrf.mxu0
  %v1847 = vadd.f32 0.0, %v1846
  %v1848 = vpop.f32.mrf.mxu0
  %v1849 = vadd.f32 0.0, %v1848
  %1850 = vdwg.mxu0
  %v1851 = vpack.c.bf16 %v1563, %v1561
  %v1852 = vpack.c.bf16 %v1564, %v1562
  %v1853 = vpack.c.bf16 %v1567, %v1565
  %v1854 = vpack.c.bf16 %v1568, %v1566
  %v1855 = vpack.c.bf16 %v1571, %v1569
  %v1856 = vpack.c.bf16 %v1572, %v1570
  %v1857 = vpack.c.bf16 %v1575, %v1573
  %v1858 = vpack.c.bf16 %v1576, %v1574
  %v1859 = vpack.c.bf16 %v1579, %v1577
  %v1860 = vpack.c.bf16 %v1580, %v1578
  %v1861 = vpack.c.bf16 %v1583, %v1581
  %v1862 = vpack.c.bf16 %v1584, %v1582
  %v1863 = vpack.c.bf16 %v1587, %v1585
  %v1864 = vpack.c.bf16 %v1588, %v1586
  %v1865 = vpack.c.bf16 %v1591, %v1589
  %v1866 = vpack.c.bf16 %v1592, %v1590
  %v1867 = vpack.c.bf16 %v1595, %v1593
  %v1868 = vpack.c.bf16 %v1596, %v1594
  %v1869 = vpack.c.bf16 %v1599, %v1597
  %v1870 = vpack.c.bf16 %v1600, %v1598
  %v1871 = vpack.c.bf16 %v1603, %v1601
  %v1872 = vpack.c.bf16 %v1604, %v1602
  %v1873 = vpack.c.bf16 %v1607, %v1605
  %v1874 = vpack.c.bf16 %v1608, %v1606
  %v1875 = vpack.c.bf16 %v1611, %v1609
  %v1876 = vpack.c.bf16 %v1612, %v1610
  %v1877 = vpack.c.bf16 %v1615, %v1613
  %v1878 = vpack.c.bf16 %v1616, %v1614
  %v1879 = vpack.c.bf16 %v1619, %v1617
  %v1880 = vpack.c.bf16 %v1620, %v1618
  %v1881 = vpack.c.bf16 %v1623, %v1621
  %v1882 = vpack.c.bf16 %v1624, %v1622
  %s1883 = scalar_lea.vmem %s4, 256
  %v1884 = vld [vmem:[%s1883] sm:$0xff]
  %v1885 = vld [vmem:[%s1883 + $0x8] sm:$0xff]
  %v1886 = vld [vmem:[%s1883 + $0x10] sm:$0xff]
  %v1887 = vld [vmem:[%s1883 + $0x18] sm:$0xff]
  %v1888 = vld [vmem:[%s1883 + $0x20] sm:$0xff]
  %v1889 = vld [vmem:[%s1883 + $0x28] sm:$0xff]
  %v1890 = vld [vmem:[%s1883 + $0x30] sm:$0xff]
  %v1891 = vld [vmem:[%s1883 + $0x38] sm:$0xff]
  %v1892 = vld [vmem:[%s1883 + $0x40] sm:$0xff]
  %v1893 = vld [vmem:[%s1883 + $0x48] sm:$0xff]
  %v1894 = vld [vmem:[%s1883 + $0x50] sm:$0xff]
  %v1895 = vld [vmem:[%s1883 + $0x58] sm:$0xff]
  %v1896 = vld [vmem:[%s1883 + $0x60] sm:$0xff]
  %v1897 = vld [vmem:[%s1883 + $0x68] sm:$0xff]
  %v1898 = vld [vmem:[%s1883 + $0x70] sm:$0xff]
  %v1899 = vld [vmem:[%s1883 + $0x78] sm:$0xff]
  %v1900 = vld [vmem:[%s1883 + $0x80] sm:$0xff]
  %v1901 = vld [vmem:[%s1883 + $0x88] sm:$0xff]
  %v1902 = vld [vmem:[%s1883 + $0x90] sm:$0xff]
  %v1903 = vld [vmem:[%s1883 + $0x98] sm:$0xff]
  %v1904 = vld [vmem:[%s1883 + $0xa0] sm:$0xff]
  %v1905 = vld [vmem:[%s1883 + $0xa8] sm:$0xff]
  %v1906 = vld [vmem:[%s1883 + $0xb0] sm:$0xff]
  %v1907 = vld [vmem:[%s1883 + $0xb8] sm:$0xff]
  %v1908 = vld [vmem:[%s1883 + $0xc0] sm:$0xff]
  %v1909 = vld [vmem:[%s1883 + $0xc8] sm:$0xff]
  %v1910 = vld [vmem:[%s1883 + $0xd0] sm:$0xff]
  %v1911 = vld [vmem:[%s1883 + $0xd8] sm:$0xff]
  %v1912 = vld [vmem:[%s1883 + $0xe0] sm:$0xff]
  %v1913 = vld [vmem:[%s1883 + $0xe8] sm:$0xff]
  %v1914 = vld [vmem:[%s1883 + $0xf0] sm:$0xff]
  %v1915 = vld [vmem:[%s1883 + $0xf8] sm:$0xff]
  %v1948 = vunpack.c.l.b16 %v1884
  %v1949 = vunpack.c.h.b16 %v1884
  %v1950 = vunpack.c.l.b16 %v1885
  %v1951 = vunpack.c.h.b16 %v1885
  %v1952 = vunpack.c.l.b16 %v1886
  %v1953 = vunpack.c.h.b16 %v1886
  %v1954 = vunpack.c.l.b16 %v1887
  %v1955 = vunpack.c.h.b16 %v1887
  %v1956 = vunpack.c.l.b16 %v1888
  %v1957 = vunpack.c.h.b16 %v1888
  %v1958 = vunpack.c.l.b16 %v1889
  %v1959 = vunpack.c.h.b16 %v1889
  %v1960 = vunpack.c.l.b16 %v1890
  %v1961 = vunpack.c.h.b16 %v1890
  %v1962 = vunpack.c.l.b16 %v1891
  %v1963 = vunpack.c.h.b16 %v1891
  %v1964 = vunpack.c.l.b16 %v1892
  %v1965 = vunpack.c.h.b16 %v1892
  %v1966 = vunpack.c.l.b16 %v1893
  %v1967 = vunpack.c.h.b16 %v1893
  %v1968 = vunpack.c.l.b16 %v1894
  %v1969 = vunpack.c.h.b16 %v1894
  %v1970 = vunpack.c.l.b16 %v1895
  %v1971 = vunpack.c.h.b16 %v1895
  %v1972 = vunpack.c.l.b16 %v1896
  %v1973 = vunpack.c.h.b16 %v1896
  %v1974 = vunpack.c.l.b16 %v1897
  %v1975 = vunpack.c.h.b16 %v1897
  %v1976 = vunpack.c.l.b16 %v1898
  %v1977 = vunpack.c.h.b16 %v1898
  %v1978 = vunpack.c.l.b16 %v1899
  %v1979 = vunpack.c.h.b16 %v1899
  %v1980 = vunpack.c.l.b16 %v1900
  %v1981 = vunpack.c.h.b16 %v1900
  %v1982 = vunpack.c.l.b16 %v1901
  %v1983 = vunpack.c.h.b16 %v1901
  %v1984 = vunpack.c.l.b16 %v1902
  %v1985 = vunpack.c.h.b16 %v1902
  %v1986 = vunpack.c.l.b16 %v1903
  %v1987 = vunpack.c.h.b16 %v1903
  %v1988 = vunpack.c.l.b16 %v1904
  %v1989 = vunpack.c.h.b16 %v1904
  %v1990 = vunpack.c.l.b16 %v1905
  %v1991 = vunpack.c.h.b16 %v1905
  %v1992 = vunpack.c.l.b16 %v1906
  %v1993 = vunpack.c.h.b16 %v1906
  %v1994 = vunpack.c.l.b16 %v1907
  %v1995 = vunpack.c.h.b16 %v1907
  %v1996 = vunpack.c.l.b16 %v1908
  %v1997 = vunpack.c.h.b16 %v1908
  %v1998 = vunpack.c.l.b16 %v1909
  %v1999 = vunpack.c.h.b16 %v1909
  %v2000 = vunpack.c.l.b16 %v1910
  %v2001 = vunpack.c.h.b16 %v1910
  %v2002 = vunpack.c.l.b16 %v1911
  %v2003 = vunpack.c.h.b16 %v1911
  %v2004 = vunpack.c.l.b16 %v1912
  %v2005 = vunpack.c.h.b16 %v1912
  %v2006 = vunpack.c.l.b16 %v1913
  %v2007 = vunpack.c.h.b16 %v1913
  %v2008 = vunpack.c.l.b16 %v1914
  %v2009 = vunpack.c.h.b16 %v1914
  %v2010 = vunpack.c.l.b16 %v1915
  %v2011 = vunpack.c.h.b16 %v1915
  %v2012 = vpack.c.b16 %v1950, %v1948
  %v2013 = vpack.c.b16 %v1951, %v1949
  %v2014 = vpack.c.b16 %v1954, %v1952
  %v2015 = vpack.c.b16 %v1955, %v1953
  %v2016 = vpack.c.b16 %v1958, %v1956
  %v2017 = vpack.c.b16 %v1959, %v1957
  %v2018 = vpack.c.b16 %v1962, %v1960
  %v2019 = vpack.c.b16 %v1963, %v1961
  %v2020 = vpack.c.b16 %v1966, %v1964
  %v2021 = vpack.c.b16 %v1967, %v1965
  %v2022 = vpack.c.b16 %v1970, %v1968
  %v2023 = vpack.c.b16 %v1971, %v1969
  %v2024 = vpack.c.b16 %v1974, %v1972
  %v2025 = vpack.c.b16 %v1975, %v1973
  %v2026 = vpack.c.b16 %v1978, %v1976
  %v2027 = vpack.c.b16 %v1979, %v1977
  %v2028 = vpack.c.b16 %v1982, %v1980
  %v2029 = vpack.c.b16 %v1983, %v1981
  %v2030 = vpack.c.b16 %v1986, %v1984
  %v2031 = vpack.c.b16 %v1987, %v1985
  %v2032 = vpack.c.b16 %v1990, %v1988
  %v2033 = vpack.c.b16 %v1991, %v1989
  %v2034 = vpack.c.b16 %v1994, %v1992
  %v2035 = vpack.c.b16 %v1995, %v1993
  %v2036 = vpack.c.b16 %v1998, %v1996
  %v2037 = vpack.c.b16 %v1999, %v1997
  %v2038 = vpack.c.b16 %v2002, %v2000
  %v2039 = vpack.c.b16 %v2003, %v2001
  %v2040 = vpack.c.b16 %v2006, %v2004
  %v2041 = vpack.c.b16 %v2007, %v2005
  %v2042 = vpack.c.b16 %v2010, %v2008
  %v2043 = vpack.c.b16 %v2011, %v2009
  %2076 = vmatpush.bf16.msra.mxu0 %v2026
  %2077 = vmatpush.bf16.msra.mxu0 %v2024
  %2078 = vmatpush.bf16.msra.mxu0 %v2022
  %2079 = vmatpush.bf16.msra.mxu0 %v2020
  %2080 = vmatpush.bf16.msra.mxu0 %v2018
  %2081 = vmatpush.bf16.msra.mxu0 %v2016
  %2082 = vmatpush.bf16.msra.mxu0 %v2014
  %2083 = vmatpush.bf16.msra.mxu0 %v2012
  %2084 = vmatmul.bf16.gmra.mxu0 %v1851
  %v2085 = vpop.f32.mrf.mxu0
  %v2086 = vadd.f32 %v1683, %v2085
  %v2087 = vpop.f32.mrf.mxu0
  %v2088 = vadd.f32 %v1685, %v2087
  %2089 = vmatmul.bf16.gmra.mxu0 %v1853
  %v2090 = vpop.f32.mrf.mxu0
  %v2091 = vadd.f32 %v1688, %v2090
  %v2092 = vpop.f32.mrf.mxu0
  %v2093 = vadd.f32 %v1690, %v2092
  %2094 = vmatmul.bf16.gmra.mxu0 %v1855
  %v2095 = vpop.f32.mrf.mxu0
  %v2096 = vadd.f32 %v1693, %v2095
  %v2097 = vpop.f32.mrf.mxu0
  %v2098 = vadd.f32 %v1695, %v2097
  %2099 = vmatmul.bf16.gmra.mxu0 %v1857
  %v2100 = vpop.f32.mrf.mxu0
  %v2101 = vadd.f32 %v1698, %v2100
  %v2102 = vpop.f32.mrf.mxu0
  %v2103 = vadd.f32 %v1700, %v2102
  %2104 = vmatmul.bf16.gmra.mxu0 %v1859
  %v2105 = vpop.f32.mrf.mxu0
  %v2106 = vadd.f32 %v1703, %v2105
  %v2107 = vpop.f32.mrf.mxu0
  %v2108 = vadd.f32 %v1705, %v2107
  %2109 = vmatmul.bf16.gmra.mxu0 %v1861
  %v2110 = vpop.f32.mrf.mxu0
  %v2111 = vadd.f32 %v1708, %v2110
  %v2112 = vpop.f32.mrf.mxu0
  %v2113 = vadd.f32 %v1710, %v2112
  %2114 = vmatmul.bf16.gmra.mxu0 %v1863
  %v2115 = vpop.f32.mrf.mxu0
  %v2116 = vadd.f32 %v1713, %v2115
  %v2117 = vpop.f32.mrf.mxu0
  %v2118 = vadd.f32 %v1715, %v2117
  %2119 = vmatmul.bf16.gmra.mxu0 %v1865
  %v2120 = vpop.f32.mrf.mxu0
  %v2121 = vadd.f32 %v1718, %v2120
  %v2122 = vpop.f32.mrf.mxu0
  %v2123 = vadd.f32 %v1720, %v2122
  %2124 = vmatmul.bf16.gmra.mxu0 %v1867
  %v2125 = vpop.f32.mrf.mxu0
  %v2126 = vadd.f32 %v1723, %v2125
  %v2127 = vpop.f32.mrf.mxu0
  %v2128 = vadd.f32 %v1725, %v2127
  %2129 = vmatmul.bf16.gmra.mxu0 %v1869
  %v2130 = vpop.f32.mrf.mxu0
  %v2131 = vadd.f32 %v1728, %v2130
  %v2132 = vpop.f32.mrf.mxu0
  %v2133 = vadd.f32 %v1730, %v2132
  %2134 = vmatmul.bf16.gmra.mxu0 %v1871
  %v2135 = vpop.f32.mrf.mxu0
  %v2136 = vadd.f32 %v1733, %v2135
  %v2137 = vpop.f32.mrf.mxu0
  %v2138 = vadd.f32 %v1735, %v2137
  %2139 = vmatmul.bf16.gmra.mxu0 %v1873
  %v2140 = vpop.f32.mrf.mxu0
  %v2141 = vadd.f32 %v1738, %v2140
  %v2142 = vpop.f32.mrf.mxu0
  %v2143 = vadd.f32 %v1740, %v2142
  %2144 = vmatmul.bf16.gmra.mxu0 %v1875
  %v2145 = vpop.f32.mrf.mxu0
  %v2146 = vadd.f32 %v1743, %v2145
  %v2147 = vpop.f32.mrf.mxu0
  %v2148 = vadd.f32 %v1745, %v2147
  %2149 = vmatmul.bf16.gmra.mxu0 %v1877
  %v2150 = vpop.f32.mrf.mxu0
  %v2151 = vadd.f32 %v1748, %v2150
  %v2152 = vpop.f32.mrf.mxu0
  %v2153 = vadd.f32 %v1750, %v2152
  %2154 = vmatmul.bf16.gmra.mxu0 %v1879
  %v2155 = vpop.f32.mrf.mxu0
  %v2156 = vadd.f32 %v1753, %v2155
  %v2157 = vpop.f32.mrf.mxu0
  %v2158 = vadd.f32 %v1755, %v2157
  %2159 = vmatmul.bf16.gmra.mxu0 %v1881
  %v2160 = vpop.f32.mrf.mxu0
  %v2161 = vadd.f32 %v1758, %v2160
  %v2162 = vpop.f32.mrf.mxu0
  %v2163 = vadd.f32 %v1760, %v2162
  %2164 = vdwg.mxu0
  %2165 = vmatpush.bf16.msra.mxu0 %v2042
  %2166 = vmatpush.bf16.msra.mxu0 %v2040
  %2167 = vmatpush.bf16.msra.mxu0 %v2038
  %2168 = vmatpush.bf16.msra.mxu0 %v2036
  %2169 = vmatpush.bf16.msra.mxu0 %v2034
  %2170 = vmatpush.bf16.msra.mxu0 %v2032
  %2171 = vmatpush.bf16.msra.mxu0 %v2030
  %2172 = vmatpush.bf16.msra.mxu0 %v2028
  %2173 = vmatmul.bf16.gmra.mxu0 %v1852
  %v2174 = vpop.f32.mrf.mxu0
  %v2175 = vadd.f32 %v2086, %v2174
  %v2176 = vpop.f32.mrf.mxu0
  %v2177 = vadd.f32 %v2088, %v2176
  %2178 = vmatmul.bf16.gmra.mxu0 %v1854
  %v2179 = vpop.f32.mrf.mxu0
  %v2180 = vadd.f32 %v2091, %v2179
  %v2181 = vpop.f32.mrf.mxu0
  %v2182 = vadd.f32 %v2093, %v2181
  %2183 = vmatmul.bf16.gmra.mxu0 %v1856
  %v2184 = vpop.f32.mrf.mxu0
  %v2185 = vadd.f32 %v2096, %v2184
  %v2186 = vpop.f32.mrf.mxu0
  %v2187 = vadd.f32 %v2098, %v2186
  %2188 = vmatmul.bf16.gmra.mxu0 %v1858
  %v2189 = vpop.f32.mrf.mxu0
  %v2190 = vadd.f32 %v2101, %v2189
  %v2191 = vpop.f32.mrf.mxu0
  %v2192 = vadd.f32 %v2103, %v2191
  %2193 = vmatmul.bf16.gmra.mxu0 %v1860
  %v2194 = vpop.f32.mrf.mxu0
  %v2195 = vadd.f32 %v2106, %v2194
  %v2196 = vpop.f32.mrf.mxu0
  %v2197 = vadd.f32 %v2108, %v2196
  %2198 = vmatmul.bf16.gmra.mxu0 %v1862
  %v2199 = vpop.f32.mrf.mxu0
  %v2200 = vadd.f32 %v2111, %v2199
  %v2201 = vpop.f32.mrf.mxu0
  %v2202 = vadd.f32 %v2113, %v2201
  %2203 = vmatmul.bf16.gmra.mxu0 %v1864
  %v2204 = vpop.f32.mrf.mxu0
  %v2205 = vadd.f32 %v2116, %v2204
  %v2206 = vpop.f32.mrf.mxu0
  %v2207 = vadd.f32 %v2118, %v2206
  %2208 = vmatmul.bf16.gmra.mxu0 %v1866
  %v2209 = vpop.f32.mrf.mxu0
  %v2210 = vadd.f32 %v2121, %v2209
  %v2211 = vpop.f32.mrf.mxu0
  %v2212 = vadd.f32 %v2123, %v2211
  %2213 = vmatmul.bf16.gmra.mxu0 %v1868
  %v2214 = vpop.f32.mrf.mxu0
  %v2215 = vadd.f32 %v2126, %v2214
  %v2216 = vpop.f32.mrf.mxu0
  %v2217 = vadd.f32 %v2128, %v2216
  %2218 = vmatmul.bf16.gmra.mxu0 %v1870
  %v2219 = vpop.f32.mrf.mxu0
  %v2220 = vadd.f32 %v2131, %v2219
  %v2221 = vpop.f32.mrf.mxu0
  %v2222 = vadd.f32 %v2133, %v2221
  %2223 = vmatmul.bf16.gmra.mxu0 %v1872
  %v2224 = vpop.f32.mrf.mxu0
  %v2225 = vadd.f32 %v2136, %v2224
  %v2226 = vpop.f32.mrf.mxu0
  %v2227 = vadd.f32 %v2138, %v2226
  %2228 = vmatmul.bf16.gmra.mxu0 %v1874
  %v2229 = vpop.f32.mrf.mxu0
  %v2230 = vadd.f32 %v2141, %v2229
  %v2231 = vpop.f32.mrf.mxu0
  %v2232 = vadd.f32 %v2143, %v2231
  %2233 = vmatmul.bf16.gmra.mxu0 %v1876
  %v2234 = vpop.f32.mrf.mxu0
  %v2235 = vadd.f32 %v2146, %v2234
  %v2236 = vpop.f32.mrf.mxu0
  %v2237 = vadd.f32 %v2148, %v2236
  %2238 = vmatmul.bf16.gmra.mxu0 %v1878
  %v2239 = vpop.f32.mrf.mxu0
  %v2240 = vadd.f32 %v2151, %v2239
  %v2241 = vpop.f32.mrf.mxu0
  %v2242 = vadd.f32 %v2153, %v2241
  %2243 = vmatmul.bf16.gmra.mxu0 %v1880
  %v2244 = vpop.f32.mrf.mxu0
  %v2245 = vadd.f32 %v2156, %v2244
  %v2246 = vpop.f32.mrf.mxu0
  %v2247 = vadd.f32 %v2158, %v2246
  %2248 = vmatmul.bf16.gmra.mxu0 %v1882
  %v2249 = vpop.f32.mrf.mxu0
  %v2250 = vadd.f32 %v2161, %v2249
  %v2251 = vpop.f32.mrf.mxu0
  %v2252 = vadd.f32 %v2163, %v2251
  %2253 = vdwg.mxu0
  %2254 = vmatpush.bf16.msra.mxu0 %v2027
  %2255 = vmatpush.bf16.msra.mxu0 %v2025
  %2256 = vmatpush.bf16.msra.mxu0 %v2023
  %2257 = vmatpush.bf16.msra.mxu0 %v2021
  %2258 = vmatpush.bf16.msra.mxu0 %v2019
  %2259 = vmatpush.bf16.msra.mxu0 %v2017
  %2260 = vmatpush.bf16.msra.mxu0 %v2015
  %2261 = vmatpush.bf16.msra.mxu0 %v2013
  %2262 = vmatmul.bf16.gmra.mxu0 %v1851
  %v2263 = vpop.f32.mrf.mxu0
  %v2264 = vadd.f32 %v1772, %v2263
  %v2265 = vpop.f32.mrf.mxu0
  %v2266 = vadd.f32 %v1774, %v2265
  %2267 = vmatmul.bf16.gmra.mxu0 %v1853
  %v2268 = vpop.f32.mrf.mxu0
  %v2269 = vadd.f32 %v1777, %v2268
  %v2270 = vpop.f32.mrf.mxu0
  %v2271 = vadd.f32 %v1779, %v2270
  %2272 = vmatmul.bf16.gmra.mxu0 %v1855
  %v2273 = vpop.f32.mrf.mxu0
  %v2274 = vadd.f32 %v1782, %v2273
  %v2275 = vpop.f32.mrf.mxu0
  %v2276 = vadd.f32 %v1784, %v2275
  %2277 = vmatmul.bf16.gmra.mxu0 %v1857
  %v2278 = vpop.f32.mrf.mxu0
  %v2279 = vadd.f32 %v1787, %v2278
  %v2280 = vpop.f32.mrf.mxu0
  %v2281 = vadd.f32 %v1789, %v2280
  %2282 = vmatmul.bf16.gmra.mxu0 %v1859
  %v2283 = vpop.f32.mrf.mxu0
  %v2284 = vadd.f32 %v1792, %v2283
  %v2285 = vpop.f32.mrf.mxu0
  %v2286 = vadd.f32 %v1794, %v2285
  %2287 = vmatmul.bf16.gmra.mxu0 %v1861
  %v2288 = vpop.f32.mrf.mxu0
  %v2289 = vadd.f32 %v1797, %v2288
  %v2290 = vpop.f32.mrf.mxu0
  %v2291 = vadd.f32 %v1799, %v2290
  %2292 = vmatmul.bf16.gmra.mxu0 %v1863
  %v2293 = vpop.f32.mrf.mxu0
  %v2294 = vadd.f32 %v1802, %v2293
  %v2295 = vpop.f32.mrf.mxu0
  %v2296 = vadd.f32 %v1804, %v2295
  %2297 = vmatmul.bf16.gmra.mxu0 %v1865
  %v2298 = vpop.f32.mrf.mxu0
  %v2299 = vadd.f32 %v1807, %v2298
  %v2300 = vpop.f32.mrf.mxu0
  %v2301 = vadd.f32 %v1809, %v2300
  %2302 = vmatmul.bf16.gmra.mxu0 %v1867
  %v2303 = vpop.f32.mrf.mxu0
  %v2304 = vadd.f32 %v1812, %v2303
  %v2305 = vpop.f32.mrf.mxu0
  %v2306 = vadd.f32 %v1814, %v2305
  %2307 = vmatmul.bf16.gmra.mxu0 %v1869
  %v2308 = vpop.f32.mrf.mxu0
  %v2309 = vadd.f32 %v1817, %v2308
  %v2310 = vpop.f32.mrf.mxu0
  %v2311 = vadd.f32 %v1819, %v2310
  %2312 = vmatmul.bf16.gmra.mxu0 %v1871
  %v2313 = vpop.f32.mrf.mxu0
  %v2314 = vadd.f32 %v1822, %v2313
  %v2315 = vpop.f32.mrf.mxu0
  %v2316 = vadd.f32 %v1824, %v2315
  %2317 = vmatmul.bf16.gmra.mxu0 %v1873
  %v2318 = vpop.f32.mrf.mxu0
  %v2319 = vadd.f32 %v1827, %v2318
  %v2320 = vpop.f32.mrf.mxu0
  %v2321 = vadd.f32 %v1829, %v2320
  %2322 = vmatmul.bf16.gmra.mxu0 %v1875
  %v2323 = vpop.f32.mrf.mxu0
  %v2324 = vadd.f32 %v1832, %v2323
  %v2325 = vpop.f32.mrf.mxu0
  %v2326 = vadd.f32 %v1834, %v2325
  %2327 = vmatmul.bf16.gmra.mxu0 %v1877
  %v2328 = vpop.f32.mrf.mxu0
  %v2329 = vadd.f32 %v1837, %v2328
  %v2330 = vpop.f32.mrf.mxu0
  %v2331 = vadd.f32 %v1839, %v2330
  %2332 = vmatmul.bf16.gmra.mxu0 %v1879
  %v2333 = vpop.f32.mrf.mxu0
  %v2334 = vadd.f32 %v1842, %v2333
  %v2335 = vpop.f32.mrf.mxu0
  %v2336 = vadd.f32 %v1844, %v2335
  %2337 = vmatmul.bf16.gmra.mxu0 %v1881
  %v2338 = vpop.f32.mrf.mxu0
  %v2339 = vadd.f32 %v1847, %v2338
  %v2340 = vpop.f32.mrf.mxu0
  %v2341 = vadd.f32 %v1849, %v2340
  %2342 = vdwg.mxu0
  %2343 = vmatpush.bf16.msra.mxu0 %v2043
  %2344 = vmatpush.bf16.msra.mxu0 %v2041
  %2345 = vmatpush.bf16.msra.mxu0 %v2039
  %2346 = vmatpush.bf16.msra.mxu0 %v2037
  %2347 = vmatpush.bf16.msra.mxu0 %v2035
  %2348 = vmatpush.bf16.msra.mxu0 %v2033
  %2349 = vmatpush.bf16.msra.mxu0 %v2031
  %2350 = vmatpush.bf16.msra.mxu0 %v2029
  %2351 = vmatmul.bf16.gmra.mxu0 %v1852
  %v2352 = vpop.f32.mrf.mxu0
  %v2353 = vadd.f32 %v2264, %v2352
  %v2354 = vpop.f32.mrf.mxu0
  %v2355 = vadd.f32 %v2266, %v2354
  %2356 = vmatmul.bf16.gmra.mxu0 %v1854
  %v2357 = vpop.f32.mrf.mxu0
  %v2358 = vadd.f32 %v2269, %v2357
  %v2359 = vpop.f32.mrf.mxu0
  %v2360 = vadd.f32 %v2271, %v2359
  %2361 = vmatmul.bf16.gmra.mxu0 %v1856
  %v2362 = vpop.f32.mrf.mxu0
  %v2363 = vadd.f32 %v2274, %v2362
  %v2364 = vpop.f32.mrf.mxu0
  %v2365 = vadd.f32 %v2276, %v2364
  %2366 = vmatmul.bf16.gmra.mxu0 %v1858
  %v2367 = vpop.f32.mrf.mxu0
  %v2368 = vadd.f32 %v2279, %v2367
  %v2369 = vpop.f32.mrf.mxu0
  %v2370 = vadd.f32 %v2281, %v2369
  %2371 = vmatmul.bf16.gmra.mxu0 %v1860
  %v2372 = vpop.f32.mrf.mxu0
  %v2373 = vadd.f32 %v2284, %v2372
  %v2374 = vpop.f32.mrf.mxu0
  %v2375 = vadd.f32 %v2286, %v2374
  %2376 = vmatmul.bf16.gmra.mxu0 %v1862
  %v2377 = vpop.f32.mrf.mxu0
  %v2378 = vadd.f32 %v2289, %v2377
  %v2379 = vpop.f32.mrf.mxu0
  %v2380 = vadd.f32 %v2291, %v2379
  %2381 = vmatmul.bf16.gmra.mxu0 %v1864
  %v2382 = vpop.f32.mrf.mxu0
  %v2383 = vadd.f32 %v2294, %v2382
  %v2384 = vpop.f32.mrf.mxu0
  %v2385 = vadd.f32 %v2296, %v2384
  %2386 = vmatmul.bf16.gmra.mxu0 %v1866
  %v2387 = vpop.f32.mrf.mxu0
  %v2388 = vadd.f32 %v2299, %v2387
  %v2389 = vpop.f32.mrf.mxu0
  %v2390 = vadd.f32 %v2301, %v2389
  %2391 = vmatmul.bf16.gmra.mxu0 %v1868
  %v2392 = vpop.f32.mrf.mxu0
  %v2393 = vadd.f32 %v2304, %v2392
  %v2394 = vpop.f32.mrf.mxu0
  %v2395 = vadd.f32 %v2306, %v2394
  %2396 = vmatmul.bf16.gmra.mxu0 %v1870
  %v2397 = vpop.f32.mrf.mxu0
  %v2398 = vadd.f32 %v2309, %v2397
  %v2399 = vpop.f32.mrf.mxu0
  %v2400 = vadd.f32 %v2311, %v2399
  %2401 = vmatmul.bf16.gmra.mxu0 %v1872
  %v2402 = vpop.f32.mrf.mxu0
  %v2403 = vadd.f32 %v2314, %v2402
  %v2404 = vpop.f32.mrf.mxu0
  %v2405 = vadd.f32 %v2316, %v2404
  %2406 = vmatmul.bf16.gmra.mxu0 %v1874
  %v2407 = vpop.f32.mrf.mxu0
  %v2408 = vadd.f32 %v2319, %v2407
  %v2409 = vpop.f32.mrf.mxu0
  %v2410 = vadd.f32 %v2321, %v2409
  %2411 = vmatmul.bf16.gmra.mxu0 %v1876
  %v2412 = vpop.f32.mrf.mxu0
  %v2413 = vadd.f32 %v2324, %v2412
  %v2414 = vpop.f32.mrf.mxu0
  %v2415 = vadd.f32 %v2326, %v2414
  %2416 = vmatmul.bf16.gmra.mxu0 %v1878
  %v2417 = vpop.f32.mrf.mxu0
  %v2418 = vadd.f32 %v2329, %v2417
  %v2419 = vpop.f32.mrf.mxu0
  %v2420 = vadd.f32 %v2331, %v2419
  %2421 = vmatmul.bf16.gmra.mxu0 %v1880
  %v2422 = vpop.f32.mrf.mxu0
  %v2423 = vadd.f32 %v2334, %v2422
  %v2424 = vpop.f32.mrf.mxu0
  %v2425 = vadd.f32 %v2336, %v2424
  %2426 = vmatmul.bf16.gmra.mxu0 %v1882
  %v2427 = vpop.f32.mrf.mxu0
  %v2428 = vadd.f32 %v2339, %v2427
  %v2429 = vpop.f32.mrf.mxu0
  %v2430 = vadd.f32 %v2341, %v2429
  %2431 = vdwg.mxu0
  %v2432 = vadd.f32 %v495, %v2175
  %v2433 = vadd.f32 %v496, %v2353
  %v2434 = vadd.f32 %v497, %v2177
  %v2435 = vadd.f32 %v498, %v2355
  %v2436 = vadd.f32 %v499, %v2180
  %v2437 = vadd.f32 %v500, %v2358
  %v2438 = vadd.f32 %v501, %v2182
  %v2439 = vadd.f32 %v502, %v2360
  %v2440 = vadd.f32 %v503, %v2185
  %v2441 = vadd.f32 %v504, %v2363
  %v2442 = vadd.f32 %v505, %v2187
  %v2443 = vadd.f32 %v506, %v2365
  %v2444 = vadd.f32 %v507, %v2190
  %v2445 = vadd.f32 %v508, %v2368
  %v2446 = vadd.f32 %v509, %v2192
  %v2447 = vadd.f32 %v510, %v2370
  %v2448 = vadd.f32 %v511, %v2195
  %v2449 = vadd.f32 %v512, %v2373
  %v2450 = vadd.f32 %v513, %v2197
  %v2451 = vadd.f32 %v514, %v2375
  %v2452 = vadd.f32 %v515, %v2200
  %v2453 = vadd.f32 %v516, %v2378
  %v2454 = vadd.f32 %v517, %v2202
  %v2455 = vadd.f32 %v518, %v2380
  %v2456 = vadd.f32 %v519, %v2205
  %v2457 = vadd.f32 %v520, %v2383
  %v2458 = vadd.f32 %v521, %v2207
  %v2459 = vadd.f32 %v522, %v2385
  %v2460 = vadd.f32 %v523, %v2210
  %v2461 = vadd.f32 %v524, %v2388
  %v2462 = vadd.f32 %v525, %v2212
  %v2463 = vadd.f32 %v526, %v2390
  %v2464 = vadd.f32 %v527, %v2215
  %v2465 = vadd.f32 %v528, %v2393
  %v2466 = vadd.f32 %v529, %v2217
  %v2467 = vadd.f32 %v530, %v2395
  %v2468 = vadd.f32 %v531, %v2220
  %v2469 = vadd.f32 %v532, %v2398
  %v2470 = vadd.f32 %v533, %v2222
  %v2471 = vadd.f32 %v534, %v2400
  %v2472 = vadd.f32 %v535, %v2225
  %v2473 = vadd.f32 %v536, %v2403
  %v2474 = vadd.f32 %v537, %v2227
  %v2475 = vadd.f32 %v538, %v2405
  %v2476 = vadd.f32 %v539, %v2230
  %v2477 = vadd.f32 %v540, %v2408
  %v2478 = vadd.f32 %v541, %v2232
  %v2479 = vadd.f32 %v542, %v2410
  %v2480 = vadd.f32 %v543, %v2235
  %v2481 = vadd.f32 %v544, %v2413
  %v2482 = vadd.f32 %v545, %v2237
  %v2483 = vadd.f32 %v546, %v2415
  %v2484 = vadd.f32 %v547, %v2240
  %v2485 = vadd.f32 %v548, %v2418
  %v2486 = vadd.f32 %v549, %v2242
  %v2487 = vadd.f32 %v550, %v2420
  %v2488 = vadd.f32 %v551, %v2245
  %v2489 = vadd.f32 %v552, %v2423
  %v2490 = vadd.f32 %v553, %v2247
  %v2491 = vadd.f32 %v554, %v2425
  %v2492 = vadd.f32 %v555, %v2250
  %v2493 = vadd.f32 %v556, %v2428
  %v2494 = vadd.f32 %v557, %v2252
  %v2495 = vadd.f32 %v558, %v2430
  %v2496 = vmul.f32 %v2432, 0.2
  %v2497 = vmul.f32 %v2433, 0.2
  %v2498 = vmul.f32 %v2434, 0.2
  %v2499 = vmul.f32 %v2435, 0.2
  %v2500 = vmul.f32 %v2436, 0.2
  %v2501 = vmul.f32 %v2437, 0.2
  %v2502 = vmul.f32 %v2438, 0.2
  %v2503 = vmul.f32 %v2439, 0.2
  %v2504 = vmul.f32 %v2440, 0.2
  %v2505 = vmul.f32 %v2441, 0.2
  %v2506 = vmul.f32 %v2442, 0.2
  %v2507 = vmul.f32 %v2443, 0.2
  %v2508 = vmul.f32 %v2444, 0.2
  %v2509 = vmul.f32 %v2445, 0.2
  %v2510 = vmul.f32 %v2446, 0.2
  %v2511 = vmul.f32 %v2447, 0.2
  %v2512 = vmul.f32 %v2448, 0.2
  %v2513 = vmul.f32 %v2449, 0.2
  %v2514 = vmul.f32 %v2450, 0.2
  %v2515 = vmul.f32 %v2451, 0.2
  %v2516 = vmul.f32 %v2452, 0.2
  %v2517 = vmul.f32 %v2453, 0.2
  %v2518 = vmul.f32 %v2454, 0.2
  %v2519 = vmul.f32 %v2455, 0.2
  %v2520 = vmul.f32 %v2456, 0.2
  %v2521 = vmul.f32 %v2457, 0.2
  %v2522 = vmul.f32 %v2458, 0.2
  %v2523 = vmul.f32 %v2459, 0.2
  %v2524 = vmul.f32 %v2460, 0.2
  %v2525 = vmul.f32 %v2461, 0.2
  %v2526 = vmul.f32 %v2462, 0.2
  %v2527 = vmul.f32 %v2463, 0.2
  %v2528 = vmul.f32 %v2464, 0.2
  %v2529 = vmul.f32 %v2465, 0.2
  %v2530 = vmul.f32 %v2466, 0.2
  %v2531 = vmul.f32 %v2467, 0.2
  %v2532 = vmul.f32 %v2468, 0.2
  %v2533 = vmul.f32 %v2469, 0.2
  %v2534 = vmul.f32 %v2470, 0.2
  %v2535 = vmul.f32 %v2471, 0.2
  %v2536 = vmul.f32 %v2472, 0.2
  %v2537 = vmul.f32 %v2473, 0.2
  %v2538 = vmul.f32 %v2474, 0.2
  %v2539 = vmul.f32 %v2475, 0.2
  %v2540 = vmul.f32 %v2476, 0.2
  %v2541 = vmul.f32 %v2477, 0.2
  %v2542 = vmul.f32 %v2478, 0.2
  %v2543 = vmul.f32 %v2479, 0.2
  %v2544 = vmul.f32 %v2480, 0.2
  %v2545 = vmul.f32 %v2481, 0.2
  %v2546 = vmul.f32 %v2482, 0.2
  %v2547 = vmul.f32 %v2483, 0.2
  %v2548 = vmul.f32 %v2484, 0.2
  %v2549 = vmul.f32 %v2485, 0.2
  %v2550 = vmul.f32 %v2486, 0.2
  %v2551 = vmul.f32 %v2487, 0.2
  %v2552 = vmul.f32 %v2488, 0.2
  %v2553 = vmul.f32 %v2489, 0.2
  %v2554 = vmul.f32 %v2490, 0.2
  %v2555 = vmul.f32 %v2491, 0.2
  %v2556 = vmul.f32 %v2492, 0.2
  %v2557 = vmul.f32 %v2493, 0.2
  %v2558 = vmul.f32 %v2494, 0.2
  %v2559 = vmul.f32 %v2495, 0.2
  %v2560 = vmax.f32 %v2432, %v2496
  %v2561 = vmax.f32 %v2433, %v2497
  %v2562 = vmax.f32 %v2434, %v2498
  %v2563 = vmax.f32 %v2435, %v2499
  %v2564 = vmax.f32 %v2436, %v2500
  %v2565 = vmax.f32 %v2437, %v2501
  %v2566 = vmax.f32 %v2438, %v2502
  %v2567 = vmax.f32 %v2439, %v2503
  %v2568 = vmax.f32 %v2440, %v2504
  %v2569 = vmax.f32 %v2441, %v2505
  %v2570 = vmax.f32 %v2442, %v2506
  %v2571 = vmax.f32 %v2443, %v2507
  %v2572 = vmax.f32 %v2444, %v2508
  %v2573 = vmax.f32 %v2445, %v2509
  %v2574 = vmax.f32 %v2446, %v2510
  %v2575 = vmax.f32 %v2447, %v2511
  %v2576 = vmax.f32 %v2448, %v2512
  %v2577 = vmax.f32 %v2449, %v2513
  %v2578 = vmax.f32 %v2450, %v2514
  %v2579 = vmax.f32 %v2451, %v2515
  %v2580 = vmax.f32 %v2452, %v2516
  %v2581 = vmax.f32 %v2453, %v2517
  %v2582 = vmax.f32 %v2454, %v2518
  %v2583 = vmax.f32 %v2455, %v2519
  %v2584 = vmax.f32 %v2456, %v2520
  %v2585 = vmax.f32 %v2457, %v2521
  %v2586 = vmax.f32 %v2458, %v2522
  %v2587 = vmax.f32 %v2459, %v2523
  %v2588 = vmax.f32 %v2460, %v2524
  %v2589 = vmax.f32 %v2461, %v2525
  %v2590 = vmax.f32 %v2462, %v2526
  %v2591 = vmax.f32 %v2463, %v2527
  %v2592 = vmax.f32 %v2464, %v2528
  %v2593 = vmax.f32 %v2465, %v2529
  %v2594 = vmax.f32 %v2466, %v2530
  %v2595 = vmax.f32 %v2467, %v2531
  %v2596 = vmax.f32 %v2468, %v2532
  %v2597 = vmax.f32 %v2469, %v2533
  %v2598 = vmax.f32 %v2470, %v2534
  %v2599 = vmax.f32 %v2471, %v2535
  %v2600 = vmax.f32 %v2472, %v2536
  %v2601 = vmax.f32 %v2473, %v2537
  %v2602 = vmax.f32 %v2474, %v2538
  %v2603 = vmax.f32 %v2475, %v2539
  %v2604 = vmax.f32 %v2476, %v2540
  %v2605 = vmax.f32 %v2477, %v2541
  %v2606 = vmax.f32 %v2478, %v2542
  %v2607 = vmax.f32 %v2479, %v2543
  %v2608 = vmax.f32 %v2480, %v2544
  %v2609 = vmax.f32 %v2481, %v2545
  %v2610 = vmax.f32 %v2482, %v2546
  %v2611 = vmax.f32 %v2483, %v2547
  %v2612 = vmax.f32 %v2484, %v2548
  %v2613 = vmax.f32 %v2485, %v2549
  %v2614 = vmax.f32 %v2486, %v2550
  %v2615 = vmax.f32 %v2487, %v2551
  %v2616 = vmax.f32 %v2488, %v2552
  %v2617 = vmax.f32 %v2489, %v2553
  %v2618 = vmax.f32 %v2490, %v2554
  %v2619 = vmax.f32 %v2491, %v2555
  %v2620 = vmax.f32 %v2492, %v2556
  %v2621 = vmax.f32 %v2493, %v2557
  %v2622 = vmax.f32 %v2494, %v2558
  %v2623 = vmax.f32 %v2495, %v2559
  %v2624 = vld [vmem:[%s5 + $0x10] sm:$0xff]
  %v2625 = vld [vmem:[%s5 + $0x50] sm:$0xff]
  %v2626 = vld [vmem:[%s5 + $0x90] sm:$0xff]
  %v2627 = vld [vmem:[%s5 + $0xd0] sm:$0xff]
  %v2628 = vld [vmem:[%s5 + $0x110] sm:$0xff]
  %v2629 = vld [vmem:[%s5 + $0x150] sm:$0xff]
  %v2630 = vld [vmem:[%s5 + $0x190] sm:$0x11]
  %v2638 = vunpack.c.l.b16 %v2624
  %v2639 = vunpack.c.h.b16 %v2624
  %v2640 = vunpack.c.l.b16 %v2625
  %v2641 = vunpack.c.h.b16 %v2625
  %v2642 = vunpack.c.l.b16 %v2626
  %v2643 = vunpack.c.h.b16 %v2626
  %v2644 = vunpack.c.l.b16 %v2627
  %v2645 = vunpack.c.h.b16 %v2627
  %v2646 = vunpack.c.l.b16 %v2628
  %v2647 = vunpack.c.h.b16 %v2628
  %v2648 = vunpack.c.l.b16 %v2629
  %v2649 = vunpack.c.h.b16 %v2629
  %v2650 = vunpack.c.l.b16 %v2630
  %v2651 = vunpack.c.h.b16 %v2630
  %v2652 = vpack.c.b16 %v2640, %v2638
  %v2653 = vpack.c.b16 %v2641, %v2639
  %v2654 = vpack.c.b16 %v2644, %v2642
  %v2655 = vpack.c.b16 %v2645, %v2643
  %v2656 = vpack.c.b16 %v2648, %v2646
  %v2657 = vpack.c.b16 %v2649, %v2647
  %v2658 = vpack.c.b16 %v2650, %v2650
  %v2659 = vpack.c.b16 %v2651, %v2651
  %v2667 = vand.u32 %v2658, %v732
  %v2670 = vand.u32 %v2659, %v732
  %2672 = vmatpush.bf16.msra.mxu0 0
  %2673 = vmatpush.bf16.msra.mxu0 0
  %2674 = vmatpush.bf16.msra.mxu0 0
  %2675 = vmatpush.bf16.msra.mxu0 0
  %2676 = vmatpush.bf16.msra.mxu0 %v2667
  %2677 = vmatpush.bf16.msra.mxu0 %v2656
  %2678 = vmatpush.bf16.msra.mxu0 %v2654
  %2679 = vmatpush.bf16.msra.mxu0 %v2652
  %2680 = vmatmul.bf16.gmra.mxu0 %v683
  %v2681 = vpop.f32.mrf.mxu0
  %v2682 = vadd.f32 0.0, %v2681
  %v2683 = vpop.f32.mrf.mxu0
  %v2684 = vadd.f32 0.0, %v2683
  %2685 = vmatmul.bf16.gmra.mxu0 %v686
  %v2686 = vpop.f32.mrf.mxu0
  %v2687 = vadd.f32 0.0, %v2686
  %v2688 = vpop.f32.mrf.mxu0
  %v2689 = vadd.f32 0.0, %v2688
  %2690 = vmatmul.bf16.gmra.mxu0 %v689
  %v2691 = vpop.f32.mrf.mxu0
  %v2692 = vadd.f32 0.0, %v2691
  %v2693 = vpop.f32.mrf.mxu0
  %v2694 = vadd.f32 0.0, %v2693
  %2695 = vmatmul.bf16.gmra.mxu0 %v692
  %v2696 = vpop.f32.mrf.mxu0
  %v2697 = vadd.f32 0.0, %v2696
  %v2698 = vpop.f32.mrf.mxu0
  %v2699 = vadd.f32 0.0, %v2698
  %2700 = vmatmul.bf16.gmra.mxu0 %v695
  %v2701 = vpop.f32.mrf.mxu0
  %v2702 = vadd.f32 0.0, %v2701
  %v2703 = vpop.f32.mrf.mxu0
  %v2704 = vadd.f32 0.0, %v2703
  %2705 = vmatmul.bf16.gmra.mxu0 %v698
  %v2706 = vpop.f32.mrf.mxu0
  %v2707 = vadd.f32 0.0, %v2706
  %v2708 = vpop.f32.mrf.mxu0
  %v2709 = vadd.f32 0.0, %v2708
  %2710 = vmatmul.bf16.gmra.mxu0 %v701
  %v2711 = vpop.f32.mrf.mxu0
  %v2712 = vadd.f32 0.0, %v2711
  %v2713 = vpop.f32.mrf.mxu0
  %v2714 = vadd.f32 0.0, %v2713
  %2715 = vmatmul.bf16.gmra.mxu0 %v704
  %v2716 = vpop.f32.mrf.mxu0
  %v2717 = vadd.f32 0.0, %v2716
  %v2718 = vpop.f32.mrf.mxu0
  %v2719 = vadd.f32 0.0, %v2718
  %2720 = vmatmul.bf16.gmra.mxu0 %v707
  %v2721 = vpop.f32.mrf.mxu0
  %v2722 = vadd.f32 0.0, %v2721
  %v2723 = vpop.f32.mrf.mxu0
  %v2724 = vadd.f32 0.0, %v2723
  %2725 = vmatmul.bf16.gmra.mxu0 %v710
  %v2726 = vpop.f32.mrf.mxu0
  %v2727 = vadd.f32 0.0, %v2726
  %v2728 = vpop.f32.mrf.mxu0
  %v2729 = vadd.f32 0.0, %v2728
  %2730 = vmatmul.bf16.gmra.mxu0 %v713
  %v2731 = vpop.f32.mrf.mxu0
  %v2732 = vadd.f32 0.0, %v2731
  %v2733 = vpop.f32.mrf.mxu0
  %v2734 = vadd.f32 0.0, %v2733
  %2735 = vmatmul.bf16.gmra.mxu0 %v716
  %v2736 = vpop.f32.mrf.mxu0
  %v2737 = vadd.f32 0.0, %v2736
  %v2738 = vpop.f32.mrf.mxu0
  %v2739 = vadd.f32 0.0, %v2738
  %2740 = vmatmul.bf16.gmra.mxu0 %v719
  %v2741 = vpop.f32.mrf.mxu0
  %v2742 = vadd.f32 0.0, %v2741
  %v2743 = vpop.f32.mrf.mxu0
  %v2744 = vadd.f32 0.0, %v2743
  %2745 = vmatmul.bf16.gmra.mxu0 %v722
  %v2746 = vpop.f32.mrf.mxu0
  %v2747 = vadd.f32 0.0, %v2746
  %v2748 = vpop.f32.mrf.mxu0
  %v2749 = vadd.f32 0.0, %v2748
  %2750 = vmatmul.bf16.gmra.mxu0 %v725
  %v2751 = vpop.f32.mrf.mxu0
  %v2752 = vadd.f32 0.0, %v2751
  %v2753 = vpop.f32.mrf.mxu0
  %v2754 = vadd.f32 0.0, %v2753
  %2755 = vmatmul.bf16.gmra.mxu0 %v728
  %v2756 = vpop.f32.mrf.mxu0
  %v2757 = vadd.f32 0.0, %v2756
  %v2758 = vpop.f32.mrf.mxu0
  %v2759 = vadd.f32 0.0, %v2758
  %2760 = vdwg.mxu0
  %2761 = vmatpush.bf16.msra.mxu0 0
  %2762 = vmatpush.bf16.msra.mxu0 0
  %2763 = vmatpush.bf16.msra.mxu0 0
  %2764 = vmatpush.bf16.msra.mxu0 0
  %2765 = vmatpush.bf16.msra.mxu0 %v2670
  %2766 = vmatpush.bf16.msra.mxu0 %v2657
  %2767 = vmatpush.bf16.msra.mxu0 %v2655
  %2768 = vmatpush.bf16.msra.mxu0 %v2653
  %2769 = vmatmul.bf16.gmra.mxu0 %v683
  %v2770 = vpop.f32.mrf.mxu0
  %v2771 = vadd.f32 0.0, %v2770
  %v2772 = vpop.f32.mrf.mxu0
  %v2773 = vadd.f32 0.0, %v2772
  %2774 = vmatmul.bf16.gmra.mxu0 %v686
  %v2775 = vpop.f32.mrf.mxu0
  %v2776 = vadd.f32 0.0, %v2775
  %v2777 = vpop.f32.mrf.mxu0
  %v2778 = vadd.f32 0.0, %v2777
  %2779 = vmatmul.bf16.gmra.mxu0 %v689
  %v2780 = vpop.f32.mrf.mxu0
  %v2781 = vadd.f32 0.0, %v2780
  %v2782 = vpop.f32.mrf.mxu0
  %v2783 = vadd.f32 0.0, %v2782
  %2784 = vmatmul.bf16.gmra.mxu0 %v692
  %v2785 = vpop.f32.mrf.mxu0
  %v2786 = vadd.f32 0.0, %v2785
  %v2787 = vpop.f32.mrf.mxu0
  %v2788 = vadd.f32 0.0, %v2787
  %2789 = vmatmul.bf16.gmra.mxu0 %v695
  %v2790 = vpop.f32.mrf.mxu0
  %v2791 = vadd.f32 0.0, %v2790
  %v2792 = vpop.f32.mrf.mxu0
  %v2793 = vadd.f32 0.0, %v2792
  %2794 = vmatmul.bf16.gmra.mxu0 %v698
  %v2795 = vpop.f32.mrf.mxu0
  %v2796 = vadd.f32 0.0, %v2795
  %v2797 = vpop.f32.mrf.mxu0
  %v2798 = vadd.f32 0.0, %v2797
  %2799 = vmatmul.bf16.gmra.mxu0 %v701
  %v2800 = vpop.f32.mrf.mxu0
  %v2801 = vadd.f32 0.0, %v2800
  %v2802 = vpop.f32.mrf.mxu0
  %v2803 = vadd.f32 0.0, %v2802
  %2804 = vmatmul.bf16.gmra.mxu0 %v704
  %v2805 = vpop.f32.mrf.mxu0
  %v2806 = vadd.f32 0.0, %v2805
  %v2807 = vpop.f32.mrf.mxu0
  %v2808 = vadd.f32 0.0, %v2807
  %2809 = vmatmul.bf16.gmra.mxu0 %v707
  %v2810 = vpop.f32.mrf.mxu0
  %v2811 = vadd.f32 0.0, %v2810
  %v2812 = vpop.f32.mrf.mxu0
  %v2813 = vadd.f32 0.0, %v2812
  %2814 = vmatmul.bf16.gmra.mxu0 %v710
  %v2815 = vpop.f32.mrf.mxu0
  %v2816 = vadd.f32 0.0, %v2815
  %v2817 = vpop.f32.mrf.mxu0
  %v2818 = vadd.f32 0.0, %v2817
  %2819 = vmatmul.bf16.gmra.mxu0 %v713
  %v2820 = vpop.f32.mrf.mxu0
  %v2821 = vadd.f32 0.0, %v2820
  %v2822 = vpop.f32.mrf.mxu0
  %v2823 = vadd.f32 0.0, %v2822
  %2824 = vmatmul.bf16.gmra.mxu0 %v716
  %v2825 = vpop.f32.mrf.mxu0
  %v2826 = vadd.f32 0.0, %v2825
  %v2827 = vpop.f32.mrf.mxu0
  %v2828 = vadd.f32 0.0, %v2827
  %2829 = vmatmul.bf16.gmra.mxu0 %v719
  %v2830 = vpop.f32.mrf.mxu0
  %v2831 = vadd.f32 0.0, %v2830
  %v2832 = vpop.f32.mrf.mxu0
  %v2833 = vadd.f32 0.0, %v2832
  %2834 = vmatmul.bf16.gmra.mxu0 %v722
  %v2835 = vpop.f32.mrf.mxu0
  %v2836 = vadd.f32 0.0, %v2835
  %v2837 = vpop.f32.mrf.mxu0
  %v2838 = vadd.f32 0.0, %v2837
  %2839 = vmatmul.bf16.gmra.mxu0 %v725
  %v2840 = vpop.f32.mrf.mxu0
  %v2841 = vadd.f32 0.0, %v2840
  %v2842 = vpop.f32.mrf.mxu0
  %v2843 = vadd.f32 0.0, %v2842
  %2844 = vmatmul.bf16.gmra.mxu0 %v728
  %v2845 = vpop.f32.mrf.mxu0
  %v2846 = vadd.f32 0.0, %v2845
  %v2847 = vpop.f32.mrf.mxu0
  %v2848 = vadd.f32 0.0, %v2847
  %2849 = vdwg.mxu0
  %v2850 = vpack.c.bf16 %v2562, %v2560
  %v2851 = vpack.c.bf16 %v2563, %v2561
  %v2852 = vpack.c.bf16 %v2566, %v2564
  %v2853 = vpack.c.bf16 %v2567, %v2565
  %v2854 = vpack.c.bf16 %v2570, %v2568
  %v2855 = vpack.c.bf16 %v2571, %v2569
  %v2856 = vpack.c.bf16 %v2574, %v2572
  %v2857 = vpack.c.bf16 %v2575, %v2573
  %v2858 = vpack.c.bf16 %v2578, %v2576
  %v2859 = vpack.c.bf16 %v2579, %v2577
  %v2860 = vpack.c.bf16 %v2582, %v2580
  %v2861 = vpack.c.bf16 %v2583, %v2581
  %v2862 = vpack.c.bf16 %v2586, %v2584
  %v2863 = vpack.c.bf16 %v2587, %v2585
  %v2864 = vpack.c.bf16 %v2590, %v2588
  %v2865 = vpack.c.bf16 %v2591, %v2589
  %v2866 = vpack.c.bf16 %v2594, %v2592
  %v2867 = vpack.c.bf16 %v2595, %v2593
  %v2868 = vpack.c.bf16 %v2598, %v2596
  %v2869 = vpack.c.bf16 %v2599, %v2597
  %v2870 = vpack.c.bf16 %v2602, %v2600
  %v2871 = vpack.c.bf16 %v2603, %v2601
  %v2872 = vpack.c.bf16 %v2606, %v2604
  %v2873 = vpack.c.bf16 %v2607, %v2605
  %v2874 = vpack.c.bf16 %v2610, %v2608
  %v2875 = vpack.c.bf16 %v2611, %v2609
  %v2876 = vpack.c.bf16 %v2614, %v2612
  %v2877 = vpack.c.bf16 %v2615, %v2613
  %v2878 = vpack.c.bf16 %v2618, %v2616
  %v2879 = vpack.c.bf16 %v2619, %v2617
  %v2880 = vpack.c.bf16 %v2622, %v2620
  %v2881 = vpack.c.bf16 %v2623, %v2621
  %s2882 = scalar_lea.vmem %s4, 512
  %v2883 = vld [vmem:[%s2882] sm:$0xff]
  %v2884 = vld [vmem:[%s2882 + $0x8] sm:$0xff]
  %v2885 = vld [vmem:[%s2882 + $0x10] sm:$0xff]
  %v2886 = vld [vmem:[%s2882 + $0x18] sm:$0xff]
  %v2887 = vld [vmem:[%s2882 + $0x20] sm:$0xff]
  %v2888 = vld [vmem:[%s2882 + $0x28] sm:$0xff]
  %v2889 = vld [vmem:[%s2882 + $0x30] sm:$0xff]
  %v2890 = vld [vmem:[%s2882 + $0x38] sm:$0xff]
  %v2891 = vld [vmem:[%s2882 + $0x40] sm:$0xff]
  %v2892 = vld [vmem:[%s2882 + $0x48] sm:$0xff]
  %v2893 = vld [vmem:[%s2882 + $0x50] sm:$0xff]
  %v2894 = vld [vmem:[%s2882 + $0x58] sm:$0xff]
  %v2895 = vld [vmem:[%s2882 + $0x60] sm:$0xff]
  %v2896 = vld [vmem:[%s2882 + $0x68] sm:$0xff]
  %v2897 = vld [vmem:[%s2882 + $0x70] sm:$0xff]
  %v2898 = vld [vmem:[%s2882 + $0x78] sm:$0xff]
  %v2899 = vld [vmem:[%s2882 + $0x80] sm:$0xff]
  %v2900 = vld [vmem:[%s2882 + $0x88] sm:$0xff]
  %v2901 = vld [vmem:[%s2882 + $0x90] sm:$0xff]
  %v2902 = vld [vmem:[%s2882 + $0x98] sm:$0xff]
  %v2903 = vld [vmem:[%s2882 + $0xa0] sm:$0xff]
  %v2904 = vld [vmem:[%s2882 + $0xa8] sm:$0xff]
  %v2905 = vld [vmem:[%s2882 + $0xb0] sm:$0xff]
  %v2906 = vld [vmem:[%s2882 + $0xb8] sm:$0xff]
  %v2907 = vld [vmem:[%s2882 + $0xc0] sm:$0xff]
  %v2908 = vld [vmem:[%s2882 + $0xc8] sm:$0xff]
  %v2909 = vld [vmem:[%s2882 + $0xd0] sm:$0xff]
  %v2910 = vld [vmem:[%s2882 + $0xd8] sm:$0xff]
  %v2911 = vld [vmem:[%s2882 + $0xe0] sm:$0xff]
  %v2912 = vld [vmem:[%s2882 + $0xe8] sm:$0xff]
  %v2913 = vld [vmem:[%s2882 + $0xf0] sm:$0xff]
  %v2914 = vld [vmem:[%s2882 + $0xf8] sm:$0xff]
  %v2947 = vunpack.c.l.b16 %v2883
  %v2948 = vunpack.c.h.b16 %v2883
  %v2949 = vunpack.c.l.b16 %v2884
  %v2950 = vunpack.c.h.b16 %v2884
  %v2951 = vunpack.c.l.b16 %v2885
  %v2952 = vunpack.c.h.b16 %v2885
  %v2953 = vunpack.c.l.b16 %v2886
  %v2954 = vunpack.c.h.b16 %v2886
  %v2955 = vunpack.c.l.b16 %v2887
  %v2956 = vunpack.c.h.b16 %v2887
  %v2957 = vunpack.c.l.b16 %v2888
  %v2958 = vunpack.c.h.b16 %v2888
  %v2959 = vunpack.c.l.b16 %v2889
  %v2960 = vunpack.c.h.b16 %v2889
  %v2961 = vunpack.c.l.b16 %v2890
  %v2962 = vunpack.c.h.b16 %v2890
  %v2963 = vunpack.c.l.b16 %v2891
  %v2964 = vunpack.c.h.b16 %v2891
  %v2965 = vunpack.c.l.b16 %v2892
  %v2966 = vunpack.c.h.b16 %v2892
  %v2967 = vunpack.c.l.b16 %v2893
  %v2968 = vunpack.c.h.b16 %v2893
  %v2969 = vunpack.c.l.b16 %v2894
  %v2970 = vunpack.c.h.b16 %v2894
  %v2971 = vunpack.c.l.b16 %v2895
  %v2972 = vunpack.c.h.b16 %v2895
  %v2973 = vunpack.c.l.b16 %v2896
  %v2974 = vunpack.c.h.b16 %v2896
  %v2975 = vunpack.c.l.b16 %v2897
  %v2976 = vunpack.c.h.b16 %v2897
  %v2977 = vunpack.c.l.b16 %v2898
  %v2978 = vunpack.c.h.b16 %v2898
  %v2979 = vunpack.c.l.b16 %v2899
  %v2980 = vunpack.c.h.b16 %v2899
  %v2981 = vunpack.c.l.b16 %v2900
  %v2982 = vunpack.c.h.b16 %v2900
  %v2983 = vunpack.c.l.b16 %v2901
  %v2984 = vunpack.c.h.b16 %v2901
  %v2985 = vunpack.c.l.b16 %v2902
  %v2986 = vunpack.c.h.b16 %v2902
  %v2987 = vunpack.c.l.b16 %v2903
  %v2988 = vunpack.c.h.b16 %v2903
  %v2989 = vunpack.c.l.b16 %v2904
  %v2990 = vunpack.c.h.b16 %v2904
  %v2991 = vunpack.c.l.b16 %v2905
  %v2992 = vunpack.c.h.b16 %v2905
  %v2993 = vunpack.c.l.b16 %v2906
  %v2994 = vunpack.c.h.b16 %v2906
  %v2995 = vunpack.c.l.b16 %v2907
  %v2996 = vunpack.c.h.b16 %v2907
  %v2997 = vunpack.c.l.b16 %v2908
  %v2998 = vunpack.c.h.b16 %v2908
  %v2999 = vunpack.c.l.b16 %v2909
  %v3000 = vunpack.c.h.b16 %v2909
  %v3001 = vunpack.c.l.b16 %v2910
  %v3002 = vunpack.c.h.b16 %v2910
  %v3003 = vunpack.c.l.b16 %v2911
  %v3004 = vunpack.c.h.b16 %v2911
  %v3005 = vunpack.c.l.b16 %v2912
  %v3006 = vunpack.c.h.b16 %v2912
  %v3007 = vunpack.c.l.b16 %v2913
  %v3008 = vunpack.c.h.b16 %v2913
  %v3009 = vunpack.c.l.b16 %v2914
  %v3010 = vunpack.c.h.b16 %v2914
  %v3011 = vpack.c.b16 %v2949, %v2947
  %v3012 = vpack.c.b16 %v2950, %v2948
  %v3013 = vpack.c.b16 %v2953, %v2951
  %v3014 = vpack.c.b16 %v2954, %v2952
  %v3015 = vpack.c.b16 %v2957, %v2955
  %v3016 = vpack.c.b16 %v2958, %v2956
  %v3017 = vpack.c.b16 %v2961, %v2959
  %v3018 = vpack.c.b16 %v2962, %v2960
  %v3019 = vpack.c.b16 %v2965, %v2963
  %v3020 = vpack.c.b16 %v2966, %v2964
  %v3021 = vpack.c.b16 %v2969, %v2967
  %v3022 = vpack.c.b16 %v2970, %v2968
  %v3023 = vpack.c.b16 %v2973, %v2971
  %v3024 = vpack.c.b16 %v2974, %v2972
  %v3025 = vpack.c.b16 %v2977, %v2975
  %v3026 = vpack.c.b16 %v2978, %v2976
  %v3027 = vpack.c.b16 %v2981, %v2979
  %v3028 = vpack.c.b16 %v2982, %v2980
  %v3029 = vpack.c.b16 %v2985, %v2983
  %v3030 = vpack.c.b16 %v2986, %v2984
  %v3031 = vpack.c.b16 %v2989, %v2987
  %v3032 = vpack.c.b16 %v2990, %v2988
  %v3033 = vpack.c.b16 %v2993, %v2991
  %v3034 = vpack.c.b16 %v2994, %v2992
  %v3035 = vpack.c.b16 %v2997, %v2995
  %v3036 = vpack.c.b16 %v2998, %v2996
  %v3037 = vpack.c.b16 %v3001, %v2999
  %v3038 = vpack.c.b16 %v3002, %v3000
  %v3039 = vpack.c.b16 %v3005, %v3003
  %v3040 = vpack.c.b16 %v3006, %v3004
  %v3041 = vpack.c.b16 %v3009, %v3007
  %v3042 = vpack.c.b16 %v3010, %v3008
  %3075 = vmatpush.bf16.msra.mxu0 %v3025
  %3076 = vmatpush.bf16.msra.mxu0 %v3023
  %3077 = vmatpush.bf16.msra.mxu0 %v3021
  %3078 = vmatpush.bf16.msra.mxu0 %v3019
  %3079 = vmatpush.bf16.msra.mxu0 %v3017
  %3080 = vmatpush.bf16.msra.mxu0 %v3015
  %3081 = vmatpush.bf16.msra.mxu0 %v3013
  %3082 = vmatpush.bf16.msra.mxu0 %v3011
  %3083 = vmatmul.bf16.gmra.mxu0 %v2850
  %v3084 = vpop.f32.mrf.mxu0
  %v3085 = vadd.f32 %v2682, %v3084
  %v3086 = vpop.f32.mrf.mxu0
  %v3087 = vadd.f32 %v2684, %v3086
  %3088 = vmatmul.bf16.gmra.mxu0 %v2852
  %v3089 = vpop.f32.mrf.mxu0
  %v3090 = vadd.f32 %v2687, %v3089
  %v3091 = vpop.f32.mrf.mxu0
  %v3092 = vadd.f32 %v2689, %v3091
  %3093 = vmatmul.bf16.gmra.mxu0 %v2854
  %v3094 = vpop.f32.mrf.mxu0
  %v3095 = vadd.f32 %v2692, %v3094
  %v3096 = vpop.f32.mrf.mxu0
  %v3097 = vadd.f32 %v2694, %v3096
  %3098 = vmatmul.bf16.gmra.mxu0 %v2856
  %v3099 = vpop.f32.mrf.mxu0
  %v3100 = vadd.f32 %v2697, %v3099
  %v3101 = vpop.f32.mrf.mxu0
  %v3102 = vadd.f32 %v2699, %v3101
  %3103 = vmatmul.bf16.gmra.mxu0 %v2858
  %v3104 = vpop.f32.mrf.mxu0
  %v3105 = vadd.f32 %v2702, %v3104
  %v3106 = vpop.f32.mrf.mxu0
  %v3107 = vadd.f32 %v2704, %v3106
  %3108 = vmatmul.bf16.gmra.mxu0 %v2860
  %v3109 = vpop.f32.mrf.mxu0
  %v3110 = vadd.f32 %v2707, %v3109
  %v3111 = vpop.f32.mrf.mxu0
  %v3112 = vadd.f32 %v2709, %v3111
  %3113 = vmatmul.bf16.gmra.mxu0 %v2862
  %v3114 = vpop.f32.mrf.mxu0
  %v3115 = vadd.f32 %v2712, %v3114
  %v3116 = vpop.f32.mrf.mxu0
  %v3117 = vadd.f32 %v2714, %v3116
  %3118 = vmatmul.bf16.gmra.mxu0 %v2864
  %v3119 = vpop.f32.mrf.mxu0
  %v3120 = vadd.f32 %v2717, %v3119
  %v3121 = vpop.f32.mrf.mxu0
  %v3122 = vadd.f32 %v2719, %v3121
  %3123 = vmatmul.bf16.gmra.mxu0 %v2866
  %v3124 = vpop.f32.mrf.mxu0
  %v3125 = vadd.f32 %v2722, %v3124
  %v3126 = vpop.f32.mrf.mxu0
  %v3127 = vadd.f32 %v2724, %v3126
  %3128 = vmatmul.bf16.gmra.mxu0 %v2868
  %v3129 = vpop.f32.mrf.mxu0
  %v3130 = vadd.f32 %v2727, %v3129
  %v3131 = vpop.f32.mrf.mxu0
  %v3132 = vadd.f32 %v2729, %v3131
  %3133 = vmatmul.bf16.gmra.mxu0 %v2870
  %v3134 = vpop.f32.mrf.mxu0
  %v3135 = vadd.f32 %v2732, %v3134
  %v3136 = vpop.f32.mrf.mxu0
  %v3137 = vadd.f32 %v2734, %v3136
  %3138 = vmatmul.bf16.gmra.mxu0 %v2872
  %v3139 = vpop.f32.mrf.mxu0
  %v3140 = vadd.f32 %v2737, %v3139
  %v3141 = vpop.f32.mrf.mxu0
  %v3142 = vadd.f32 %v2739, %v3141
  %3143 = vmatmul.bf16.gmra.mxu0 %v2874
  %v3144 = vpop.f32.mrf.mxu0
  %v3145 = vadd.f32 %v2742, %v3144
  %v3146 = vpop.f32.mrf.mxu0
  %v3147 = vadd.f32 %v2744, %v3146
  %3148 = vmatmul.bf16.gmra.mxu0 %v2876
  %v3149 = vpop.f32.mrf.mxu0
  %v3150 = vadd.f32 %v2747, %v3149
  %v3151 = vpop.f32.mrf.mxu0
  %v3152 = vadd.f32 %v2749, %v3151
  %3153 = vmatmul.bf16.gmra.mxu0 %v2878
  %v3154 = vpop.f32.mrf.mxu0
  %v3155 = vadd.f32 %v2752, %v3154
  %v3156 = vpop.f32.mrf.mxu0
  %v3157 = vadd.f32 %v2754, %v3156
  %3158 = vmatmul.bf16.gmra.mxu0 %v2880
  %v3159 = vpop.f32.mrf.mxu0
  %v3160 = vadd.f32 %v2757, %v3159
  %v3161 = vpop.f32.mrf.mxu0
  %v3162 = vadd.f32 %v2759, %v3161
  %3163 = vdwg.mxu0
  %3164 = vmatpush.bf16.msra.mxu0 %v3041
  %3165 = vmatpush.bf16.msra.mxu0 %v3039
  %3166 = vmatpush.bf16.msra.mxu0 %v3037
  %3167 = vmatpush.bf16.msra.mxu0 %v3035
  %3168 = vmatpush.bf16.msra.mxu0 %v3033
  %3169 = vmatpush.bf16.msra.mxu0 %v3031
  %3170 = vmatpush.bf16.msra.mxu0 %v3029
  %3171 = vmatpush.bf16.msra.mxu0 %v3027
  %3172 = vmatmul.bf16.gmra.mxu0 %v2851
  %v3173 = vpop.f32.mrf.mxu0
  %v3174 = vadd.f32 %v3085, %v3173
  %v3175 = vpop.f32.mrf.mxu0
  %v3176 = vadd.f32 %v3087, %v3175
  %3177 = vmatmul.bf16.gmra.mxu0 %v2853
  %v3178 = vpop.f32.mrf.mxu0
  %v3179 = vadd.f32 %v3090, %v3178
  %v3180 = vpop.f32.mrf.mxu0
  %v3181 = vadd.f32 %v3092, %v3180
  %3182 = vmatmul.bf16.gmra.mxu0 %v2855
  %v3183 = vpop.f32.mrf.mxu0
  %v3184 = vadd.f32 %v3095, %v3183
  %v3185 = vpop.f32.mrf.mxu0
  %v3186 = vadd.f32 %v3097, %v3185
  %3187 = vmatmul.bf16.gmra.mxu0 %v2857
  %v3188 = vpop.f32.mrf.mxu0
  %v3189 = vadd.f32 %v3100, %v3188
  %v3190 = vpop.f32.mrf.mxu0
  %v3191 = vadd.f32 %v3102, %v3190
  %3192 = vmatmul.bf16.gmra.mxu0 %v2859
  %v3193 = vpop.f32.mrf.mxu0
  %v3194 = vadd.f32 %v3105, %v3193
  %v3195 = vpop.f32.mrf.mxu0
  %v3196 = vadd.f32 %v3107, %v3195
  %3197 = vmatmul.bf16.gmra.mxu0 %v2861
  %v3198 = vpop.f32.mrf.mxu0
  %v3199 = vadd.f32 %v3110, %v3198
  %v3200 = vpop.f32.mrf.mxu0
  %v3201 = vadd.f32 %v3112, %v3200
  %3202 = vmatmul.bf16.gmra.mxu0 %v2863
  %v3203 = vpop.f32.mrf.mxu0
  %v3204 = vadd.f32 %v3115, %v3203
  %v3205 = vpop.f32.mrf.mxu0
  %v3206 = vadd.f32 %v3117, %v3205
  %3207 = vmatmul.bf16.gmra.mxu0 %v2865
  %v3208 = vpop.f32.mrf.mxu0
  %v3209 = vadd.f32 %v3120, %v3208
  %v3210 = vpop.f32.mrf.mxu0
  %v3211 = vadd.f32 %v3122, %v3210
  %3212 = vmatmul.bf16.gmra.mxu0 %v2867
  %v3213 = vpop.f32.mrf.mxu0
  %v3214 = vadd.f32 %v3125, %v3213
  %v3215 = vpop.f32.mrf.mxu0
  %v3216 = vadd.f32 %v3127, %v3215
  %3217 = vmatmul.bf16.gmra.mxu0 %v2869
  %v3218 = vpop.f32.mrf.mxu0
  %v3219 = vadd.f32 %v3130, %v3218
  %v3220 = vpop.f32.mrf.mxu0
  %v3221 = vadd.f32 %v3132, %v3220
  %3222 = vmatmul.bf16.gmra.mxu0 %v2871
  %v3223 = vpop.f32.mrf.mxu0
  %v3224 = vadd.f32 %v3135, %v3223
  %v3225 = vpop.f32.mrf.mxu0
  %v3226 = vadd.f32 %v3137, %v3225
  %3227 = vmatmul.bf16.gmra.mxu0 %v2873
  %v3228 = vpop.f32.mrf.mxu0
  %v3229 = vadd.f32 %v3140, %v3228
  %v3230 = vpop.f32.mrf.mxu0
  %v3231 = vadd.f32 %v3142, %v3230
  %3232 = vmatmul.bf16.gmra.mxu0 %v2875
  %v3233 = vpop.f32.mrf.mxu0
  %v3234 = vadd.f32 %v3145, %v3233
  %v3235 = vpop.f32.mrf.mxu0
  %v3236 = vadd.f32 %v3147, %v3235
  %3237 = vmatmul.bf16.gmra.mxu0 %v2877
  %v3238 = vpop.f32.mrf.mxu0
  %v3239 = vadd.f32 %v3150, %v3238
  %v3240 = vpop.f32.mrf.mxu0
  %v3241 = vadd.f32 %v3152, %v3240
  %3242 = vmatmul.bf16.gmra.mxu0 %v2879
  %v3243 = vpop.f32.mrf.mxu0
  %v3244 = vadd.f32 %v3155, %v3243
  %v3245 = vpop.f32.mrf.mxu0
  %v3246 = vadd.f32 %v3157, %v3245
  %3247 = vmatmul.bf16.gmra.mxu0 %v2881
  %v3248 = vpop.f32.mrf.mxu0
  %v3249 = vadd.f32 %v3160, %v3248
  %v3250 = vpop.f32.mrf.mxu0
  %v3251 = vadd.f32 %v3162, %v3250
  %3252 = vdwg.mxu0
  %3253 = vmatpush.bf16.msra.mxu0 %v3026
  %3254 = vmatpush.bf16.msra.mxu0 %v3024
  %3255 = vmatpush.bf16.msra.mxu0 %v3022
  %3256 = vmatpush.bf16.msra.mxu0 %v3020
  %3257 = vmatpush.bf16.msra.mxu0 %v3018
  %3258 = vmatpush.bf16.msra.mxu0 %v3016
  %3259 = vmatpush.bf16.msra.mxu0 %v3014
  %3260 = vmatpush.bf16.msra.mxu0 %v3012
  %3261 = vmatmul.bf16.gmra.mxu0 %v2850
  %v3262 = vpop.f32.mrf.mxu0
  %v3263 = vadd.f32 %v2771, %v3262
  %v3264 = vpop.f32.mrf.mxu0
  %v3265 = vadd.f32 %v2773, %v3264
  %3266 = vmatmul.bf16.gmra.mxu0 %v2852
  %v3267 = vpop.f32.mrf.mxu0
  %v3268 = vadd.f32 %v2776, %v3267
  %v3269 = vpop.f32.mrf.mxu0
  %v3270 = vadd.f32 %v2778, %v3269
  %3271 = vmatmul.bf16.gmra.mxu0 %v2854
  %v3272 = vpop.f32.mrf.mxu0
  %v3273 = vadd.f32 %v2781, %v3272
  %v3274 = vpop.f32.mrf.mxu0
  %v3275 = vadd.f32 %v2783, %v3274
  %3276 = vmatmul.bf16.gmra.mxu0 %v2856
  %v3277 = vpop.f32.mrf.mxu0
  %v3278 = vadd.f32 %v2786, %v3277
  %v3279 = vpop.f32.mrf.mxu0
  %v3280 = vadd.f32 %v2788, %v3279
  %3281 = vmatmul.bf16.gmra.mxu0 %v2858
  %v3282 = vpop.f32.mrf.mxu0
  %v3283 = vadd.f32 %v2791, %v3282
  %v3284 = vpop.f32.mrf.mxu0
  %v3285 = vadd.f32 %v2793, %v3284
  %3286 = vmatmul.bf16.gmra.mxu0 %v2860
  %v3287 = vpop.f32.mrf.mxu0
  %v3288 = vadd.f32 %v2796, %v3287
  %v3289 = vpop.f32.mrf.mxu0
  %v3290 = vadd.f32 %v2798, %v3289
  %3291 = vmatmul.bf16.gmra.mxu0 %v2862
  %v3292 = vpop.f32.mrf.mxu0
  %v3293 = vadd.f32 %v2801, %v3292
  %v3294 = vpop.f32.mrf.mxu0
  %v3295 = vadd.f32 %v2803, %v3294
  %3296 = vmatmul.bf16.gmra.mxu0 %v2864
  %v3297 = vpop.f32.mrf.mxu0
  %v3298 = vadd.f32 %v2806, %v3297
  %v3299 = vpop.f32.mrf.mxu0
  %v3300 = vadd.f32 %v2808, %v3299
  %3301 = vmatmul.bf16.gmra.mxu0 %v2866
  %v3302 = vpop.f32.mrf.mxu0
  %v3303 = vadd.f32 %v2811, %v3302
  %v3304 = vpop.f32.mrf.mxu0
  %v3305 = vadd.f32 %v2813, %v3304
  %3306 = vmatmul.bf16.gmra.mxu0 %v2868
  %v3307 = vpop.f32.mrf.mxu0
  %v3308 = vadd.f32 %v2816, %v3307
  %v3309 = vpop.f32.mrf.mxu0
  %v3310 = vadd.f32 %v2818, %v3309
  %3311 = vmatmul.bf16.gmra.mxu0 %v2870
  %v3312 = vpop.f32.mrf.mxu0
  %v3313 = vadd.f32 %v2821, %v3312
  %v3314 = vpop.f32.mrf.mxu0
  %v3315 = vadd.f32 %v2823, %v3314
  %3316 = vmatmul.bf16.gmra.mxu0 %v2872
  %v3317 = vpop.f32.mrf.mxu0
  %v3318 = vadd.f32 %v2826, %v3317
  %v3319 = vpop.f32.mrf.mxu0
  %v3320 = vadd.f32 %v2828, %v3319
  %3321 = vmatmul.bf16.gmra.mxu0 %v2874
  %v3322 = vpop.f32.mrf.mxu0
  %v3323 = vadd.f32 %v2831, %v3322
  %v3324 = vpop.f32.mrf.mxu0
  %v3325 = vadd.f32 %v2833, %v3324
  %3326 = vmatmul.bf16.gmra.mxu0 %v2876
  %v3327 = vpop.f32.mrf.mxu0
  %v3328 = vadd.f32 %v2836, %v3327
  %v3329 = vpop.f32.mrf.mxu0
  %v3330 = vadd.f32 %v2838, %v3329
  %3331 = vmatmul.bf16.gmra.mxu0 %v2878
  %v3332 = vpop.f32.mrf.mxu0
  %v3333 = vadd.f32 %v2841, %v3332
  %v3334 = vpop.f32.mrf.mxu0
  %v3335 = vadd.f32 %v2843, %v3334
  %3336 = vmatmul.bf16.gmra.mxu0 %v2880
  %v3337 = vpop.f32.mrf.mxu0
  %v3338 = vadd.f32 %v2846, %v3337
  %v3339 = vpop.f32.mrf.mxu0
  %v3340 = vadd.f32 %v2848, %v3339
  %3341 = vdwg.mxu0
  %3342 = vmatpush.bf16.msra.mxu0 %v3042
  %3343 = vmatpush.bf16.msra.mxu0 %v3040
  %3344 = vmatpush.bf16.msra.mxu0 %v3038
  %3345 = vmatpush.bf16.msra.mxu0 %v3036
  %3346 = vmatpush.bf16.msra.mxu0 %v3034
  %3347 = vmatpush.bf16.msra.mxu0 %v3032
  %3348 = vmatpush.bf16.msra.mxu0 %v3030
  %3349 = vmatpush.bf16.msra.mxu0 %v3028
  %3350 = vmatmul.bf16.gmra.mxu0 %v2851
  %v3351 = vpop.f32.mrf.mxu0
  %v3352 = vadd.f32 %v3263, %v3351
  %v3353 = vpop.f32.mrf.mxu0
  %v3354 = vadd.f32 %v3265, %v3353
  %3355 = vmatmul.bf16.gmra.mxu0 %v2853
  %v3356 = vpop.f32.mrf.mxu0
  %v3357 = vadd.f32 %v3268, %v3356
  %v3358 = vpop.f32.mrf.mxu0
  %v3359 = vadd.f32 %v3270, %v3358
  %3360 = vmatmul.bf16.gmra.mxu0 %v2855
  %v3361 = vpop.f32.mrf.mxu0
  %v3362 = vadd.f32 %v3273, %v3361
  %v3363 = vpop.f32.mrf.mxu0
  %v3364 = vadd.f32 %v3275, %v3363
  %3365 = vmatmul.bf16.gmra.mxu0 %v2857
  %v3366 = vpop.f32.mrf.mxu0
  %v3367 = vadd.f32 %v3278, %v3366
  %v3368 = vpop.f32.mrf.mxu0
  %v3369 = vadd.f32 %v3280, %v3368
  %3370 = vmatmul.bf16.gmra.mxu0 %v2859
  %v3371 = vpop.f32.mrf.mxu0
  %v3372 = vadd.f32 %v3283, %v3371
  %v3373 = vpop.f32.mrf.mxu0
  %v3374 = vadd.f32 %v3285, %v3373
  %3375 = vmatmul.bf16.gmra.mxu0 %v2861
  %v3376 = vpop.f32.mrf.mxu0
  %v3377 = vadd.f32 %v3288, %v3376
  %v3378 = vpop.f32.mrf.mxu0
  %v3379 = vadd.f32 %v3290, %v3378
  %3380 = vmatmul.bf16.gmra.mxu0 %v2863
  %v3381 = vpop.f32.mrf.mxu0
  %v3382 = vadd.f32 %v3293, %v3381
  %v3383 = vpop.f32.mrf.mxu0
  %v3384 = vadd.f32 %v3295, %v3383
  %3385 = vmatmul.bf16.gmra.mxu0 %v2865
  %v3386 = vpop.f32.mrf.mxu0
  %v3387 = vadd.f32 %v3298, %v3386
  %v3388 = vpop.f32.mrf.mxu0
  %v3389 = vadd.f32 %v3300, %v3388
  %3390 = vmatmul.bf16.gmra.mxu0 %v2867
  %v3391 = vpop.f32.mrf.mxu0
  %v3392 = vadd.f32 %v3303, %v3391
  %v3393 = vpop.f32.mrf.mxu0
  %v3394 = vadd.f32 %v3305, %v3393
  %3395 = vmatmul.bf16.gmra.mxu0 %v2869
  %v3396 = vpop.f32.mrf.mxu0
  %v3397 = vadd.f32 %v3308, %v3396
  %v3398 = vpop.f32.mrf.mxu0
  %v3399 = vadd.f32 %v3310, %v3398
  %3400 = vmatmul.bf16.gmra.mxu0 %v2871
  %v3401 = vpop.f32.mrf.mxu0
  %v3402 = vadd.f32 %v3313, %v3401
  %v3403 = vpop.f32.mrf.mxu0
  %v3404 = vadd.f32 %v3315, %v3403
  %3405 = vmatmul.bf16.gmra.mxu0 %v2873
  %v3406 = vpop.f32.mrf.mxu0
  %v3407 = vadd.f32 %v3318, %v3406
  %v3408 = vpop.f32.mrf.mxu0
  %v3409 = vadd.f32 %v3320, %v3408
  %3410 = vmatmul.bf16.gmra.mxu0 %v2875
  %v3411 = vpop.f32.mrf.mxu0
  %v3412 = vadd.f32 %v3323, %v3411
  %v3413 = vpop.f32.mrf.mxu0
  %v3414 = vadd.f32 %v3325, %v3413
  %3415 = vmatmul.bf16.gmra.mxu0 %v2877
  %v3416 = vpop.f32.mrf.mxu0
  %v3417 = vadd.f32 %v3328, %v3416
  %v3418 = vpop.f32.mrf.mxu0
  %v3419 = vadd.f32 %v3330, %v3418
  %3420 = vmatmul.bf16.gmra.mxu0 %v2879
  %v3421 = vpop.f32.mrf.mxu0
  %v3422 = vadd.f32 %v3333, %v3421
  %v3423 = vpop.f32.mrf.mxu0
  %v3424 = vadd.f32 %v3335, %v3423
  %3425 = vmatmul.bf16.gmra.mxu0 %v2881
  %v3426 = vpop.f32.mrf.mxu0
  %v3427 = vadd.f32 %v3338, %v3426
  %v3428 = vpop.f32.mrf.mxu0
  %v3429 = vadd.f32 %v3340, %v3428
  %3430 = vdwg.mxu0
  %v3431 = vmul.f32 %v3174, 0.2
  %v3432 = vmul.f32 %v3352, 0.2
  %v3433 = vmul.f32 %v3176, 0.2
  %v3434 = vmul.f32 %v3354, 0.2
  %v3435 = vmul.f32 %v3179, 0.2
  %v3436 = vmul.f32 %v3357, 0.2
  %v3437 = vmul.f32 %v3181, 0.2
  %v3438 = vmul.f32 %v3359, 0.2
  %v3439 = vmul.f32 %v3184, 0.2
  %v3440 = vmul.f32 %v3362, 0.2
  %v3441 = vmul.f32 %v3186, 0.2
  %v3442 = vmul.f32 %v3364, 0.2
  %v3443 = vmul.f32 %v3189, 0.2
  %v3444 = vmul.f32 %v3367, 0.2
  %v3445 = vmul.f32 %v3191, 0.2
  %v3446 = vmul.f32 %v3369, 0.2
  %v3447 = vmul.f32 %v3194, 0.2
  %v3448 = vmul.f32 %v3372, 0.2
  %v3449 = vmul.f32 %v3196, 0.2
  %v3450 = vmul.f32 %v3374, 0.2
  %v3451 = vmul.f32 %v3199, 0.2
  %v3452 = vmul.f32 %v3377, 0.2
  %v3453 = vmul.f32 %v3201, 0.2
  %v3454 = vmul.f32 %v3379, 0.2
  %v3455 = vmul.f32 %v3204, 0.2
  %v3456 = vmul.f32 %v3382, 0.2
  %v3457 = vmul.f32 %v3206, 0.2
  %v3458 = vmul.f32 %v3384, 0.2
  %v3459 = vmul.f32 %v3209, 0.2
  %v3460 = vmul.f32 %v3387, 0.2
  %v3461 = vmul.f32 %v3211, 0.2
  %v3462 = vmul.f32 %v3389, 0.2
  %v3463 = vmul.f32 %v3214, 0.2
  %v3464 = vmul.f32 %v3392, 0.2
  %v3465 = vmul.f32 %v3216, 0.2
  %v3466 = vmul.f32 %v3394, 0.2
  %v3467 = vmul.f32 %v3219, 0.2
  %v3468 = vmul.f32 %v3397, 0.2
  %v3469 = vmul.f32 %v3221, 0.2
  %v3470 = vmul.f32 %v3399, 0.2
  %v3471 = vmul.f32 %v3224, 0.2
  %v3472 = vmul.f32 %v3402, 0.2
  %v3473 = vmul.f32 %v3226, 0.2
  %v3474 = vmul.f32 %v3404, 0.2
  %v3475 = vmul.f32 %v3229, 0.2
  %v3476 = vmul.f32 %v3407, 0.2
  %v3477 = vmul.f32 %v3231, 0.2
  %v3478 = vmul.f32 %v3409, 0.2
  %v3479 = vmul.f32 %v3234, 0.2
  %v3480 = vmul.f32 %v3412, 0.2
  %v3481 = vmul.f32 %v3236, 0.2
  %v3482 = vmul.f32 %v3414, 0.2
  %v3483 = vmul.f32 %v3239, 0.2
  %v3484 = vmul.f32 %v3417, 0.2
  %v3485 = vmul.f32 %v3241, 0.2
  %v3486 = vmul.f32 %v3419, 0.2
  %v3487 = vmul.f32 %v3244, 0.2
  %v3488 = vmul.f32 %v3422, 0.2
  %v3489 = vmul.f32 %v3246, 0.2
  %v3490 = vmul.f32 %v3424, 0.2
  %v3491 = vmul.f32 %v3249, 0.2
  %v3492 = vmul.f32 %v3427, 0.2
  %v3493 = vmul.f32 %v3251, 0.2
  %v3494 = vmul.f32 %v3429, 0.2
  %v3495 = vmax.f32 %v3174, %v3431
  %v3496 = vmax.f32 %v3352, %v3432
  %v3497 = vmax.f32 %v3176, %v3433
  %v3498 = vmax.f32 %v3354, %v3434
  %v3499 = vmax.f32 %v3179, %v3435
  %v3500 = vmax.f32 %v3357, %v3436
  %v3501 = vmax.f32 %v3181, %v3437
  %v3502 = vmax.f32 %v3359, %v3438
  %v3503 = vmax.f32 %v3184, %v3439
  %v3504 = vmax.f32 %v3362, %v3440
  %v3505 = vmax.f32 %v3186, %v3441
  %v3506 = vmax.f32 %v3364, %v3442
  %v3507 = vmax.f32 %v3189, %v3443
  %v3508 = vmax.f32 %v3367, %v3444
  %v3509 = vmax.f32 %v3191, %v3445
  %v3510 = vmax.f32 %v3369, %v3446
  %v3511 = vmax.f32 %v3194, %v3447
  %v3512 = vmax.f32 %v3372, %v3448
  %v3513 = vmax.f32 %v3196, %v3449
  %v3514 = vmax.f32 %v3374, %v3450
  %v3515 = vmax.f32 %v3199, %v3451
  %v3516 = vmax.f32 %v3377, %v3452
  %v3517 = vmax.f32 %v3201, %v3453
  %v3518 = vmax.f32 %v3379, %v3454
  %v3519 = vmax.f32 %v3204, %v3455
  %v3520 = vmax.f32 %v3382, %v3456
  %v3521 = vmax.f32 %v3206, %v3457
  %v3522 = vmax.f32 %v3384, %v3458
  %v3523 = vmax.f32 %v3209, %v3459
  %v3524 = vmax.f32 %v3387, %v3460
  %v3525 = vmax.f32 %v3211, %v3461
  %v3526 = vmax.f32 %v3389, %v3462
  %v3527 = vmax.f32 %v3214, %v3463
  %v3528 = vmax.f32 %v3392, %v3464
  %v3529 = vmax.f32 %v3216, %v3465
  %v3530 = vmax.f32 %v3394, %v3466
  %v3531 = vmax.f32 %v3219, %v3467
  %v3532 = vmax.f32 %v3397, %v3468
  %v3533 = vmax.f32 %v3221, %v3469
  %v3534 = vmax.f32 %v3399, %v3470
  %v3535 = vmax.f32 %v3224, %v3471
  %v3536 = vmax.f32 %v3402, %v3472
  %v3537 = vmax.f32 %v3226, %v3473
  %v3538 = vmax.f32 %v3404, %v3474
  %v3539 = vmax.f32 %v3229, %v3475
  %v3540 = vmax.f32 %v3407, %v3476
  %v3541 = vmax.f32 %v3231, %v3477
  %v3542 = vmax.f32 %v3409, %v3478
  %v3543 = vmax.f32 %v3234, %v3479
  %v3544 = vmax.f32 %v3412, %v3480
  %v3545 = vmax.f32 %v3236, %v3481
  %v3546 = vmax.f32 %v3414, %v3482
  %v3547 = vmax.f32 %v3239, %v3483
  %v3548 = vmax.f32 %v3417, %v3484
  %v3549 = vmax.f32 %v3241, %v3485
  %v3550 = vmax.f32 %v3419, %v3486
  %v3551 = vmax.f32 %v3244, %v3487
  %v3552 = vmax.f32 %v3422, %v3488
  %v3553 = vmax.f32 %v3246, %v3489
  %v3554 = vmax.f32 %v3424, %v3490
  %v3555 = vmax.f32 %v3249, %v3491
  %v3556 = vmax.f32 %v3427, %v3492
  %v3557 = vmax.f32 %v3251, %v3493
  %v3558 = vmax.f32 %v3429, %v3494
  %v3559 = vld [vmem:[%s5 + $0x18] sm:$0xff]
  %v3560 = vld [vmem:[%s5 + $0x58] sm:$0xff]
  %v3561 = vld [vmem:[%s5 + $0x98] sm:$0xff]
  %v3562 = vld [vmem:[%s5 + $0xd8] sm:$0xff]
  %v3563 = vld [vmem:[%s5 + $0x118] sm:$0xff]
  %v3564 = vld [vmem:[%s5 + $0x158] sm:$0xff]
  %v3565 = vld [vmem:[%s5 + $0x198] sm:$0x11]
  %v3573 = vunpack.c.l.b16 %v3559
  %v3574 = vunpack.c.h.b16 %v3559
  %v3575 = vunpack.c.l.b16 %v3560
  %v3576 = vunpack.c.h.b16 %v3560
  %v3577 = vunpack.c.l.b16 %v3561
  %v3578 = vunpack.c.h.b16 %v3561
  %v3579 = vunpack.c.l.b16 %v3562
  %v3580 = vunpack.c.h.b16 %v3562
  %v3581 = vunpack.c.l.b16 %v3563
  %v3582 = vunpack.c.h.b16 %v3563
  %v3583 = vunpack.c.l.b16 %v3564
  %v3584 = vunpack.c.h.b16 %v3564
  %v3585 = vunpack.c.l.b16 %v3565
  %v3586 = vunpack.c.h.b16 %v3565
  %v3587 = vpack.c.b16 %v3575, %v3573
  %v3588 = vpack.c.b16 %v3576, %v3574
  %v3589 = vpack.c.b16 %v3579, %v3577
  %v3590 = vpack.c.b16 %v3580, %v3578
  %v3591 = vpack.c.b16 %v3583, %v3581
  %v3592 = vpack.c.b16 %v3584, %v3582
  %v3593 = vpack.c.b16 %v3585, %v3585
  %v3594 = vpack.c.b16 %v3586, %v3586
  %v3602 = vand.u32 %v3593, %v732
  %v3605 = vand.u32 %v3594, %v732
  %3607 = vmatpush.bf16.msra.mxu0 0
  %3608 = vmatpush.bf16.msra.mxu0 0
  %3609 = vmatpush.bf16.msra.mxu0 0
  %3610 = vmatpush.bf16.msra.mxu0 0
  %3611 = vmatpush.bf16.msra.mxu0 %v3602
  %3612 = vmatpush.bf16.msra.mxu0 %v3591
  %3613 = vmatpush.bf16.msra.mxu0 %v3589
  %3614 = vmatpush.bf16.msra.mxu0 %v3587
  %3615 = vmatmul.bf16.gmra.mxu0 %v683
  %v3616 = vpop.f32.mrf.mxu0
  %v3617 = vadd.f32 0.0, %v3616
  %v3618 = vpop.f32.mrf.mxu0
  %v3619 = vadd.f32 0.0, %v3618
  %3620 = vmatmul.bf16.gmra.mxu0 %v686
  %v3621 = vpop.f32.mrf.mxu0
  %v3622 = vadd.f32 0.0, %v3621
  %v3623 = vpop.f32.mrf.mxu0
  %v3624 = vadd.f32 0.0, %v3623
  %3625 = vmatmul.bf16.gmra.mxu0 %v689
  %v3626 = vpop.f32.mrf.mxu0
  %v3627 = vadd.f32 0.0, %v3626
  %v3628 = vpop.f32.mrf.mxu0
  %v3629 = vadd.f32 0.0, %v3628
  %3630 = vmatmul.bf16.gmra.mxu0 %v692
  %v3631 = vpop.f32.mrf.mxu0
  %v3632 = vadd.f32 0.0, %v3631
  %v3633 = vpop.f32.mrf.mxu0
  %v3634 = vadd.f32 0.0, %v3633
  %3635 = vmatmul.bf16.gmra.mxu0 %v695
  %v3636 = vpop.f32.mrf.mxu0
  %v3637 = vadd.f32 0.0, %v3636
  %v3638 = vpop.f32.mrf.mxu0
  %v3639 = vadd.f32 0.0, %v3638
  %3640 = vmatmul.bf16.gmra.mxu0 %v698
  %v3641 = vpop.f32.mrf.mxu0
  %v3642 = vadd.f32 0.0, %v3641
  %v3643 = vpop.f32.mrf.mxu0
  %v3644 = vadd.f32 0.0, %v3643
  %3645 = vmatmul.bf16.gmra.mxu0 %v701
  %v3646 = vpop.f32.mrf.mxu0
  %v3647 = vadd.f32 0.0, %v3646
  %v3648 = vpop.f32.mrf.mxu0
  %v3649 = vadd.f32 0.0, %v3648
  %3650 = vmatmul.bf16.gmra.mxu0 %v704
  %v3651 = vpop.f32.mrf.mxu0
  %v3652 = vadd.f32 0.0, %v3651
  %v3653 = vpop.f32.mrf.mxu0
  %v3654 = vadd.f32 0.0, %v3653
  %3655 = vmatmul.bf16.gmra.mxu0 %v707
  %v3656 = vpop.f32.mrf.mxu0
  %v3657 = vadd.f32 0.0, %v3656
  %v3658 = vpop.f32.mrf.mxu0
  %v3659 = vadd.f32 0.0, %v3658
  %3660 = vmatmul.bf16.gmra.mxu0 %v710
  %v3661 = vpop.f32.mrf.mxu0
  %v3662 = vadd.f32 0.0, %v3661
  %v3663 = vpop.f32.mrf.mxu0
  %v3664 = vadd.f32 0.0, %v3663
  %3665 = vmatmul.bf16.gmra.mxu0 %v713
  %v3666 = vpop.f32.mrf.mxu0
  %v3667 = vadd.f32 0.0, %v3666
  %v3668 = vpop.f32.mrf.mxu0
  %v3669 = vadd.f32 0.0, %v3668
  %3670 = vmatmul.bf16.gmra.mxu0 %v716
  %v3671 = vpop.f32.mrf.mxu0
  %v3672 = vadd.f32 0.0, %v3671
  %v3673 = vpop.f32.mrf.mxu0
  %v3674 = vadd.f32 0.0, %v3673
  %3675 = vmatmul.bf16.gmra.mxu0 %v719
  %v3676 = vpop.f32.mrf.mxu0
  %v3677 = vadd.f32 0.0, %v3676
  %v3678 = vpop.f32.mrf.mxu0
  %v3679 = vadd.f32 0.0, %v3678
  %3680 = vmatmul.bf16.gmra.mxu0 %v722
  %v3681 = vpop.f32.mrf.mxu0
  %v3682 = vadd.f32 0.0, %v3681
  %v3683 = vpop.f32.mrf.mxu0
  %v3684 = vadd.f32 0.0, %v3683
  %3685 = vmatmul.bf16.gmra.mxu0 %v725
  %v3686 = vpop.f32.mrf.mxu0
  %v3687 = vadd.f32 0.0, %v3686
  %v3688 = vpop.f32.mrf.mxu0
  %v3689 = vadd.f32 0.0, %v3688
  %3690 = vmatmul.bf16.gmra.mxu0 %v728
  %v3691 = vpop.f32.mrf.mxu0
  %v3692 = vadd.f32 0.0, %v3691
  %v3693 = vpop.f32.mrf.mxu0
  %v3694 = vadd.f32 0.0, %v3693
  %3695 = vdwg.mxu0
  %3696 = vmatpush.bf16.msra.mxu0 0
  %3697 = vmatpush.bf16.msra.mxu0 0
  %3698 = vmatpush.bf16.msra.mxu0 0
  %3699 = vmatpush.bf16.msra.mxu0 0
  %3700 = vmatpush.bf16.msra.mxu0 %v3605
  %3701 = vmatpush.bf16.msra.mxu0 %v3592
  %3702 = vmatpush.bf16.msra.mxu0 %v3590
  %3703 = vmatpush.bf16.msra.mxu0 %v3588
  %3704 = vmatmul.bf16.gmra.mxu0 %v683
  %v3705 = vpop.f32.mrf.mxu0
  %v3706 = vadd.f32 0.0, %v3705
  %v3707 = vpop.f32.mrf.mxu0
  %v3708 = vadd.f32 0.0, %v3707
  %3709 = vmatmul.bf16.gmra.mxu0 %v686
  %v3710 = vpop.f32.mrf.mxu0
  %v3711 = vadd.f32 0.0, %v3710
  %v3712 = vpop.f32.mrf.mxu0
  %v3713 = vadd.f32 0.0, %v3712
  %3714 = vmatmul.bf16.gmra.mxu0 %v689
  %v3715 = vpop.f32.mrf.mxu0
  %v3716 = vadd.f32 0.0, %v3715
  %v3717 = vpop.f32.mrf.mxu0
  %v3718 = vadd.f32 0.0, %v3717
  %3719 = vmatmul.bf16.gmra.mxu0 %v692
  %v3720 = vpop.f32.mrf.mxu0
  %v3721 = vadd.f32 0.0, %v3720
  %v3722 = vpop.f32.mrf.mxu0
  %v3723 = vadd.f32 0.0, %v3722
  %3724 = vmatmul.bf16.gmra.mxu0 %v695
  %v3725 = vpop.f32.mrf.mxu0
  %v3726 = vadd.f32 0.0, %v3725
  %v3727 = vpop.f32.mrf.mxu0
  %v3728 = vadd.f32 0.0, %v3727
  %3729 = vmatmul.bf16.gmra.mxu0 %v698
  %v3730 = vpop.f32.mrf.mxu0
  %v3731 = vadd.f32 0.0, %v3730
  %v3732 = vpop.f32.mrf.mxu0
  %v3733 = vadd.f32 0.0, %v3732
  %3734 = vmatmul.bf16.gmra.mxu0 %v701
  %v3735 = vpop.f32.mrf.mxu0
  %v3736 = vadd.f32 0.0, %v3735
  %v3737 = vpop.f32.mrf.mxu0
  %v3738 = vadd.f32 0.0, %v3737
  %3739 = vmatmul.bf16.gmra.mxu0 %v704
  %v3740 = vpop.f32.mrf.mxu0
  %v3741 = vadd.f32 0.0, %v3740
  %v3742 = vpop.f32.mrf.mxu0
  %v3743 = vadd.f32 0.0, %v3742
  %3744 = vmatmul.bf16.gmra.mxu0 %v707
  %v3745 = vpop.f32.mrf.mxu0
  %v3746 = vadd.f32 0.0, %v3745
  %v3747 = vpop.f32.mrf.mxu0
  %v3748 = vadd.f32 0.0, %v3747
  %3749 = vmatmul.bf16.gmra.mxu0 %v710
  %v3750 = vpop.f32.mrf.mxu0
  %v3751 = vadd.f32 0.0, %v3750
  %v3752 = vpop.f32.mrf.mxu0
  %v3753 = vadd.f32 0.0, %v3752
  %3754 = vmatmul.bf16.gmra.mxu0 %v713
  %v3755 = vpop.f32.mrf.mxu0
  %v3756 = vadd.f32 0.0, %v3755
  %v3757 = vpop.f32.mrf.mxu0
  %v3758 = vadd.f32 0.0, %v3757
  %3759 = vmatmul.bf16.gmra.mxu0 %v716
  %v3760 = vpop.f32.mrf.mxu0
  %v3761 = vadd.f32 0.0, %v3760
  %v3762 = vpop.f32.mrf.mxu0
  %v3763 = vadd.f32 0.0, %v3762
  %3764 = vmatmul.bf16.gmra.mxu0 %v719
  %v3765 = vpop.f32.mrf.mxu0
  %v3766 = vadd.f32 0.0, %v3765
  %v3767 = vpop.f32.mrf.mxu0
  %v3768 = vadd.f32 0.0, %v3767
  %3769 = vmatmul.bf16.gmra.mxu0 %v722
  %v3770 = vpop.f32.mrf.mxu0
  %v3771 = vadd.f32 0.0, %v3770
  %v3772 = vpop.f32.mrf.mxu0
  %v3773 = vadd.f32 0.0, %v3772
  %3774 = vmatmul.bf16.gmra.mxu0 %v725
  %v3775 = vpop.f32.mrf.mxu0
  %v3776 = vadd.f32 0.0, %v3775
  %v3777 = vpop.f32.mrf.mxu0
  %v3778 = vadd.f32 0.0, %v3777
  %3779 = vmatmul.bf16.gmra.mxu0 %v728
  %v3780 = vpop.f32.mrf.mxu0
  %v3781 = vadd.f32 0.0, %v3780
  %v3782 = vpop.f32.mrf.mxu0
  %v3783 = vadd.f32 0.0, %v3782
  %3784 = vdwg.mxu0
  %v3785 = vpack.c.bf16 %v3497, %v3495
  %v3786 = vpack.c.bf16 %v3498, %v3496
  %v3787 = vpack.c.bf16 %v3501, %v3499
  %v3788 = vpack.c.bf16 %v3502, %v3500
  %v3789 = vpack.c.bf16 %v3505, %v3503
  %v3790 = vpack.c.bf16 %v3506, %v3504
  %v3791 = vpack.c.bf16 %v3509, %v3507
  %v3792 = vpack.c.bf16 %v3510, %v3508
  %v3793 = vpack.c.bf16 %v3513, %v3511
  %v3794 = vpack.c.bf16 %v3514, %v3512
  %v3795 = vpack.c.bf16 %v3517, %v3515
  %v3796 = vpack.c.bf16 %v3518, %v3516
  %v3797 = vpack.c.bf16 %v3521, %v3519
  %v3798 = vpack.c.bf16 %v3522, %v3520
  %v3799 = vpack.c.bf16 %v3525, %v3523
  %v3800 = vpack.c.bf16 %v3526, %v3524
  %v3801 = vpack.c.bf16 %v3529, %v3527
  %v3802 = vpack.c.bf16 %v3530, %v3528
  %v3803 = vpack.c.bf16 %v3533, %v3531
  %v3804 = vpack.c.bf16 %v3534, %v3532
  %v3805 = vpack.c.bf16 %v3537, %v3535
  %v3806 = vpack.c.bf16 %v3538, %v3536
  %v3807 = vpack.c.bf16 %v3541, %v3539
  %v3808 = vpack.c.bf16 %v3542, %v3540
  %v3809 = vpack.c.bf16 %v3545, %v3543
  %v3810 = vpack.c.bf16 %v3546, %v3544
  %v3811 = vpack.c.bf16 %v3549, %v3547
  %v3812 = vpack.c.bf16 %v3550, %v3548
  %v3813 = vpack.c.bf16 %v3553, %v3551
  %v3814 = vpack.c.bf16 %v3554, %v3552
  %v3815 = vpack.c.bf16 %v3557, %v3555
  %v3816 = vpack.c.bf16 %v3558, %v3556
  %s3817 = scalar_lea.vmem %s4, 768
  %v3818 = vld [vmem:[%s3817] sm:$0xff]
  %v3819 = vld [vmem:[%s3817 + $0x8] sm:$0xff]
  %v3820 = vld [vmem:[%s3817 + $0x10] sm:$0xff]
  %v3821 = vld [vmem:[%s3817 + $0x18] sm:$0xff]
  %v3822 = vld [vmem:[%s3817 + $0x20] sm:$0xff]
  %v3823 = vld [vmem:[%s3817 + $0x28] sm:$0xff]
  %v3824 = vld [vmem:[%s3817 + $0x30] sm:$0xff]
  %v3825 = vld [vmem:[%s3817 + $0x38] sm:$0xff]
  %v3826 = vld [vmem:[%s3817 + $0x40] sm:$0xff]
  %v3827 = vld [vmem:[%s3817 + $0x48] sm:$0xff]
  %v3828 = vld [vmem:[%s3817 + $0x50] sm:$0xff]
  %v3829 = vld [vmem:[%s3817 + $0x58] sm:$0xff]
  %v3830 = vld [vmem:[%s3817 + $0x60] sm:$0xff]
  %v3831 = vld [vmem:[%s3817 + $0x68] sm:$0xff]
  %v3832 = vld [vmem:[%s3817 + $0x70] sm:$0xff]
  %v3833 = vld [vmem:[%s3817 + $0x78] sm:$0xff]
  %v3834 = vld [vmem:[%s3817 + $0x80] sm:$0xff]
  %v3835 = vld [vmem:[%s3817 + $0x88] sm:$0xff]
  %v3836 = vld [vmem:[%s3817 + $0x90] sm:$0xff]
  %v3837 = vld [vmem:[%s3817 + $0x98] sm:$0xff]
  %v3838 = vld [vmem:[%s3817 + $0xa0] sm:$0xff]
  %v3839 = vld [vmem:[%s3817 + $0xa8] sm:$0xff]
  %v3840 = vld [vmem:[%s3817 + $0xb0] sm:$0xff]
  %v3841 = vld [vmem:[%s3817 + $0xb8] sm:$0xff]
  %v3842 = vld [vmem:[%s3817 + $0xc0] sm:$0xff]
  %v3843 = vld [vmem:[%s3817 + $0xc8] sm:$0xff]
  %v3844 = vld [vmem:[%s3817 + $0xd0] sm:$0xff]
  %v3845 = vld [vmem:[%s3817 + $0xd8] sm:$0xff]
  %v3846 = vld [vmem:[%s3817 + $0xe0] sm:$0xff]
  %v3847 = vld [vmem:[%s3817 + $0xe8] sm:$0xff]
  %v3848 = vld [vmem:[%s3817 + $0xf0] sm:$0xff]
  %v3849 = vld [vmem:[%s3817 + $0xf8] sm:$0xff]
  %v3882 = vunpack.c.l.b16 %v3818
  %v3883 = vunpack.c.h.b16 %v3818
  %v3884 = vunpack.c.l.b16 %v3819
  %v3885 = vunpack.c.h.b16 %v3819
  %v3886 = vunpack.c.l.b16 %v3820
  %v3887 = vunpack.c.h.b16 %v3820
  %v3888 = vunpack.c.l.b16 %v3821
  %v3889 = vunpack.c.h.b16 %v3821
  %v3890 = vunpack.c.l.b16 %v3822
  %v3891 = vunpack.c.h.b16 %v3822
  %v3892 = vunpack.c.l.b16 %v3823
  %v3893 = vunpack.c.h.b16 %v3823
  %v3894 = vunpack.c.l.b16 %v3824
  %v3895 = vunpack.c.h.b16 %v3824
  %v3896 = vunpack.c.l.b16 %v3825
  %v3897 = vunpack.c.h.b16 %v3825
  %v3898 = vunpack.c.l.b16 %v3826
  %v3899 = vunpack.c.h.b16 %v3826
  %v3900 = vunpack.c.l.b16 %v3827
  %v3901 = vunpack.c.h.b16 %v3827
  %v3902 = vunpack.c.l.b16 %v3828
  %v3903 = vunpack.c.h.b16 %v3828
  %v3904 = vunpack.c.l.b16 %v3829
  %v3905 = vunpack.c.h.b16 %v3829
  %v3906 = vunpack.c.l.b16 %v3830
  %v3907 = vunpack.c.h.b16 %v3830
  %v3908 = vunpack.c.l.b16 %v3831
  %v3909 = vunpack.c.h.b16 %v3831
  %v3910 = vunpack.c.l.b16 %v3832
  %v3911 = vunpack.c.h.b16 %v3832
  %v3912 = vunpack.c.l.b16 %v3833
  %v3913 = vunpack.c.h.b16 %v3833
  %v3914 = vunpack.c.l.b16 %v3834
  %v3915 = vunpack.c.h.b16 %v3834
  %v3916 = vunpack.c.l.b16 %v3835
  %v3917 = vunpack.c.h.b16 %v3835
  %v3918 = vunpack.c.l.b16 %v3836
  %v3919 = vunpack.c.h.b16 %v3836
  %v3920 = vunpack.c.l.b16 %v3837
  %v3921 = vunpack.c.h.b16 %v3837
  %v3922 = vunpack.c.l.b16 %v3838
  %v3923 = vunpack.c.h.b16 %v3838
  %v3924 = vunpack.c.l.b16 %v3839
  %v3925 = vunpack.c.h.b16 %v3839
  %v3926 = vunpack.c.l.b16 %v3840
  %v3927 = vunpack.c.h.b16 %v3840
  %v3928 = vunpack.c.l.b16 %v3841
  %v3929 = vunpack.c.h.b16 %v3841
  %v3930 = vunpack.c.l.b16 %v3842
  %v3931 = vunpack.c.h.b16 %v3842
  %v3932 = vunpack.c.l.b16 %v3843
  %v3933 = vunpack.c.h.b16 %v3843
  %v3934 = vunpack.c.l.b16 %v3844
  %v3935 = vunpack.c.h.b16 %v3844
  %v3936 = vunpack.c.l.b16 %v3845
  %v3937 = vunpack.c.h.b16 %v3845
  %v3938 = vunpack.c.l.b16 %v3846
  %v3939 = vunpack.c.h.b16 %v3846
  %v3940 = vunpack.c.l.b16 %v3847
  %v3941 = vunpack.c.h.b16 %v3847
  %v3942 = vunpack.c.l.b16 %v3848
  %v3943 = vunpack.c.h.b16 %v3848
  %v3944 = vunpack.c.l.b16 %v3849
  %v3945 = vunpack.c.h.b16 %v3849
  %v3946 = vpack.c.b16 %v3884, %v3882
  %v3947 = vpack.c.b16 %v3885, %v3883
  %v3948 = vpack.c.b16 %v3888, %v3886
  %v3949 = vpack.c.b16 %v3889, %v3887
  %v3950 = vpack.c.b16 %v3892, %v3890
  %v3951 = vpack.c.b16 %v3893, %v3891
  %v3952 = vpack.c.b16 %v3896, %v3894
  %v3953 = vpack.c.b16 %v3897, %v3895
  %v3954 = vpack.c.b16 %v3900, %v3898
  %v3955 = vpack.c.b16 %v3901, %v3899
  %v3956 = vpack.c.b16 %v3904, %v3902
  %v3957 = vpack.c.b16 %v3905, %v3903
  %v3958 = vpack.c.b16 %v3908, %v3906
  %v3959 = vpack.c.b16 %v3909, %v3907
  %v3960 = vpack.c.b16 %v3912, %v3910
  %v3961 = vpack.c.b16 %v3913, %v3911
  %v3962 = vpack.c.b16 %v3916, %v3914
  %v3963 = vpack.c.b16 %v3917, %v3915
  %v3964 = vpack.c.b16 %v3920, %v3918
  %v3965 = vpack.c.b16 %v3921, %v3919
  %v3966 = vpack.c.b16 %v3924, %v3922
  %v3967 = vpack.c.b16 %v3925, %v3923
  %v3968 = vpack.c.b16 %v3928, %v3926
  %v3969 = vpack.c.b16 %v3929, %v3927
  %v3970 = vpack.c.b16 %v3932, %v3930
  %v3971 = vpack.c.b16 %v3933, %v3931
  %v3972 = vpack.c.b16 %v3936, %v3934
  %v3973 = vpack.c.b16 %v3937, %v3935
  %v3974 = vpack.c.b16 %v3940, %v3938
  %v3975 = vpack.c.b16 %v3941, %v3939
  %v3976 = vpack.c.b16 %v3944, %v3942
  %v3977 = vpack.c.b16 %v3945, %v3943
  %4010 = vmatpush.bf16.msra.mxu0 %v3960
  %4011 = vmatpush.bf16.msra.mxu0 %v3958
  %4012 = vmatpush.bf16.msra.mxu0 %v3956
  %4013 = vmatpush.bf16.msra.mxu0 %v3954
  %4014 = vmatpush.bf16.msra.mxu0 %v3952
  %4015 = vmatpush.bf16.msra.mxu0 %v3950
  %4016 = vmatpush.bf16.msra.mxu0 %v3948
  %4017 = vmatpush.bf16.msra.mxu0 %v3946
  %4018 = vmatmul.bf16.gmra.mxu0 %v3785
  %v4019 = vpop.f32.mrf.mxu0
  %v4020 = vadd.f32 %v3617, %v4019
  %v4021 = vpop.f32.mrf.mxu0
  %v4022 = vadd.f32 %v3619, %v4021
  %4023 = vmatmul.bf16.gmra.mxu0 %v3787
  %v4024 = vpop.f32.mrf.mxu0
  %v4025 = vadd.f32 %v3622, %v4024
  %v4026 = vpop.f32.mrf.mxu0
  %v4027 = vadd.f32 %v3624, %v4026
  %4028 = vmatmul.bf16.gmra.mxu0 %v3789
  %v4029 = vpop.f32.mrf.mxu0
  %v4030 = vadd.f32 %v3627, %v4029
  %v4031 = vpop.f32.mrf.mxu0
  %v4032 = vadd.f32 %v3629, %v4031
  %4033 = vmatmul.bf16.gmra.mxu0 %v3791
  %v4034 = vpop.f32.mrf.mxu0
  %v4035 = vadd.f32 %v3632, %v4034
  %v4036 = vpop.f32.mrf.mxu0
  %v4037 = vadd.f32 %v3634, %v4036
  %4038 = vmatmul.bf16.gmra.mxu0 %v3793
  %v4039 = vpop.f32.mrf.mxu0
  %v4040 = vadd.f32 %v3637, %v4039
  %v4041 = vpop.f32.mrf.mxu0
  %v4042 = vadd.f32 %v3639, %v4041
  %4043 = vmatmul.bf16.gmra.mxu0 %v3795
  %v4044 = vpop.f32.mrf.mxu0
  %v4045 = vadd.f32 %v3642, %v4044
  %v4046 = vpop.f32.mrf.mxu0
  %v4047 = vadd.f32 %v3644, %v4046
  %4048 = vmatmul.bf16.gmra.mxu0 %v3797
  %v4049 = vpop.f32.mrf.mxu0
  %v4050 = vadd.f32 %v3647, %v4049
  %v4051 = vpop.f32.mrf.mxu0
  %v4052 = vadd.f32 %v3649, %v4051
  %4053 = vmatmul.bf16.gmra.mxu0 %v3799
  %v4054 = vpop.f32.mrf.mxu0
  %v4055 = vadd.f32 %v3652, %v4054
  %v4056 = vpop.f32.mrf.mxu0
  %v4057 = vadd.f32 %v3654, %v4056
  %4058 = vmatmul.bf16.gmra.mxu0 %v3801
  %v4059 = vpop.f32.mrf.mxu0
  %v4060 = vadd.f32 %v3657, %v4059
  %v4061 = vpop.f32.mrf.mxu0
  %v4062 = vadd.f32 %v3659, %v4061
  %4063 = vmatmul.bf16.gmra.mxu0 %v3803
  %v4064 = vpop.f32.mrf.mxu0
  %v4065 = vadd.f32 %v3662, %v4064
  %v4066 = vpop.f32.mrf.mxu0
  %v4067 = vadd.f32 %v3664, %v4066
  %4068 = vmatmul.bf16.gmra.mxu0 %v3805
  %v4069 = vpop.f32.mrf.mxu0
  %v4070 = vadd.f32 %v3667, %v4069
  %v4071 = vpop.f32.mrf.mxu0
  %v4072 = vadd.f32 %v3669, %v4071
  %4073 = vmatmul.bf16.gmra.mxu0 %v3807
  %v4074 = vpop.f32.mrf.mxu0
  %v4075 = vadd.f32 %v3672, %v4074
  %v4076 = vpop.f32.mrf.mxu0
  %v4077 = vadd.f32 %v3674, %v4076
  %4078 = vmatmul.bf16.gmra.mxu0 %v3809
  %v4079 = vpop.f32.mrf.mxu0
  %v4080 = vadd.f32 %v3677, %v4079
  %v4081 = vpop.f32.mrf.mxu0
  %v4082 = vadd.f32 %v3679, %v4081
  %4083 = vmatmul.bf16.gmra.mxu0 %v3811
  %v4084 = vpop.f32.mrf.mxu0
  %v4085 = vadd.f32 %v3682, %v4084
  %v4086 = vpop.f32.mrf.mxu0
  %v4087 = vadd.f32 %v3684, %v4086
  %4088 = vmatmul.bf16.gmra.mxu0 %v3813
  %v4089 = vpop.f32.mrf.mxu0
  %v4090 = vadd.f32 %v3687, %v4089
  %v4091 = vpop.f32.mrf.mxu0
  %v4092 = vadd.f32 %v3689, %v4091
  %4093 = vmatmul.bf16.gmra.mxu0 %v3815
  %v4094 = vpop.f32.mrf.mxu0
  %v4095 = vadd.f32 %v3692, %v4094
  %v4096 = vpop.f32.mrf.mxu0
  %v4097 = vadd.f32 %v3694, %v4096
  %4098 = vdwg.mxu0
  %4099 = vmatpush.bf16.msra.mxu0 %v3976
  %4100 = vmatpush.bf16.msra.mxu0 %v3974
  %4101 = vmatpush.bf16.msra.mxu0 %v3972
  %4102 = vmatpush.bf16.msra.mxu0 %v3970
  %4103 = vmatpush.bf16.msra.mxu0 %v3968
  %4104 = vmatpush.bf16.msra.mxu0 %v3966
  %4105 = vmatpush.bf16.msra.mxu0 %v3964
  %4106 = vmatpush.bf16.msra.mxu0 %v3962
  %4107 = vmatmul.bf16.gmra.mxu0 %v3786
  %v4108 = vpop.f32.mrf.mxu0
  %v4109 = vadd.f32 %v4020, %v4108
  %v4110 = vpop.f32.mrf.mxu0
  %v4111 = vadd.f32 %v4022, %v4110
  %4112 = vmatmul.bf16.gmra.mxu0 %v3788
  %v4113 = vpop.f32.mrf.mxu0
  %v4114 = vadd.f32 %v4025, %v4113
  %v4115 = vpop.f32.mrf.mxu0
  %v4116 = vadd.f32 %v4027, %v4115
  %4117 = vmatmul.bf16.gmra.mxu0 %v3790
  %v4118 = vpop.f32.mrf.mxu0
  %v4119 = vadd.f32 %v4030, %v4118
  %v4120 = vpop.f32.mrf.mxu0
  %v4121 = vadd.f32 %v4032, %v4120
  %4122 = vmatmul.bf16.gmra.mxu0 %v3792
  %v4123 = vpop.f32.mrf.mxu0
  %v4124 = vadd.f32 %v4035, %v4123
  %v4125 = vpop.f32.mrf.mxu0
  %v4126 = vadd.f32 %v4037, %v4125
  %4127 = vmatmul.bf16.gmra.mxu0 %v3794
  %v4128 = vpop.f32.mrf.mxu0
  %v4129 = vadd.f32 %v4040, %v4128
  %v4130 = vpop.f32.mrf.mxu0
  %v4131 = vadd.f32 %v4042, %v4130
  %4132 = vmatmul.bf16.gmra.mxu0 %v3796
  %v4133 = vpop.f32.mrf.mxu0
  %v4134 = vadd.f32 %v4045, %v4133
  %v4135 = vpop.f32.mrf.mxu0
  %v4136 = vadd.f32 %v4047, %v4135
  %4137 = vmatmul.bf16.gmra.mxu0 %v3798
  %v4138 = vpop.f32.mrf.mxu0
  %v4139 = vadd.f32 %v4050, %v4138
  %v4140 = vpop.f32.mrf.mxu0
  %v4141 = vadd.f32 %v4052, %v4140
  %4142 = vmatmul.bf16.gmra.mxu0 %v3800
  %v4143 = vpop.f32.mrf.mxu0
  %v4144 = vadd.f32 %v4055, %v4143
  %v4145 = vpop.f32.mrf.mxu0
  %v4146 = vadd.f32 %v4057, %v4145
  %4147 = vmatmul.bf16.gmra.mxu0 %v3802
  %v4148 = vpop.f32.mrf.mxu0
  %v4149 = vadd.f32 %v4060, %v4148
  %v4150 = vpop.f32.mrf.mxu0
  %v4151 = vadd.f32 %v4062, %v4150
  %4152 = vmatmul.bf16.gmra.mxu0 %v3804
  %v4153 = vpop.f32.mrf.mxu0
  %v4154 = vadd.f32 %v4065, %v4153
  %v4155 = vpop.f32.mrf.mxu0
  %v4156 = vadd.f32 %v4067, %v4155
  %4157 = vmatmul.bf16.gmra.mxu0 %v3806
  %v4158 = vpop.f32.mrf.mxu0
  %v4159 = vadd.f32 %v4070, %v4158
  %v4160 = vpop.f32.mrf.mxu0
  %v4161 = vadd.f32 %v4072, %v4160
  %4162 = vmatmul.bf16.gmra.mxu0 %v3808
  %v4163 = vpop.f32.mrf.mxu0
  %v4164 = vadd.f32 %v4075, %v4163
  %v4165 = vpop.f32.mrf.mxu0
  %v4166 = vadd.f32 %v4077, %v4165
  %4167 = vmatmul.bf16.gmra.mxu0 %v3810
  %v4168 = vpop.f32.mrf.mxu0
  %v4169 = vadd.f32 %v4080, %v4168
  %v4170 = vpop.f32.mrf.mxu0
  %v4171 = vadd.f32 %v4082, %v4170
  %4172 = vmatmul.bf16.gmra.mxu0 %v3812
  %v4173 = vpop.f32.mrf.mxu0
  %v4174 = vadd.f32 %v4085, %v4173
  %v4175 = vpop.f32.mrf.mxu0
  %v4176 = vadd.f32 %v4087, %v4175
  %4177 = vmatmul.bf16.gmra.mxu0 %v3814
  %v4178 = vpop.f32.mrf.mxu0
  %v4179 = vadd.f32 %v4090, %v4178
  %v4180 = vpop.f32.mrf.mxu0
  %v4181 = vadd.f32 %v4092, %v4180
  %4182 = vmatmul.bf16.gmra.mxu0 %v3816
  %v4183 = vpop.f32.mrf.mxu0
  %v4184 = vadd.f32 %v4095, %v4183
  %v4185 = vpop.f32.mrf.mxu0
  %v4186 = vadd.f32 %v4097, %v4185
  %4187 = vdwg.mxu0
  %4188 = vmatpush.bf16.msra.mxu0 %v3961
  %4189 = vmatpush.bf16.msra.mxu0 %v3959
  %4190 = vmatpush.bf16.msra.mxu0 %v3957
  %4191 = vmatpush.bf16.msra.mxu0 %v3955
  %4192 = vmatpush.bf16.msra.mxu0 %v3953
  %4193 = vmatpush.bf16.msra.mxu0 %v3951
  %4194 = vmatpush.bf16.msra.mxu0 %v3949
  %4195 = vmatpush.bf16.msra.mxu0 %v3947
  %4196 = vmatmul.bf16.gmra.mxu0 %v3785
  %v4197 = vpop.f32.mrf.mxu0
  %v4198 = vadd.f32 %v3706, %v4197
  %v4199 = vpop.f32.mrf.mxu0
  %v4200 = vadd.f32 %v3708, %v4199
  %4201 = vmatmul.bf16.gmra.mxu0 %v3787
  %v4202 = vpop.f32.mrf.mxu0
  %v4203 = vadd.f32 %v3711, %v4202
  %v4204 = vpop.f32.mrf.mxu0
  %v4205 = vadd.f32 %v3713, %v4204
  %4206 = vmatmul.bf16.gmra.mxu0 %v3789
  %v4207 = vpop.f32.mrf.mxu0
  %v4208 = vadd.f32 %v3716, %v4207
  %v4209 = vpop.f32.mrf.mxu0
  %v4210 = vadd.f32 %v3718, %v4209
  %4211 = vmatmul.bf16.gmra.mxu0 %v3791
  %v4212 = vpop.f32.mrf.mxu0
  %v4213 = vadd.f32 %v3721, %v4212
  %v4214 = vpop.f32.mrf.mxu0
  %v4215 = vadd.f32 %v3723, %v4214
  %4216 = vmatmul.bf16.gmra.mxu0 %v3793
  %v4217 = vpop.f32.mrf.mxu0
  %v4218 = vadd.f32 %v3726, %v4217
  %v4219 = vpop.f32.mrf.mxu0
  %v4220 = vadd.f32 %v3728, %v4219
  %4221 = vmatmul.bf16.gmra.mxu0 %v3795
  %v4222 = vpop.f32.mrf.mxu0
  %v4223 = vadd.f32 %v3731, %v4222
  %v4224 = vpop.f32.mrf.mxu0
  %v4225 = vadd.f32 %v3733, %v4224
  %4226 = vmatmul.bf16.gmra.mxu0 %v3797
  %v4227 = vpop.f32.mrf.mxu0
  %v4228 = vadd.f32 %v3736, %v4227
  %v4229 = vpop.f32.mrf.mxu0
  %v4230 = vadd.f32 %v3738, %v4229
  %4231 = vmatmul.bf16.gmra.mxu0 %v3799
  %v4232 = vpop.f32.mrf.mxu0
  %v4233 = vadd.f32 %v3741, %v4232
  %v4234 = vpop.f32.mrf.mxu0
  %v4235 = vadd.f32 %v3743, %v4234
  %4236 = vmatmul.bf16.gmra.mxu0 %v3801
  %v4237 = vpop.f32.mrf.mxu0
  %v4238 = vadd.f32 %v3746, %v4237
  %v4239 = vpop.f32.mrf.mxu0
  %v4240 = vadd.f32 %v3748, %v4239
  %4241 = vmatmul.bf16.gmra.mxu0 %v3803
  %v4242 = vpop.f32.mrf.mxu0
  %v4243 = vadd.f32 %v3751, %v4242
  %v4244 = vpop.f32.mrf.mxu0
  %v4245 = vadd.f32 %v3753, %v4244
  %4246 = vmatmul.bf16.gmra.mxu0 %v3805
  %v4247 = vpop.f32.mrf.mxu0
  %v4248 = vadd.f32 %v3756, %v4247
  %v4249 = vpop.f32.mrf.mxu0
  %v4250 = vadd.f32 %v3758, %v4249
  %4251 = vmatmul.bf16.gmra.mxu0 %v3807
  %v4252 = vpop.f32.mrf.mxu0
  %v4253 = vadd.f32 %v3761, %v4252
  %v4254 = vpop.f32.mrf.mxu0
  %v4255 = vadd.f32 %v3763, %v4254
  %4256 = vmatmul.bf16.gmra.mxu0 %v3809
  %v4257 = vpop.f32.mrf.mxu0
  %v4258 = vadd.f32 %v3766, %v4257
  %v4259 = vpop.f32.mrf.mxu0
  %v4260 = vadd.f32 %v3768, %v4259
  %4261 = vmatmul.bf16.gmra.mxu0 %v3811
  %v4262 = vpop.f32.mrf.mxu0
  %v4263 = vadd.f32 %v3771, %v4262
  %v4264 = vpop.f32.mrf.mxu0
  %v4265 = vadd.f32 %v3773, %v4264
  %4266 = vmatmul.bf16.gmra.mxu0 %v3813
  %v4267 = vpop.f32.mrf.mxu0
  %v4268 = vadd.f32 %v3776, %v4267
  %v4269 = vpop.f32.mrf.mxu0
  %v4270 = vadd.f32 %v3778, %v4269
  %4271 = vmatmul.bf16.gmra.mxu0 %v3815
  %v4272 = vpop.f32.mrf.mxu0
  %v4273 = vadd.f32 %v3781, %v4272
  %v4274 = vpop.f32.mrf.mxu0
  %v4275 = vadd.f32 %v3783, %v4274
  %4276 = vdwg.mxu0
  %4277 = vmatpush.bf16.msra.mxu0 %v3977
  %4278 = vmatpush.bf16.msra.mxu0 %v3975
  %4279 = vmatpush.bf16.msra.mxu0 %v3973
  %4280 = vmatpush.bf16.msra.mxu0 %v3971
  %4281 = vmatpush.bf16.msra.mxu0 %v3969
  %4282 = vmatpush.bf16.msra.mxu0 %v3967
  %4283 = vmatpush.bf16.msra.mxu0 %v3965
  %4284 = vmatpush.bf16.msra.mxu0 %v3963
  %4285 = vmatmul.bf16.gmra.mxu0 %v3786
  %v4286 = vpop.f32.mrf.mxu0
  %v4287 = vadd.f32 %v4198, %v4286
  %v4288 = vpop.f32.mrf.mxu0
  %v4289 = vadd.f32 %v4200, %v4288
  %4290 = vmatmul.bf16.gmra.mxu0 %v3788
  %v4291 = vpop.f32.mrf.mxu0
  %v4292 = vadd.f32 %v4203, %v4291
  %v4293 = vpop.f32.mrf.mxu0
  %v4294 = vadd.f32 %v4205, %v4293
  %4295 = vmatmul.bf16.gmra.mxu0 %v3790
  %v4296 = vpop.f32.mrf.mxu0
  %v4297 = vadd.f32 %v4208, %v4296
  %v4298 = vpop.f32.mrf.mxu0
  %v4299 = vadd.f32 %v4210, %v4298
  %4300 = vmatmul.bf16.gmra.mxu0 %v3792
  %v4301 = vpop.f32.mrf.mxu0
  %v4302 = vadd.f32 %v4213, %v4301
  %v4303 = vpop.f32.mrf.mxu0
  %v4304 = vadd.f32 %v4215, %v4303
  %4305 = vmatmul.bf16.gmra.mxu0 %v3794
  %v4306 = vpop.f32.mrf.mxu0
  %v4307 = vadd.f32 %v4218, %v4306
  %v4308 = vpop.f32.mrf.mxu0
  %v4309 = vadd.f32 %v4220, %v4308
  %4310 = vmatmul.bf16.gmra.mxu0 %v3796
  %v4311 = vpop.f32.mrf.mxu0
  %v4312 = vadd.f32 %v4223, %v4311
  %v4313 = vpop.f32.mrf.mxu0
  %v4314 = vadd.f32 %v4225, %v4313
  %4315 = vmatmul.bf16.gmra.mxu0 %v3798
  %v4316 = vpop.f32.mrf.mxu0
  %v4317 = vadd.f32 %v4228, %v4316
  %v4318 = vpop.f32.mrf.mxu0
  %v4319 = vadd.f32 %v4230, %v4318
  %4320 = vmatmul.bf16.gmra.mxu0 %v3800
  %v4321 = vpop.f32.mrf.mxu0
  %v4322 = vadd.f32 %v4233, %v4321
  %v4323 = vpop.f32.mrf.mxu0
  %v4324 = vadd.f32 %v4235, %v4323
  %4325 = vmatmul.bf16.gmra.mxu0 %v3802
  %v4326 = vpop.f32.mrf.mxu0
  %v4327 = vadd.f32 %v4238, %v4326
  %v4328 = vpop.f32.mrf.mxu0
  %v4329 = vadd.f32 %v4240, %v4328
  %4330 = vmatmul.bf16.gmra.mxu0 %v3804
  %v4331 = vpop.f32.mrf.mxu0
  %v4332 = vadd.f32 %v4243, %v4331
  %v4333 = vpop.f32.mrf.mxu0
  %v4334 = vadd.f32 %v4245, %v4333
  %4335 = vmatmul.bf16.gmra.mxu0 %v3806
  %v4336 = vpop.f32.mrf.mxu0
  %v4337 = vadd.f32 %v4248, %v4336
  %v4338 = vpop.f32.mrf.mxu0
  %v4339 = vadd.f32 %v4250, %v4338
  %4340 = vmatmul.bf16.gmra.mxu0 %v3808
  %v4341 = vpop.f32.mrf.mxu0
  %v4342 = vadd.f32 %v4253, %v4341
  %v4343 = vpop.f32.mrf.mxu0
  %v4344 = vadd.f32 %v4255, %v4343
  %4345 = vmatmul.bf16.gmra.mxu0 %v3810
  %v4346 = vpop.f32.mrf.mxu0
  %v4347 = vadd.f32 %v4258, %v4346
  %v4348 = vpop.f32.mrf.mxu0
  %v4349 = vadd.f32 %v4260, %v4348
  %4350 = vmatmul.bf16.gmra.mxu0 %v3812
  %v4351 = vpop.f32.mrf.mxu0
  %v4352 = vadd.f32 %v4263, %v4351
  %v4353 = vpop.f32.mrf.mxu0
  %v4354 = vadd.f32 %v4265, %v4353
  %4355 = vmatmul.bf16.gmra.mxu0 %v3814
  %v4356 = vpop.f32.mrf.mxu0
  %v4357 = vadd.f32 %v4268, %v4356
  %v4358 = vpop.f32.mrf.mxu0
  %v4359 = vadd.f32 %v4270, %v4358
  %4360 = vmatmul.bf16.gmra.mxu0 %v3816
  %v4361 = vpop.f32.mrf.mxu0
  %v4362 = vadd.f32 %v4273, %v4361
  %v4363 = vpop.f32.mrf.mxu0
  %v4364 = vadd.f32 %v4275, %v4363
  %4365 = vdwg.mxu0
  %v4366 = vadd.f32 %v2560, %v4109
  %v4367 = vadd.f32 %v2561, %v4287
  %v4368 = vadd.f32 %v2562, %v4111
  %v4369 = vadd.f32 %v2563, %v4289
  %v4370 = vadd.f32 %v2564, %v4114
  %v4371 = vadd.f32 %v2565, %v4292
  %v4372 = vadd.f32 %v2566, %v4116
  %v4373 = vadd.f32 %v2567, %v4294
  %v4374 = vadd.f32 %v2568, %v4119
  %v4375 = vadd.f32 %v2569, %v4297
  %v4376 = vadd.f32 %v2570, %v4121
  %v4377 = vadd.f32 %v2571, %v4299
  %v4378 = vadd.f32 %v2572, %v4124
  %v4379 = vadd.f32 %v2573, %v4302
  %v4380 = vadd.f32 %v2574, %v4126
  %v4381 = vadd.f32 %v2575, %v4304
  %v4382 = vadd.f32 %v2576, %v4129
  %v4383 = vadd.f32 %v2577, %v4307
  %v4384 = vadd.f32 %v2578, %v4131
  %v4385 = vadd.f32 %v2579, %v4309
  %v4386 = vadd.f32 %v2580, %v4134
  %v4387 = vadd.f32 %v2581, %v4312
  %v4388 = vadd.f32 %v2582, %v4136
  %v4389 = vadd.f32 %v2583, %v4314
  %v4390 = vadd.f32 %v2584, %v4139
  %v4391 = vadd.f32 %v2585, %v4317
  %v4392 = vadd.f32 %v2586, %v4141
  %v4393 = vadd.f32 %v2587, %v4319
  %v4394 = vadd.f32 %v2588, %v4144
  %v4395 = vadd.f32 %v2589, %v4322
  %v4396 = vadd.f32 %v2590, %v4146
  %v4397 = vadd.f32 %v2591, %v4324
  %v4398 = vadd.f32 %v2592, %v4149
  %v4399 = vadd.f32 %v2593, %v4327
  %v4400 = vadd.f32 %v2594, %v4151
  %v4401 = vadd.f32 %v2595, %v4329
  %v4402 = vadd.f32 %v2596, %v4154
  %v4403 = vadd.f32 %v2597, %v4332
  %v4404 = vadd.f32 %v2598, %v4156
  %v4405 = vadd.f32 %v2599, %v4334
  %v4406 = vadd.f32 %v2600, %v4159
  %v4407 = vadd.f32 %v2601, %v4337
  %v4408 = vadd.f32 %v2602, %v4161
  %v4409 = vadd.f32 %v2603, %v4339
  %v4410 = vadd.f32 %v2604, %v4164
  %v4411 = vadd.f32 %v2605, %v4342
  %v4412 = vadd.f32 %v2606, %v4166
  %v4413 = vadd.f32 %v2607, %v4344
  %v4414 = vadd.f32 %v2608, %v4169
  %v4415 = vadd.f32 %v2609, %v4347
  %v4416 = vadd.f32 %v2610, %v4171
  %v4417 = vadd.f32 %v2611, %v4349
  %v4418 = vadd.f32 %v2612, %v4174
  %v4419 = vadd.f32 %v2613, %v4352
  %v4420 = vadd.f32 %v2614, %v4176
  %v4421 = vadd.f32 %v2615, %v4354
  %v4422 = vadd.f32 %v2616, %v4179
  %v4423 = vadd.f32 %v2617, %v4357
  %v4424 = vadd.f32 %v2618, %v4181
  %v4425 = vadd.f32 %v2619, %v4359
  %v4426 = vadd.f32 %v2620, %v4184
  %v4427 = vadd.f32 %v2621, %v4362
  %v4428 = vadd.f32 %v2622, %v4186
  %v4429 = vadd.f32 %v2623, %v4364
  %v4430 = vmul.f32 %v4366, 0.2
  %v4431 = vmul.f32 %v4367, 0.2
  %v4432 = vmul.f32 %v4368, 0.2
  %v4433 = vmul.f32 %v4369, 0.2
  %v4434 = vmul.f32 %v4370, 0.2
  %v4435 = vmul.f32 %v4371, 0.2
  %v4436 = vmul.f32 %v4372, 0.2
  %v4437 = vmul.f32 %v4373, 0.2
  %v4438 = vmul.f32 %v4374, 0.2
  %v4439 = vmul.f32 %v4375, 0.2
  %v4440 = vmul.f32 %v4376, 0.2
  %v4441 = vmul.f32 %v4377, 0.2
  %v4442 = vmul.f32 %v4378, 0.2
  %v4443 = vmul.f32 %v4379, 0.2
  %v4444 = vmul.f32 %v4380, 0.2
  %v4445 = vmul.f32 %v4381, 0.2
  %v4446 = vmul.f32 %v4382, 0.2
  %v4447 = vmul.f32 %v4383, 0.2
  %v4448 = vmul.f32 %v4384, 0.2
  %v4449 = vmul.f32 %v4385, 0.2
  %v4450 = vmul.f32 %v4386, 0.2
  %v4451 = vmul.f32 %v4387, 0.2
  %v4452 = vmul.f32 %v4388, 0.2
  %v4453 = vmul.f32 %v4389, 0.2
  %v4454 = vmul.f32 %v4390, 0.2
  %v4455 = vmul.f32 %v4391, 0.2
  %v4456 = vmul.f32 %v4392, 0.2
  %v4457 = vmul.f32 %v4393, 0.2
  %v4458 = vmul.f32 %v4394, 0.2
  %v4459 = vmul.f32 %v4395, 0.2
  %v4460 = vmul.f32 %v4396, 0.2
  %v4461 = vmul.f32 %v4397, 0.2
  %v4462 = vmul.f32 %v4398, 0.2
  %v4463 = vmul.f32 %v4399, 0.2
  %v4464 = vmul.f32 %v4400, 0.2
  %v4465 = vmul.f32 %v4401, 0.2
  %v4466 = vmul.f32 %v4402, 0.2
  %v4467 = vmul.f32 %v4403, 0.2
  %v4468 = vmul.f32 %v4404, 0.2
  %v4469 = vmul.f32 %v4405, 0.2
  %v4470 = vmul.f32 %v4406, 0.2
  %v4471 = vmul.f32 %v4407, 0.2
  %v4472 = vmul.f32 %v4408, 0.2
  %v4473 = vmul.f32 %v4409, 0.2
  %v4474 = vmul.f32 %v4410, 0.2
  %v4475 = vmul.f32 %v4411, 0.2
  %v4476 = vmul.f32 %v4412, 0.2
  %v4477 = vmul.f32 %v4413, 0.2
  %v4478 = vmul.f32 %v4414, 0.2
  %v4479 = vmul.f32 %v4415, 0.2
  %v4480 = vmul.f32 %v4416, 0.2
  %v4481 = vmul.f32 %v4417, 0.2
  %v4482 = vmul.f32 %v4418, 0.2
  %v4483 = vmul.f32 %v4419, 0.2
  %v4484 = vmul.f32 %v4420, 0.2
  %v4485 = vmul.f32 %v4421, 0.2
  %v4486 = vmul.f32 %v4422, 0.2
  %v4487 = vmul.f32 %v4423, 0.2
  %v4488 = vmul.f32 %v4424, 0.2
  %v4489 = vmul.f32 %v4425, 0.2
  %v4490 = vmul.f32 %v4426, 0.2
  %v4491 = vmul.f32 %v4427, 0.2
  %v4492 = vmul.f32 %v4428, 0.2
  %v4493 = vmul.f32 %v4429, 0.2
  %v4494 = vmax.f32 %v4366, %v4430
  %v4495 = vmax.f32 %v4367, %v4431
  %v4496 = vmax.f32 %v4368, %v4432
  %v4497 = vmax.f32 %v4369, %v4433
  %v4498 = vmax.f32 %v4370, %v4434
  %v4499 = vmax.f32 %v4371, %v4435
  %v4500 = vmax.f32 %v4372, %v4436
  %v4501 = vmax.f32 %v4373, %v4437
  %v4502 = vmax.f32 %v4374, %v4438
  %v4503 = vmax.f32 %v4375, %v4439
  %v4504 = vmax.f32 %v4376, %v4440
  %v4505 = vmax.f32 %v4377, %v4441
  %v4506 = vmax.f32 %v4378, %v4442
  %v4507 = vmax.f32 %v4379, %v4443
  %v4508 = vmax.f32 %v4380, %v4444
  %v4509 = vmax.f32 %v4381, %v4445
  %v4510 = vmax.f32 %v4382, %v4446
  %v4511 = vmax.f32 %v4383, %v4447
  %v4512 = vmax.f32 %v4384, %v4448
  %v4513 = vmax.f32 %v4385, %v4449
  %v4514 = vmax.f32 %v4386, %v4450
  %v4515 = vmax.f32 %v4387, %v4451
  %v4516 = vmax.f32 %v4388, %v4452
  %v4517 = vmax.f32 %v4389, %v4453
  %v4518 = vmax.f32 %v4390, %v4454
  %v4519 = vmax.f32 %v4391, %v4455
  %v4520 = vmax.f32 %v4392, %v4456
  %v4521 = vmax.f32 %v4393, %v4457
  %v4522 = vmax.f32 %v4394, %v4458
  %v4523 = vmax.f32 %v4395, %v4459
  %v4524 = vmax.f32 %v4396, %v4460
  %v4525 = vmax.f32 %v4397, %v4461
  %v4526 = vmax.f32 %v4398, %v4462
  %v4527 = vmax.f32 %v4399, %v4463
  %v4528 = vmax.f32 %v4400, %v4464
  %v4529 = vmax.f32 %v4401, %v4465
  %v4530 = vmax.f32 %v4402, %v4466
  %v4531 = vmax.f32 %v4403, %v4467
  %v4532 = vmax.f32 %v4404, %v4468
  %v4533 = vmax.f32 %v4405, %v4469
  %v4534 = vmax.f32 %v4406, %v4470
  %v4535 = vmax.f32 %v4407, %v4471
  %v4536 = vmax.f32 %v4408, %v4472
  %v4537 = vmax.f32 %v4409, %v4473
  %v4538 = vmax.f32 %v4410, %v4474
  %v4539 = vmax.f32 %v4411, %v4475
  %v4540 = vmax.f32 %v4412, %v4476
  %v4541 = vmax.f32 %v4413, %v4477
  %v4542 = vmax.f32 %v4414, %v4478
  %v4543 = vmax.f32 %v4415, %v4479
  %v4544 = vmax.f32 %v4416, %v4480
  %v4545 = vmax.f32 %v4417, %v4481
  %v4546 = vmax.f32 %v4418, %v4482
  %v4547 = vmax.f32 %v4419, %v4483
  %v4548 = vmax.f32 %v4420, %v4484
  %v4549 = vmax.f32 %v4421, %v4485
  %v4550 = vmax.f32 %v4422, %v4486
  %v4551 = vmax.f32 %v4423, %v4487
  %v4552 = vmax.f32 %v4424, %v4488
  %v4553 = vmax.f32 %v4425, %v4489
  %v4554 = vmax.f32 %v4426, %v4490
  %v4555 = vmax.f32 %v4427, %v4491
  %v4556 = vmax.f32 %v4428, %v4492
  %v4557 = vmax.f32 %v4429, %v4493
  %v4558 = vld [vmem:[%s5 + $0x20] sm:$0xff]
  %v4559 = vld [vmem:[%s5 + $0x60] sm:$0xff]
  %v4560 = vld [vmem:[%s5 + $0xa0] sm:$0xff]
  %v4561 = vld [vmem:[%s5 + $0xe0] sm:$0xff]
  %v4562 = vld [vmem:[%s5 + $0x120] sm:$0xff]
  %v4563 = vld [vmem:[%s5 + $0x160] sm:$0xff]
  %v4564 = vld [vmem:[%s5 + $0x1a0] sm:$0x11]
  %v4572 = vunpack.c.l.b16 %v4558
  %v4573 = vunpack.c.h.b16 %v4558
  %v4574 = vunpack.c.l.b16 %v4559
  %v4575 = vunpack.c.h.b16 %v4559
  %v4576 = vunpack.c.l.b16 %v4560
  %v4577 = vunpack.c.h.b16 %v4560
  %v4578 = vunpack.c.l.b16 %v4561
  %v4579 = vunpack.c.h.b16 %v4561
  %v4580 = vunpack.c.l.b16 %v4562
  %v4581 = vunpack.c.h.b16 %v4562
  %v4582 = vunpack.c.l.b16 %v4563
  %v4583 = vunpack.c.h.b16 %v4563
  %v4584 = vunpack.c.l.b16 %v4564
  %v4585 = vunpack.c.h.b16 %v4564
  %v4586 = vpack.c.b16 %v4574, %v4572
  %v4587 = vpack.c.b16 %v4575, %v4573
  %v4588 = vpack.c.b16 %v4578, %v4576
  %v4589 = vpack.c.b16 %v4579, %v4577
  %v4590 = vpack.c.b16 %v4582, %v4580
  %v4591 = vpack.c.b16 %v4583, %v4581
  %v4592 = vpack.c.b16 %v4584, %v4584
  %v4593 = vpack.c.b16 %v4585, %v4585
  %v4601 = vand.u32 %v4592, %v732
  %v4604 = vand.u32 %v4593, %v732
  %4606 = vmatpush.bf16.msra.mxu0 0
  %4607 = vmatpush.bf16.msra.mxu0 0
  %4608 = vmatpush.bf16.msra.mxu0 0
  %4609 = vmatpush.bf16.msra.mxu0 0
  %4610 = vmatpush.bf16.msra.mxu0 %v4601
  %4611 = vmatpush.bf16.msra.mxu0 %v4590
  %4612 = vmatpush.bf16.msra.mxu0 %v4588
  %4613 = vmatpush.bf16.msra.mxu0 %v4586
  %4614 = vmatmul.bf16.gmra.mxu0 %v683
  %v4615 = vpop.f32.mrf.mxu0
  %v4616 = vadd.f32 0.0, %v4615
  %v4617 = vpop.f32.mrf.mxu0
  %v4618 = vadd.f32 0.0, %v4617
  %4619 = vmatmul.bf16.gmra.mxu0 %v686
  %v4620 = vpop.f32.mrf.mxu0
  %v4621 = vadd.f32 0.0, %v4620
  %v4622 = vpop.f32.mrf.mxu0
  %v4623 = vadd.f32 0.0, %v4622
  %4624 = vmatmul.bf16.gmra.mxu0 %v689
  %v4625 = vpop.f32.mrf.mxu0
  %v4626 = vadd.f32 0.0, %v4625
  %v4627 = vpop.f32.mrf.mxu0
  %v4628 = vadd.f32 0.0, %v4627
  %4629 = vmatmul.bf16.gmra.mxu0 %v692
  %v4630 = vpop.f32.mrf.mxu0
  %v4631 = vadd.f32 0.0, %v4630
  %v4632 = vpop.f32.mrf.mxu0
  %v4633 = vadd.f32 0.0, %v4632
  %4634 = vmatmul.bf16.gmra.mxu0 %v695
  %v4635 = vpop.f32.mrf.mxu0
  %v4636 = vadd.f32 0.0, %v4635
  %v4637 = vpop.f32.mrf.mxu0
  %v4638 = vadd.f32 0.0, %v4637
  %4639 = vmatmul.bf16.gmra.mxu0 %v698
  %v4640 = vpop.f32.mrf.mxu0
  %v4641 = vadd.f32 0.0, %v4640
  %v4642 = vpop.f32.mrf.mxu0
  %v4643 = vadd.f32 0.0, %v4642
  %4644 = vmatmul.bf16.gmra.mxu0 %v701
  %v4645 = vpop.f32.mrf.mxu0
  %v4646 = vadd.f32 0.0, %v4645
  %v4647 = vpop.f32.mrf.mxu0
  %v4648 = vadd.f32 0.0, %v4647
  %4649 = vmatmul.bf16.gmra.mxu0 %v704
  %v4650 = vpop.f32.mrf.mxu0
  %v4651 = vadd.f32 0.0, %v4650
  %v4652 = vpop.f32.mrf.mxu0
  %v4653 = vadd.f32 0.0, %v4652
  %4654 = vmatmul.bf16.gmra.mxu0 %v707
  %v4655 = vpop.f32.mrf.mxu0
  %v4656 = vadd.f32 0.0, %v4655
  %v4657 = vpop.f32.mrf.mxu0
  %v4658 = vadd.f32 0.0, %v4657
  %4659 = vmatmul.bf16.gmra.mxu0 %v710
  %v4660 = vpop.f32.mrf.mxu0
  %v4661 = vadd.f32 0.0, %v4660
  %v4662 = vpop.f32.mrf.mxu0
  %v4663 = vadd.f32 0.0, %v4662
  %4664 = vmatmul.bf16.gmra.mxu0 %v713
  %v4665 = vpop.f32.mrf.mxu0
  %v4666 = vadd.f32 0.0, %v4665
  %v4667 = vpop.f32.mrf.mxu0
  %v4668 = vadd.f32 0.0, %v4667
  %4669 = vmatmul.bf16.gmra.mxu0 %v716
  %v4670 = vpop.f32.mrf.mxu0
  %v4671 = vadd.f32 0.0, %v4670
  %v4672 = vpop.f32.mrf.mxu0
  %v4673 = vadd.f32 0.0, %v4672
  %4674 = vmatmul.bf16.gmra.mxu0 %v719
  %v4675 = vpop.f32.mrf.mxu0
  %v4676 = vadd.f32 0.0, %v4675
  %v4677 = vpop.f32.mrf.mxu0
  %v4678 = vadd.f32 0.0, %v4677
  %4679 = vmatmul.bf16.gmra.mxu0 %v722
  %v4680 = vpop.f32.mrf.mxu0
  %v4681 = vadd.f32 0.0, %v4680
  %v4682 = vpop.f32.mrf.mxu0
  %v4683 = vadd.f32 0.0, %v4682
  %4684 = vmatmul.bf16.gmra.mxu0 %v725
  %v4685 = vpop.f32.mrf.mxu0
  %v4686 = vadd.f32 0.0, %v4685
  %v4687 = vpop.f32.mrf.mxu0
  %v4688 = vadd.f32 0.0, %v4687
  %4689 = vmatmul.bf16.gmra.mxu0 %v728
  %v4690 = vpop.f32.mrf.mxu0
  %v4691 = vadd.f32 0.0, %v4690
  %v4692 = vpop.f32.mrf.mxu0
  %v4693 = vadd.f32 0.0, %v4692
  %4694 = vdwg.mxu0
  %4695 = vmatpush.bf16.msra.mxu0 0
  %4696 = vmatpush.bf16.msra.mxu0 0
  %4697 = vmatpush.bf16.msra.mxu0 0
  %4698 = vmatpush.bf16.msra.mxu0 0
  %4699 = vmatpush.bf16.msra.mxu0 %v4604
  %4700 = vmatpush.bf16.msra.mxu0 %v4591
  %4701 = vmatpush.bf16.msra.mxu0 %v4589
  %4702 = vmatpush.bf16.msra.mxu0 %v4587
  %4703 = vmatmul.bf16.gmra.mxu0 %v683
  %v4704 = vpop.f32.mrf.mxu0
  %v4705 = vadd.f32 0.0, %v4704
  %v4706 = vpop.f32.mrf.mxu0
  %v4707 = vadd.f32 0.0, %v4706
  %4708 = vmatmul.bf16.gmra.mxu0 %v686
  %v4709 = vpop.f32.mrf.mxu0
  %v4710 = vadd.f32 0.0, %v4709
  %v4711 = vpop.f32.mrf.mxu0
  %v4712 = vadd.f32 0.0, %v4711
  %4713 = vmatmul.bf16.gmra.mxu0 %v689
  %v4714 = vpop.f32.mrf.mxu0
  %v4715 = vadd.f32 0.0, %v4714
  %v4716 = vpop.f32.mrf.mxu0
  %v4717 = vadd.f32 0.0, %v4716
  %4718 = vmatmul.bf16.gmra.mxu0 %v692
  %v4719 = vpop.f32.mrf.mxu0
  %v4720 = vadd.f32 0.0, %v4719
  %v4721 = vpop.f32.mrf.mxu0
  %v4722 = vadd.f32 0.0, %v4721
  %4723 = vmatmul.bf16.gmra.mxu0 %v695
  %v4724 = vpop.f32.mrf.mxu0
  %v4725 = vadd.f32 0.0, %v4724
  %v4726 = vpop.f32.mrf.mxu0
  %v4727 = vadd.f32 0.0, %v4726
  %4728 = vmatmul.bf16.gmra.mxu0 %v698
  %v4729 = vpop.f32.mrf.mxu0
  %v4730 = vadd.f32 0.0, %v4729
  %v4731 = vpop.f32.mrf.mxu0
  %v4732 = vadd.f32 0.0, %v4731
  %4733 = vmatmul.bf16.gmra.mxu0 %v701
  %v4734 = vpop.f32.mrf.mxu0
  %v4735 = vadd.f32 0.0, %v4734
  %v4736 = vpop.f32.mrf.mxu0
  %v4737 = vadd.f32 0.0, %v4736
  %4738 = vmatmul.bf16.gmra.mxu0 %v704
  %v4739 = vpop.f32.mrf.mxu0
  %v4740 = vadd.f32 0.0, %v4739
  %v4741 = vpop.f32.mrf.mxu0
  %v4742 = vadd.f32 0.0, %v4741
  %4743 = vmatmul.bf16.gmra.mxu0 %v707
  %v4744 = vpop.f32.mrf.mxu0
  %v4745 = vadd.f32 0.0, %v4744
  %v4746 = vpop.f32.mrf.mxu0
  %v4747 = vadd.f32 0.0, %v4746
  %4748 = vmatmul.bf16.gmra.mxu0 %v710
  %v4749 = vpop.f32.mrf.mxu0
  %v4750 = vadd.f32 0.0, %v4749
  %v4751 = vpop.f32.mrf.mxu0
  %v4752 = vadd.f32 0.0, %v4751
  %4753 = vmatmul.bf16.gmra.mxu0 %v713
  %v4754 = vpop.f32.mrf.mxu0
  %v4755 = vadd.f32 0.0, %v4754
  %v4756 = vpop.f32.mrf.mxu0
  %v4757 = vadd.f32 0.0, %v4756
  %4758 = vmatmul.bf16.gmra.mxu0 %v716
  %v4759 = vpop.f32.mrf.mxu0
  %v4760 = vadd.f32 0.0, %v4759
  %v4761 = vpop.f32.mrf.mxu0
  %v4762 = vadd.f32 0.0, %v4761
  %4763 = vmatmul.bf16.gmra.mxu0 %v719
  %v4764 = vpop.f32.mrf.mxu0
  %v4765 = vadd.f32 0.0, %v4764
  %v4766 = vpop.f32.mrf.mxu0
  %v4767 = vadd.f32 0.0, %v4766
  %4768 = vmatmul.bf16.gmra.mxu0 %v722
  %v4769 = vpop.f32.mrf.mxu0
  %v4770 = vadd.f32 0.0, %v4769
  %v4771 = vpop.f32.mrf.mxu0
  %v4772 = vadd.f32 0.0, %v4771
  %4773 = vmatmul.bf16.gmra.mxu0 %v725
  %v4774 = vpop.f32.mrf.mxu0
  %v4775 = vadd.f32 0.0, %v4774
  %v4776 = vpop.f32.mrf.mxu0
  %v4777 = vadd.f32 0.0, %v4776
  %4778 = vmatmul.bf16.gmra.mxu0 %v728
  %v4779 = vpop.f32.mrf.mxu0
  %v4780 = vadd.f32 0.0, %v4779
  %v4781 = vpop.f32.mrf.mxu0
  %v4782 = vadd.f32 0.0, %v4781
  %4783 = vdwg.mxu0
  %v4784 = vpack.c.bf16 %v4496, %v4494
  %v4785 = vpack.c.bf16 %v4497, %v4495
  %v4786 = vpack.c.bf16 %v4500, %v4498
  %v4787 = vpack.c.bf16 %v4501, %v4499
  %v4788 = vpack.c.bf16 %v4504, %v4502
  %v4789 = vpack.c.bf16 %v4505, %v4503
  %v4790 = vpack.c.bf16 %v4508, %v4506
  %v4791 = vpack.c.bf16 %v4509, %v4507
  %v4792 = vpack.c.bf16 %v4512, %v4510
  %v4793 = vpack.c.bf16 %v4513, %v4511
  %v4794 = vpack.c.bf16 %v4516, %v4514
  %v4795 = vpack.c.bf16 %v4517, %v4515
  %v4796 = vpack.c.bf16 %v4520, %v4518
  %v4797 = vpack.c.bf16 %v4521, %v4519
  %v4798 = vpack.c.bf16 %v4524, %v4522
  %v4799 = vpack.c.bf16 %v4525, %v4523
  %v4800 = vpack.c.bf16 %v4528, %v4526
  %v4801 = vpack.c.bf16 %v4529, %v4527
  %v4802 = vpack.c.bf16 %v4532, %v4530
  %v4803 = vpack.c.bf16 %v4533, %v4531
  %v4804 = vpack.c.bf16 %v4536, %v4534
  %v4805 = vpack.c.bf16 %v4537, %v4535
  %v4806 = vpack.c.bf16 %v4540, %v4538
  %v4807 = vpack.c.bf16 %v4541, %v4539
  %v4808 = vpack.c.bf16 %v4544, %v4542
  %v4809 = vpack.c.bf16 %v4545, %v4543
  %v4810 = vpack.c.bf16 %v4548, %v4546
  %v4811 = vpack.c.bf16 %v4549, %v4547
  %v4812 = vpack.c.bf16 %v4552, %v4550
  %v4813 = vpack.c.bf16 %v4553, %v4551
  %v4814 = vpack.c.bf16 %v4556, %v4554
  %v4815 = vpack.c.bf16 %v4557, %v4555
  %s4816 = scalar_lea.vmem %s4, 1024
  %v4817 = vld [vmem:[%s4816] sm:$0xff]
  %v4818 = vld [vmem:[%s4816 + $0x8] sm:$0xff]
  %v4819 = vld [vmem:[%s4816 + $0x10] sm:$0xff]
  %v4820 = vld [vmem:[%s4816 + $0x18] sm:$0xff]
  %v4821 = vld [vmem:[%s4816 + $0x20] sm:$0xff]
  %v4822 = vld [vmem:[%s4816 + $0x28] sm:$0xff]
  %v4823 = vld [vmem:[%s4816 + $0x30] sm:$0xff]
  %v4824 = vld [vmem:[%s4816 + $0x38] sm:$0xff]
  %v4825 = vld [vmem:[%s4816 + $0x40] sm:$0xff]
  %v4826 = vld [vmem:[%s4816 + $0x48] sm:$0xff]
  %v4827 = vld [vmem:[%s4816 + $0x50] sm:$0xff]
  %v4828 = vld [vmem:[%s4816 + $0x58] sm:$0xff]
  %v4829 = vld [vmem:[%s4816 + $0x60] sm:$0xff]
  %v4830 = vld [vmem:[%s4816 + $0x68] sm:$0xff]
  %v4831 = vld [vmem:[%s4816 + $0x70] sm:$0xff]
  %v4832 = vld [vmem:[%s4816 + $0x78] sm:$0xff]
  %v4833 = vld [vmem:[%s4816 + $0x80] sm:$0xff]
  %v4834 = vld [vmem:[%s4816 + $0x88] sm:$0xff]
  %v4835 = vld [vmem:[%s4816 + $0x90] sm:$0xff]
  %v4836 = vld [vmem:[%s4816 + $0x98] sm:$0xff]
  %v4837 = vld [vmem:[%s4816 + $0xa0] sm:$0xff]
  %v4838 = vld [vmem:[%s4816 + $0xa8] sm:$0xff]
  %v4839 = vld [vmem:[%s4816 + $0xb0] sm:$0xff]
  %v4840 = vld [vmem:[%s4816 + $0xb8] sm:$0xff]
  %v4841 = vld [vmem:[%s4816 + $0xc0] sm:$0xff]
  %v4842 = vld [vmem:[%s4816 + $0xc8] sm:$0xff]
  %v4843 = vld [vmem:[%s4816 + $0xd0] sm:$0xff]
  %v4844 = vld [vmem:[%s4816 + $0xd8] sm:$0xff]
  %v4845 = vld [vmem:[%s4816 + $0xe0] sm:$0xff]
  %v4846 = vld [vmem:[%s4816 + $0xe8] sm:$0xff]
  %v4847 = vld [vmem:[%s4816 + $0xf0] sm:$0xff]
  %v4848 = vld [vmem:[%s4816 + $0xf8] sm:$0xff]
  %v4881 = vunpack.c.l.b16 %v4817
  %v4882 = vunpack.c.h.b16 %v4817
  %v4883 = vunpack.c.l.b16 %v4818
  %v4884 = vunpack.c.h.b16 %v4818
  %v4885 = vunpack.c.l.b16 %v4819
  %v4886 = vunpack.c.h.b16 %v4819
  %v4887 = vunpack.c.l.b16 %v4820
  %v4888 = vunpack.c.h.b16 %v4820
  %v4889 = vunpack.c.l.b16 %v4821
  %v4890 = vunpack.c.h.b16 %v4821
  %v4891 = vunpack.c.l.b16 %v4822
  %v4892 = vunpack.c.h.b16 %v4822
  %v4893 = vunpack.c.l.b16 %v4823
  %v4894 = vunpack.c.h.b16 %v4823
  %v4895 = vunpack.c.l.b16 %v4824
  %v4896 = vunpack.c.h.b16 %v4824
  %v4897 = vunpack.c.l.b16 %v4825
  %v4898 = vunpack.c.h.b16 %v4825
  %v4899 = vunpack.c.l.b16 %v4826
  %v4900 = vunpack.c.h.b16 %v4826
  %v4901 = vunpack.c.l.b16 %v4827
  %v4902 = vunpack.c.h.b16 %v4827
  %v4903 = vunpack.c.l.b16 %v4828
  %v4904 = vunpack.c.h.b16 %v4828
  %v4905 = vunpack.c.l.b16 %v4829
  %v4906 = vunpack.c.h.b16 %v4829
  %v4907 = vunpack.c.l.b16 %v4830
  %v4908 = vunpack.c.h.b16 %v4830
  %v4909 = vunpack.c.l.b16 %v4831
  %v4910 = vunpack.c.h.b16 %v4831
  %v4911 = vunpack.c.l.b16 %v4832
  %v4912 = vunpack.c.h.b16 %v4832
  %v4913 = vunpack.c.l.b16 %v4833
  %v4914 = vunpack.c.h.b16 %v4833
  %v4915 = vunpack.c.l.b16 %v4834
  %v4916 = vunpack.c.h.b16 %v4834
  %v4917 = vunpack.c.l.b16 %v4835
  %v4918 = vunpack.c.h.b16 %v4835
  %v4919 = vunpack.c.l.b16 %v4836
  %v4920 = vunpack.c.h.b16 %v4836
  %v4921 = vunpack.c.l.b16 %v4837
  %v4922 = vunpack.c.h.b16 %v4837
  %v4923 = vunpack.c.l.b16 %v4838
  %v4924 = vunpack.c.h.b16 %v4838
  %v4925 = vunpack.c.l.b16 %v4839
  %v4926 = vunpack.c.h.b16 %v4839
  %v4927 = vunpack.c.l.b16 %v4840
  %v4928 = vunpack.c.h.b16 %v4840
  %v4929 = vunpack.c.l.b16 %v4841
  %v4930 = vunpack.c.h.b16 %v4841
  %v4931 = vunpack.c.l.b16 %v4842
  %v4932 = vunpack.c.h.b16 %v4842
  %v4933 = vunpack.c.l.b16 %v4843
  %v4934 = vunpack.c.h.b16 %v4843
  %v4935 = vunpack.c.l.b16 %v4844
  %v4936 = vunpack.c.h.b16 %v4844
  %v4937 = vunpack.c.l.b16 %v4845
  %v4938 = vunpack.c.h.b16 %v4845
  %v4939 = vunpack.c.l.b16 %v4846
  %v4940 = vunpack.c.h.b16 %v4846
  %v4941 = vunpack.c.l.b16 %v4847
  %v4942 = vunpack.c.h.b16 %v4847
  %v4943 = vunpack.c.l.b16 %v4848
  %v4944 = vunpack.c.h.b16 %v4848
  %v4945 = vpack.c.b16 %v4883, %v4881
  %v4946 = vpack.c.b16 %v4884, %v4882
  %v4947 = vpack.c.b16 %v4887, %v4885
  %v4948 = vpack.c.b16 %v4888, %v4886
  %v4949 = vpack.c.b16 %v4891, %v4889
  %v4950 = vpack.c.b16 %v4892, %v4890
  %v4951 = vpack.c.b16 %v4895, %v4893
  %v4952 = vpack.c.b16 %v4896, %v4894
  %v4953 = vpack.c.b16 %v4899, %v4897
  %v4954 = vpack.c.b16 %v4900, %v4898
  %v4955 = vpack.c.b16 %v4903, %v4901
  %v4956 = vpack.c.b16 %v4904, %v4902
  %v4957 = vpack.c.b16 %v4907, %v4905
  %v4958 = vpack.c.b16 %v4908, %v4906
  %v4959 = vpack.c.b16 %v4911, %v4909
  %v4960 = vpack.c.b16 %v4912, %v4910
  %v4961 = vpack.c.b16 %v4915, %v4913
  %v4962 = vpack.c.b16 %v4916, %v4914
  %v4963 = vpack.c.b16 %v4919, %v4917
  %v4964 = vpack.c.b16 %v4920, %v4918
  %v4965 = vpack.c.b16 %v4923, %v4921
  %v4966 = vpack.c.b16 %v4924, %v4922
  %v4967 = vpack.c.b16 %v4927, %v4925
  %v4968 = vpack.c.b16 %v4928, %v4926
  %v4969 = vpack.c.b16 %v4931, %v4929
  %v4970 = vpack.c.b16 %v4932, %v4930
  %v4971 = vpack.c.b16 %v4935, %v4933
  %v4972 = vpack.c.b16 %v4936, %v4934
  %v4973 = vpack.c.b16 %v4939, %v4937
  %v4974 = vpack.c.b16 %v4940, %v4938
  %v4975 = vpack.c.b16 %v4943, %v4941
  %v4976 = vpack.c.b16 %v4944, %v4942
  %5009 = vmatpush.bf16.msra.mxu0 %v4959
  %5010 = vmatpush.bf16.msra.mxu0 %v4957
  %5011 = vmatpush.bf16.msra.mxu0 %v4955
  %5012 = vmatpush.bf16.msra.mxu0 %v4953
  %5013 = vmatpush.bf16.msra.mxu0 %v4951
  %5014 = vmatpush.bf16.msra.mxu0 %v4949
  %5015 = vmatpush.bf16.msra.mxu0 %v4947
  %5016 = vmatpush.bf16.msra.mxu0 %v4945
  %5017 = vmatmul.bf16.gmra.mxu0 %v4784
  %v5018 = vpop.f32.mrf.mxu0
  %v5019 = vadd.f32 %v4616, %v5018
  %v5020 = vpop.f32.mrf.mxu0
  %v5021 = vadd.f32 %v4618, %v5020
  %5022 = vmatmul.bf16.gmra.mxu0 %v4786
  %v5023 = vpop.f32.mrf.mxu0
  %v5024 = vadd.f32 %v4621, %v5023
  %v5025 = vpop.f32.mrf.mxu0
  %v5026 = vadd.f32 %v4623, %v5025
  %5027 = vmatmul.bf16.gmra.mxu0 %v4788
  %v5028 = vpop.f32.mrf.mxu0
  %v5029 = vadd.f32 %v4626, %v5028
  %v5030 = vpop.f32.mrf.mxu0
  %v5031 = vadd.f32 %v4628, %v5030
  %5032 = vmatmul.bf16.gmra.mxu0 %v4790
  %v5033 = vpop.f32.mrf.mxu0
  %v5034 = vadd.f32 %v4631, %v5033
  %v5035 = vpop.f32.mrf.mxu0
  %v5036 = vadd.f32 %v4633, %v5035
  %5037 = vmatmul.bf16.gmra.mxu0 %v4792
  %v5038 = vpop.f32.mrf.mxu0
  %v5039 = vadd.f32 %v4636, %v5038
  %v5040 = vpop.f32.mrf.mxu0
  %v5041 = vadd.f32 %v4638, %v5040
  %5042 = vmatmul.bf16.gmra.mxu0 %v4794
  %v5043 = vpop.f32.mrf.mxu0
  %v5044 = vadd.f32 %v4641, %v5043
  %v5045 = vpop.f32.mrf.mxu0
  %v5046 = vadd.f32 %v4643, %v5045
  %5047 = vmatmul.bf16.gmra.mxu0 %v4796
  %v5048 = vpop.f32.mrf.mxu0
  %v5049 = vadd.f32 %v4646, %v5048
  %v5050 = vpop.f32.mrf.mxu0
  %v5051 = vadd.f32 %v4648, %v5050
  %5052 = vmatmul.bf16.gmra.mxu0 %v4798
  %v5053 = vpop.f32.mrf.mxu0
  %v5054 = vadd.f32 %v4651, %v5053
  %v5055 = vpop.f32.mrf.mxu0
  %v5056 = vadd.f32 %v4653, %v5055
  %5057 = vmatmul.bf16.gmra.mxu0 %v4800
  %v5058 = vpop.f32.mrf.mxu0
  %v5059 = vadd.f32 %v4656, %v5058
  %v5060 = vpop.f32.mrf.mxu0
  %v5061 = vadd.f32 %v4658, %v5060
  %5062 = vmatmul.bf16.gmra.mxu0 %v4802
  %v5063 = vpop.f32.mrf.mxu0
  %v5064 = vadd.f32 %v4661, %v5063
  %v5065 = vpop.f32.mrf.mxu0
  %v5066 = vadd.f32 %v4663, %v5065
  %5067 = vmatmul.bf16.gmra.mxu0 %v4804
  %v5068 = vpop.f32.mrf.mxu0
  %v5069 = vadd.f32 %v4666, %v5068
  %v5070 = vpop.f32.mrf.mxu0
  %v5071 = vadd.f32 %v4668, %v5070
  %5072 = vmatmul.bf16.gmra.mxu0 %v4806
  %v5073 = vpop.f32.mrf.mxu0
  %v5074 = vadd.f32 %v4671, %v5073
  %v5075 = vpop.f32.mrf.mxu0
  %v5076 = vadd.f32 %v4673, %v5075
  %5077 = vmatmul.bf16.gmra.mxu0 %v4808
  %v5078 = vpop.f32.mrf.mxu0
  %v5079 = vadd.f32 %v4676, %v5078
  %v5080 = vpop.f32.mrf.mxu0
  %v5081 = vadd.f32 %v4678, %v5080
  %5082 = vmatmul.bf16.gmra.mxu0 %v4810
  %v5083 = vpop.f32.mrf.mxu0
  %v5084 = vadd.f32 %v4681, %v5083
  %v5085 = vpop.f32.mrf.mxu0
  %v5086 = vadd.f32 %v4683, %v5085
  %5087 = vmatmul.bf16.gmra.mxu0 %v4812
  %v5088 = vpop.f32.mrf.mxu0
  %v5089 = vadd.f32 %v4686, %v5088
  %v5090 = vpop.f32.mrf.mxu0
  %v5091 = vadd.f32 %v4688, %v5090
  %5092 = vmatmul.bf16.gmra.mxu0 %v4814
  %v5093 = vpop.f32.mrf.mxu0
  %v5094 = vadd.f32 %v4691, %v5093
  %v5095 = vpop.f32.mrf.mxu0
  %v5096 = vadd.f32 %v4693, %v5095
  %5097 = vdwg.mxu0
  %5098 = vmatpush.bf16.msra.mxu0 %v4975
  %5099 = vmatpush.bf16.msra.mxu0 %v4973
  %5100 = vmatpush.bf16.msra.mxu0 %v4971
  %5101 = vmatpush.bf16.msra.mxu0 %v4969
  %5102 = vmatpush.bf16.msra.mxu0 %v4967
  %5103 = vmatpush.bf16.msra.mxu0 %v4965
  %5104 = vmatpush.bf16.msra.mxu0 %v4963
  %5105 = vmatpush.bf16.msra.mxu0 %v4961
  %5106 = vmatmul.bf16.gmra.mxu0 %v4785
  %v5107 = vpop.f32.mrf.mxu0
  %v5108 = vadd.f32 %v5019, %v5107
  %v5109 = vpop.f32.mrf.mxu0
  %v5110 = vadd.f32 %v5021, %v5109
  %5111 = vmatmul.bf16.gmra.mxu0 %v4787
  %v5112 = vpop.f32.mrf.mxu0
  %v5113 = vadd.f32 %v5024, %v5112
  %v5114 = vpop.f32.mrf.mxu0
  %v5115 = vadd.f32 %v5026, %v5114
  %5116 = vmatmul.bf16.gmra.mxu0 %v4789
  %v5117 = vpop.f32.mrf.mxu0
  %v5118 = vadd.f32 %v5029, %v5117
  %v5119 = vpop.f32.mrf.mxu0
  %v5120 = vadd.f32 %v5031, %v5119
  %5121 = vmatmul.bf16.gmra.mxu0 %v4791
  %v5122 = vpop.f32.mrf.mxu0
  %v5123 = vadd.f32 %v5034, %v5122
  %v5124 = vpop.f32.mrf.mxu0
  %v5125 = vadd.f32 %v5036, %v5124
  %5126 = vmatmul.bf16.gmra.mxu0 %v4793
  %v5127 = vpop.f32.mrf.mxu0
  %v5128 = vadd.f32 %v5039, %v5127
  %v5129 = vpop.f32.mrf.mxu0
  %v5130 = vadd.f32 %v5041, %v5129
  %5131 = vmatmul.bf16.gmra.mxu0 %v4795
  %v5132 = vpop.f32.mrf.mxu0
  %v5133 = vadd.f32 %v5044, %v5132
  %v5134 = vpop.f32.mrf.mxu0
  %v5135 = vadd.f32 %v5046, %v5134
  %5136 = vmatmul.bf16.gmra.mxu0 %v4797
  %v5137 = vpop.f32.mrf.mxu0
  %v5138 = vadd.f32 %v5049, %v5137
  %v5139 = vpop.f32.mrf.mxu0
  %v5140 = vadd.f32 %v5051, %v5139
  %5141 = vmatmul.bf16.gmra.mxu0 %v4799
  %v5142 = vpop.f32.mrf.mxu0
  %v5143 = vadd.f32 %v5054, %v5142
  %v5144 = vpop.f32.mrf.mxu0
  %v5145 = vadd.f32 %v5056, %v5144
  %5146 = vmatmul.bf16.gmra.mxu0 %v4801
  %v5147 = vpop.f32.mrf.mxu0
  %v5148 = vadd.f32 %v5059, %v5147
  %v5149 = vpop.f32.mrf.mxu0
  %v5150 = vadd.f32 %v5061, %v5149
  %5151 = vmatmul.bf16.gmra.mxu0 %v4803
  %v5152 = vpop.f32.mrf.mxu0
  %v5153 = vadd.f32 %v5064, %v5152
  %v5154 = vpop.f32.mrf.mxu0
  %v5155 = vadd.f32 %v5066, %v5154
  %5156 = vmatmul.bf16.gmra.mxu0 %v4805
  %v5157 = vpop.f32.mrf.mxu0
  %v5158 = vadd.f32 %v5069, %v5157
  %v5159 = vpop.f32.mrf.mxu0
  %v5160 = vadd.f32 %v5071, %v5159
  %5161 = vmatmul.bf16.gmra.mxu0 %v4807
  %v5162 = vpop.f32.mrf.mxu0
  %v5163 = vadd.f32 %v5074, %v5162
  %v5164 = vpop.f32.mrf.mxu0
  %v5165 = vadd.f32 %v5076, %v5164
  %5166 = vmatmul.bf16.gmra.mxu0 %v4809
  %v5167 = vpop.f32.mrf.mxu0
  %v5168 = vadd.f32 %v5079, %v5167
  %v5169 = vpop.f32.mrf.mxu0
  %v5170 = vadd.f32 %v5081, %v5169
  %5171 = vmatmul.bf16.gmra.mxu0 %v4811
  %v5172 = vpop.f32.mrf.mxu0
  %v5173 = vadd.f32 %v5084, %v5172
  %v5174 = vpop.f32.mrf.mxu0
  %v5175 = vadd.f32 %v5086, %v5174
  %5176 = vmatmul.bf16.gmra.mxu0 %v4813
  %v5177 = vpop.f32.mrf.mxu0
  %v5178 = vadd.f32 %v5089, %v5177
  %v5179 = vpop.f32.mrf.mxu0
  %v5180 = vadd.f32 %v5091, %v5179
  %5181 = vmatmul.bf16.gmra.mxu0 %v4815
  %v5182 = vpop.f32.mrf.mxu0
  %v5183 = vadd.f32 %v5094, %v5182
  %v5184 = vpop.f32.mrf.mxu0
  %v5185 = vadd.f32 %v5096, %v5184
  %5186 = vdwg.mxu0
  %5187 = vmatpush.bf16.msra.mxu0 %v4960
  %5188 = vmatpush.bf16.msra.mxu0 %v4958
  %5189 = vmatpush.bf16.msra.mxu0 %v4956
  %5190 = vmatpush.bf16.msra.mxu0 %v4954
  %5191 = vmatpush.bf16.msra.mxu0 %v4952
  %5192 = vmatpush.bf16.msra.mxu0 %v4950
  %5193 = vmatpush.bf16.msra.mxu0 %v4948
  %5194 = vmatpush.bf16.msra.mxu0 %v4946
  %5195 = vmatmul.bf16.gmra.mxu0 %v4784
  %v5196 = vpop.f32.mrf.mxu0
  %v5197 = vadd.f32 %v4705, %v5196
  %v5198 = vpop.f32.mrf.mxu0
  %v5199 = vadd.f32 %v4707, %v5198
  %5200 = vmatmul.bf16.gmra.mxu0 %v4786
  %v5201 = vpop.f32.mrf.mxu0
  %v5202 = vadd.f32 %v4710, %v5201
  %v5203 = vpop.f32.mrf.mxu0
  %v5204 = vadd.f32 %v4712, %v5203
  %5205 = vmatmul.bf16.gmra.mxu0 %v4788
  %v5206 = vpop.f32.mrf.mxu0
  %v5207 = vadd.f32 %v4715, %v5206
  %v5208 = vpop.f32.mrf.mxu0
  %v5209 = vadd.f32 %v4717, %v5208
  %5210 = vmatmul.bf16.gmra.mxu0 %v4790
  %v5211 = vpop.f32.mrf.mxu0
  %v5212 = vadd.f32 %v4720, %v5211
  %v5213 = vpop.f32.mrf.mxu0
  %v5214 = vadd.f32 %v4722, %v5213
  %5215 = vmatmul.bf16.gmra.mxu0 %v4792
  %v5216 = vpop.f32.mrf.mxu0
  %v5217 = vadd.f32 %v4725, %v5216
  %v5218 = vpop.f32.mrf.mxu0
  %v5219 = vadd.f32 %v4727, %v5218
  %5220 = vmatmul.bf16.gmra.mxu0 %v4794
  %v5221 = vpop.f32.mrf.mxu0
  %v5222 = vadd.f32 %v4730, %v5221
  %v5223 = vpop.f32.mrf.mxu0
  %v5224 = vadd.f32 %v4732, %v5223
  %5225 = vmatmul.bf16.gmra.mxu0 %v4796
  %v5226 = vpop.f32.mrf.mxu0
  %v5227 = vadd.f32 %v4735, %v5226
  %v5228 = vpop.f32.mrf.mxu0
  %v5229 = vadd.f32 %v4737, %v5228
  %5230 = vmatmul.bf16.gmra.mxu0 %v4798
  %v5231 = vpop.f32.mrf.mxu0
  %v5232 = vadd.f32 %v4740, %v5231
  %v5233 = vpop.f32.mrf.mxu0
  %v5234 = vadd.f32 %v4742, %v5233
  %5235 = vmatmul.bf16.gmra.mxu0 %v4800
  %v5236 = vpop.f32.mrf.mxu0
  %v5237 = vadd.f32 %v4745, %v5236
  %v5238 = vpop.f32.mrf.mxu0
  %v5239 = vadd.f32 %v4747, %v5238
  %5240 = vmatmul.bf16.gmra.mxu0 %v4802
  %v5241 = vpop.f32.mrf.mxu0
  %v5242 = vadd.f32 %v4750, %v5241
  %v5243 = vpop.f32.mrf.mxu0
  %v5244 = vadd.f32 %v4752, %v5243
  %5245 = vmatmul.bf16.gmra.mxu0 %v4804
  %v5246 = vpop.f32.mrf.mxu0
  %v5247 = vadd.f32 %v4755, %v5246
  %v5248 = vpop.f32.mrf.mxu0
  %v5249 = vadd.f32 %v4757, %v5248
  %5250 = vmatmul.bf16.gmra.mxu0 %v4806
  %v5251 = vpop.f32.mrf.mxu0
  %v5252 = vadd.f32 %v4760, %v5251
  %v5253 = vpop.f32.mrf.mxu0
  %v5254 = vadd.f32 %v4762, %v5253
  %5255 = vmatmul.bf16.gmra.mxu0 %v4808
  %v5256 = vpop.f32.mrf.mxu0
  %v5257 = vadd.f32 %v4765, %v5256
  %v5258 = vpop.f32.mrf.mxu0
  %v5259 = vadd.f32 %v4767, %v5258
  %5260 = vmatmul.bf16.gmra.mxu0 %v4810
  %v5261 = vpop.f32.mrf.mxu0
  %v5262 = vadd.f32 %v4770, %v5261
  %v5263 = vpop.f32.mrf.mxu0
  %v5264 = vadd.f32 %v4772, %v5263
  %5265 = vmatmul.bf16.gmra.mxu0 %v4812
  %v5266 = vpop.f32.mrf.mxu0
  %v5267 = vadd.f32 %v4775, %v5266
  %v5268 = vpop.f32.mrf.mxu0
  %v5269 = vadd.f32 %v4777, %v5268
  %5270 = vmatmul.bf16.gmra.mxu0 %v4814
  %v5271 = vpop.f32.mrf.mxu0
  %v5272 = vadd.f32 %v4780, %v5271
  %v5273 = vpop.f32.mrf.mxu0
  %v5274 = vadd.f32 %v4782, %v5273
  %5275 = vdwg.mxu0
  %5276 = vmatpush.bf16.msra.mxu0 %v4976
  %5277 = vmatpush.bf16.msra.mxu0 %v4974
  %5278 = vmatpush.bf16.msra.mxu0 %v4972
  %5279 = vmatpush.bf16.msra.mxu0 %v4970
  %5280 = vmatpush.bf16.msra.mxu0 %v4968
  %5281 = vmatpush.bf16.msra.mxu0 %v4966
  %5282 = vmatpush.bf16.msra.mxu0 %v4964
  %5283 = vmatpush.bf16.msra.mxu0 %v4962
  %5284 = vmatmul.bf16.gmra.mxu0 %v4785
  %v5285 = vpop.f32.mrf.mxu0
  %v5286 = vadd.f32 %v5197, %v5285
  %v5287 = vpop.f32.mrf.mxu0
  %v5288 = vadd.f32 %v5199, %v5287
  %5289 = vmatmul.bf16.gmra.mxu0 %v4787
  %v5290 = vpop.f32.mrf.mxu0
  %v5291 = vadd.f32 %v5202, %v5290
  %v5292 = vpop.f32.mrf.mxu0
  %v5293 = vadd.f32 %v5204, %v5292
  %5294 = vmatmul.bf16.gmra.mxu0 %v4789
  %v5295 = vpop.f32.mrf.mxu0
  %v5296 = vadd.f32 %v5207, %v5295
  %v5297 = vpop.f32.mrf.mxu0
  %v5298 = vadd.f32 %v5209, %v5297
  %5299 = vmatmul.bf16.gmra.mxu0 %v4791
  %v5300 = vpop.f32.mrf.mxu0
  %v5301 = vadd.f32 %v5212, %v5300
  %v5302 = vpop.f32.mrf.mxu0
  %v5303 = vadd.f32 %v5214, %v5302
  %5304 = vmatmul.bf16.gmra.mxu0 %v4793
  %v5305 = vpop.f32.mrf.mxu0
  %v5306 = vadd.f32 %v5217, %v5305
  %v5307 = vpop.f32.mrf.mxu0
  %v5308 = vadd.f32 %v5219, %v5307
  %5309 = vmatmul.bf16.gmra.mxu0 %v4795
  %v5310 = vpop.f32.mrf.mxu0
  %v5311 = vadd.f32 %v5222, %v5310
  %v5312 = vpop.f32.mrf.mxu0
  %v5313 = vadd.f32 %v5224, %v5312
  %5314 = vmatmul.bf16.gmra.mxu0 %v4797
  %v5315 = vpop.f32.mrf.mxu0
  %v5316 = vadd.f32 %v5227, %v5315
  %v5317 = vpop.f32.mrf.mxu0
  %v5318 = vadd.f32 %v5229, %v5317
  %5319 = vmatmul.bf16.gmra.mxu0 %v4799
  %v5320 = vpop.f32.mrf.mxu0
  %v5321 = vadd.f32 %v5232, %v5320
  %v5322 = vpop.f32.mrf.mxu0
  %v5323 = vadd.f32 %v5234, %v5322
  %5324 = vmatmul.bf16.gmra.mxu0 %v4801
  %v5325 = vpop.f32.mrf.mxu0
  %v5326 = vadd.f32 %v5237, %v5325
  %v5327 = vpop.f32.mrf.mxu0
  %v5328 = vadd.f32 %v5239, %v5327
  %5329 = vmatmul.bf16.gmra.mxu0 %v4803
  %v5330 = vpop.f32.mrf.mxu0
  %v5331 = vadd.f32 %v5242, %v5330
  %v5332 = vpop.f32.mrf.mxu0
  %v5333 = vadd.f32 %v5244, %v5332
  %5334 = vmatmul.bf16.gmra.mxu0 %v4805
  %v5335 = vpop.f32.mrf.mxu0
  %v5336 = vadd.f32 %v5247, %v5335
  %v5337 = vpop.f32.mrf.mxu0
  %v5338 = vadd.f32 %v5249, %v5337
  %5339 = vmatmul.bf16.gmra.mxu0 %v4807
  %v5340 = vpop.f32.mrf.mxu0
  %v5341 = vadd.f32 %v5252, %v5340
  %v5342 = vpop.f32.mrf.mxu0
  %v5343 = vadd.f32 %v5254, %v5342
  %5344 = vmatmul.bf16.gmra.mxu0 %v4809
  %v5345 = vpop.f32.mrf.mxu0
  %v5346 = vadd.f32 %v5257, %v5345
  %v5347 = vpop.f32.mrf.mxu0
  %v5348 = vadd.f32 %v5259, %v5347
  %5349 = vmatmul.bf16.gmra.mxu0 %v4811
  %v5350 = vpop.f32.mrf.mxu0
  %v5351 = vadd.f32 %v5262, %v5350
  %v5352 = vpop.f32.mrf.mxu0
  %v5353 = vadd.f32 %v5264, %v5352
  %5354 = vmatmul.bf16.gmra.mxu0 %v4813
  %v5355 = vpop.f32.mrf.mxu0
  %v5356 = vadd.f32 %v5267, %v5355
  %v5357 = vpop.f32.mrf.mxu0
  %v5358 = vadd.f32 %v5269, %v5357
  %5359 = vmatmul.bf16.gmra.mxu0 %v4815
  %v5360 = vpop.f32.mrf.mxu0
  %v5361 = vadd.f32 %v5272, %v5360
  %v5362 = vpop.f32.mrf.mxu0
  %v5363 = vadd.f32 %v5274, %v5362
  %5364 = vdwg.mxu0
  %v5365 = vmul.f32 %v5108, 0.2
  %v5366 = vmul.f32 %v5286, 0.2
  %v5367 = vmul.f32 %v5110, 0.2
  %v5368 = vmul.f32 %v5288, 0.2
  %v5369 = vmul.f32 %v5113, 0.2
  %v5370 = vmul.f32 %v5291, 0.2
  %v5371 = vmul.f32 %v5115, 0.2
  %v5372 = vmul.f32 %v5293, 0.2
  %v5373 = vmul.f32 %v5118, 0.2
  %v5374 = vmul.f32 %v5296, 0.2
  %v5375 = vmul.f32 %v5120, 0.2
  %v5376 = vmul.f32 %v5298, 0.2
  %v5377 = vmul.f32 %v5123, 0.2
  %v5378 = vmul.f32 %v5301, 0.2
  %v5379 = vmul.f32 %v5125, 0.2
  %v5380 = vmul.f32 %v5303, 0.2
  %v5381 = vmul.f32 %v5128, 0.2
  %v5382 = vmul.f32 %v5306, 0.2
  %v5383 = vmul.f32 %v5130, 0.2
  %v5384 = vmul.f32 %v5308, 0.2
  %v5385 = vmul.f32 %v5133, 0.2
  %v5386 = vmul.f32 %v5311, 0.2
  %v5387 = vmul.f32 %v5135, 0.2
  %v5388 = vmul.f32 %v5313, 0.2
  %v5389 = vmul.f32 %v5138, 0.2
  %v5390 = vmul.f32 %v5316, 0.2
  %v5391 = vmul.f32 %v5140, 0.2
  %v5392 = vmul.f32 %v5318, 0.2
  %v5393 = vmul.f32 %v5143, 0.2
  %v5394 = vmul.f32 %v5321, 0.2
  %v5395 = vmul.f32 %v5145, 0.2
  %v5396 = vmul.f32 %v5323, 0.2
  %v5397 = vmul.f32 %v5148, 0.2
  %v5398 = vmul.f32 %v5326, 0.2
  %v5399 = vmul.f32 %v5150, 0.2
  %v5400 = vmul.f32 %v5328, 0.2
  %v5401 = vmul.f32 %v5153, 0.2
  %v5402 = vmul.f32 %v5331, 0.2
  %v5403 = vmul.f32 %v5155, 0.2
  %v5404 = vmul.f32 %v5333, 0.2
  %v5405 = vmul.f32 %v5158, 0.2
  %v5406 = vmul.f32 %v5336, 0.2
  %v5407 = vmul.f32 %v5160, 0.2
  %v5408 = vmul.f32 %v5338, 0.2
  %v5409 = vmul.f32 %v5163, 0.2
  %v5410 = vmul.f32 %v5341, 0.2
  %v5411 = vmul.f32 %v5165, 0.2
  %v5412 = vmul.f32 %v5343, 0.2
  %v5413 = vmul.f32 %v5168, 0.2
  %v5414 = vmul.f32 %v5346, 0.2
  %v5415 = vmul.f32 %v5170, 0.2
  %v5416 = vmul.f32 %v5348, 0.2
  %v5417 = vmul.f32 %v5173, 0.2
  %v5418 = vmul.f32 %v5351, 0.2
  %v5419 = vmul.f32 %v5175, 0.2
  %v5420 = vmul.f32 %v5353, 0.2
  %v5421 = vmul.f32 %v5178, 0.2
  %v5422 = vmul.f32 %v5356, 0.2
  %v5423 = vmul.f32 %v5180, 0.2
  %v5424 = vmul.f32 %v5358, 0.2
  %v5425 = vmul.f32 %v5183, 0.2
  %v5426 = vmul.f32 %v5361, 0.2
  %v5427 = vmul.f32 %v5185, 0.2
  %v5428 = vmul.f32 %v5363, 0.2
  %v5429 = vmax.f32 %v5108, %v5365
  %v5430 = vmax.f32 %v5286, %v5366
  %v5431 = vmax.f32 %v5110, %v5367
  %v5432 = vmax.f32 %v5288, %v5368
  %v5433 = vmax.f32 %v5113, %v5369
  %v5434 = vmax.f32 %v5291, %v5370
  %v5435 = vmax.f32 %v5115, %v5371
  %v5436 = vmax.f32 %v5293, %v5372
  %v5437 = vmax.f32 %v5118, %v5373
  %v5438 = vmax.f32 %v5296, %v5374
  %v5439 = vmax.f32 %v5120, %v5375
  %v5440 = vmax.f32 %v5298, %v5376
  %v5441 = vmax.f32 %v5123, %v5377
  %v5442 = vmax.f32 %v5301, %v5378
  %v5443 = vmax.f32 %v5125, %v5379
  %v5444 = vmax.f32 %v5303, %v5380
  %v5445 = vmax.f32 %v5128, %v5381
  %v5446 = vmax.f32 %v5306, %v5382
  %v5447 = vmax.f32 %v5130, %v5383
  %v5448 = vmax.f32 %v5308, %v5384
  %v5449 = vmax.f32 %v5133, %v5385
  %v5450 = vmax.f32 %v5311, %v5386
  %v5451 = vmax.f32 %v5135, %v5387
  %v5452 = vmax.f32 %v5313, %v5388
  %v5453 = vmax.f32 %v5138, %v5389
  %v5454 = vmax.f32 %v5316, %v5390
  %v5455 = vmax.f32 %v5140, %v5391
  %v5456 = vmax.f32 %v5318, %v5392
  %v5457 = vmax.f32 %v5143, %v5393
  %v5458 = vmax.f32 %v5321, %v5394
  %v5459 = vmax.f32 %v5145, %v5395
  %v5460 = vmax.f32 %v5323, %v5396
  %v5461 = vmax.f32 %v5148, %v5397
  %v5462 = vmax.f32 %v5326, %v5398
  %v5463 = vmax.f32 %v5150, %v5399
  %v5464 = vmax.f32 %v5328, %v5400
  %v5465 = vmax.f32 %v5153, %v5401
  %v5466 = vmax.f32 %v5331, %v5402
  %v5467 = vmax.f32 %v5155, %v5403
  %v5468 = vmax.f32 %v5333, %v5404
  %v5469 = vmax.f32 %v5158, %v5405
  %v5470 = vmax.f32 %v5336, %v5406
  %v5471 = vmax.f32 %v5160, %v5407
  %v5472 = vmax.f32 %v5338, %v5408
  %v5473 = vmax.f32 %v5163, %v5409
  %v5474 = vmax.f32 %v5341, %v5410
  %v5475 = vmax.f32 %v5165, %v5411
  %v5476 = vmax.f32 %v5343, %v5412
  %v5477 = vmax.f32 %v5168, %v5413
  %v5478 = vmax.f32 %v5346, %v5414
  %v5479 = vmax.f32 %v5170, %v5415
  %v5480 = vmax.f32 %v5348, %v5416
  %v5481 = vmax.f32 %v5173, %v5417
  %v5482 = vmax.f32 %v5351, %v5418
  %v5483 = vmax.f32 %v5175, %v5419
  %v5484 = vmax.f32 %v5353, %v5420
  %v5485 = vmax.f32 %v5178, %v5421
  %v5486 = vmax.f32 %v5356, %v5422
  %v5487 = vmax.f32 %v5180, %v5423
  %v5488 = vmax.f32 %v5358, %v5424
  %v5489 = vmax.f32 %v5183, %v5425
  %v5490 = vmax.f32 %v5361, %v5426
  %v5491 = vmax.f32 %v5185, %v5427
  %v5492 = vmax.f32 %v5363, %v5428
  %v5493 = vld [vmem:[%s5 + $0x28] sm:$0xff]
  %v5494 = vld [vmem:[%s5 + $0x68] sm:$0xff]
  %v5495 = vld [vmem:[%s5 + $0xa8] sm:$0xff]
  %v5496 = vld [vmem:[%s5 + $0xe8] sm:$0xff]
  %v5497 = vld [vmem:[%s5 + $0x128] sm:$0xff]
  %v5498 = vld [vmem:[%s5 + $0x168] sm:$0xff]
  %v5499 = vld [vmem:[%s5 + $0x1a8] sm:$0x11]
  %v5507 = vunpack.c.l.b16 %v5493
  %v5508 = vunpack.c.h.b16 %v5493
  %v5509 = vunpack.c.l.b16 %v5494
  %v5510 = vunpack.c.h.b16 %v5494
  %v5511 = vunpack.c.l.b16 %v5495
  %v5512 = vunpack.c.h.b16 %v5495
  %v5513 = vunpack.c.l.b16 %v5496
  %v5514 = vunpack.c.h.b16 %v5496
  %v5515 = vunpack.c.l.b16 %v5497
  %v5516 = vunpack.c.h.b16 %v5497
  %v5517 = vunpack.c.l.b16 %v5498
  %v5518 = vunpack.c.h.b16 %v5498
  %v5519 = vunpack.c.l.b16 %v5499
  %v5520 = vunpack.c.h.b16 %v5499
  %v5521 = vpack.c.b16 %v5509, %v5507
  %v5522 = vpack.c.b16 %v5510, %v5508
  %v5523 = vpack.c.b16 %v5513, %v5511
  %v5524 = vpack.c.b16 %v5514, %v5512
  %v5525 = vpack.c.b16 %v5517, %v5515
  %v5526 = vpack.c.b16 %v5518, %v5516
  %v5527 = vpack.c.b16 %v5519, %v5519
  %v5528 = vpack.c.b16 %v5520, %v5520
  %v5536 = vand.u32 %v5527, %v732
  %v5539 = vand.u32 %v5528, %v732
  %5541 = vmatpush.bf16.msra.mxu0 0
  %5542 = vmatpush.bf16.msra.mxu0 0
  %5543 = vmatpush.bf16.msra.mxu0 0
  %5544 = vmatpush.bf16.msra.mxu0 0
  %5545 = vmatpush.bf16.msra.mxu0 %v5536
  %5546 = vmatpush.bf16.msra.mxu0 %v5525
  %5547 = vmatpush.bf16.msra.mxu0 %v5523
  %5548 = vmatpush.bf16.msra.mxu0 %v5521
  %5549 = vmatmul.bf16.gmra.mxu0 %v683
  %v5550 = vpop.f32.mrf.mxu0
  %v5551 = vadd.f32 0.0, %v5550
  %v5552 = vpop.f32.mrf.mxu0
  %v5553 = vadd.f32 0.0, %v5552
  %5554 = vmatmul.bf16.gmra.mxu0 %v686
  %v5555 = vpop.f32.mrf.mxu0
  %v5556 = vadd.f32 0.0, %v5555
  %v5557 = vpop.f32.mrf.mxu0
  %v5558 = vadd.f32 0.0, %v5557
  %5559 = vmatmul.bf16.gmra.mxu0 %v689
  %v5560 = vpop.f32.mrf.mxu0
  %v5561 = vadd.f32 0.0, %v5560
  %v5562 = vpop.f32.mrf.mxu0
  %v5563 = vadd.f32 0.0, %v5562
  %5564 = vmatmul.bf16.gmra.mxu0 %v692
  %v5565 = vpop.f32.mrf.mxu0
  %v5566 = vadd.f32 0.0, %v5565
  %v5567 = vpop.f32.mrf.mxu0
  %v5568 = vadd.f32 0.0, %v5567
  %5569 = vmatmul.bf16.gmra.mxu0 %v695
  %v5570 = vpop.f32.mrf.mxu0
  %v5571 = vadd.f32 0.0, %v5570
  %v5572 = vpop.f32.mrf.mxu0
  %v5573 = vadd.f32 0.0, %v5572
  %5574 = vmatmul.bf16.gmra.mxu0 %v698
  %v5575 = vpop.f32.mrf.mxu0
  %v5576 = vadd.f32 0.0, %v5575
  %v5577 = vpop.f32.mrf.mxu0
  %v5578 = vadd.f32 0.0, %v5577
  %5579 = vmatmul.bf16.gmra.mxu0 %v701
  %v5580 = vpop.f32.mrf.mxu0
  %v5581 = vadd.f32 0.0, %v5580
  %v5582 = vpop.f32.mrf.mxu0
  %v5583 = vadd.f32 0.0, %v5582
  %5584 = vmatmul.bf16.gmra.mxu0 %v704
  %v5585 = vpop.f32.mrf.mxu0
  %v5586 = vadd.f32 0.0, %v5585
  %v5587 = vpop.f32.mrf.mxu0
  %v5588 = vadd.f32 0.0, %v5587
  %5589 = vmatmul.bf16.gmra.mxu0 %v707
  %v5590 = vpop.f32.mrf.mxu0
  %v5591 = vadd.f32 0.0, %v5590
  %v5592 = vpop.f32.mrf.mxu0
  %v5593 = vadd.f32 0.0, %v5592
  %5594 = vmatmul.bf16.gmra.mxu0 %v710
  %v5595 = vpop.f32.mrf.mxu0
  %v5596 = vadd.f32 0.0, %v5595
  %v5597 = vpop.f32.mrf.mxu0
  %v5598 = vadd.f32 0.0, %v5597
  %5599 = vmatmul.bf16.gmra.mxu0 %v713
  %v5600 = vpop.f32.mrf.mxu0
  %v5601 = vadd.f32 0.0, %v5600
  %v5602 = vpop.f32.mrf.mxu0
  %v5603 = vadd.f32 0.0, %v5602
  %5604 = vmatmul.bf16.gmra.mxu0 %v716
  %v5605 = vpop.f32.mrf.mxu0
  %v5606 = vadd.f32 0.0, %v5605
  %v5607 = vpop.f32.mrf.mxu0
  %v5608 = vadd.f32 0.0, %v5607
  %5609 = vmatmul.bf16.gmra.mxu0 %v719
  %v5610 = vpop.f32.mrf.mxu0
  %v5611 = vadd.f32 0.0, %v5610
  %v5612 = vpop.f32.mrf.mxu0
  %v5613 = vadd.f32 0.0, %v5612
  %5614 = vmatmul.bf16.gmra.mxu0 %v722
  %v5615 = vpop.f32.mrf.mxu0
  %v5616 = vadd.f32 0.0, %v5615
  %v5617 = vpop.f32.mrf.mxu0
  %v5618 = vadd.f32 0.0, %v5617
  %5619 = vmatmul.bf16.gmra.mxu0 %v725
  %v5620 = vpop.f32.mrf.mxu0
  %v5621 = vadd.f32 0.0, %v5620
  %v5622 = vpop.f32.mrf.mxu0
  %v5623 = vadd.f32 0.0, %v5622
  %5624 = vmatmul.bf16.gmra.mxu0 %v728
  %v5625 = vpop.f32.mrf.mxu0
  %v5626 = vadd.f32 0.0, %v5625
  %v5627 = vpop.f32.mrf.mxu0
  %v5628 = vadd.f32 0.0, %v5627
  %5629 = vdwg.mxu0
  %5630 = vmatpush.bf16.msra.mxu0 0
  %5631 = vmatpush.bf16.msra.mxu0 0
  %5632 = vmatpush.bf16.msra.mxu0 0
  %5633 = vmatpush.bf16.msra.mxu0 0
  %5634 = vmatpush.bf16.msra.mxu0 %v5539
  %5635 = vmatpush.bf16.msra.mxu0 %v5526
  %5636 = vmatpush.bf16.msra.mxu0 %v5524
  %5637 = vmatpush.bf16.msra.mxu0 %v5522
  %5638 = vmatmul.bf16.gmra.mxu0 %v683
  %v5639 = vpop.f32.mrf.mxu0
  %v5640 = vadd.f32 0.0, %v5639
  %v5641 = vpop.f32.mrf.mxu0
  %v5642 = vadd.f32 0.0, %v5641
  %5643 = vmatmul.bf16.gmra.mxu0 %v686
  %v5644 = vpop.f32.mrf.mxu0
  %v5645 = vadd.f32 0.0, %v5644
  %v5646 = vpop.f32.mrf.mxu0
  %v5647 = vadd.f32 0.0, %v5646
  %5648 = vmatmul.bf16.gmra.mxu0 %v689
  %v5649 = vpop.f32.mrf.mxu0
  %v5650 = vadd.f32 0.0, %v5649
  %v5651 = vpop.f32.mrf.mxu0
  %v5652 = vadd.f32 0.0, %v5651
  %5653 = vmatmul.bf16.gmra.mxu0 %v692
  %v5654 = vpop.f32.mrf.mxu0
  %v5655 = vadd.f32 0.0, %v5654
  %v5656 = vpop.f32.mrf.mxu0
  %v5657 = vadd.f32 0.0, %v5656
  %5658 = vmatmul.bf16.gmra.mxu0 %v695
  %v5659 = vpop.f32.mrf.mxu0
  %v5660 = vadd.f32 0.0, %v5659
  %v5661 = vpop.f32.mrf.mxu0
  %v5662 = vadd.f32 0.0, %v5661
  %5663 = vmatmul.bf16.gmra.mxu0 %v698
  %v5664 = vpop.f32.mrf.mxu0
  %v5665 = vadd.f32 0.0, %v5664
  %v5666 = vpop.f32.mrf.mxu0
  %v5667 = vadd.f32 0.0, %v5666
  %5668 = vmatmul.bf16.gmra.mxu0 %v701
  %v5669 = vpop.f32.mrf.mxu0
  %v5670 = vadd.f32 0.0, %v5669
  %v5671 = vpop.f32.mrf.mxu0
  %v5672 = vadd.f32 0.0, %v5671
  %5673 = vmatmul.bf16.gmra.mxu0 %v704
  %v5674 = vpop.f32.mrf.mxu0
  %v5675 = vadd.f32 0.0, %v5674
  %v5676 = vpop.f32.mrf.mxu0
  %v5677 = vadd.f32 0.0, %v5676
  %5678 = vmatmul.bf16.gmra.mxu0 %v707
  %v5679 = vpop.f32.mrf.mxu0
  %v5680 = vadd.f32 0.0, %v5679
  %v5681 = vpop.f32.mrf.mxu0
  %v5682 = vadd.f32 0.0, %v5681
  %5683 = vmatmul.bf16.gmra.mxu0 %v710
  %v5684 = vpop.f32.mrf.mxu0
  %v5685 = vadd.f32 0.0, %v5684
  %v5686 = vpop.f32.mrf.mxu0
  %v5687 = vadd.f32 0.0, %v5686
  %5688 = vmatmul.bf16.gmra.mxu0 %v713
  %v5689 = vpop.f32.mrf.mxu0
  %v5690 = vadd.f32 0.0, %v5689
  %v5691 = vpop.f32.mrf.mxu0
  %v5692 = vadd.f32 0.0, %v5691
  %5693 = vmatmul.bf16.gmra.mxu0 %v716
  %v5694 = vpop.f32.mrf.mxu0
  %v5695 = vadd.f32 0.0, %v5694
  %v5696 = vpop.f32.mrf.mxu0
  %v5697 = vadd.f32 0.0, %v5696
  %5698 = vmatmul.bf16.gmra.mxu0 %v719
  %v5699 = vpop.f32.mrf.mxu0
  %v5700 = vadd.f32 0.0, %v5699
  %v5701 = vpop.f32.mrf.mxu0
  %v5702 = vadd.f32 0.0, %v5701
  %5703 = vmatmul.bf16.gmra.mxu0 %v722
  %v5704 = vpop.f32.mrf.mxu0
  %v5705 = vadd.f32 0.0, %v5704
  %v5706 = vpop.f32.mrf.mxu0
  %v5707 = vadd.f32 0.0, %v5706
  %5708 = vmatmul.bf16.gmra.mxu0 %v725
  %v5709 = vpop.f32.mrf.mxu0
  %v5710 = vadd.f32 0.0, %v5709
  %v5711 = vpop.f32.mrf.mxu0
  %v5712 = vadd.f32 0.0, %v5711
  %5713 = vmatmul.bf16.gmra.mxu0 %v728
  %v5714 = vpop.f32.mrf.mxu0
  %v5715 = vadd.f32 0.0, %v5714
  %v5716 = vpop.f32.mrf.mxu0
  %v5717 = vadd.f32 0.0, %v5716
  %5718 = vdwg.mxu0
  %v5719 = vpack.c.bf16 %v5431, %v5429
  %v5720 = vpack.c.bf16 %v5432, %v5430
  %v5721 = vpack.c.bf16 %v5435, %v5433
  %v5722 = vpack.c.bf16 %v5436, %v5434
  %v5723 = vpack.c.bf16 %v5439, %v5437
  %v5724 = vpack.c.bf16 %v5440, %v5438
  %v5725 = vpack.c.bf16 %v5443, %v5441
  %v5726 = vpack.c.bf16 %v5444, %v5442
  %v5727 = vpack.c.bf16 %v5447, %v5445
  %v5728 = vpack.c.bf16 %v5448, %v5446
  %v5729 = vpack.c.bf16 %v5451, %v5449
  %v5730 = vpack.c.bf16 %v5452, %v5450
  %v5731 = vpack.c.bf16 %v5455, %v5453
  %v5732 = vpack.c.bf16 %v5456, %v5454
  %v5733 = vpack.c.bf16 %v5459, %v5457
  %v5734 = vpack.c.bf16 %v5460, %v5458
  %v5735 = vpack.c.bf16 %v5463, %v5461
  %v5736 = vpack.c.bf16 %v5464, %v5462
  %v5737 = vpack.c.bf16 %v5467, %v5465
  %v5738 = vpack.c.bf16 %v5468, %v5466
  %v5739 = vpack.c.bf16 %v5471, %v5469
  %v5740 = vpack.c.bf16 %v5472, %v5470
  %v5741 = vpack.c.bf16 %v5475, %v5473
  %v5742 = vpack.c.bf16 %v5476, %v5474
  %v5743 = vpack.c.bf16 %v5479, %v5477
  %v5744 = vpack.c.bf16 %v5480, %v5478
  %v5745 = vpack.c.bf16 %v5483, %v5481
  %v5746 = vpack.c.bf16 %v5484, %v5482
  %v5747 = vpack.c.bf16 %v5487, %v5485
  %v5748 = vpack.c.bf16 %v5488, %v5486
  %v5749 = vpack.c.bf16 %v5491, %v5489
  %v5750 = vpack.c.bf16 %v5492, %v5490
  %s5751 = scalar_lea.vmem %s4, 1280
  %v5752 = vld [vmem:[%s5751] sm:$0xff]
  %v5753 = vld [vmem:[%s5751 + $0x8] sm:$0xff]
  %v5754 = vld [vmem:[%s5751 + $0x10] sm:$0xff]
  %v5755 = vld [vmem:[%s5751 + $0x18] sm:$0xff]
  %v5756 = vld [vmem:[%s5751 + $0x20] sm:$0xff]
  %v5757 = vld [vmem:[%s5751 + $0x28] sm:$0xff]
  %v5758 = vld [vmem:[%s5751 + $0x30] sm:$0xff]
  %v5759 = vld [vmem:[%s5751 + $0x38] sm:$0xff]
  %v5760 = vld [vmem:[%s5751 + $0x40] sm:$0xff]
  %v5761 = vld [vmem:[%s5751 + $0x48] sm:$0xff]
  %v5762 = vld [vmem:[%s5751 + $0x50] sm:$0xff]
  %v5763 = vld [vmem:[%s5751 + $0x58] sm:$0xff]
  %v5764 = vld [vmem:[%s5751 + $0x60] sm:$0xff]
  %v5765 = vld [vmem:[%s5751 + $0x68] sm:$0xff]
  %v5766 = vld [vmem:[%s5751 + $0x70] sm:$0xff]
  %v5767 = vld [vmem:[%s5751 + $0x78] sm:$0xff]
  %v5768 = vld [vmem:[%s5751 + $0x80] sm:$0xff]
  %v5769 = vld [vmem:[%s5751 + $0x88] sm:$0xff]
  %v5770 = vld [vmem:[%s5751 + $0x90] sm:$0xff]
  %v5771 = vld [vmem:[%s5751 + $0x98] sm:$0xff]
  %v5772 = vld [vmem:[%s5751 + $0xa0] sm:$0xff]
  %v5773 = vld [vmem:[%s5751 + $0xa8] sm:$0xff]
  %v5774 = vld [vmem:[%s5751 + $0xb0] sm:$0xff]
  %v5775 = vld [vmem:[%s5751 + $0xb8] sm:$0xff]
  %v5776 = vld [vmem:[%s5751 + $0xc0] sm:$0xff]
  %v5777 = vld [vmem:[%s5751 + $0xc8] sm:$0xff]
  %v5778 = vld [vmem:[%s5751 + $0xd0] sm:$0xff]
  %v5779 = vld [vmem:[%s5751 + $0xd8] sm:$0xff]
  %v5780 = vld [vmem:[%s5751 + $0xe0] sm:$0xff]
  %v5781 = vld [vmem:[%s5751 + $0xe8] sm:$0xff]
  %v5782 = vld [vmem:[%s5751 + $0xf0] sm:$0xff]
  %v5783 = vld [vmem:[%s5751 + $0xf8] sm:$0xff]
  %v5816 = vunpack.c.l.b16 %v5752
  %v5817 = vunpack.c.h.b16 %v5752
  %v5818 = vunpack.c.l.b16 %v5753
  %v5819 = vunpack.c.h.b16 %v5753
  %v5820 = vunpack.c.l.b16 %v5754
  %v5821 = vunpack.c.h.b16 %v5754
  %v5822 = vunpack.c.l.b16 %v5755
  %v5823 = vunpack.c.h.b16 %v5755
  %v5824 = vunpack.c.l.b16 %v5756
  %v5825 = vunpack.c.h.b16 %v5756
  %v5826 = vunpack.c.l.b16 %v5757
  %v5827 = vunpack.c.h.b16 %v5757
  %v5828 = vunpack.c.l.b16 %v5758
  %v5829 = vunpack.c.h.b16 %v5758
  %v5830 = vunpack.c.l.b16 %v5759
  %v5831 = vunpack.c.h.b16 %v5759
  %v5832 = vunpack.c.l.b16 %v5760
  %v5833 = vunpack.c.h.b16 %v5760
  %v5834 = vunpack.c.l.b16 %v5761
  %v5835 = vunpack.c.h.b16 %v5761
  %v5836 = vunpack.c.l.b16 %v5762
  %v5837 = vunpack.c.h.b16 %v5762
  %v5838 = vunpack.c.l.b16 %v5763
  %v5839 = vunpack.c.h.b16 %v5763
  %v5840 = vunpack.c.l.b16 %v5764
  %v5841 = vunpack.c.h.b16 %v5764
  %v5842 = vunpack.c.l.b16 %v5765
  %v5843 = vunpack.c.h.b16 %v5765
  %v5844 = vunpack.c.l.b16 %v5766
  %v5845 = vunpack.c.h.b16 %v5766
  %v5846 = vunpack.c.l.b16 %v5767
  %v5847 = vunpack.c.h.b16 %v5767
  %v5848 = vunpack.c.l.b16 %v5768
  %v5849 = vunpack.c.h.b16 %v5768
  %v5850 = vunpack.c.l.b16 %v5769
  %v5851 = vunpack.c.h.b16 %v5769
  %v5852 = vunpack.c.l.b16 %v5770
  %v5853 = vunpack.c.h.b16 %v5770
  %v5854 = vunpack.c.l.b16 %v5771
  %v5855 = vunpack.c.h.b16 %v5771
  %v5856 = vunpack.c.l.b16 %v5772
  %v5857 = vunpack.c.h.b16 %v5772
  %v5858 = vunpack.c.l.b16 %v5773
  %v5859 = vunpack.c.h.b16 %v5773
  %v5860 = vunpack.c.l.b16 %v5774
  %v5861 = vunpack.c.h.b16 %v5774
  %v5862 = vunpack.c.l.b16 %v5775
  %v5863 = vunpack.c.h.b16 %v5775
  %v5864 = vunpack.c.l.b16 %v5776
  %v5865 = vunpack.c.h.b16 %v5776
  %v5866 = vunpack.c.l.b16 %v5777
  %v5867 = vunpack.c.h.b16 %v5777
  %v5868 = vunpack.c.l.b16 %v5778
  %v5869 = vunpack.c.h.b16 %v5778
  %v5870 = vunpack.c.l.b16 %v5779
  %v5871 = vunpack.c.h.b16 %v5779
  %v5872 = vunpack.c.l.b16 %v5780
  %v5873 = vunpack.c.h.b16 %v5780
  %v5874 = vunpack.c.l.b16 %v5781
  %v5875 = vunpack.c.h.b16 %v5781
  %v5876 = vunpack.c.l.b16 %v5782
  %v5877 = vunpack.c.h.b16 %v5782
  %v5878 = vunpack.c.l.b16 %v5783
  %v5879 = vunpack.c.h.b16 %v5783
  %v5880 = vpack.c.b16 %v5818, %v5816
  %v5881 = vpack.c.b16 %v5819, %v5817
  %v5882 = vpack.c.b16 %v5822, %v5820
  %v5883 = vpack.c.b16 %v5823, %v5821
  %v5884 = vpack.c.b16 %v5826, %v5824
  %v5885 = vpack.c.b16 %v5827, %v5825
  %v5886 = vpack.c.b16 %v5830, %v5828
  %v5887 = vpack.c.b16 %v5831, %v5829
  %v5888 = vpack.c.b16 %v5834, %v5832
  %v5889 = vpack.c.b16 %v5835, %v5833
  %v5890 = vpack.c.b16 %v5838, %v5836
  %v5891 = vpack.c.b16 %v5839, %v5837
  %v5892 = vpack.c.b16 %v5842, %v5840
  %v5893 = vpack.c.b16 %v5843, %v5841
  %v5894 = vpack.c.b16 %v5846, %v5844
  %v5895 = vpack.c.b16 %v5847, %v5845
  %v5896 = vpack.c.b16 %v5850, %v5848
  %v5897 = vpack.c.b16 %v5851, %v5849
  %v5898 = vpack.c.b16 %v5854, %v5852
  %v5899 = vpack.c.b16 %v5855, %v5853
  %v5900 = vpack.c.b16 %v5858, %v5856
  %v5901 = vpack.c.b16 %v5859, %v5857
  %v5902 = vpack.c.b16 %v5862, %v5860
  %v5903 = vpack.c.b16 %v5863, %v5861
  %v5904 = vpack.c.b16 %v5866, %v5864
  %v5905 = vpack.c.b16 %v5867, %v5865
  %v5906 = vpack.c.b16 %v5870, %v5868
  %v5907 = vpack.c.b16 %v5871, %v5869
  %v5908 = vpack.c.b16 %v5874, %v5872
  %v5909 = vpack.c.b16 %v5875, %v5873
  %v5910 = vpack.c.b16 %v5878, %v5876
  %v5911 = vpack.c.b16 %v5879, %v5877
  %5944 = vmatpush.bf16.msra.mxu0 %v5894
  %5945 = vmatpush.bf16.msra.mxu0 %v5892
  %5946 = vmatpush.bf16.msra.mxu0 %v5890
  %5947 = vmatpush.bf16.msra.mxu0 %v5888
  %5948 = vmatpush.bf16.msra.mxu0 %v5886
  %5949 = vmatpush.bf16.msra.mxu0 %v5884
  %5950 = vmatpush.bf16.msra.mxu0 %v5882
  %5951 = vmatpush.bf16.msra.mxu0 %v5880
  %5952 = vmatmul.bf16.gmra.mxu0 %v5719
  %v5953 = vpop.f32.mrf.mxu0
  %v5954 = vadd.f32 %v5551, %v5953
  %v5955 = vpop.f32.mrf.mxu0
  %v5956 = vadd.f32 %v5553, %v5955
  %5957 = vmatmul.bf16.gmra.mxu0 %v5721
  %v5958 = vpop.f32.mrf.mxu0
  %v5959 = vadd.f32 %v5556, %v5958
  %v5960 = vpop.f32.mrf.mxu0
  %v5961 = vadd.f32 %v5558, %v5960
  %5962 = vmatmul.bf16.gmra.mxu0 %v5723
  %v5963 = vpop.f32.mrf.mxu0
  %v5964 = vadd.f32 %v5561, %v5963
  %v5965 = vpop.f32.mrf.mxu0
  %v5966 = vadd.f32 %v5563, %v5965
  %5967 = vmatmul.bf16.gmra.mxu0 %v5725
  %v5968 = vpop.f32.mrf.mxu0
  %v5969 = vadd.f32 %v5566, %v5968
  %v5970 = vpop.f32.mrf.mxu0
  %v5971 = vadd.f32 %v5568, %v5970
  %5972 = vmatmul.bf16.gmra.mxu0 %v5727
  %v5973 = vpop.f32.mrf.mxu0
  %v5974 = vadd.f32 %v5571, %v5973
  %v5975 = vpop.f32.mrf.mxu0
  %v5976 = vadd.f32 %v5573, %v5975
  %5977 = vmatmul.bf16.gmra.mxu0 %v5729
  %v5978 = vpop.f32.mrf.mxu0
  %v5979 = vadd.f32 %v5576, %v5978
  %v5980 = vpop.f32.mrf.mxu0
  %v5981 = vadd.f32 %v5578, %v5980
  %5982 = vmatmul.bf16.gmra.mxu0 %v5731
  %v5983 = vpop.f32.mrf.mxu0
  %v5984 = vadd.f32 %v5581, %v5983
  %v5985 = vpop.f32.mrf.mxu0
  %v5986 = vadd.f32 %v5583, %v5985
  %5987 = vmatmul.bf16.gmra.mxu0 %v5733
  %v5988 = vpop.f32.mrf.mxu0
  %v5989 = vadd.f32 %v5586, %v5988
  %v5990 = vpop.f32.mrf.mxu0
  %v5991 = vadd.f32 %v5588, %v5990
  %5992 = vmatmul.bf16.gmra.mxu0 %v5735
  %v5993 = vpop.f32.mrf.mxu0
  %v5994 = vadd.f32 %v5591, %v5993
  %v5995 = vpop.f32.mrf.mxu0
  %v5996 = vadd.f32 %v5593, %v5995
  %5997 = vmatmul.bf16.gmra.mxu0 %v5737
  %v5998 = vpop.f32.mrf.mxu0
  %v5999 = vadd.f32 %v5596, %v5998
  %v6000 = vpop.f32.mrf.mxu0
  %v6001 = vadd.f32 %v5598, %v6000
  %6002 = vmatmul.bf16.gmra.mxu0 %v5739
  %v6003 = vpop.f32.mrf.mxu0
  %v6004 = vadd.f32 %v5601, %v6003
  %v6005 = vpop.f32.mrf.mxu0
  %v6006 = vadd.f32 %v5603, %v6005
  %6007 = vmatmul.bf16.gmra.mxu0 %v5741
  %v6008 = vpop.f32.mrf.mxu0
  %v6009 = vadd.f32 %v5606, %v6008
  %v6010 = vpop.f32.mrf.mxu0
  %v6011 = vadd.f32 %v5608, %v6010
  %6012 = vmatmul.bf16.gmra.mxu0 %v5743
  %v6013 = vpop.f32.mrf.mxu0
  %v6014 = vadd.f32 %v5611, %v6013
  %v6015 = vpop.f32.mrf.mxu0
  %v6016 = vadd.f32 %v5613, %v6015
  %6017 = vmatmul.bf16.gmra.mxu0 %v5745
  %v6018 = vpop.f32.mrf.mxu0
  %v6019 = vadd.f32 %v5616, %v6018
  %v6020 = vpop.f32.mrf.mxu0
  %v6021 = vadd.f32 %v5618, %v6020
  %6022 = vmatmul.bf16.gmra.mxu0 %v5747
  %v6023 = vpop.f32.mrf.mxu0
  %v6024 = vadd.f32 %v5621, %v6023
  %v6025 = vpop.f32.mrf.mxu0
  %v6026 = vadd.f32 %v5623, %v6025
  %6027 = vmatmul.bf16.gmra.mxu0 %v5749
  %v6028 = vpop.f32.mrf.mxu0
  %v6029 = vadd.f32 %v5626, %v6028
  %v6030 = vpop.f32.mrf.mxu0
  %v6031 = vadd.f32 %v5628, %v6030
  %6032 = vdwg.mxu0
  %6033 = vmatpush.bf16.msra.mxu0 %v5910
  %6034 = vmatpush.bf16.msra.mxu0 %v5908
  %6035 = vmatpush.bf16.msra.mxu0 %v5906
  %6036 = vmatpush.bf16.msra.mxu0 %v5904
  %6037 = vmatpush.bf16.msra.mxu0 %v5902
  %6038 = vmatpush.bf16.msra.mxu0 %v5900
  %6039 = vmatpush.bf16.msra.mxu0 %v5898
  %6040 = vmatpush.bf16.msra.mxu0 %v5896
  %6041 = vmatmul.bf16.gmra.mxu0 %v5720
  %v6042 = vpop.f32.mrf.mxu0
  %v6043 = vadd.f32 %v5954, %v6042
  %v6044 = vpop.f32.mrf.mxu0
  %v6045 = vadd.f32 %v5956, %v6044
  %6046 = vmatmul.bf16.gmra.mxu0 %v5722
  %v6047 = vpop.f32.mrf.mxu0
  %v6048 = vadd.f32 %v5959, %v6047
  %v6049 = vpop.f32.mrf.mxu0
  %v6050 = vadd.f32 %v5961, %v6049
  %6051 = vmatmul.bf16.gmra.mxu0 %v5724
  %v6052 = vpop.f32.mrf.mxu0
  %v6053 = vadd.f32 %v5964, %v6052
  %v6054 = vpop.f32.mrf.mxu0
  %v6055 = vadd.f32 %v5966, %v6054
  %6056 = vmatmul.bf16.gmra.mxu0 %v5726
  %v6057 = vpop.f32.mrf.mxu0
  %v6058 = vadd.f32 %v5969, %v6057
  %v6059 = vpop.f32.mrf.mxu0
  %v6060 = vadd.f32 %v5971, %v6059
  %6061 = vmatmul.bf16.gmra.mxu0 %v5728
  %v6062 = vpop.f32.mrf.mxu0
  %v6063 = vadd.f32 %v5974, %v6062
  %v6064 = vpop.f32.mrf.mxu0
  %v6065 = vadd.f32 %v5976, %v6064
  %6066 = vmatmul.bf16.gmra.mxu0 %v5730
  %v6067 = vpop.f32.mrf.mxu0
  %v6068 = vadd.f32 %v5979, %v6067
  %v6069 = vpop.f32.mrf.mxu0
  %v6070 = vadd.f32 %v5981, %v6069
  %6071 = vmatmul.bf16.gmra.mxu0 %v5732
  %v6072 = vpop.f32.mrf.mxu0
  %v6073 = vadd.f32 %v5984, %v6072
  %v6074 = vpop.f32.mrf.mxu0
  %v6075 = vadd.f32 %v5986, %v6074
  %6076 = vmatmul.bf16.gmra.mxu0 %v5734
  %v6077 = vpop.f32.mrf.mxu0
  %v6078 = vadd.f32 %v5989, %v6077
  %v6079 = vpop.f32.mrf.mxu0
  %v6080 = vadd.f32 %v5991, %v6079
  %6081 = vmatmul.bf16.gmra.mxu0 %v5736
  %v6082 = vpop.f32.mrf.mxu0
  %v6083 = vadd.f32 %v5994, %v6082
  %v6084 = vpop.f32.mrf.mxu0
  %v6085 = vadd.f32 %v5996, %v6084
  %6086 = vmatmul.bf16.gmra.mxu0 %v5738
  %v6087 = vpop.f32.mrf.mxu0
  %v6088 = vadd.f32 %v5999, %v6087
  %v6089 = vpop.f32.mrf.mxu0
  %v6090 = vadd.f32 %v6001, %v6089
  %6091 = vmatmul.bf16.gmra.mxu0 %v5740
  %v6092 = vpop.f32.mrf.mxu0
  %v6093 = vadd.f32 %v6004, %v6092
  %v6094 = vpop.f32.mrf.mxu0
  %v6095 = vadd.f32 %v6006, %v6094
  %6096 = vmatmul.bf16.gmra.mxu0 %v5742
  %v6097 = vpop.f32.mrf.mxu0
  %v6098 = vadd.f32 %v6009, %v6097
  %v6099 = vpop.f32.mrf.mxu0
  %v6100 = vadd.f32 %v6011, %v6099
  %6101 = vmatmul.bf16.gmra.mxu0 %v5744
  %v6102 = vpop.f32.mrf.mxu0
  %v6103 = vadd.f32 %v6014, %v6102
  %v6104 = vpop.f32.mrf.mxu0
  %v6105 = vadd.f32 %v6016, %v6104
  %6106 = vmatmul.bf16.gmra.mxu0 %v5746
  %v6107 = vpop.f32.mrf.mxu0
  %v6108 = vadd.f32 %v6019, %v6107
  %v6109 = vpop.f32.mrf.mxu0
  %v6110 = vadd.f32 %v6021, %v6109
  %6111 = vmatmul.bf16.gmra.mxu0 %v5748
  %v6112 = vpop.f32.mrf.mxu0
  %v6113 = vadd.f32 %v6024, %v6112
  %v6114 = vpop.f32.mrf.mxu0
  %v6115 = vadd.f32 %v6026, %v6114
  %6116 = vmatmul.bf16.gmra.mxu0 %v5750
  %v6117 = vpop.f32.mrf.mxu0
  %v6118 = vadd.f32 %v6029, %v6117
  %v6119 = vpop.f32.mrf.mxu0
  %v6120 = vadd.f32 %v6031, %v6119
  %6121 = vdwg.mxu0
  %6122 = vmatpush.bf16.msra.mxu0 %v5895
  %6123 = vmatpush.bf16.msra.mxu0 %v5893
  %6124 = vmatpush.bf16.msra.mxu0 %v5891
  %6125 = vmatpush.bf16.msra.mxu0 %v5889
  %6126 = vmatpush.bf16.msra.mxu0 %v5887
  %6127 = vmatpush.bf16.msra.mxu0 %v5885
  %6128 = vmatpush.bf16.msra.mxu0 %v5883
  %6129 = vmatpush.bf16.msra.mxu0 %v5881
  %6130 = vmatmul.bf16.gmra.mxu0 %v5719
  %v6131 = vpop.f32.mrf.mxu0
  %v6132 = vadd.f32 %v5640, %v6131
  %v6133 = vpop.f32.mrf.mxu0
  %v6134 = vadd.f32 %v5642, %v6133
  %6135 = vmatmul.bf16.gmra.mxu0 %v5721
  %v6136 = vpop.f32.mrf.mxu0
  %v6137 = vadd.f32 %v5645, %v6136
  %v6138 = vpop.f32.mrf.mxu0
  %v6139 = vadd.f32 %v5647, %v6138
  %6140 = vmatmul.bf16.gmra.mxu0 %v5723
  %v6141 = vpop.f32.mrf.mxu0
  %v6142 = vadd.f32 %v5650, %v6141
  %v6143 = vpop.f32.mrf.mxu0
  %v6144 = vadd.f32 %v5652, %v6143
  %6145 = vmatmul.bf16.gmra.mxu0 %v5725
  %v6146 = vpop.f32.mrf.mxu0
  %v6147 = vadd.f32 %v5655, %v6146
  %v6148 = vpop.f32.mrf.mxu0
  %v6149 = vadd.f32 %v5657, %v6148
  %6150 = vmatmul.bf16.gmra.mxu0 %v5727
  %v6151 = vpop.f32.mrf.mxu0
  %v6152 = vadd.f32 %v5660, %v6151
  %v6153 = vpop.f32.mrf.mxu0
  %v6154 = vadd.f32 %v5662, %v6153
  %6155 = vmatmul.bf16.gmra.mxu0 %v5729
  %v6156 = vpop.f32.mrf.mxu0
  %v6157 = vadd.f32 %v5665, %v6156
  %v6158 = vpop.f32.mrf.mxu0
  %v6159 = vadd.f32 %v5667, %v6158
  %6160 = vmatmul.bf16.gmra.mxu0 %v5731
  %v6161 = vpop.f32.mrf.mxu0
  %v6162 = vadd.f32 %v5670, %v6161
  %v6163 = vpop.f32.mrf.mxu0
  %v6164 = vadd.f32 %v5672, %v6163
  %6165 = vmatmul.bf16.gmra.mxu0 %v5733
  %v6166 = vpop.f32.mrf.mxu0
  %v6167 = vadd.f32 %v5675, %v6166
  %v6168 = vpop.f32.mrf.mxu0
  %v6169 = vadd.f32 %v5677, %v6168
  %6170 = vmatmul.bf16.gmra.mxu0 %v5735
  %v6171 = vpop.f32.mrf.mxu0
  %v6172 = vadd.f32 %v5680, %v6171
  %v6173 = vpop.f32.mrf.mxu0
  %v6174 = vadd.f32 %v5682, %v6173
  %6175 = vmatmul.bf16.gmra.mxu0 %v5737
  %v6176 = vpop.f32.mrf.mxu0
  %v6177 = vadd.f32 %v5685, %v6176
  %v6178 = vpop.f32.mrf.mxu0
  %v6179 = vadd.f32 %v5687, %v6178
  %6180 = vmatmul.bf16.gmra.mxu0 %v5739
  %v6181 = vpop.f32.mrf.mxu0
  %v6182 = vadd.f32 %v5690, %v6181
  %v6183 = vpop.f32.mrf.mxu0
  %v6184 = vadd.f32 %v5692, %v6183
  %6185 = vmatmul.bf16.gmra.mxu0 %v5741
  %v6186 = vpop.f32.mrf.mxu0
  %v6187 = vadd.f32 %v5695, %v6186
  %v6188 = vpop.f32.mrf.mxu0
  %v6189 = vadd.f32 %v5697, %v6188
  %6190 = vmatmul.bf16.gmra.mxu0 %v5743
  %v6191 = vpop.f32.mrf.mxu0
  %v6192 = vadd.f32 %v5700, %v6191
  %v6193 = vpop.f32.mrf.mxu0
  %v6194 = vadd.f32 %v5702, %v6193
  %6195 = vmatmul.bf16.gmra.mxu0 %v5745
  %v6196 = vpop.f32.mrf.mxu0
  %v6197 = vadd.f32 %v5705, %v6196
  %v6198 = vpop.f32.mrf.mxu0
  %v6199 = vadd.f32 %v5707, %v6198
  %6200 = vmatmul.bf16.gmra.mxu0 %v5747
  %v6201 = vpop.f32.mrf.mxu0
  %v6202 = vadd.f32 %v5710, %v6201
  %v6203 = vpop.f32.mrf.mxu0
  %v6204 = vadd.f32 %v5712, %v6203
  %6205 = vmatmul.bf16.gmra.mxu0 %v5749
  %v6206 = vpop.f32.mrf.mxu0
  %v6207 = vadd.f32 %v5715, %v6206
  %v6208 = vpop.f32.mrf.mxu0
  %v6209 = vadd.f32 %v5717, %v6208
  %6210 = vdwg.mxu0
  %6211 = vmatpush.bf16.msra.mxu0 %v5911
  %6212 = vmatpush.bf16.msra.mxu0 %v5909
  %6213 = vmatpush.bf16.msra.mxu0 %v5907
  %6214 = vmatpush.bf16.msra.mxu0 %v5905
  %6215 = vmatpush.bf16.msra.mxu0 %v5903
  %6216 = vmatpush.bf16.msra.mxu0 %v5901
  %6217 = vmatpush.bf16.msra.mxu0 %v5899
  %6218 = vmatpush.bf16.msra.mxu0 %v5897
  %6219 = vmatmul.bf16.gmra.mxu0 %v5720
  %v6220 = vpop.f32.mrf.mxu0
  %v6221 = vadd.f32 %v6132, %v6220
  %v6222 = vpop.f32.mrf.mxu0
  %v6223 = vadd.f32 %v6134, %v6222
  %6224 = vmatmul.bf16.gmra.mxu0 %v5722
  %v6225 = vpop.f32.mrf.mxu0
  %v6226 = vadd.f32 %v6137, %v6225
  %v6227 = vpop.f32.mrf.mxu0
  %v6228 = vadd.f32 %v6139, %v6227
  %6229 = vmatmul.bf16.gmra.mxu0 %v5724
  %v6230 = vpop.f32.mrf.mxu0
  %v6231 = vadd.f32 %v6142, %v6230
  %v6232 = vpop.f32.mrf.mxu0
  %v6233 = vadd.f32 %v6144, %v6232
  %6234 = vmatmul.bf16.gmra.mxu0 %v5726
  %v6235 = vpop.f32.mrf.mxu0
  %v6236 = vadd.f32 %v6147, %v6235
  %v6237 = vpop.f32.mrf.mxu0
  %v6238 = vadd.f32 %v6149, %v6237
  %6239 = vmatmul.bf16.gmra.mxu0 %v5728
  %v6240 = vpop.f32.mrf.mxu0
  %v6241 = vadd.f32 %v6152, %v6240
  %v6242 = vpop.f32.mrf.mxu0
  %v6243 = vadd.f32 %v6154, %v6242
  %6244 = vmatmul.bf16.gmra.mxu0 %v5730
  %v6245 = vpop.f32.mrf.mxu0
  %v6246 = vadd.f32 %v6157, %v6245
  %v6247 = vpop.f32.mrf.mxu0
  %v6248 = vadd.f32 %v6159, %v6247
  %6249 = vmatmul.bf16.gmra.mxu0 %v5732
  %v6250 = vpop.f32.mrf.mxu0
  %v6251 = vadd.f32 %v6162, %v6250
  %v6252 = vpop.f32.mrf.mxu0
  %v6253 = vadd.f32 %v6164, %v6252
  %6254 = vmatmul.bf16.gmra.mxu0 %v5734
  %v6255 = vpop.f32.mrf.mxu0
  %v6256 = vadd.f32 %v6167, %v6255
  %v6257 = vpop.f32.mrf.mxu0
  %v6258 = vadd.f32 %v6169, %v6257
  %6259 = vmatmul.bf16.gmra.mxu0 %v5736
  %v6260 = vpop.f32.mrf.mxu0
  %v6261 = vadd.f32 %v6172, %v6260
  %v6262 = vpop.f32.mrf.mxu0
  %v6263 = vadd.f32 %v6174, %v6262
  %6264 = vmatmul.bf16.gmra.mxu0 %v5738
  %v6265 = vpop.f32.mrf.mxu0
  %v6266 = vadd.f32 %v6177, %v6265
  %v6267 = vpop.f32.mrf.mxu0
  %v6268 = vadd.f32 %v6179, %v6267
  %6269 = vmatmul.bf16.gmra.mxu0 %v5740
  %v6270 = vpop.f32.mrf.mxu0
  %v6271 = vadd.f32 %v6182, %v6270
  %v6272 = vpop.f32.mrf.mxu0
  %v6273 = vadd.f32 %v6184, %v6272
  %6274 = vmatmul.bf16.gmra.mxu0 %v5742
  %v6275 = vpop.f32.mrf.mxu0
  %v6276 = vadd.f32 %v6187, %v6275
  %v6277 = vpop.f32.mrf.mxu0
  %v6278 = vadd.f32 %v6189, %v6277
  %6279 = vmatmul.bf16.gmra.mxu0 %v5744
  %v6280 = vpop.f32.mrf.mxu0
  %v6281 = vadd.f32 %v6192, %v6280
  %v6282 = vpop.f32.mrf.mxu0
  %v6283 = vadd.f32 %v6194, %v6282
  %6284 = vmatmul.bf16.gmra.mxu0 %v5746
  %v6285 = vpop.f32.mrf.mxu0
  %v6286 = vadd.f32 %v6197, %v6285
  %v6287 = vpop.f32.mrf.mxu0
  %v6288 = vadd.f32 %v6199, %v6287
  %6289 = vmatmul.bf16.gmra.mxu0 %v5748
  %v6290 = vpop.f32.mrf.mxu0
  %v6291 = vadd.f32 %v6202, %v6290
  %v6292 = vpop.f32.mrf.mxu0
  %v6293 = vadd.f32 %v6204, %v6292
  %6294 = vmatmul.bf16.gmra.mxu0 %v5750
  %v6295 = vpop.f32.mrf.mxu0
  %v6296 = vadd.f32 %v6207, %v6295
  %v6297 = vpop.f32.mrf.mxu0
  %v6298 = vadd.f32 %v6209, %v6297
  %6299 = vdwg.mxu0
  %v6300 = vadd.f32 %v4494, %v6043
  %v6301 = vadd.f32 %v4495, %v6221
  %v6302 = vadd.f32 %v4496, %v6045
  %v6303 = vadd.f32 %v4497, %v6223
  %v6304 = vadd.f32 %v4498, %v6048
  %v6305 = vadd.f32 %v4499, %v6226
  %v6306 = vadd.f32 %v4500, %v6050
  %v6307 = vadd.f32 %v4501, %v6228
  %v6308 = vadd.f32 %v4502, %v6053
  %v6309 = vadd.f32 %v4503, %v6231
  %v6310 = vadd.f32 %v4504, %v6055
  %v6311 = vadd.f32 %v4505, %v6233
  %v6312 = vadd.f32 %v4506, %v6058
  %v6313 = vadd.f32 %v4507, %v6236
  %v6314 = vadd.f32 %v4508, %v6060
  %v6315 = vadd.f32 %v4509, %v6238
  %v6316 = vadd.f32 %v4510, %v6063
  %v6317 = vadd.f32 %v4511, %v6241
  %v6318 = vadd.f32 %v4512, %v6065
  %v6319 = vadd.f32 %v4513, %v6243
  %v6320 = vadd.f32 %v4514, %v6068
  %v6321 = vadd.f32 %v4515, %v6246
  %v6322 = vadd.f32 %v4516, %v6070
  %v6323 = vadd.f32 %v4517, %v6248
  %v6324 = vadd.f32 %v4518, %v6073
  %v6325 = vadd.f32 %v4519, %v6251
  %v6326 = vadd.f32 %v4520, %v6075
  %v6327 = vadd.f32 %v4521, %v6253
  %v6328 = vadd.f32 %v4522, %v6078
  %v6329 = vadd.f32 %v4523, %v6256
  %v6330 = vadd.f32 %v4524, %v6080
  %v6331 = vadd.f32 %v4525, %v6258
  %v6332 = vadd.f32 %v4526, %v6083
  %v6333 = vadd.f32 %v4527, %v6261
  %v6334 = vadd.f32 %v4528, %v6085
  %v6335 = vadd.f32 %v4529, %v6263
  %v6336 = vadd.f32 %v4530, %v6088
  %v6337 = vadd.f32 %v4531, %v6266
  %v6338 = vadd.f32 %v4532, %v6090
  %v6339 = vadd.f32 %v4533, %v6268
  %v6340 = vadd.f32 %v4534, %v6093
  %v6341 = vadd.f32 %v4535, %v6271
  %v6342 = vadd.f32 %v4536, %v6095
  %v6343 = vadd.f32 %v4537, %v6273
  %v6344 = vadd.f32 %v4538, %v6098
  %v6345 = vadd.f32 %v4539, %v6276
  %v6346 = vadd.f32 %v4540, %v6100
  %v6347 = vadd.f32 %v4541, %v6278
  %v6348 = vadd.f32 %v4542, %v6103
  %v6349 = vadd.f32 %v4543, %v6281
  %v6350 = vadd.f32 %v4544, %v6105
  %v6351 = vadd.f32 %v4545, %v6283
  %v6352 = vadd.f32 %v4546, %v6108
  %v6353 = vadd.f32 %v4547, %v6286
  %v6354 = vadd.f32 %v4548, %v6110
  %v6355 = vadd.f32 %v4549, %v6288
  %v6356 = vadd.f32 %v4550, %v6113
  %v6357 = vadd.f32 %v4551, %v6291
  %v6358 = vadd.f32 %v4552, %v6115
  %v6359 = vadd.f32 %v4553, %v6293
  %v6360 = vadd.f32 %v4554, %v6118
  %v6361 = vadd.f32 %v4555, %v6296
  %v6362 = vadd.f32 %v4556, %v6120
  %v6363 = vadd.f32 %v4557, %v6298
  %v6364 = vmul.f32 %v6300, 0.2
  %v6365 = vmul.f32 %v6301, 0.2
  %v6366 = vmul.f32 %v6302, 0.2
  %v6367 = vmul.f32 %v6303, 0.2
  %v6368 = vmul.f32 %v6304, 0.2
  %v6369 = vmul.f32 %v6305, 0.2
  %v6370 = vmul.f32 %v6306, 0.2
  %v6371 = vmul.f32 %v6307, 0.2
  %v6372 = vmul.f32 %v6308, 0.2
  %v6373 = vmul.f32 %v6309, 0.2
  %v6374 = vmul.f32 %v6310, 0.2
  %v6375 = vmul.f32 %v6311, 0.2
  %v6376 = vmul.f32 %v6312, 0.2
  %v6377 = vmul.f32 %v6313, 0.2
  %v6378 = vmul.f32 %v6314, 0.2
  %v6379 = vmul.f32 %v6315, 0.2
  %v6380 = vmul.f32 %v6316, 0.2
  %v6381 = vmul.f32 %v6317, 0.2
  %v6382 = vmul.f32 %v6318, 0.2
  %v6383 = vmul.f32 %v6319, 0.2
  %v6384 = vmul.f32 %v6320, 0.2
  %v6385 = vmul.f32 %v6321, 0.2
  %v6386 = vmul.f32 %v6322, 0.2
  %v6387 = vmul.f32 %v6323, 0.2
  %v6388 = vmul.f32 %v6324, 0.2
  %v6389 = vmul.f32 %v6325, 0.2
  %v6390 = vmul.f32 %v6326, 0.2
  %v6391 = vmul.f32 %v6327, 0.2
  %v6392 = vmul.f32 %v6328, 0.2
  %v6393 = vmul.f32 %v6329, 0.2
  %v6394 = vmul.f32 %v6330, 0.2
  %v6395 = vmul.f32 %v6331, 0.2
  %v6396 = vmul.f32 %v6332, 0.2
  %v6397 = vmul.f32 %v6333, 0.2
  %v6398 = vmul.f32 %v6334, 0.2
  %v6399 = vmul.f32 %v6335, 0.2
  %v6400 = vmul.f32 %v6336, 0.2
  %v6401 = vmul.f32 %v6337, 0.2
  %v6402 = vmul.f32 %v6338, 0.2
  %v6403 = vmul.f32 %v6339, 0.2
  %v6404 = vmul.f32 %v6340, 0.2
  %v6405 = vmul.f32 %v6341, 0.2
  %v6406 = vmul.f32 %v6342, 0.2
  %v6407 = vmul.f32 %v6343, 0.2
  %v6408 = vmul.f32 %v6344, 0.2
  %v6409 = vmul.f32 %v6345, 0.2
  %v6410 = vmul.f32 %v6346, 0.2
  %v6411 = vmul.f32 %v6347, 0.2
  %v6412 = vmul.f32 %v6348, 0.2
  %v6413 = vmul.f32 %v6349, 0.2
  %v6414 = vmul.f32 %v6350, 0.2
  %v6415 = vmul.f32 %v6351, 0.2
  %v6416 = vmul.f32 %v6352, 0.2
  %v6417 = vmul.f32 %v6353, 0.2
  %v6418 = vmul.f32 %v6354, 0.2
  %v6419 = vmul.f32 %v6355, 0.2
  %v6420 = vmul.f32 %v6356, 0.2
  %v6421 = vmul.f32 %v6357, 0.2
  %v6422 = vmul.f32 %v6358, 0.2
  %v6423 = vmul.f32 %v6359, 0.2
  %v6424 = vmul.f32 %v6360, 0.2
  %v6425 = vmul.f32 %v6361, 0.2
  %v6426 = vmul.f32 %v6362, 0.2
  %v6427 = vmul.f32 %v6363, 0.2
  %v6428 = vmax.f32 %v6300, %v6364
  %v6429 = vmax.f32 %v6301, %v6365
  %v6430 = vmax.f32 %v6302, %v6366
  %v6431 = vmax.f32 %v6303, %v6367
  %v6432 = vmax.f32 %v6304, %v6368
  %v6433 = vmax.f32 %v6305, %v6369
  %v6434 = vmax.f32 %v6306, %v6370
  %v6435 = vmax.f32 %v6307, %v6371
  %v6436 = vmax.f32 %v6308, %v6372
  %v6437 = vmax.f32 %v6309, %v6373
  %v6438 = vmax.f32 %v6310, %v6374
  %v6439 = vmax.f32 %v6311, %v6375
  %v6440 = vmax.f32 %v6312, %v6376
  %v6441 = vmax.f32 %v6313, %v6377
  %v6442 = vmax.f32 %v6314, %v6378
  %v6443 = vmax.f32 %v6315, %v6379
  %v6444 = vmax.f32 %v6316, %v6380
  %v6445 = vmax.f32 %v6317, %v6381
  %v6446 = vmax.f32 %v6318, %v6382
  %v6447 = vmax.f32 %v6319, %v6383
  %v6448 = vmax.f32 %v6320, %v6384
  %v6449 = vmax.f32 %v6321, %v6385
  %v6450 = vmax.f32 %v6322, %v6386
  %v6451 = vmax.f32 %v6323, %v6387
  %v6452 = vmax.f32 %v6324, %v6388
  %v6453 = vmax.f32 %v6325, %v6389
  %v6454 = vmax.f32 %v6326, %v6390
  %v6455 = vmax.f32 %v6327, %v6391
  %v6456 = vmax.f32 %v6328, %v6392
  %v6457 = vmax.f32 %v6329, %v6393
  %v6458 = vmax.f32 %v6330, %v6394
  %v6459 = vmax.f32 %v6331, %v6395
  %v6460 = vmax.f32 %v6332, %v6396
  %v6461 = vmax.f32 %v6333, %v6397
  %v6462 = vmax.f32 %v6334, %v6398
  %v6463 = vmax.f32 %v6335, %v6399
  %v6464 = vmax.f32 %v6336, %v6400
  %v6465 = vmax.f32 %v6337, %v6401
  %v6466 = vmax.f32 %v6338, %v6402
  %v6467 = vmax.f32 %v6339, %v6403
  %v6468 = vmax.f32 %v6340, %v6404
  %v6469 = vmax.f32 %v6341, %v6405
  %v6470 = vmax.f32 %v6342, %v6406
  %v6471 = vmax.f32 %v6343, %v6407
  %v6472 = vmax.f32 %v6344, %v6408
  %v6473 = vmax.f32 %v6345, %v6409
  %v6474 = vmax.f32 %v6346, %v6410
  %v6475 = vmax.f32 %v6347, %v6411
  %v6476 = vmax.f32 %v6348, %v6412
  %v6477 = vmax.f32 %v6349, %v6413
  %v6478 = vmax.f32 %v6350, %v6414
  %v6479 = vmax.f32 %v6351, %v6415
  %v6480 = vmax.f32 %v6352, %v6416
  %v6481 = vmax.f32 %v6353, %v6417
  %v6482 = vmax.f32 %v6354, %v6418
  %v6483 = vmax.f32 %v6355, %v6419
  %v6484 = vmax.f32 %v6356, %v6420
  %v6485 = vmax.f32 %v6357, %v6421
  %v6486 = vmax.f32 %v6358, %v6422
  %v6487 = vmax.f32 %v6359, %v6423
  %v6488 = vmax.f32 %v6360, %v6424
  %v6489 = vmax.f32 %v6361, %v6425
  %v6490 = vmax.f32 %v6362, %v6426
  %v6491 = vmax.f32 %v6363, %v6427
  %v6492 = vld [vmem:[%s5 + $0x30] sm:$0xff]
  %v6493 = vld [vmem:[%s5 + $0x70] sm:$0xff]
  %v6494 = vld [vmem:[%s5 + $0xb0] sm:$0xff]
  %v6495 = vld [vmem:[%s5 + $0xf0] sm:$0xff]
  %v6496 = vld [vmem:[%s5 + $0x130] sm:$0xff]
  %v6497 = vld [vmem:[%s5 + $0x170] sm:$0xff]
  %v6498 = vld [vmem:[%s5 + $0x1b0] sm:$0x11]
  %v6506 = vunpack.c.l.b16 %v6492
  %v6507 = vunpack.c.h.b16 %v6492
  %v6508 = vunpack.c.l.b16 %v6493
  %v6509 = vunpack.c.h.b16 %v6493
  %v6510 = vunpack.c.l.b16 %v6494
  %v6511 = vunpack.c.h.b16 %v6494
  %v6512 = vunpack.c.l.b16 %v6495
  %v6513 = vunpack.c.h.b16 %v6495
  %v6514 = vunpack.c.l.b16 %v6496
  %v6515 = vunpack.c.h.b16 %v6496
  %v6516 = vunpack.c.l.b16 %v6497
  %v6517 = vunpack.c.h.b16 %v6497
  %v6518 = vunpack.c.l.b16 %v6498
  %v6519 = vunpack.c.h.b16 %v6498
  %v6520 = vpack.c.b16 %v6508, %v6506
  %v6521 = vpack.c.b16 %v6509, %v6507
  %v6522 = vpack.c.b16 %v6512, %v6510
  %v6523 = vpack.c.b16 %v6513, %v6511
  %v6524 = vpack.c.b16 %v6516, %v6514
  %v6525 = vpack.c.b16 %v6517, %v6515
  %v6526 = vpack.c.b16 %v6518, %v6518
  %v6527 = vpack.c.b16 %v6519, %v6519
  %v6535 = vand.u32 %v6526, %v732
  %v6538 = vand.u32 %v6527, %v732
  %6540 = vmatpush.bf16.msra.mxu0 0
  %6541 = vmatpush.bf16.msra.mxu0 0
  %6542 = vmatpush.bf16.msra.mxu0 0
  %6543 = vmatpush.bf16.msra.mxu0 0
  %6544 = vmatpush.bf16.msra.mxu0 %v6535
  %6545 = vmatpush.bf16.msra.mxu0 %v6524
  %6546 = vmatpush.bf16.msra.mxu0 %v6522
  %6547 = vmatpush.bf16.msra.mxu0 %v6520
  %6548 = vmatmul.bf16.gmra.mxu0 %v683
  %v6549 = vpop.f32.mrf.mxu0
  %v6550 = vadd.f32 0.0, %v6549
  %v6551 = vpop.f32.mrf.mxu0
  %v6552 = vadd.f32 0.0, %v6551
  %6553 = vmatmul.bf16.gmra.mxu0 %v686
  %v6554 = vpop.f32.mrf.mxu0
  %v6555 = vadd.f32 0.0, %v6554
  %v6556 = vpop.f32.mrf.mxu0
  %v6557 = vadd.f32 0.0, %v6556
  %6558 = vmatmul.bf16.gmra.mxu0 %v689
  %v6559 = vpop.f32.mrf.mxu0
  %v6560 = vadd.f32 0.0, %v6559
  %v6561 = vpop.f32.mrf.mxu0
  %v6562 = vadd.f32 0.0, %v6561
  %6563 = vmatmul.bf16.gmra.mxu0 %v692
  %v6564 = vpop.f32.mrf.mxu0
  %v6565 = vadd.f32 0.0, %v6564
  %v6566 = vpop.f32.mrf.mxu0
  %v6567 = vadd.f32 0.0, %v6566
  %6568 = vmatmul.bf16.gmra.mxu0 %v695
  %v6569 = vpop.f32.mrf.mxu0
  %v6570 = vadd.f32 0.0, %v6569
  %v6571 = vpop.f32.mrf.mxu0
  %v6572 = vadd.f32 0.0, %v6571
  %6573 = vmatmul.bf16.gmra.mxu0 %v698
  %v6574 = vpop.f32.mrf.mxu0
  %v6575 = vadd.f32 0.0, %v6574
  %v6576 = vpop.f32.mrf.mxu0
  %v6577 = vadd.f32 0.0, %v6576
  %6578 = vmatmul.bf16.gmra.mxu0 %v701
  %v6579 = vpop.f32.mrf.mxu0
  %v6580 = vadd.f32 0.0, %v6579
  %v6581 = vpop.f32.mrf.mxu0
  %v6582 = vadd.f32 0.0, %v6581
  %6583 = vmatmul.bf16.gmra.mxu0 %v704
  %v6584 = vpop.f32.mrf.mxu0
  %v6585 = vadd.f32 0.0, %v6584
  %v6586 = vpop.f32.mrf.mxu0
  %v6587 = vadd.f32 0.0, %v6586
  %6588 = vmatmul.bf16.gmra.mxu0 %v707
  %v6589 = vpop.f32.mrf.mxu0
  %v6590 = vadd.f32 0.0, %v6589
  %v6591 = vpop.f32.mrf.mxu0
  %v6592 = vadd.f32 0.0, %v6591
  %6593 = vmatmul.bf16.gmra.mxu0 %v710
  %v6594 = vpop.f32.mrf.mxu0
  %v6595 = vadd.f32 0.0, %v6594
  %v6596 = vpop.f32.mrf.mxu0
  %v6597 = vadd.f32 0.0, %v6596
  %6598 = vmatmul.bf16.gmra.mxu0 %v713
  %v6599 = vpop.f32.mrf.mxu0
  %v6600 = vadd.f32 0.0, %v6599
  %v6601 = vpop.f32.mrf.mxu0
  %v6602 = vadd.f32 0.0, %v6601
  %6603 = vmatmul.bf16.gmra.mxu0 %v716
  %v6604 = vpop.f32.mrf.mxu0
  %v6605 = vadd.f32 0.0, %v6604
  %v6606 = vpop.f32.mrf.mxu0
  %v6607 = vadd.f32 0.0, %v6606
  %6608 = vmatmul.bf16.gmra.mxu0 %v719
  %v6609 = vpop.f32.mrf.mxu0
  %v6610 = vadd.f32 0.0, %v6609
  %v6611 = vpop.f32.mrf.mxu0
  %v6612 = vadd.f32 0.0, %v6611
  %6613 = vmatmul.bf16.gmra.mxu0 %v722
  %v6614 = vpop.f32.mrf.mxu0
  %v6615 = vadd.f32 0.0, %v6614
  %v6616 = vpop.f32.mrf.mxu0
  %v6617 = vadd.f32 0.0, %v6616
  %6618 = vmatmul.bf16.gmra.mxu0 %v725
  %v6619 = vpop.f32.mrf.mxu0
  %v6620 = vadd.f32 0.0, %v6619
  %v6621 = vpop.f32.mrf.mxu0
  %v6622 = vadd.f32 0.0, %v6621
  %6623 = vmatmul.bf16.gmra.mxu0 %v728
  %v6624 = vpop.f32.mrf.mxu0
  %v6625 = vadd.f32 0.0, %v6624
  %v6626 = vpop.f32.mrf.mxu0
  %v6627 = vadd.f32 0.0, %v6626
  %6628 = vdwg.mxu0
  %6629 = vmatpush.bf16.msra.mxu0 0
  %6630 = vmatpush.bf16.msra.mxu0 0
  %6631 = vmatpush.bf16.msra.mxu0 0
  %6632 = vmatpush.bf16.msra.mxu0 0
  %6633 = vmatpush.bf16.msra.mxu0 %v6538
  %6634 = vmatpush.bf16.msra.mxu0 %v6525
  %6635 = vmatpush.bf16.msra.mxu0 %v6523
  %6636 = vmatpush.bf16.msra.mxu0 %v6521
  %6637 = vmatmul.bf16.gmra.mxu0 %v683
  %v6638 = vpop.f32.mrf.mxu0
  %v6639 = vadd.f32 0.0, %v6638
  %v6640 = vpop.f32.mrf.mxu0
  %v6641 = vadd.f32 0.0, %v6640
  %6642 = vmatmul.bf16.gmra.mxu0 %v686
  %v6643 = vpop.f32.mrf.mxu0
  %v6644 = vadd.f32 0.0, %v6643
  %v6645 = vpop.f32.mrf.mxu0
  %v6646 = vadd.f32 0.0, %v6645
  %6647 = vmatmul.bf16.gmra.mxu0 %v689
  %v6648 = vpop.f32.mrf.mxu0
  %v6649 = vadd.f32 0.0, %v6648
  %v6650 = vpop.f32.mrf.mxu0
  %v6651 = vadd.f32 0.0, %v6650
  %6652 = vmatmul.bf16.gmra.mxu0 %v692
  %v6653 = vpop.f32.mrf.mxu0
  %v6654 = vadd.f32 0.0, %v6653
  %v6655 = vpop.f32.mrf.mxu0
  %v6656 = vadd.f32 0.0, %v6655
  %6657 = vmatmul.bf16.gmra.mxu0 %v695
  %v6658 = vpop.f32.mrf.mxu0
  %v6659 = vadd.f32 0.0, %v6658
  %v6660 = vpop.f32.mrf.mxu0
  %v6661 = vadd.f32 0.0, %v6660
  %6662 = vmatmul.bf16.gmra.mxu0 %v698
  %v6663 = vpop.f32.mrf.mxu0
  %v6664 = vadd.f32 0.0, %v6663
  %v6665 = vpop.f32.mrf.mxu0
  %v6666 = vadd.f32 0.0, %v6665
  %6667 = vmatmul.bf16.gmra.mxu0 %v701
  %v6668 = vpop.f32.mrf.mxu0
  %v6669 = vadd.f32 0.0, %v6668
  %v6670 = vpop.f32.mrf.mxu0
  %v6671 = vadd.f32 0.0, %v6670
  %6672 = vmatmul.bf16.gmra.mxu0 %v704
  %v6673 = vpop.f32.mrf.mxu0
  %v6674 = vadd.f32 0.0, %v6673
  %v6675 = vpop.f32.mrf.mxu0
  %v6676 = vadd.f32 0.0, %v6675
  %6677 = vmatmul.bf16.gmra.mxu0 %v707
  %v6678 = vpop.f32.mrf.mxu0
  %v6679 = vadd.f32 0.0, %v6678
  %v6680 = vpop.f32.mrf.mxu0
  %v6681 = vadd.f32 0.0, %v6680
  %6682 = vmatmul.bf16.gmra.mxu0 %v710
  %v6683 = vpop.f32.mrf.mxu0
  %v6684 = vadd.f32 0.0, %v6683
  %v6685 = vpop.f32.mrf.mxu0
  %v6686 = vadd.f32 0.0, %v6685
  %6687 = vmatmul.bf16.gmra.mxu0 %v713
  %v6688 = vpop.f32.mrf.mxu0
  %v6689 = vadd.f32 0.0, %v6688
  %v6690 = vpop.f32.mrf.mxu0
  %v6691 = vadd.f32 0.0, %v6690
  %6692 = vmatmul.bf16.gmra.mxu0 %v716
  %v6693 = vpop.f32.mrf.mxu0
  %v6694 = vadd.f32 0.0, %v6693
  %v6695 = vpop.f32.mrf.mxu0
  %v6696 = vadd.f32 0.0, %v6695
  %6697 = vmatmul.bf16.gmra.mxu0 %v719
  %v6698 = vpop.f32.mrf.mxu0
  %v6699 = vadd.f32 0.0, %v6698
  %v6700 = vpop.f32.mrf.mxu0
  %v6701 = vadd.f32 0.0, %v6700
  %6702 = vmatmul.bf16.gmra.mxu0 %v722
  %v6703 = vpop.f32.mrf.mxu0
  %v6704 = vadd.f32 0.0, %v6703
  %v6705 = vpop.f32.mrf.mxu0
  %v6706 = vadd.f32 0.0, %v6705
  %6707 = vmatmul.bf16.gmra.mxu0 %v725
  %v6708 = vpop.f32.mrf.mxu0
  %v6709 = vadd.f32 0.0, %v6708
  %v6710 = vpop.f32.mrf.mxu0
  %v6711 = vadd.f32 0.0, %v6710
  %6712 = vmatmul.bf16.gmra.mxu0 %v728
  %v6713 = vpop.f32.mrf.mxu0
  %v6714 = vadd.f32 0.0, %v6713
  %v6715 = vpop.f32.mrf.mxu0
  %v6716 = vadd.f32 0.0, %v6715
  %6717 = vdwg.mxu0
  %v6718 = vpack.c.bf16 %v6430, %v6428
  %v6719 = vpack.c.bf16 %v6431, %v6429
  %v6720 = vpack.c.bf16 %v6434, %v6432
  %v6721 = vpack.c.bf16 %v6435, %v6433
  %v6722 = vpack.c.bf16 %v6438, %v6436
  %v6723 = vpack.c.bf16 %v6439, %v6437
  %v6724 = vpack.c.bf16 %v6442, %v6440
  %v6725 = vpack.c.bf16 %v6443, %v6441
  %v6726 = vpack.c.bf16 %v6446, %v6444
  %v6727 = vpack.c.bf16 %v6447, %v6445
  %v6728 = vpack.c.bf16 %v6450, %v6448
  %v6729 = vpack.c.bf16 %v6451, %v6449
  %v6730 = vpack.c.bf16 %v6454, %v6452
  %v6731 = vpack.c.bf16 %v6455, %v6453
  %v6732 = vpack.c.bf16 %v6458, %v6456
  %v6733 = vpack.c.bf16 %v6459, %v6457
  %v6734 = vpack.c.bf16 %v6462, %v6460
  %v6735 = vpack.c.bf16 %v6463, %v6461
  %v6736 = vpack.c.bf16 %v6466, %v6464
  %v6737 = vpack.c.bf16 %v6467, %v6465
  %v6738 = vpack.c.bf16 %v6470, %v6468
  %v6739 = vpack.c.bf16 %v6471, %v6469
  %v6740 = vpack.c.bf16 %v6474, %v6472
  %v6741 = vpack.c.bf16 %v6475, %v6473
  %v6742 = vpack.c.bf16 %v6478, %v6476
  %v6743 = vpack.c.bf16 %v6479, %v6477
  %v6744 = vpack.c.bf16 %v6482, %v6480
  %v6745 = vpack.c.bf16 %v6483, %v6481
  %v6746 = vpack.c.bf16 %v6486, %v6484
  %v6747 = vpack.c.bf16 %v6487, %v6485
  %v6748 = vpack.c.bf16 %v6490, %v6488
  %v6749 = vpack.c.bf16 %v6491, %v6489
  %s6750 = scalar_lea.vmem %s4, 1536
  %v6751 = vld [vmem:[%s6750] sm:$0xff]
  %v6752 = vld [vmem:[%s6750 + $0x8] sm:$0xff]
  %v6753 = vld [vmem:[%s6750 + $0x10] sm:$0xff]
  %v6754 = vld [vmem:[%s6750 + $0x18] sm:$0xff]
  %v6755 = vld [vmem:[%s6750 + $0x20] sm:$0xff]
  %v6756 = vld [vmem:[%s6750 + $0x28] sm:$0xff]
  %v6757 = vld [vmem:[%s6750 + $0x30] sm:$0xff]
  %v6758 = vld [vmem:[%s6750 + $0x38] sm:$0xff]
  %v6759 = vld [vmem:[%s6750 + $0x40] sm:$0xff]
  %v6760 = vld [vmem:[%s6750 + $0x48] sm:$0xff]
  %v6761 = vld [vmem:[%s6750 + $0x50] sm:$0xff]
  %v6762 = vld [vmem:[%s6750 + $0x58] sm:$0xff]
  %v6763 = vld [vmem:[%s6750 + $0x60] sm:$0xff]
  %v6764 = vld [vmem:[%s6750 + $0x68] sm:$0xff]
  %v6765 = vld [vmem:[%s6750 + $0x70] sm:$0xff]
  %v6766 = vld [vmem:[%s6750 + $0x78] sm:$0xff]
  %v6767 = vld [vmem:[%s6750 + $0x80] sm:$0xff]
  %v6768 = vld [vmem:[%s6750 + $0x88] sm:$0xff]
  %v6769 = vld [vmem:[%s6750 + $0x90] sm:$0xff]
  %v6770 = vld [vmem:[%s6750 + $0x98] sm:$0xff]
  %v6771 = vld [vmem:[%s6750 + $0xa0] sm:$0xff]
  %v6772 = vld [vmem:[%s6750 + $0xa8] sm:$0xff]
  %v6773 = vld [vmem:[%s6750 + $0xb0] sm:$0xff]
  %v6774 = vld [vmem:[%s6750 + $0xb8] sm:$0xff]
  %v6775 = vld [vmem:[%s6750 + $0xc0] sm:$0xff]
  %v6776 = vld [vmem:[%s6750 + $0xc8] sm:$0xff]
  %v6777 = vld [vmem:[%s6750 + $0xd0] sm:$0xff]
  %v6778 = vld [vmem:[%s6750 + $0xd8] sm:$0xff]
  %v6779 = vld [vmem:[%s6750 + $0xe0] sm:$0xff]
  %v6780 = vld [vmem:[%s6750 + $0xe8] sm:$0xff]
  %v6781 = vld [vmem:[%s6750 + $0xf0] sm:$0xff]
  %v6782 = vld [vmem:[%s6750 + $0xf8] sm:$0xff]
  %v6815 = vunpack.c.l.b16 %v6751
  %v6816 = vunpack.c.h.b16 %v6751
  %v6817 = vunpack.c.l.b16 %v6752
  %v6818 = vunpack.c.h.b16 %v6752
  %v6819 = vunpack.c.l.b16 %v6753
  %v6820 = vunpack.c.h.b16 %v6753
  %v6821 = vunpack.c.l.b16 %v6754
  %v6822 = vunpack.c.h.b16 %v6754
  %v6823 = vunpack.c.l.b16 %v6755
  %v6824 = vunpack.c.h.b16 %v6755
  %v6825 = vunpack.c.l.b16 %v6756
  %v6826 = vunpack.c.h.b16 %v6756
  %v6827 = vunpack.c.l.b16 %v6757
  %v6828 = vunpack.c.h.b16 %v6757
  %v6829 = vunpack.c.l.b16 %v6758
  %v6830 = vunpack.c.h.b16 %v6758
  %v6831 = vunpack.c.l.b16 %v6759
  %v6832 = vunpack.c.h.b16 %v6759
  %v6833 = vunpack.c.l.b16 %v6760
  %v6834 = vunpack.c.h.b16 %v6760
  %v6835 = vunpack.c.l.b16 %v6761
  %v6836 = vunpack.c.h.b16 %v6761
  %v6837 = vunpack.c.l.b16 %v6762
  %v6838 = vunpack.c.h.b16 %v6762
  %v6839 = vunpack.c.l.b16 %v6763
  %v6840 = vunpack.c.h.b16 %v6763
  %v6841 = vunpack.c.l.b16 %v6764
  %v6842 = vunpack.c.h.b16 %v6764
  %v6843 = vunpack.c.l.b16 %v6765
  %v6844 = vunpack.c.h.b16 %v6765
  %v6845 = vunpack.c.l.b16 %v6766
  %v6846 = vunpack.c.h.b16 %v6766
  %v6847 = vunpack.c.l.b16 %v6767
  %v6848 = vunpack.c.h.b16 %v6767
  %v6849 = vunpack.c.l.b16 %v6768
  %v6850 = vunpack.c.h.b16 %v6768
  %v6851 = vunpack.c.l.b16 %v6769
  %v6852 = vunpack.c.h.b16 %v6769
  %v6853 = vunpack.c.l.b16 %v6770
  %v6854 = vunpack.c.h.b16 %v6770
  %v6855 = vunpack.c.l.b16 %v6771
  %v6856 = vunpack.c.h.b16 %v6771
  %v6857 = vunpack.c.l.b16 %v6772
  %v6858 = vunpack.c.h.b16 %v6772
  %v6859 = vunpack.c.l.b16 %v6773
  %v6860 = vunpack.c.h.b16 %v6773
  %v6861 = vunpack.c.l.b16 %v6774
  %v6862 = vunpack.c.h.b16 %v6774
  %v6863 = vunpack.c.l.b16 %v6775
  %v6864 = vunpack.c.h.b16 %v6775
  %v6865 = vunpack.c.l.b16 %v6776
  %v6866 = vunpack.c.h.b16 %v6776
  %v6867 = vunpack.c.l.b16 %v6777
  %v6868 = vunpack.c.h.b16 %v6777
  %v6869 = vunpack.c.l.b16 %v6778
  %v6870 = vunpack.c.h.b16 %v6778
  %v6871 = vunpack.c.l.b16 %v6779
  %v6872 = vunpack.c.h.b16 %v6779
  %v6873 = vunpack.c.l.b16 %v6780
  %v6874 = vunpack.c.h.b16 %v6780
  %v6875 = vunpack.c.l.b16 %v6781
  %v6876 = vunpack.c.h.b16 %v6781
  %v6877 = vunpack.c.l.b16 %v6782
  %v6878 = vunpack.c.h.b16 %v6782
  %v6879 = vpack.c.b16 %v6817, %v6815
  %v6880 = vpack.c.b16 %v6818, %v6816
  %v6881 = vpack.c.b16 %v6821, %v6819
  %v6882 = vpack.c.b16 %v6822, %v6820
  %v6883 = vpack.c.b16 %v6825, %v6823
  %v6884 = vpack.c.b16 %v6826, %v6824
  %v6885 = vpack.c.b16 %v6829, %v6827
  %v6886 = vpack.c.b16 %v6830, %v6828
  %v6887 = vpack.c.b16 %v6833, %v6831
  %v6888 = vpack.c.b16 %v6834, %v6832
  %v6889 = vpack.c.b16 %v6837, %v6835
  %v6890 = vpack.c.b16 %v6838, %v6836
  %v6891 = vpack.c.b16 %v6841, %v6839
  %v6892 = vpack.c.b16 %v6842, %v6840
  %v6893 = vpack.c.b16 %v6845, %v6843
  %v6894 = vpack.c.b16 %v6846, %v6844
  %v6895 = vpack.c.b16 %v6849, %v6847
  %v6896 = vpack.c.b16 %v6850, %v6848
  %v6897 = vpack.c.b16 %v6853, %v6851
  %v6898 = vpack.c.b16 %v6854, %v6852
  %v6899 = vpack.c.b16 %v6857, %v6855
  %v6900 = vpack.c.b16 %v6858, %v6856
  %v6901 = vpack.c.b16 %v6861, %v6859
  %v6902 = vpack.c.b16 %v6862, %v6860
  %v6903 = vpack.c.b16 %v6865, %v6863
  %v6904 = vpack.c.b16 %v6866, %v6864
  %v6905 = vpack.c.b16 %v6869, %v6867
  %v6906 = vpack.c.b16 %v6870, %v6868
  %v6907 = vpack.c.b16 %v6873, %v6871
  %v6908 = vpack.c.b16 %v6874, %v6872
  %v6909 = vpack.c.b16 %v6877, %v6875
  %v6910 = vpack.c.b16 %v6878, %v6876
  %6943 = vmatpush.bf16.msra.mxu0 %v6893
  %6944 = vmatpush.bf16.msra.mxu0 %v6891
  %6945 = vmatpush.bf16.msra.mxu0 %v6889
  %6946 = vmatpush.bf16.msra.mxu0 %v6887
  %6947 = vmatpush.bf16.msra.mxu0 %v6885
  %6948 = vmatpush.bf16.msra.mxu0 %v6883
  %6949 = vmatpush.bf16.msra.mxu0 %v6881
  %6950 = vmatpush.bf16.msra.mxu0 %v6879
  %6951 = vmatmul.bf16.gmra.mxu0 %v6718
  %v6952 = vpop.f32.mrf.mxu0
  %v6953 = vadd.f32 %v6550, %v6952
  %v6954 = vpop.f32.mrf.mxu0
  %v6955 = vadd.f32 %v6552, %v6954
  %6956 = vmatmul.bf16.gmra.mxu0 %v6720
  %v6957 = vpop.f32.mrf.mxu0
  %v6958 = vadd.f32 %v6555, %v6957
  %v6959 = vpop.f32.mrf.mxu0
  %v6960 = vadd.f32 %v6557, %v6959
  %6961 = vmatmul.bf16.gmra.mxu0 %v6722
  %v6962 = vpop.f32.mrf.mxu0
  %v6963 = vadd.f32 %v6560, %v6962
  %v6964 = vpop.f32.mrf.mxu0
  %v6965 = vadd.f32 %v6562, %v6964
  %6966 = vmatmul.bf16.gmra.mxu0 %v6724
  %v6967 = vpop.f32.mrf.mxu0
  %v6968 = vadd.f32 %v6565, %v6967
  %v6969 = vpop.f32.mrf.mxu0
  %v6970 = vadd.f32 %v6567, %v6969
  %6971 = vmatmul.bf16.gmra.mxu0 %v6726
  %v6972 = vpop.f32.mrf.mxu0
  %v6973 = vadd.f32 %v6570, %v6972
  %v6974 = vpop.f32.mrf.mxu0
  %v6975 = vadd.f32 %v6572, %v6974
  %6976 = vmatmul.bf16.gmra.mxu0 %v6728
  %v6977 = vpop.f32.mrf.mxu0
  %v6978 = vadd.f32 %v6575, %v6977
  %v6979 = vpop.f32.mrf.mxu0
  %v6980 = vadd.f32 %v6577, %v6979
  %6981 = vmatmul.bf16.gmra.mxu0 %v6730
  %v6982 = vpop.f32.mrf.mxu0
  %v6983 = vadd.f32 %v6580, %v6982
  %v6984 = vpop.f32.mrf.mxu0
  %v6985 = vadd.f32 %v6582, %v6984
  %6986 = vmatmul.bf16.gmra.mxu0 %v6732
  %v6987 = vpop.f32.mrf.mxu0
  %v6988 = vadd.f32 %v6585, %v6987
  %v6989 = vpop.f32.mrf.mxu0
  %v6990 = vadd.f32 %v6587, %v6989
  %6991 = vmatmul.bf16.gmra.mxu0 %v6734
  %v6992 = vpop.f32.mrf.mxu0
  %v6993 = vadd.f32 %v6590, %v6992
  %v6994 = vpop.f32.mrf.mxu0
  %v6995 = vadd.f32 %v6592, %v6994
  %6996 = vmatmul.bf16.gmra.mxu0 %v6736
  %v6997 = vpop.f32.mrf.mxu0
  %v6998 = vadd.f32 %v6595, %v6997
  %v6999 = vpop.f32.mrf.mxu0
  %v7000 = vadd.f32 %v6597, %v6999
  %7001 = vmatmul.bf16.gmra.mxu0 %v6738
  %v7002 = vpop.f32.mrf.mxu0
  %v7003 = vadd.f32 %v6600, %v7002
  %v7004 = vpop.f32.mrf.mxu0
  %v7005 = vadd.f32 %v6602, %v7004
  %7006 = vmatmul.bf16.gmra.mxu0 %v6740
  %v7007 = vpop.f32.mrf.mxu0
  %v7008 = vadd.f32 %v6605, %v7007
  %v7009 = vpop.f32.mrf.mxu0
  %v7010 = vadd.f32 %v6607, %v7009
  %7011 = vmatmul.bf16.gmra.mxu0 %v6742
  %v7012 = vpop.f32.mrf.mxu0
  %v7013 = vadd.f32 %v6610, %v7012
  %v7014 = vpop.f32.mrf.mxu0
  %v7015 = vadd.f32 %v6612, %v7014
  %7016 = vmatmul.bf16.gmra.mxu0 %v6744
  %v7017 = vpop.f32.mrf.mxu0
  %v7018 = vadd.f32 %v6615, %v7017
  %v7019 = vpop.f32.mrf.mxu0
  %v7020 = vadd.f32 %v6617, %v7019
  %7021 = vmatmul.bf16.gmra.mxu0 %v6746
  %v7022 = vpop.f32.mrf.mxu0
  %v7023 = vadd.f32 %v6620, %v7022
  %v7024 = vpop.f32.mrf.mxu0
  %v7025 = vadd.f32 %v6622, %v7024
  %7026 = vmatmul.bf16.gmra.mxu0 %v6748
  %v7027 = vpop.f32.mrf.mxu0
  %v7028 = vadd.f32 %v6625, %v7027
  %v7029 = vpop.f32.mrf.mxu0
  %v7030 = vadd.f32 %v6627, %v7029
  %7031 = vdwg.mxu0
  %7032 = vmatpush.bf16.msra.mxu0 %v6909
  %7033 = vmatpush.bf16.msra.mxu0 %v6907
  %7034 = vmatpush.bf16.msra.mxu0 %v6905
  %7035 = vmatpush.bf16.msra.mxu0 %v6903
  %7036 = vmatpush.bf16.msra.mxu0 %v6901
  %7037 = vmatpush.bf16.msra.mxu0 %v6899
  %7038 = vmatpush.bf16.msra.mxu0 %v6897
  %7039 = vmatpush.bf16.msra.mxu0 %v6895
  %7040 = vmatmul.bf16.gmra.mxu0 %v6719
  %v7041 = vpop.f32.mrf.mxu0
  %v7042 = vadd.f32 %v6953, %v7041
  %v7043 = vpop.f32.mrf.mxu0
  %v7044 = vadd.f32 %v6955, %v7043
  %7045 = vmatmul.bf16.gmra.mxu0 %v6721
  %v7046 = vpop.f32.mrf.mxu0
  %v7047 = vadd.f32 %v6958, %v7046
  %v7048 = vpop.f32.mrf.mxu0
  %v7049 = vadd.f32 %v6960, %v7048
  %7050 = vmatmul.bf16.gmra.mxu0 %v6723
  %v7051 = vpop.f32.mrf.mxu0
  %v7052 = vadd.f32 %v6963, %v7051
  %v7053 = vpop.f32.mrf.mxu0
  %v7054 = vadd.f32 %v6965, %v7053
  %7055 = vmatmul.bf16.gmra.mxu0 %v6725
  %v7056 = vpop.f32.mrf.mxu0
  %v7057 = vadd.f32 %v6968, %v7056
  %v7058 = vpop.f32.mrf.mxu0
  %v7059 = vadd.f32 %v6970, %v7058
  %7060 = vmatmul.bf16.gmra.mxu0 %v6727
  %v7061 = vpop.f32.mrf.mxu0
  %v7062 = vadd.f32 %v6973, %v7061
  %v7063 = vpop.f32.mrf.mxu0
  %v7064 = vadd.f32 %v6975, %v7063
  %7065 = vmatmul.bf16.gmra.mxu0 %v6729
  %v7066 = vpop.f32.mrf.mxu0
  %v7067 = vadd.f32 %v6978, %v7066
  %v7068 = vpop.f32.mrf.mxu0
  %v7069 = vadd.f32 %v6980, %v7068
  %7070 = vmatmul.bf16.gmra.mxu0 %v6731
  %v7071 = vpop.f32.mrf.mxu0
  %v7072 = vadd.f32 %v6983, %v7071
  %v7073 = vpop.f32.mrf.mxu0
  %v7074 = vadd.f32 %v6985, %v7073
  %7075 = vmatmul.bf16.gmra.mxu0 %v6733
  %v7076 = vpop.f32.mrf.mxu0
  %v7077 = vadd.f32 %v6988, %v7076
  %v7078 = vpop.f32.mrf.mxu0
  %v7079 = vadd.f32 %v6990, %v7078
  %7080 = vmatmul.bf16.gmra.mxu0 %v6735
  %v7081 = vpop.f32.mrf.mxu0
  %v7082 = vadd.f32 %v6993, %v7081
  %v7083 = vpop.f32.mrf.mxu0
  %v7084 = vadd.f32 %v6995, %v7083
  %7085 = vmatmul.bf16.gmra.mxu0 %v6737
  %v7086 = vpop.f32.mrf.mxu0
  %v7087 = vadd.f32 %v6998, %v7086
  %v7088 = vpop.f32.mrf.mxu0
  %v7089 = vadd.f32 %v7000, %v7088
  %7090 = vmatmul.bf16.gmra.mxu0 %v6739
  %v7091 = vpop.f32.mrf.mxu0
  %v7092 = vadd.f32 %v7003, %v7091
  %v7093 = vpop.f32.mrf.mxu0
  %v7094 = vadd.f32 %v7005, %v7093
  %7095 = vmatmul.bf16.gmra.mxu0 %v6741
  %v7096 = vpop.f32.mrf.mxu0
  %v7097 = vadd.f32 %v7008, %v7096
  %v7098 = vpop.f32.mrf.mxu0
  %v7099 = vadd.f32 %v7010, %v7098
  %7100 = vmatmul.bf16.gmra.mxu0 %v6743
  %v7101 = vpop.f32.mrf.mxu0
  %v7102 = vadd.f32 %v7013, %v7101
  %v7103 = vpop.f32.mrf.mxu0
  %v7104 = vadd.f32 %v7015, %v7103
  %7105 = vmatmul.bf16.gmra.mxu0 %v6745
  %v7106 = vpop.f32.mrf.mxu0
  %v7107 = vadd.f32 %v7018, %v7106
  %v7108 = vpop.f32.mrf.mxu0
  %v7109 = vadd.f32 %v7020, %v7108
  %7110 = vmatmul.bf16.gmra.mxu0 %v6747
  %v7111 = vpop.f32.mrf.mxu0
  %v7112 = vadd.f32 %v7023, %v7111
  %v7113 = vpop.f32.mrf.mxu0
  %v7114 = vadd.f32 %v7025, %v7113
  %7115 = vmatmul.bf16.gmra.mxu0 %v6749
  %v7116 = vpop.f32.mrf.mxu0
  %v7117 = vadd.f32 %v7028, %v7116
  %v7118 = vpop.f32.mrf.mxu0
  %v7119 = vadd.f32 %v7030, %v7118
  %7120 = vdwg.mxu0
  %7121 = vmatpush.bf16.msra.mxu0 %v6894
  %7122 = vmatpush.bf16.msra.mxu0 %v6892
  %7123 = vmatpush.bf16.msra.mxu0 %v6890
  %7124 = vmatpush.bf16.msra.mxu0 %v6888
  %7125 = vmatpush.bf16.msra.mxu0 %v6886
  %7126 = vmatpush.bf16.msra.mxu0 %v6884
  %7127 = vmatpush.bf16.msra.mxu0 %v6882
  %7128 = vmatpush.bf16.msra.mxu0 %v6880
  %7129 = vmatmul.bf16.gmra.mxu0 %v6718
  %v7130 = vpop.f32.mrf.mxu0
  %v7131 = vadd.f32 %v6639, %v7130
  %v7132 = vpop.f32.mrf.mxu0
  %v7133 = vadd.f32 %v6641, %v7132
  %7134 = vmatmul.bf16.gmra.mxu0 %v6720
  %v7135 = vpop.f32.mrf.mxu0
  %v7136 = vadd.f32 %v6644, %v7135
  %v7137 = vpop.f32.mrf.mxu0
  %v7138 = vadd.f32 %v6646, %v7137
  %7139 = vmatmul.bf16.gmra.mxu0 %v6722
  %v7140 = vpop.f32.mrf.mxu0
  %v7141 = vadd.f32 %v6649, %v7140
  %v7142 = vpop.f32.mrf.mxu0
  %v7143 = vadd.f32 %v6651, %v7142
  %7144 = vmatmul.bf16.gmra.mxu0 %v6724
  %v7145 = vpop.f32.mrf.mxu0
  %v7146 = vadd.f32 %v6654, %v7145
  %v7147 = vpop.f32.mrf.mxu0
  %v7148 = vadd.f32 %v6656, %v7147
  %7149 = vmatmul.bf16.gmra.mxu0 %v6726
  %v7150 = vpop.f32.mrf.mxu0
  %v7151 = vadd.f32 %v6659, %v7150
  %v7152 = vpop.f32.mrf.mxu0
  %v7153 = vadd.f32 %v6661, %v7152
  %7154 = vmatmul.bf16.gmra.mxu0 %v6728
  %v7155 = vpop.f32.mrf.mxu0
  %v7156 = vadd.f32 %v6664, %v7155
  %v7157 = vpop.f32.mrf.mxu0
  %v7158 = vadd.f32 %v6666, %v7157
  %7159 = vmatmul.bf16.gmra.mxu0 %v6730
  %v7160 = vpop.f32.mrf.mxu0
  %v7161 = vadd.f32 %v6669, %v7160
  %v7162 = vpop.f32.mrf.mxu0
  %v7163 = vadd.f32 %v6671, %v7162
  %7164 = vmatmul.bf16.gmra.mxu0 %v6732
  %v7165 = vpop.f32.mrf.mxu0
  %v7166 = vadd.f32 %v6674, %v7165
  %v7167 = vpop.f32.mrf.mxu0
  %v7168 = vadd.f32 %v6676, %v7167
  %7169 = vmatmul.bf16.gmra.mxu0 %v6734
  %v7170 = vpop.f32.mrf.mxu0
  %v7171 = vadd.f32 %v6679, %v7170
  %v7172 = vpop.f32.mrf.mxu0
  %v7173 = vadd.f32 %v6681, %v7172
  %7174 = vmatmul.bf16.gmra.mxu0 %v6736
  %v7175 = vpop.f32.mrf.mxu0
  %v7176 = vadd.f32 %v6684, %v7175
  %v7177 = vpop.f32.mrf.mxu0
  %v7178 = vadd.f32 %v6686, %v7177
  %7179 = vmatmul.bf16.gmra.mxu0 %v6738
  %v7180 = vpop.f32.mrf.mxu0
  %v7181 = vadd.f32 %v6689, %v7180
  %v7182 = vpop.f32.mrf.mxu0
  %v7183 = vadd.f32 %v6691, %v7182
  %7184 = vmatmul.bf16.gmra.mxu0 %v6740
  %v7185 = vpop.f32.mrf.mxu0
  %v7186 = vadd.f32 %v6694, %v7185
  %v7187 = vpop.f32.mrf.mxu0
  %v7188 = vadd.f32 %v6696, %v7187
  %7189 = vmatmul.bf16.gmra.mxu0 %v6742
  %v7190 = vpop.f32.mrf.mxu0
  %v7191 = vadd.f32 %v6699, %v7190
  %v7192 = vpop.f32.mrf.mxu0
  %v7193 = vadd.f32 %v6701, %v7192
  %7194 = vmatmul.bf16.gmra.mxu0 %v6744
  %v7195 = vpop.f32.mrf.mxu0
  %v7196 = vadd.f32 %v6704, %v7195
  %v7197 = vpop.f32.mrf.mxu0
  %v7198 = vadd.f32 %v6706, %v7197
  %7199 = vmatmul.bf16.gmra.mxu0 %v6746
  %v7200 = vpop.f32.mrf.mxu0
  %v7201 = vadd.f32 %v6709, %v7200
  %v7202 = vpop.f32.mrf.mxu0
  %v7203 = vadd.f32 %v6711, %v7202
  %7204 = vmatmul.bf16.gmra.mxu0 %v6748
  %v7205 = vpop.f32.mrf.mxu0
  %v7206 = vadd.f32 %v6714, %v7205
  %v7207 = vpop.f32.mrf.mxu0
  %v7208 = vadd.f32 %v6716, %v7207
  %7209 = vdwg.mxu0
  %7210 = vmatpush.bf16.msra.mxu0 %v6910
  %7211 = vmatpush.bf16.msra.mxu0 %v6908
  %7212 = vmatpush.bf16.msra.mxu0 %v6906
  %7213 = vmatpush.bf16.msra.mxu0 %v6904
  %7214 = vmatpush.bf16.msra.mxu0 %v6902
  %7215 = vmatpush.bf16.msra.mxu0 %v6900
  %7216 = vmatpush.bf16.msra.mxu0 %v6898
  %7217 = vmatpush.bf16.msra.mxu0 %v6896
  %7218 = vmatmul.bf16.gmra.mxu0 %v6719
  %v7219 = vpop.f32.mrf.mxu0
  %v7220 = vadd.f32 %v7131, %v7219
  %v7221 = vpop.f32.mrf.mxu0
  %v7222 = vadd.f32 %v7133, %v7221
  %7223 = vmatmul.bf16.gmra.mxu0 %v6721
  %v7224 = vpop.f32.mrf.mxu0
  %v7225 = vadd.f32 %v7136, %v7224
  %v7226 = vpop.f32.mrf.mxu0
  %v7227 = vadd.f32 %v7138, %v7226
  %7228 = vmatmul.bf16.gmra.mxu0 %v6723
  %v7229 = vpop.f32.mrf.mxu0
  %v7230 = vadd.f32 %v7141, %v7229
  %v7231 = vpop.f32.mrf.mxu0
  %v7232 = vadd.f32 %v7143, %v7231
  %7233 = vmatmul.bf16.gmra.mxu0 %v6725
  %v7234 = vpop.f32.mrf.mxu0
  %v7235 = vadd.f32 %v7146, %v7234
  %v7236 = vpop.f32.mrf.mxu0
  %v7237 = vadd.f32 %v7148, %v7236
  %7238 = vmatmul.bf16.gmra.mxu0 %v6727
  %v7239 = vpop.f32.mrf.mxu0
  %v7240 = vadd.f32 %v7151, %v7239
  %v7241 = vpop.f32.mrf.mxu0
  %v7242 = vadd.f32 %v7153, %v7241
  %7243 = vmatmul.bf16.gmra.mxu0 %v6729
  %v7244 = vpop.f32.mrf.mxu0
  %v7245 = vadd.f32 %v7156, %v7244
  %v7246 = vpop.f32.mrf.mxu0
  %v7247 = vadd.f32 %v7158, %v7246
  %7248 = vmatmul.bf16.gmra.mxu0 %v6731
  %v7249 = vpop.f32.mrf.mxu0
  %v7250 = vadd.f32 %v7161, %v7249
  %v7251 = vpop.f32.mrf.mxu0
  %v7252 = vadd.f32 %v7163, %v7251
  %7253 = vmatmul.bf16.gmra.mxu0 %v6733
  %v7254 = vpop.f32.mrf.mxu0
  %v7255 = vadd.f32 %v7166, %v7254
  %v7256 = vpop.f32.mrf.mxu0
  %v7257 = vadd.f32 %v7168, %v7256
  %7258 = vmatmul.bf16.gmra.mxu0 %v6735
  %v7259 = vpop.f32.mrf.mxu0
  %v7260 = vadd.f32 %v7171, %v7259
  %v7261 = vpop.f32.mrf.mxu0
  %v7262 = vadd.f32 %v7173, %v7261
  %7263 = vmatmul.bf16.gmra.mxu0 %v6737
  %v7264 = vpop.f32.mrf.mxu0
  %v7265 = vadd.f32 %v7176, %v7264
  %v7266 = vpop.f32.mrf.mxu0
  %v7267 = vadd.f32 %v7178, %v7266
  %7268 = vmatmul.bf16.gmra.mxu0 %v6739
  %v7269 = vpop.f32.mrf.mxu0
  %v7270 = vadd.f32 %v7181, %v7269
  %v7271 = vpop.f32.mrf.mxu0
  %v7272 = vadd.f32 %v7183, %v7271
  %7273 = vmatmul.bf16.gmra.mxu0 %v6741
  %v7274 = vpop.f32.mrf.mxu0
  %v7275 = vadd.f32 %v7186, %v7274
  %v7276 = vpop.f32.mrf.mxu0
  %v7277 = vadd.f32 %v7188, %v7276
  %7278 = vmatmul.bf16.gmra.mxu0 %v6743
  %v7279 = vpop.f32.mrf.mxu0
  %v7280 = vadd.f32 %v7191, %v7279
  %v7281 = vpop.f32.mrf.mxu0
  %v7282 = vadd.f32 %v7193, %v7281
  %7283 = vmatmul.bf16.gmra.mxu0 %v6745
  %v7284 = vpop.f32.mrf.mxu0
  %v7285 = vadd.f32 %v7196, %v7284
  %v7286 = vpop.f32.mrf.mxu0
  %v7287 = vadd.f32 %v7198, %v7286
  %7288 = vmatmul.bf16.gmra.mxu0 %v6747
  %v7289 = vpop.f32.mrf.mxu0
  %v7290 = vadd.f32 %v7201, %v7289
  %v7291 = vpop.f32.mrf.mxu0
  %v7292 = vadd.f32 %v7203, %v7291
  %7293 = vmatmul.bf16.gmra.mxu0 %v6749
  %v7294 = vpop.f32.mrf.mxu0
  %v7295 = vadd.f32 %v7206, %v7294
  %v7296 = vpop.f32.mrf.mxu0
  %v7297 = vadd.f32 %v7208, %v7296
  %7298 = vdwg.mxu0
  %v7299 = vmul.f32 %v7042, 0.2
  %v7300 = vmul.f32 %v7220, 0.2
  %v7301 = vmul.f32 %v7044, 0.2
  %v7302 = vmul.f32 %v7222, 0.2
  %v7303 = vmul.f32 %v7047, 0.2
  %v7304 = vmul.f32 %v7225, 0.2
  %v7305 = vmul.f32 %v7049, 0.2
  %v7306 = vmul.f32 %v7227, 0.2
  %v7307 = vmul.f32 %v7052, 0.2
  %v7308 = vmul.f32 %v7230, 0.2
  %v7309 = vmul.f32 %v7054, 0.2
  %v7310 = vmul.f32 %v7232, 0.2
  %v7311 = vmul.f32 %v7057, 0.2
  %v7312 = vmul.f32 %v7235, 0.2
  %v7313 = vmul.f32 %v7059, 0.2
  %v7314 = vmul.f32 %v7237, 0.2
  %v7315 = vmul.f32 %v7062, 0.2
  %v7316 = vmul.f32 %v7240, 0.2
  %v7317 = vmul.f32 %v7064, 0.2
  %v7318 = vmul.f32 %v7242, 0.2
  %v7319 = vmul.f32 %v7067, 0.2
  %v7320 = vmul.f32 %v7245, 0.2
  %v7321 = vmul.f32 %v7069, 0.2
  %v7322 = vmul.f32 %v7247, 0.2
  %v7323 = vmul.f32 %v7072, 0.2
  %v7324 = vmul.f32 %v7250, 0.2
  %v7325 = vmul.f32 %v7074, 0.2
  %v7326 = vmul.f32 %v7252, 0.2
  %v7327 = vmul.f32 %v7077, 0.2
  %v7328 = vmul.f32 %v7255, 0.2
  %v7329 = vmul.f32 %v7079, 0.2
  %v7330 = vmul.f32 %v7257, 0.2
  %v7331 = vmul.f32 %v7082, 0.2
  %v7332 = vmul.f32 %v7260, 0.2
  %v7333 = vmul.f32 %v7084, 0.2
  %v7334 = vmul.f32 %v7262, 0.2
  %v7335 = vmul.f32 %v7087, 0.2
  %v7336 = vmul.f32 %v7265, 0.2
  %v7337 = vmul.f32 %v7089, 0.2
  %v7338 = vmul.f32 %v7267, 0.2
  %v7339 = vmul.f32 %v7092, 0.2
  %v7340 = vmul.f32 %v7270, 0.2
  %v7341 = vmul.f32 %v7094, 0.2
  %v7342 = vmul.f32 %v7272, 0.2
  %v7343 = vmul.f32 %v7097, 0.2
  %v7344 = vmul.f32 %v7275, 0.2
  %v7345 = vmul.f32 %v7099, 0.2
  %v7346 = vmul.f32 %v7277, 0.2
  %v7347 = vmul.f32 %v7102, 0.2
  %v7348 = vmul.f32 %v7280, 0.2
  %v7349 = vmul.f32 %v7104, 0.2
  %v7350 = vmul.f32 %v7282, 0.2
  %v7351 = vmul.f32 %v7107, 0.2
  %v7352 = vmul.f32 %v7285, 0.2
  %v7353 = vmul.f32 %v7109, 0.2
  %v7354 = vmul.f32 %v7287, 0.2
  %v7355 = vmul.f32 %v7112, 0.2
  %v7356 = vmul.f32 %v7290, 0.2
  %v7357 = vmul.f32 %v7114, 0.2
  %v7358 = vmul.f32 %v7292, 0.2
  %v7359 = vmul.f32 %v7117, 0.2
  %v7360 = vmul.f32 %v7295, 0.2
  %v7361 = vmul.f32 %v7119, 0.2
  %v7362 = vmul.f32 %v7297, 0.2
  %v7363 = vmax.f32 %v7042, %v7299
  %v7364 = vmax.f32 %v7220, %v7300
  %v7365 = vmax.f32 %v7044, %v7301
  %v7366 = vmax.f32 %v7222, %v7302
  %v7367 = vmax.f32 %v7047, %v7303
  %v7368 = vmax.f32 %v7225, %v7304
  %v7369 = vmax.f32 %v7049, %v7305
  %v7370 = vmax.f32 %v7227, %v7306
  %v7371 = vmax.f32 %v7052, %v7307
  %v7372 = vmax.f32 %v7230, %v7308
  %v7373 = vmax.f32 %v7054, %v7309
  %v7374 = vmax.f32 %v7232, %v7310
  %v7375 = vmax.f32 %v7057, %v7311
  %v7376 = vmax.f32 %v7235, %v7312
  %v7377 = vmax.f32 %v7059, %v7313
  %v7378 = vmax.f32 %v7237, %v7314
  %v7379 = vmax.f32 %v7062, %v7315
  %v7380 = vmax.f32 %v7240, %v7316
  %v7381 = vmax.f32 %v7064, %v7317
  %v7382 = vmax.f32 %v7242, %v7318
  %v7383 = vmax.f32 %v7067, %v7319
  %v7384 = vmax.f32 %v7245, %v7320
  %v7385 = vmax.f32 %v7069, %v7321
  %v7386 = vmax.f32 %v7247, %v7322
  %v7387 = vmax.f32 %v7072, %v7323
  %v7388 = vmax.f32 %v7250, %v7324
  %v7389 = vmax.f32 %v7074, %v7325
  %v7390 = vmax.f32 %v7252, %v7326
  %v7391 = vmax.f32 %v7077, %v7327
  %v7392 = vmax.f32 %v7255, %v7328
  %v7393 = vmax.f32 %v7079, %v7329
  %v7394 = vmax.f32 %v7257, %v7330
  %v7395 = vmax.f32 %v7082, %v7331
  %v7396 = vmax.f32 %v7260, %v7332
  %v7397 = vmax.f32 %v7084, %v7333
  %v7398 = vmax.f32 %v7262, %v7334
  %v7399 = vmax.f32 %v7087, %v7335
  %v7400 = vmax.f32 %v7265, %v7336
  %v7401 = vmax.f32 %v7089, %v7337
  %v7402 = vmax.f32 %v7267, %v7338
  %v7403 = vmax.f32 %v7092, %v7339
  %v7404 = vmax.f32 %v7270, %v7340
  %v7405 = vmax.f32 %v7094, %v7341
  %v7406 = vmax.f32 %v7272, %v7342
  %v7407 = vmax.f32 %v7097, %v7343
  %v7408 = vmax.f32 %v7275, %v7344
  %v7409 = vmax.f32 %v7099, %v7345
  %v7410 = vmax.f32 %v7277, %v7346
  %v7411 = vmax.f32 %v7102, %v7347
  %v7412 = vmax.f32 %v7280, %v7348
  %v7413 = vmax.f32 %v7104, %v7349
  %v7414 = vmax.f32 %v7282, %v7350
  %v7415 = vmax.f32 %v7107, %v7351
  %v7416 = vmax.f32 %v7285, %v7352
  %v7417 = vmax.f32 %v7109, %v7353
  %v7418 = vmax.f32 %v7287, %v7354
  %v7419 = vmax.f32 %v7112, %v7355
  %v7420 = vmax.f32 %v7290, %v7356
  %v7421 = vmax.f32 %v7114, %v7357
  %v7422 = vmax.f32 %v7292, %v7358
  %v7423 = vmax.f32 %v7117, %v7359
  %v7424 = vmax.f32 %v7295, %v7360
  %v7425 = vmax.f32 %v7119, %v7361
  %v7426 = vmax.f32 %v7297, %v7362
  %v7427 = vld [vmem:[%s5 + $0x38] sm:$0xff]
  %v7428 = vld [vmem:[%s5 + $0x78] sm:$0xff]
  %v7429 = vld [vmem:[%s5 + $0xb8] sm:$0xff]
  %v7430 = vld [vmem:[%s5 + $0xf8] sm:$0xff]
  %v7431 = vld [vmem:[%s5 + $0x138] sm:$0xff]
  %v7432 = vld [vmem:[%s5 + $0x178] sm:$0xff]
  %v7433 = vld [vmem:[%s5 + $0x1b8] sm:$0x11]
  %v7441 = vunpack.c.l.b16 %v7427
  %v7442 = vunpack.c.h.b16 %v7427
  %v7443 = vunpack.c.l.b16 %v7428
  %v7444 = vunpack.c.h.b16 %v7428
  %v7445 = vunpack.c.l.b16 %v7429
  %v7446 = vunpack.c.h.b16 %v7429
  %v7447 = vunpack.c.l.b16 %v7430
  %v7448 = vunpack.c.h.b16 %v7430
  %v7449 = vunpack.c.l.b16 %v7431
  %v7450 = vunpack.c.h.b16 %v7431
  %v7451 = vunpack.c.l.b16 %v7432
  %v7452 = vunpack.c.h.b16 %v7432
  %v7453 = vunpack.c.l.b16 %v7433
  %v7454 = vunpack.c.h.b16 %v7433
  %v7455 = vpack.c.b16 %v7443, %v7441
  %v7456 = vpack.c.b16 %v7444, %v7442
  %v7457 = vpack.c.b16 %v7447, %v7445
  %v7458 = vpack.c.b16 %v7448, %v7446
  %v7459 = vpack.c.b16 %v7451, %v7449
  %v7460 = vpack.c.b16 %v7452, %v7450
  %v7461 = vpack.c.b16 %v7453, %v7453
  %v7462 = vpack.c.b16 %v7454, %v7454
  %v7470 = vand.u32 %v7461, %v732
  %v7473 = vand.u32 %v7462, %v732
  %7475 = vmatpush.bf16.msra.mxu0 0
  %7476 = vmatpush.bf16.msra.mxu0 0
  %7477 = vmatpush.bf16.msra.mxu0 0
  %7478 = vmatpush.bf16.msra.mxu0 0
  %7479 = vmatpush.bf16.msra.mxu0 %v7470
  %7480 = vmatpush.bf16.msra.mxu0 %v7459
  %7481 = vmatpush.bf16.msra.mxu0 %v7457
  %7482 = vmatpush.bf16.msra.mxu0 %v7455
  %7483 = vmatmul.bf16.gmra.mxu0 %v683
  %v7484 = vpop.f32.mrf.mxu0
  %v7485 = vadd.f32 0.0, %v7484
  %v7486 = vpop.f32.mrf.mxu0
  %v7487 = vadd.f32 0.0, %v7486
  %7488 = vmatmul.bf16.gmra.mxu0 %v686
  %v7489 = vpop.f32.mrf.mxu0
  %v7490 = vadd.f32 0.0, %v7489
  %v7491 = vpop.f32.mrf.mxu0
  %v7492 = vadd.f32 0.0, %v7491
  %7493 = vmatmul.bf16.gmra.mxu0 %v689
  %v7494 = vpop.f32.mrf.mxu0
  %v7495 = vadd.f32 0.0, %v7494
  %v7496 = vpop.f32.mrf.mxu0
  %v7497 = vadd.f32 0.0, %v7496
  %7498 = vmatmul.bf16.gmra.mxu0 %v692
  %v7499 = vpop.f32.mrf.mxu0
  %v7500 = vadd.f32 0.0, %v7499
  %v7501 = vpop.f32.mrf.mxu0
  %v7502 = vadd.f32 0.0, %v7501
  %7503 = vmatmul.bf16.gmra.mxu0 %v695
  %v7504 = vpop.f32.mrf.mxu0
  %v7505 = vadd.f32 0.0, %v7504
  %v7506 = vpop.f32.mrf.mxu0
  %v7507 = vadd.f32 0.0, %v7506
  %7508 = vmatmul.bf16.gmra.mxu0 %v698
  %v7509 = vpop.f32.mrf.mxu0
  %v7510 = vadd.f32 0.0, %v7509
  %v7511 = vpop.f32.mrf.mxu0
  %v7512 = vadd.f32 0.0, %v7511
  %7513 = vmatmul.bf16.gmra.mxu0 %v701
  %v7514 = vpop.f32.mrf.mxu0
  %v7515 = vadd.f32 0.0, %v7514
  %v7516 = vpop.f32.mrf.mxu0
  %v7517 = vadd.f32 0.0, %v7516
  %7518 = vmatmul.bf16.gmra.mxu0 %v704
  %v7519 = vpop.f32.mrf.mxu0
  %v7520 = vadd.f32 0.0, %v7519
  %v7521 = vpop.f32.mrf.mxu0
  %v7522 = vadd.f32 0.0, %v7521
  %7523 = vmatmul.bf16.gmra.mxu0 %v707
  %v7524 = vpop.f32.mrf.mxu0
  %v7525 = vadd.f32 0.0, %v7524
  %v7526 = vpop.f32.mrf.mxu0
  %v7527 = vadd.f32 0.0, %v7526
  %7528 = vmatmul.bf16.gmra.mxu0 %v710
  %v7529 = vpop.f32.mrf.mxu0
  %v7530 = vadd.f32 0.0, %v7529
  %v7531 = vpop.f32.mrf.mxu0
  %v7532 = vadd.f32 0.0, %v7531
  %7533 = vmatmul.bf16.gmra.mxu0 %v713
  %v7534 = vpop.f32.mrf.mxu0
  %v7535 = vadd.f32 0.0, %v7534
  %v7536 = vpop.f32.mrf.mxu0
  %v7537 = vadd.f32 0.0, %v7536
  %7538 = vmatmul.bf16.gmra.mxu0 %v716
  %v7539 = vpop.f32.mrf.mxu0
  %v7540 = vadd.f32 0.0, %v7539
  %v7541 = vpop.f32.mrf.mxu0
  %v7542 = vadd.f32 0.0, %v7541
  %7543 = vmatmul.bf16.gmra.mxu0 %v719
  %v7544 = vpop.f32.mrf.mxu0
  %v7545 = vadd.f32 0.0, %v7544
  %v7546 = vpop.f32.mrf.mxu0
  %v7547 = vadd.f32 0.0, %v7546
  %7548 = vmatmul.bf16.gmra.mxu0 %v722
  %v7549 = vpop.f32.mrf.mxu0
  %v7550 = vadd.f32 0.0, %v7549
  %v7551 = vpop.f32.mrf.mxu0
  %v7552 = vadd.f32 0.0, %v7551
  %7553 = vmatmul.bf16.gmra.mxu0 %v725
  %v7554 = vpop.f32.mrf.mxu0
  %v7555 = vadd.f32 0.0, %v7554
  %v7556 = vpop.f32.mrf.mxu0
  %v7557 = vadd.f32 0.0, %v7556
  %7558 = vmatmul.bf16.gmra.mxu0 %v728
  %v7559 = vpop.f32.mrf.mxu0
  %v7560 = vadd.f32 0.0, %v7559
  %v7561 = vpop.f32.mrf.mxu0
  %v7562 = vadd.f32 0.0, %v7561
  %7563 = vdwg.mxu0
  %7564 = vmatpush.bf16.msra.mxu0 0
  %7565 = vmatpush.bf16.msra.mxu0 0
  %7566 = vmatpush.bf16.msra.mxu0 0
  %7567 = vmatpush.bf16.msra.mxu0 0
  %7568 = vmatpush.bf16.msra.mxu0 %v7473
  %7569 = vmatpush.bf16.msra.mxu0 %v7460
  %7570 = vmatpush.bf16.msra.mxu0 %v7458
  %7571 = vmatpush.bf16.msra.mxu0 %v7456
  %7572 = vmatmul.bf16.gmra.mxu0 %v683
  %v7573 = vpop.f32.mrf.mxu0
  %v7574 = vadd.f32 0.0, %v7573
  %v7575 = vpop.f32.mrf.mxu0
  %v7576 = vadd.f32 0.0, %v7575
  %7577 = vmatmul.bf16.gmra.mxu0 %v686
  %v7578 = vpop.f32.mrf.mxu0
  %v7579 = vadd.f32 0.0, %v7578
  %v7580 = vpop.f32.mrf.mxu0
  %v7581 = vadd.f32 0.0, %v7580
  %7582 = vmatmul.bf16.gmra.mxu0 %v689
  %v7583 = vpop.f32.mrf.mxu0
  %v7584 = vadd.f32 0.0, %v7583
  %v7585 = vpop.f32.mrf.mxu0
  %v7586 = vadd.f32 0.0, %v7585
  %7587 = vmatmul.bf16.gmra.mxu0 %v692
  %v7588 = vpop.f32.mrf.mxu0
  %v7589 = vadd.f32 0.0, %v7588
  %v7590 = vpop.f32.mrf.mxu0
  %v7591 = vadd.f32 0.0, %v7590
  %7592 = vmatmul.bf16.gmra.mxu0 %v695
  %v7593 = vpop.f32.mrf.mxu0
  %v7594 = vadd.f32 0.0, %v7593
  %v7595 = vpop.f32.mrf.mxu0
  %v7596 = vadd.f32 0.0, %v7595
  %7597 = vmatmul.bf16.gmra.mxu0 %v698
  %v7598 = vpop.f32.mrf.mxu0
  %v7599 = vadd.f32 0.0, %v7598
  %v7600 = vpop.f32.mrf.mxu0
  %v7601 = vadd.f32 0.0, %v7600
  %7602 = vmatmul.bf16.gmra.mxu0 %v701
  %v7603 = vpop.f32.mrf.mxu0
  %v7604 = vadd.f32 0.0, %v7603
  %v7605 = vpop.f32.mrf.mxu0
  %v7606 = vadd.f32 0.0, %v7605
  %7607 = vmatmul.bf16.gmra.mxu0 %v704
  %v7608 = vpop.f32.mrf.mxu0
  %v7609 = vadd.f32 0.0, %v7608
  %v7610 = vpop.f32.mrf.mxu0
  %v7611 = vadd.f32 0.0, %v7610
  %7612 = vmatmul.bf16.gmra.mxu0 %v707
  %v7613 = vpop.f32.mrf.mxu0
  %v7614 = vadd.f32 0.0, %v7613
  %v7615 = vpop.f32.mrf.mxu0
  %v7616 = vadd.f32 0.0, %v7615
  %7617 = vmatmul.bf16.gmra.mxu0 %v710
  %v7618 = vpop.f32.mrf.mxu0
  %v7619 = vadd.f32 0.0, %v7618
  %v7620 = vpop.f32.mrf.mxu0
  %v7621 = vadd.f32 0.0, %v7620
  %7622 = vmatmul.bf16.gmra.mxu0 %v713
  %v7623 = vpop.f32.mrf.mxu0
  %v7624 = vadd.f32 0.0, %v7623
  %v7625 = vpop.f32.mrf.mxu0
  %v7626 = vadd.f32 0.0, %v7625
  %7627 = vmatmul.bf16.gmra.mxu0 %v716
  %v7628 = vpop.f32.mrf.mxu0
  %v7629 = vadd.f32 0.0, %v7628
  %v7630 = vpop.f32.mrf.mxu0
  %v7631 = vadd.f32 0.0, %v7630
  %7632 = vmatmul.bf16.gmra.mxu0 %v719
  %v7633 = vpop.f32.mrf.mxu0
  %v7634 = vadd.f32 0.0, %v7633
  %v7635 = vpop.f32.mrf.mxu0
  %v7636 = vadd.f32 0.0, %v7635
  %7637 = vmatmul.bf16.gmra.mxu0 %v722
  %v7638 = vpop.f32.mrf.mxu0
  %v7639 = vadd.f32 0.0, %v7638
  %v7640 = vpop.f32.mrf.mxu0
  %v7641 = vadd.f32 0.0, %v7640
  %7642 = vmatmul.bf16.gmra.mxu0 %v725
  %v7643 = vpop.f32.mrf.mxu0
  %v7644 = vadd.f32 0.0, %v7643
  %v7645 = vpop.f32.mrf.mxu0
  %v7646 = vadd.f32 0.0, %v7645
  %7647 = vmatmul.bf16.gmra.mxu0 %v728
  %v7648 = vpop.f32.mrf.mxu0
  %v7649 = vadd.f32 0.0, %v7648
  %v7650 = vpop.f32.mrf.mxu0
  %v7651 = vadd.f32 0.0, %v7650
  %7652 = vdwg.mxu0
  %v7653 = vpack.c.bf16 %v7365, %v7363
  %v7654 = vpack.c.bf16 %v7366, %v7364
  %v7655 = vpack.c.bf16 %v7369, %v7367
  %v7656 = vpack.c.bf16 %v7370, %v7368
  %v7657 = vpack.c.bf16 %v7373, %v7371
  %v7658 = vpack.c.bf16 %v7374, %v7372
  %v7659 = vpack.c.bf16 %v7377, %v7375
  %v7660 = vpack.c.bf16 %v7378, %v7376
  %v7661 = vpack.c.bf16 %v7381, %v7379
  %v7662 = vpack.c.bf16 %v7382, %v7380
  %v7663 = vpack.c.bf16 %v7385, %v7383
  %v7664 = vpack.c.bf16 %v7386, %v7384
  %v7665 = vpack.c.bf16 %v7389, %v7387
  %v7666 = vpack.c.bf16 %v7390, %v7388
  %v7667 = vpack.c.bf16 %v7393, %v7391
  %v7668 = vpack.c.bf16 %v7394, %v7392
  %v7669 = vpack.c.bf16 %v7397, %v7395
  %v7670 = vpack.c.bf16 %v7398, %v7396
  %v7671 = vpack.c.bf16 %v7401, %v7399
  %v7672 = vpack.c.bf16 %v7402, %v7400
  %v7673 = vpack.c.bf16 %v7405, %v7403
  %v7674 = vpack.c.bf16 %v7406, %v7404
  %v7675 = vpack.c.bf16 %v7409, %v7407
  %v7676 = vpack.c.bf16 %v7410, %v7408
  %v7677 = vpack.c.bf16 %v7413, %v7411
  %v7678 = vpack.c.bf16 %v7414, %v7412
  %v7679 = vpack.c.bf16 %v7417, %v7415
  %v7680 = vpack.c.bf16 %v7418, %v7416
  %v7681 = vpack.c.bf16 %v7421, %v7419
  %v7682 = vpack.c.bf16 %v7422, %v7420
  %v7683 = vpack.c.bf16 %v7425, %v7423
  %v7684 = vpack.c.bf16 %v7426, %v7424
  %s7685 = scalar_lea.vmem %s4, 1792
  %v7686 = vld [vmem:[%s7685] sm:$0xff]
  %v7687 = vld [vmem:[%s7685 + $0x8] sm:$0xff]
  %v7688 = vld [vmem:[%s7685 + $0x10] sm:$0xff]
  %v7689 = vld [vmem:[%s7685 + $0x18] sm:$0xff]
  %v7690 = vld [vmem:[%s7685 + $0x20] sm:$0xff]
  %v7691 = vld [vmem:[%s7685 + $0x28] sm:$0xff]
  %v7692 = vld [vmem:[%s7685 + $0x30] sm:$0xff]
  %v7693 = vld [vmem:[%s7685 + $0x38] sm:$0xff]
  %v7694 = vld [vmem:[%s7685 + $0x40] sm:$0xff]
  %v7695 = vld [vmem:[%s7685 + $0x48] sm:$0xff]
  %v7696 = vld [vmem:[%s7685 + $0x50] sm:$0xff]
  %v7697 = vld [vmem:[%s7685 + $0x58] sm:$0xff]
  %v7698 = vld [vmem:[%s7685 + $0x60] sm:$0xff]
  %v7699 = vld [vmem:[%s7685 + $0x68] sm:$0xff]
  %v7700 = vld [vmem:[%s7685 + $0x70] sm:$0xff]
  %v7701 = vld [vmem:[%s7685 + $0x78] sm:$0xff]
  %v7702 = vld [vmem:[%s7685 + $0x80] sm:$0xff]
  %v7703 = vld [vmem:[%s7685 + $0x88] sm:$0xff]
  %v7704 = vld [vmem:[%s7685 + $0x90] sm:$0xff]
  %v7705 = vld [vmem:[%s7685 + $0x98] sm:$0xff]
  %v7706 = vld [vmem:[%s7685 + $0xa0] sm:$0xff]
  %v7707 = vld [vmem:[%s7685 + $0xa8] sm:$0xff]
  %v7708 = vld [vmem:[%s7685 + $0xb0] sm:$0xff]
  %v7709 = vld [vmem:[%s7685 + $0xb8] sm:$0xff]
  %v7710 = vld [vmem:[%s7685 + $0xc0] sm:$0xff]
  %v7711 = vld [vmem:[%s7685 + $0xc8] sm:$0xff]
  %v7712 = vld [vmem:[%s7685 + $0xd0] sm:$0xff]
  %v7713 = vld [vmem:[%s7685 + $0xd8] sm:$0xff]
  %v7714 = vld [vmem:[%s7685 + $0xe0] sm:$0xff]
  %v7715 = vld [vmem:[%s7685 + $0xe8] sm:$0xff]
  %v7716 = vld [vmem:[%s7685 + $0xf0] sm:$0xff]
  %v7717 = vld [vmem:[%s7685 + $0xf8] sm:$0xff]
  %v7750 = vunpack.c.l.b16 %v7686
  %v7751 = vunpack.c.h.b16 %v7686
  %v7752 = vunpack.c.l.b16 %v7687
  %v7753 = vunpack.c.h.b16 %v7687
  %v7754 = vunpack.c.l.b16 %v7688
  %v7755 = vunpack.c.h.b16 %v7688
  %v7756 = vunpack.c.l.b16 %v7689
  %v7757 = vunpack.c.h.b16 %v7689
  %v7758 = vunpack.c.l.b16 %v7690
  %v7759 = vunpack.c.h.b16 %v7690
  %v7760 = vunpack.c.l.b16 %v7691
  %v7761 = vunpack.c.h.b16 %v7691
  %v7762 = vunpack.c.l.b16 %v7692
  %v7763 = vunpack.c.h.b16 %v7692
  %v7764 = vunpack.c.l.b16 %v7693
  %v7765 = vunpack.c.h.b16 %v7693
  %v7766 = vunpack.c.l.b16 %v7694
  %v7767 = vunpack.c.h.b16 %v7694
  %v7768 = vunpack.c.l.b16 %v7695
  %v7769 = vunpack.c.h.b16 %v7695
  %v7770 = vunpack.c.l.b16 %v7696
  %v7771 = vunpack.c.h.b16 %v7696
  %v7772 = vunpack.c.l.b16 %v7697
  %v7773 = vunpack.c.h.b16 %v7697
  %v7774 = vunpack.c.l.b16 %v7698
  %v7775 = vunpack.c.h.b16 %v7698
  %v7776 = vunpack.c.l.b16 %v7699
  %v7777 = vunpack.c.h.b16 %v7699
  %v7778 = vunpack.c.l.b16 %v7700
  %v7779 = vunpack.c.h.b16 %v7700
  %v7780 = vunpack.c.l.b16 %v7701
  %v7781 = vunpack.c.h.b16 %v7701
  %v7782 = vunpack.c.l.b16 %v7702
  %v7783 = vunpack.c.h.b16 %v7702
  %v7784 = vunpack.c.l.b16 %v7703
  %v7785 = vunpack.c.h.b16 %v7703
  %v7786 = vunpack.c.l.b16 %v7704
  %v7787 = vunpack.c.h.b16 %v7704
  %v7788 = vunpack.c.l.b16 %v7705
  %v7789 = vunpack.c.h.b16 %v7705
  %v7790 = vunpack.c.l.b16 %v7706
  %v7791 = vunpack.c.h.b16 %v7706
  %v7792 = vunpack.c.l.b16 %v7707
  %v7793 = vunpack.c.h.b16 %v7707
  %v7794 = vunpack.c.l.b16 %v7708
  %v7795 = vunpack.c.h.b16 %v7708
  %v7796 = vunpack.c.l.b16 %v7709
  %v7797 = vunpack.c.h.b16 %v7709
  %v7798 = vunpack.c.l.b16 %v7710
  %v7799 = vunpack.c.h.b16 %v7710
  %v7800 = vunpack.c.l.b16 %v7711
  %v7801 = vunpack.c.h.b16 %v7711
  %v7802 = vunpack.c.l.b16 %v7712
  %v7803 = vunpack.c.h.b16 %v7712
  %v7804 = vunpack.c.l.b16 %v7713
  %v7805 = vunpack.c.h.b16 %v7713
  %v7806 = vunpack.c.l.b16 %v7714
  %v7807 = vunpack.c.h.b16 %v7714
  %v7808 = vunpack.c.l.b16 %v7715
  %v7809 = vunpack.c.h.b16 %v7715
  %v7810 = vunpack.c.l.b16 %v7716
  %v7811 = vunpack.c.h.b16 %v7716
  %v7812 = vunpack.c.l.b16 %v7717
  %v7813 = vunpack.c.h.b16 %v7717
  %v7814 = vpack.c.b16 %v7752, %v7750
  %v7815 = vpack.c.b16 %v7753, %v7751
  %v7816 = vpack.c.b16 %v7756, %v7754
  %v7817 = vpack.c.b16 %v7757, %v7755
  %v7818 = vpack.c.b16 %v7760, %v7758
  %v7819 = vpack.c.b16 %v7761, %v7759
  %v7820 = vpack.c.b16 %v7764, %v7762
  %v7821 = vpack.c.b16 %v7765, %v7763
  %v7822 = vpack.c.b16 %v7768, %v7766
  %v7823 = vpack.c.b16 %v7769, %v7767
  %v7824 = vpack.c.b16 %v7772, %v7770
  %v7825 = vpack.c.b16 %v7773, %v7771
  %v7826 = vpack.c.b16 %v7776, %v7774
  %v7827 = vpack.c.b16 %v7777, %v7775
  %v7828 = vpack.c.b16 %v7780, %v7778
  %v7829 = vpack.c.b16 %v7781, %v7779
  %v7830 = vpack.c.b16 %v7784, %v7782
  %v7831 = vpack.c.b16 %v7785, %v7783
  %v7832 = vpack.c.b16 %v7788, %v7786
  %v7833 = vpack.c.b16 %v7789, %v7787
  %v7834 = vpack.c.b16 %v7792, %v7790
  %v7835 = vpack.c.b16 %v7793, %v7791
  %v7836 = vpack.c.b16 %v7796, %v7794
  %v7837 = vpack.c.b16 %v7797, %v7795
  %v7838 = vpack.c.b16 %v7800, %v7798
  %v7839 = vpack.c.b16 %v7801, %v7799
  %v7840 = vpack.c.b16 %v7804, %v7802
  %v7841 = vpack.c.b16 %v7805, %v7803
  %v7842 = vpack.c.b16 %v7808, %v7806
  %v7843 = vpack.c.b16 %v7809, %v7807
  %v7844 = vpack.c.b16 %v7812, %v7810
  %v7845 = vpack.c.b16 %v7813, %v7811
  %7878 = vmatpush.bf16.msra.mxu0 %v7828
  %7879 = vmatpush.bf16.msra.mxu0 %v7826
  %7880 = vmatpush.bf16.msra.mxu0 %v7824
  %7881 = vmatpush.bf16.msra.mxu0 %v7822
  %7882 = vmatpush.bf16.msra.mxu0 %v7820
  %7883 = vmatpush.bf16.msra.mxu0 %v7818
  %7884 = vmatpush.bf16.msra.mxu0 %v7816
  %7885 = vmatpush.bf16.msra.mxu0 %v7814
  %7886 = vmatmul.bf16.gmra.mxu0 %v7653
  %v7887 = vpop.f32.mrf.mxu0
  %v7888 = vadd.f32 %v7485, %v7887
  %v7889 = vpop.f32.mrf.mxu0
  %v7890 = vadd.f32 %v7487, %v7889
  %7891 = vmatmul.bf16.gmra.mxu0 %v7655
  %v7892 = vpop.f32.mrf.mxu0
  %v7893 = vadd.f32 %v7490, %v7892
  %v7894 = vpop.f32.mrf.mxu0
  %v7895 = vadd.f32 %v7492, %v7894
  %7896 = vmatmul.bf16.gmra.mxu0 %v7657
  %v7897 = vpop.f32.mrf.mxu0
  %v7898 = vadd.f32 %v7495, %v7897
  %v7899 = vpop.f32.mrf.mxu0
  %v7900 = vadd.f32 %v7497, %v7899
  %7901 = vmatmul.bf16.gmra.mxu0 %v7659
  %v7902 = vpop.f32.mrf.mxu0
  %v7903 = vadd.f32 %v7500, %v7902
  %v7904 = vpop.f32.mrf.mxu0
  %v7905 = vadd.f32 %v7502, %v7904
  %7906 = vmatmul.bf16.gmra.mxu0 %v7661
  %v7907 = vpop.f32.mrf.mxu0
  %v7908 = vadd.f32 %v7505, %v7907
  %v7909 = vpop.f32.mrf.mxu0
  %v7910 = vadd.f32 %v7507, %v7909
  %7911 = vmatmul.bf16.gmra.mxu0 %v7663
  %v7912 = vpop.f32.mrf.mxu0
  %v7913 = vadd.f32 %v7510, %v7912
  %v7914 = vpop.f32.mrf.mxu0
  %v7915 = vadd.f32 %v7512, %v7914
  %7916 = vmatmul.bf16.gmra.mxu0 %v7665
  %v7917 = vpop.f32.mrf.mxu0
  %v7918 = vadd.f32 %v7515, %v7917
  %v7919 = vpop.f32.mrf.mxu0
  %v7920 = vadd.f32 %v7517, %v7919
  %7921 = vmatmul.bf16.gmra.mxu0 %v7667
  %v7922 = vpop.f32.mrf.mxu0
  %v7923 = vadd.f32 %v7520, %v7922
  %v7924 = vpop.f32.mrf.mxu0
  %v7925 = vadd.f32 %v7522, %v7924
  %7926 = vmatmul.bf16.gmra.mxu0 %v7669
  %v7927 = vpop.f32.mrf.mxu0
  %v7928 = vadd.f32 %v7525, %v7927
  %v7929 = vpop.f32.mrf.mxu0
  %v7930 = vadd.f32 %v7527, %v7929
  %7931 = vmatmul.bf16.gmra.mxu0 %v7671
  %v7932 = vpop.f32.mrf.mxu0
  %v7933 = vadd.f32 %v7530, %v7932
  %v7934 = vpop.f32.mrf.mxu0
  %v7935 = vadd.f32 %v7532, %v7934
  %7936 = vmatmul.bf16.gmra.mxu0 %v7673
  %v7937 = vpop.f32.mrf.mxu0
  %v7938 = vadd.f32 %v7535, %v7937
  %v7939 = vpop.f32.mrf.mxu0
  %v7940 = vadd.f32 %v7537, %v7939
  %7941 = vmatmul.bf16.gmra.mxu0 %v7675
  %v7942 = vpop.f32.mrf.mxu0
  %v7943 = vadd.f32 %v7540, %v7942
  %v7944 = vpop.f32.mrf.mxu0
  %v7945 = vadd.f32 %v7542, %v7944
  %7946 = vmatmul.bf16.gmra.mxu0 %v7677
  %v7947 = vpop.f32.mrf.mxu0
  %v7948 = vadd.f32 %v7545, %v7947
  %v7949 = vpop.f32.mrf.mxu0
  %v7950 = vadd.f32 %v7547, %v7949
  %7951 = vmatmul.bf16.gmra.mxu0 %v7679
  %v7952 = vpop.f32.mrf.mxu0
  %v7953 = vadd.f32 %v7550, %v7952
  %v7954 = vpop.f32.mrf.mxu0
  %v7955 = vadd.f32 %v7552, %v7954
  %7956 = vmatmul.bf16.gmra.mxu0 %v7681
  %v7957 = vpop.f32.mrf.mxu0
  %v7958 = vadd.f32 %v7555, %v7957
  %v7959 = vpop.f32.mrf.mxu0
  %v7960 = vadd.f32 %v7557, %v7959
  %7961 = vmatmul.bf16.gmra.mxu0 %v7683
  %v7962 = vpop.f32.mrf.mxu0
  %v7963 = vadd.f32 %v7560, %v7962
  %v7964 = vpop.f32.mrf.mxu0
  %v7965 = vadd.f32 %v7562, %v7964
  %7966 = vdwg.mxu0
  %7967 = vmatpush.bf16.msra.mxu0 %v7844
  %7968 = vmatpush.bf16.msra.mxu0 %v7842
  %7969 = vmatpush.bf16.msra.mxu0 %v7840
  %7970 = vmatpush.bf16.msra.mxu0 %v7838
  %7971 = vmatpush.bf16.msra.mxu0 %v7836
  %7972 = vmatpush.bf16.msra.mxu0 %v7834
  %7973 = vmatpush.bf16.msra.mxu0 %v7832
  %7974 = vmatpush.bf16.msra.mxu0 %v7830
  %7975 = vmatmul.bf16.gmra.mxu0 %v7654
  %v7976 = vpop.f32.mrf.mxu0
  %v7977 = vadd.f32 %v7888, %v7976
  %v7978 = vpop.f32.mrf.mxu0
  %v7979 = vadd.f32 %v7890, %v7978
  %7980 = vmatmul.bf16.gmra.mxu0 %v7656
  %v7981 = vpop.f32.mrf.mxu0
  %v7982 = vadd.f32 %v7893, %v7981
  %v7983 = vpop.f32.mrf.mxu0
  %v7984 = vadd.f32 %v7895, %v7983
  %7985 = vmatmul.bf16.gmra.mxu0 %v7658
  %v7986 = vpop.f32.mrf.mxu0
  %v7987 = vadd.f32 %v7898, %v7986
  %v7988 = vpop.f32.mrf.mxu0
  %v7989 = vadd.f32 %v7900, %v7988
  %7990 = vmatmul.bf16.gmra.mxu0 %v7660
  %v7991 = vpop.f32.mrf.mxu0
  %v7992 = vadd.f32 %v7903, %v7991
  %v7993 = vpop.f32.mrf.mxu0
  %v7994 = vadd.f32 %v7905, %v7993
  %7995 = vmatmul.bf16.gmra.mxu0 %v7662
  %v7996 = vpop.f32.mrf.mxu0
  %v7997 = vadd.f32 %v7908, %v7996
  %v7998 = vpop.f32.mrf.mxu0
  %v7999 = vadd.f32 %v7910, %v7998
  %8000 = vmatmul.bf16.gmra.mxu0 %v7664
  %v8001 = vpop.f32.mrf.mxu0
  %v8002 = vadd.f32 %v7913, %v8001
  %v8003 = vpop.f32.mrf.mxu0
  %v8004 = vadd.f32 %v7915, %v8003
  %8005 = vmatmul.bf16.gmra.mxu0 %v7666
  %v8006 = vpop.f32.mrf.mxu0
  %v8007 = vadd.f32 %v7918, %v8006
  %v8008 = vpop.f32.mrf.mxu0
  %v8009 = vadd.f32 %v7920, %v8008
  %8010 = vmatmul.bf16.gmra.mxu0 %v7668
  %v8011 = vpop.f32.mrf.mxu0
  %v8012 = vadd.f32 %v7923, %v8011
  %v8013 = vpop.f32.mrf.mxu0
  %v8014 = vadd.f32 %v7925, %v8013
  %8015 = vmatmul.bf16.gmra.mxu0 %v7670
  %v8016 = vpop.f32.mrf.mxu0
  %v8017 = vadd.f32 %v7928, %v8016
  %v8018 = vpop.f32.mrf.mxu0
  %v8019 = vadd.f32 %v7930, %v8018
  %8020 = vmatmul.bf16.gmra.mxu0 %v7672
  %v8021 = vpop.f32.mrf.mxu0
  %v8022 = vadd.f32 %v7933, %v8021
  %v8023 = vpop.f32.mrf.mxu0
  %v8024 = vadd.f32 %v7935, %v8023
  %8025 = vmatmul.bf16.gmra.mxu0 %v7674
  %v8026 = vpop.f32.mrf.mxu0
  %v8027 = vadd.f32 %v7938, %v8026
  %v8028 = vpop.f32.mrf.mxu0
  %v8029 = vadd.f32 %v7940, %v8028
  %8030 = vmatmul.bf16.gmra.mxu0 %v7676
  %v8031 = vpop.f32.mrf.mxu0
  %v8032 = vadd.f32 %v7943, %v8031
  %v8033 = vpop.f32.mrf.mxu0
  %v8034 = vadd.f32 %v7945, %v8033
  %8035 = vmatmul.bf16.gmra.mxu0 %v7678
  %v8036 = vpop.f32.mrf.mxu0
  %v8037 = vadd.f32 %v7948, %v8036
  %v8038 = vpop.f32.mrf.mxu0
  %v8039 = vadd.f32 %v7950, %v8038
  %8040 = vmatmul.bf16.gmra.mxu0 %v7680
  %v8041 = vpop.f32.mrf.mxu0
  %v8042 = vadd.f32 %v7953, %v8041
  %v8043 = vpop.f32.mrf.mxu0
  %v8044 = vadd.f32 %v7955, %v8043
  %8045 = vmatmul.bf16.gmra.mxu0 %v7682
  %v8046 = vpop.f32.mrf.mxu0
  %v8047 = vadd.f32 %v7958, %v8046
  %v8048 = vpop.f32.mrf.mxu0
  %v8049 = vadd.f32 %v7960, %v8048
  %8050 = vmatmul.bf16.gmra.mxu0 %v7684
  %v8051 = vpop.f32.mrf.mxu0
  %v8052 = vadd.f32 %v7963, %v8051
  %v8053 = vpop.f32.mrf.mxu0
  %v8054 = vadd.f32 %v7965, %v8053
  %8055 = vdwg.mxu0
  %8056 = vmatpush.bf16.msra.mxu0 %v7829
  %8057 = vmatpush.bf16.msra.mxu0 %v7827
  %8058 = vmatpush.bf16.msra.mxu0 %v7825
  %8059 = vmatpush.bf16.msra.mxu0 %v7823
  %8060 = vmatpush.bf16.msra.mxu0 %v7821
  %8061 = vmatpush.bf16.msra.mxu0 %v7819
  %8062 = vmatpush.bf16.msra.mxu0 %v7817
  %8063 = vmatpush.bf16.msra.mxu0 %v7815
  %8064 = vmatmul.bf16.gmra.mxu0 %v7653
  %v8065 = vpop.f32.mrf.mxu0
  %v8066 = vadd.f32 %v7574, %v8065
  %v8067 = vpop.f32.mrf.mxu0
  %v8068 = vadd.f32 %v7576, %v8067
  %8069 = vmatmul.bf16.gmra.mxu0 %v7655
  %v8070 = vpop.f32.mrf.mxu0
  %v8071 = vadd.f32 %v7579, %v8070
  %v8072 = vpop.f32.mrf.mxu0
  %v8073 = vadd.f32 %v7581, %v8072
  %8074 = vmatmul.bf16.gmra.mxu0 %v7657
  %v8075 = vpop.f32.mrf.mxu0
  %v8076 = vadd.f32 %v7584, %v8075
  %v8077 = vpop.f32.mrf.mxu0
  %v8078 = vadd.f32 %v7586, %v8077
  %8079 = vmatmul.bf16.gmra.mxu0 %v7659
  %v8080 = vpop.f32.mrf.mxu0
  %v8081 = vadd.f32 %v7589, %v8080
  %v8082 = vpop.f32.mrf.mxu0
  %v8083 = vadd.f32 %v7591, %v8082
  %8084 = vmatmul.bf16.gmra.mxu0 %v7661
  %v8085 = vpop.f32.mrf.mxu0
  %v8086 = vadd.f32 %v7594, %v8085
  %v8087 = vpop.f32.mrf.mxu0
  %v8088 = vadd.f32 %v7596, %v8087
  %8089 = vmatmul.bf16.gmra.mxu0 %v7663
  %v8090 = vpop.f32.mrf.mxu0
  %v8091 = vadd.f32 %v7599, %v8090
  %v8092 = vpop.f32.mrf.mxu0
  %v8093 = vadd.f32 %v7601, %v8092
  %8094 = vmatmul.bf16.gmra.mxu0 %v7665
  %v8095 = vpop.f32.mrf.mxu0
  %v8096 = vadd.f32 %v7604, %v8095
  %v8097 = vpop.f32.mrf.mxu0
  %v8098 = vadd.f32 %v7606, %v8097
  %8099 = vmatmul.bf16.gmra.mxu0 %v7667
  %v8100 = vpop.f32.mrf.mxu0
  %v8101 = vadd.f32 %v7609, %v8100
  %v8102 = vpop.f32.mrf.mxu0
  %v8103 = vadd.f32 %v7611, %v8102
  %8104 = vmatmul.bf16.gmra.mxu0 %v7669
  %v8105 = vpop.f32.mrf.mxu0
  %v8106 = vadd.f32 %v7614, %v8105
  %v8107 = vpop.f32.mrf.mxu0
  %v8108 = vadd.f32 %v7616, %v8107
  %8109 = vmatmul.bf16.gmra.mxu0 %v7671
  %v8110 = vpop.f32.mrf.mxu0
  %v8111 = vadd.f32 %v7619, %v8110
  %v8112 = vpop.f32.mrf.mxu0
  %v8113 = vadd.f32 %v7621, %v8112
  %8114 = vmatmul.bf16.gmra.mxu0 %v7673
  %v8115 = vpop.f32.mrf.mxu0
  %v8116 = vadd.f32 %v7624, %v8115
  %v8117 = vpop.f32.mrf.mxu0
  %v8118 = vadd.f32 %v7626, %v8117
  %8119 = vmatmul.bf16.gmra.mxu0 %v7675
  %v8120 = vpop.f32.mrf.mxu0
  %v8121 = vadd.f32 %v7629, %v8120
  %v8122 = vpop.f32.mrf.mxu0
  %v8123 = vadd.f32 %v7631, %v8122
  %8124 = vmatmul.bf16.gmra.mxu0 %v7677
  %v8125 = vpop.f32.mrf.mxu0
  %v8126 = vadd.f32 %v7634, %v8125
  %v8127 = vpop.f32.mrf.mxu0
  %v8128 = vadd.f32 %v7636, %v8127
  %8129 = vmatmul.bf16.gmra.mxu0 %v7679
  %v8130 = vpop.f32.mrf.mxu0
  %v8131 = vadd.f32 %v7639, %v8130
  %v8132 = vpop.f32.mrf.mxu0
  %v8133 = vadd.f32 %v7641, %v8132
  %8134 = vmatmul.bf16.gmra.mxu0 %v7681
  %v8135 = vpop.f32.mrf.mxu0
  %v8136 = vadd.f32 %v7644, %v8135
  %v8137 = vpop.f32.mrf.mxu0
  %v8138 = vadd.f32 %v7646, %v8137
  %8139 = vmatmul.bf16.gmra.mxu0 %v7683
  %v8140 = vpop.f32.mrf.mxu0
  %v8141 = vadd.f32 %v7649, %v8140
  %v8142 = vpop.f32.mrf.mxu0
  %v8143 = vadd.f32 %v7651, %v8142
  %8144 = vdwg.mxu0
  %8145 = vmatpush.bf16.msra.mxu0 %v7845
  %8146 = vmatpush.bf16.msra.mxu0 %v7843
  %8147 = vmatpush.bf16.msra.mxu0 %v7841
  %8148 = vmatpush.bf16.msra.mxu0 %v7839
  %8149 = vmatpush.bf16.msra.mxu0 %v7837
  %8150 = vmatpush.bf16.msra.mxu0 %v7835
  %8151 = vmatpush.bf16.msra.mxu0 %v7833
  %8152 = vmatpush.bf16.msra.mxu0 %v7831
  %8153 = vmatmul.bf16.gmra.mxu0 %v7654
  %v8154 = vpop.f32.mrf.mxu0
  %v8155 = vadd.f32 %v8066, %v8154
  %v8156 = vpop.f32.mrf.mxu0
  %v8157 = vadd.f32 %v8068, %v8156
  %8158 = vmatmul.bf16.gmra.mxu0 %v7656
  %v8159 = vpop.f32.mrf.mxu0
  %v8160 = vadd.f32 %v8071, %v8159
  %v8161 = vpop.f32.mrf.mxu0
  %v8162 = vadd.f32 %v8073, %v8161
  %8163 = vmatmul.bf16.gmra.mxu0 %v7658
  %v8164 = vpop.f32.mrf.mxu0
  %v8165 = vadd.f32 %v8076, %v8164
  %v8166 = vpop.f32.mrf.mxu0
  %v8167 = vadd.f32 %v8078, %v8166
  %8168 = vmatmul.bf16.gmra.mxu0 %v7660
  %v8169 = vpop.f32.mrf.mxu0
  %v8170 = vadd.f32 %v8081, %v8169
  %v8171 = vpop.f32.mrf.mxu0
  %v8172 = vadd.f32 %v8083, %v8171
  %8173 = vmatmul.bf16.gmra.mxu0 %v7662
  %v8174 = vpop.f32.mrf.mxu0
  %v8175 = vadd.f32 %v8086, %v8174
  %v8176 = vpop.f32.mrf.mxu0
  %v8177 = vadd.f32 %v8088, %v8176
  %8178 = vmatmul.bf16.gmra.mxu0 %v7664
  %v8179 = vpop.f32.mrf.mxu0
  %v8180 = vadd.f32 %v8091, %v8179
  %v8181 = vpop.f32.mrf.mxu0
  %v8182 = vadd.f32 %v8093, %v8181
  %8183 = vmatmul.bf16.gmra.mxu0 %v7666
  %v8184 = vpop.f32.mrf.mxu0
  %v8185 = vadd.f32 %v8096, %v8184
  %v8186 = vpop.f32.mrf.mxu0
  %v8187 = vadd.f32 %v8098, %v8186
  %8188 = vmatmul.bf16.gmra.mxu0 %v7668
  %v8189 = vpop.f32.mrf.mxu0
  %v8190 = vadd.f32 %v8101, %v8189
  %v8191 = vpop.f32.mrf.mxu0
  %v8192 = vadd.f32 %v8103, %v8191
  %8193 = vmatmul.bf16.gmra.mxu0 %v7670
  %v8194 = vpop.f32.mrf.mxu0
  %v8195 = vadd.f32 %v8106, %v8194
  %v8196 = vpop.f32.mrf.mxu0
  %v8197 = vadd.f32 %v8108, %v8196
  %8198 = vmatmul.bf16.gmra.mxu0 %v7672
  %v8199 = vpop.f32.mrf.mxu0
  %v8200 = vadd.f32 %v8111, %v8199
  %v8201 = vpop.f32.mrf.mxu0
  %v8202 = vadd.f32 %v8113, %v8201
  %8203 = vmatmul.bf16.gmra.mxu0 %v7674
  %v8204 = vpop.f32.mrf.mxu0
  %v8205 = vadd.f32 %v8116, %v8204
  %v8206 = vpop.f32.mrf.mxu0
  %v8207 = vadd.f32 %v8118, %v8206
  %8208 = vmatmul.bf16.gmra.mxu0 %v7676
  %v8209 = vpop.f32.mrf.mxu0
  %v8210 = vadd.f32 %v8121, %v8209
  %v8211 = vpop.f32.mrf.mxu0
  %v8212 = vadd.f32 %v8123, %v8211
  %8213 = vmatmul.bf16.gmra.mxu0 %v7678
  %v8214 = vpop.f32.mrf.mxu0
  %v8215 = vadd.f32 %v8126, %v8214
  %v8216 = vpop.f32.mrf.mxu0
  %v8217 = vadd.f32 %v8128, %v8216
  %8218 = vmatmul.bf16.gmra.mxu0 %v7680
  %v8219 = vpop.f32.mrf.mxu0
  %v8220 = vadd.f32 %v8131, %v8219
  %v8221 = vpop.f32.mrf.mxu0
  %v8222 = vadd.f32 %v8133, %v8221
  %8223 = vmatmul.bf16.gmra.mxu0 %v7682
  %v8224 = vpop.f32.mrf.mxu0
  %v8225 = vadd.f32 %v8136, %v8224
  %v8226 = vpop.f32.mrf.mxu0
  %v8227 = vadd.f32 %v8138, %v8226
  %8228 = vmatmul.bf16.gmra.mxu0 %v7684
  %v8229 = vpop.f32.mrf.mxu0
  %v8230 = vadd.f32 %v8141, %v8229
  %v8231 = vpop.f32.mrf.mxu0
  %v8232 = vadd.f32 %v8143, %v8231
  %8233 = vdwg.mxu0
  %v8234 = vadd.f32 %v6428, %v7977
  %v8235 = vadd.f32 %v6429, %v8155
  %v8236 = vadd.f32 %v6430, %v7979
  %v8237 = vadd.f32 %v6431, %v8157
  %v8238 = vadd.f32 %v6432, %v7982
  %v8239 = vadd.f32 %v6433, %v8160
  %v8240 = vadd.f32 %v6434, %v7984
  %v8241 = vadd.f32 %v6435, %v8162
  %v8242 = vadd.f32 %v6436, %v7987
  %v8243 = vadd.f32 %v6437, %v8165
  %v8244 = vadd.f32 %v6438, %v7989
  %v8245 = vadd.f32 %v6439, %v8167
  %v8246 = vadd.f32 %v6440, %v7992
  %v8247 = vadd.f32 %v6441, %v8170
  %v8248 = vadd.f32 %v6442, %v7994
  %v8249 = vadd.f32 %v6443, %v8172
  %v8250 = vadd.f32 %v6444, %v7997
  %v8251 = vadd.f32 %v6445, %v8175
  %v8252 = vadd.f32 %v6446, %v7999
  %v8253 = vadd.f32 %v6447, %v8177
  %v8254 = vadd.f32 %v6448, %v8002
  %v8255 = vadd.f32 %v6449, %v8180
  %v8256 = vadd.f32 %v6450, %v8004
  %v8257 = vadd.f32 %v6451, %v8182
  %v8258 = vadd.f32 %v6452, %v8007
  %v8259 = vadd.f32 %v6453, %v8185
  %v8260 = vadd.f32 %v6454, %v8009
  %v8261 = vadd.f32 %v6455, %v8187
  %v8262 = vadd.f32 %v6456, %v8012
  %v8263 = vadd.f32 %v6457, %v8190
  %v8264 = vadd.f32 %v6458, %v8014
  %v8265 = vadd.f32 %v6459, %v8192
  %v8266 = vadd.f32 %v6460, %v8017
  %v8267 = vadd.f32 %v6461, %v8195
  %v8268 = vadd.f32 %v6462, %v8019
  %v8269 = vadd.f32 %v6463, %v8197
  %v8270 = vadd.f32 %v6464, %v8022
  %v8271 = vadd.f32 %v6465, %v8200
  %v8272 = vadd.f32 %v6466, %v8024
  %v8273 = vadd.f32 %v6467, %v8202
  %v8274 = vadd.f32 %v6468, %v8027
  %v8275 = vadd.f32 %v6469, %v8205
  %v8276 = vadd.f32 %v6470, %v8029
  %v8277 = vadd.f32 %v6471, %v8207
  %v8278 = vadd.f32 %v6472, %v8032
  %v8279 = vadd.f32 %v6473, %v8210
  %v8280 = vadd.f32 %v6474, %v8034
  %v8281 = vadd.f32 %v6475, %v8212
  %v8282 = vadd.f32 %v6476, %v8037
  %v8283 = vadd.f32 %v6477, %v8215
  %v8284 = vadd.f32 %v6478, %v8039
  %v8285 = vadd.f32 %v6479, %v8217
  %v8286 = vadd.f32 %v6480, %v8042
  %v8287 = vadd.f32 %v6481, %v8220
  %v8288 = vadd.f32 %v6482, %v8044
  %v8289 = vadd.f32 %v6483, %v8222
  %v8290 = vadd.f32 %v6484, %v8047
  %v8291 = vadd.f32 %v6485, %v8225
  %v8292 = vadd.f32 %v6486, %v8049
  %v8293 = vadd.f32 %v6487, %v8227
  %v8294 = vadd.f32 %v6488, %v8052
  %v8295 = vadd.f32 %v6489, %v8230
  %v8296 = vadd.f32 %v6490, %v8054
  %v8297 = vadd.f32 %v6491, %v8232
  %v8298 = vmul.f32 %v8234, 0.2
  %v8299 = vmul.f32 %v8235, 0.2
  %v8300 = vmul.f32 %v8236, 0.2
  %v8301 = vmul.f32 %v8237, 0.2
  %v8302 = vmul.f32 %v8238, 0.2
  %v8303 = vmul.f32 %v8239, 0.2
  %v8304 = vmul.f32 %v8240, 0.2
  %v8305 = vmul.f32 %v8241, 0.2
  %v8306 = vmul.f32 %v8242, 0.2
  %v8307 = vmul.f32 %v8243, 0.2
  %v8308 = vmul.f32 %v8244, 0.2
  %v8309 = vmul.f32 %v8245, 0.2
  %v8310 = vmul.f32 %v8246, 0.2
  %v8311 = vmul.f32 %v8247, 0.2
  %v8312 = vmul.f32 %v8248, 0.2
  %v8313 = vmul.f32 %v8249, 0.2
  %v8314 = vmul.f32 %v8250, 0.2
  %v8315 = vmul.f32 %v8251, 0.2
  %v8316 = vmul.f32 %v8252, 0.2
  %v8317 = vmul.f32 %v8253, 0.2
  %v8318 = vmul.f32 %v8254, 0.2
  %v8319 = vmul.f32 %v8255, 0.2
  %v8320 = vmul.f32 %v8256, 0.2
  %v8321 = vmul.f32 %v8257, 0.2
  %v8322 = vmul.f32 %v8258, 0.2
  %v8323 = vmul.f32 %v8259, 0.2
  %v8324 = vmul.f32 %v8260, 0.2
  %v8325 = vmul.f32 %v8261, 0.2
  %v8326 = vmul.f32 %v8262, 0.2
  %v8327 = vmul.f32 %v8263, 0.2
  %v8328 = vmul.f32 %v8264, 0.2
  %v8329 = vmul.f32 %v8265, 0.2
  %v8330 = vmul.f32 %v8266, 0.2
  %v8331 = vmul.f32 %v8267, 0.2
  %v8332 = vmul.f32 %v8268, 0.2
  %v8333 = vmul.f32 %v8269, 0.2
  %v8334 = vmul.f32 %v8270, 0.2
  %v8335 = vmul.f32 %v8271, 0.2
  %v8336 = vmul.f32 %v8272, 0.2
  %v8337 = vmul.f32 %v8273, 0.2
  %v8338 = vmul.f32 %v8274, 0.2
  %v8339 = vmul.f32 %v8275, 0.2
  %v8340 = vmul.f32 %v8276, 0.2
  %v8341 = vmul.f32 %v8277, 0.2
  %v8342 = vmul.f32 %v8278, 0.2
  %v8343 = vmul.f32 %v8279, 0.2
  %v8344 = vmul.f32 %v8280, 0.2
  %v8345 = vmul.f32 %v8281, 0.2
  %v8346 = vmul.f32 %v8282, 0.2
  %v8347 = vmul.f32 %v8283, 0.2
  %v8348 = vmul.f32 %v8284, 0.2
  %v8349 = vmul.f32 %v8285, 0.2
  %v8350 = vmul.f32 %v8286, 0.2
  %v8351 = vmul.f32 %v8287, 0.2
  %v8352 = vmul.f32 %v8288, 0.2
  %v8353 = vmul.f32 %v8289, 0.2
  %v8354 = vmul.f32 %v8290, 0.2
  %v8355 = vmul.f32 %v8291, 0.2
  %v8356 = vmul.f32 %v8292, 0.2
  %v8357 = vmul.f32 %v8293, 0.2
  %v8358 = vmul.f32 %v8294, 0.2
  %v8359 = vmul.f32 %v8295, 0.2
  %v8360 = vmul.f32 %v8296, 0.2
  %v8361 = vmul.f32 %v8297, 0.2
  %v8362 = vmax.f32 %v8234, %v8298
  %v8363 = vmax.f32 %v8235, %v8299
  %v8364 = vmax.f32 %v8236, %v8300
  %v8365 = vmax.f32 %v8237, %v8301
  %v8366 = vmax.f32 %v8238, %v8302
  %v8367 = vmax.f32 %v8239, %v8303
  %v8368 = vmax.f32 %v8240, %v8304
  %v8369 = vmax.f32 %v8241, %v8305
  %v8370 = vmax.f32 %v8242, %v8306
  %v8371 = vmax.f32 %v8243, %v8307
  %v8372 = vmax.f32 %v8244, %v8308
  %v8373 = vmax.f32 %v8245, %v8309
  %v8374 = vmax.f32 %v8246, %v8310
  %v8375 = vmax.f32 %v8247, %v8311
  %v8376 = vmax.f32 %v8248, %v8312
  %v8377 = vmax.f32 %v8249, %v8313
  %v8378 = vmax.f32 %v8250, %v8314
  %v8379 = vmax.f32 %v8251, %v8315
  %v8380 = vmax.f32 %v8252, %v8316
  %v8381 = vmax.f32 %v8253, %v8317
  %v8382 = vmax.f32 %v8254, %v8318
  %v8383 = vmax.f32 %v8255, %v8319
  %v8384 = vmax.f32 %v8256, %v8320
  %v8385 = vmax.f32 %v8257, %v8321
  %v8386 = vmax.f32 %v8258, %v8322
  %v8387 = vmax.f32 %v8259, %v8323
  %v8388 = vmax.f32 %v8260, %v8324
  %v8389 = vmax.f32 %v8261, %v8325
  %v8390 = vmax.f32 %v8262, %v8326
  %v8391 = vmax.f32 %v8263, %v8327
  %v8392 = vmax.f32 %v8264, %v8328
  %v8393 = vmax.f32 %v8265, %v8329
  %v8394 = vmax.f32 %v8266, %v8330
  %v8395 = vmax.f32 %v8267, %v8331
  %v8396 = vmax.f32 %v8268, %v8332
  %v8397 = vmax.f32 %v8269, %v8333
  %v8398 = vmax.f32 %v8270, %v8334
  %v8399 = vmax.f32 %v8271, %v8335
  %v8400 = vmax.f32 %v8272, %v8336
  %v8401 = vmax.f32 %v8273, %v8337
  %v8402 = vmax.f32 %v8274, %v8338
  %v8403 = vmax.f32 %v8275, %v8339
  %v8404 = vmax.f32 %v8276, %v8340
  %v8405 = vmax.f32 %v8277, %v8341
  %v8406 = vmax.f32 %v8278, %v8342
  %v8407 = vmax.f32 %v8279, %v8343
  %v8408 = vmax.f32 %v8280, %v8344
  %v8409 = vmax.f32 %v8281, %v8345
  %v8410 = vmax.f32 %v8282, %v8346
  %v8411 = vmax.f32 %v8283, %v8347
  %v8412 = vmax.f32 %v8284, %v8348
  %v8413 = vmax.f32 %v8285, %v8349
  %v8414 = vmax.f32 %v8286, %v8350
  %v8415 = vmax.f32 %v8287, %v8351
  %v8416 = vmax.f32 %v8288, %v8352
  %v8417 = vmax.f32 %v8289, %v8353
  %v8418 = vmax.f32 %v8290, %v8354
  %v8419 = vmax.f32 %v8291, %v8355
  %v8420 = vmax.f32 %v8292, %v8356
  %v8421 = vmax.f32 %v8293, %v8357
  %v8422 = vmax.f32 %v8294, %v8358
  %v8423 = vmax.f32 %v8295, %v8359
  %v8424 = vmax.f32 %v8296, %v8360
  %v8425 = vmax.f32 %v8297, %v8361
  %v8426 = vpack.c.bf16 %v8364, %v8362
  %v8427 = vpack.c.bf16 %v8365, %v8363
  %v8428 = vpack.c.bf16 %v8368, %v8366
  %v8429 = vpack.c.bf16 %v8369, %v8367
  %v8430 = vpack.c.bf16 %v8372, %v8370
  %v8431 = vpack.c.bf16 %v8373, %v8371
  %v8432 = vpack.c.bf16 %v8376, %v8374
  %v8433 = vpack.c.bf16 %v8377, %v8375
  %v8434 = vpack.c.bf16 %v8380, %v8378
  %v8435 = vpack.c.bf16 %v8381, %v8379
  %v8436 = vpack.c.bf16 %v8384, %v8382
  %v8437 = vpack.c.bf16 %v8385, %v8383
  %v8438 = vpack.c.bf16 %v8388, %v8386
  %v8439 = vpack.c.bf16 %v8389, %v8387
  %v8440 = vpack.c.bf16 %v8392, %v8390
  %v8441 = vpack.c.bf16 %v8393, %v8391
  %v8442 = vpack.c.bf16 %v8396, %v8394
  %v8443 = vpack.c.bf16 %v8397, %v8395
  %v8444 = vpack.c.bf16 %v8400, %v8398
  %v8445 = vpack.c.bf16 %v8401, %v8399
  %v8446 = vpack.c.bf16 %v8404, %v8402
  %v8447 = vpack.c.bf16 %v8405, %v8403
  %v8448 = vpack.c.bf16 %v8408, %v8406
  %v8449 = vpack.c.bf16 %v8409, %v8407
  %v8450 = vpack.c.bf16 %v8412, %v8410
  %v8451 = vpack.c.bf16 %v8413, %v8411
  %v8452 = vpack.c.bf16 %v8416, %v8414
  %v8453 = vpack.c.bf16 %v8417, %v8415
  %v8454 = vpack.c.bf16 %v8420, %v8418
  %v8455 = vpack.c.bf16 %v8421, %v8419
  %v8456 = vpack.c.bf16 %v8424, %v8422
  %v8457 = vpack.c.bf16 %v8425, %v8423
  %v8458 = vld [vmem:[%s6] sm:$0xf]
  %v8459 = vld [vmem:[%s6 + $0x4] sm:$0xf]
  %v8460 = vld [vmem:[%s6 + $0x8] sm:$0xf]
  %v8461 = vld [vmem:[%s6 + $0xc] sm:$0xf]
  %v8462 = vld [vmem:[%s6 + $0x10] sm:$0xf]
  %v8463 = vld [vmem:[%s6 + $0x14] sm:$0xf]
  %v8464 = vld [vmem:[%s6 + $0x18] sm:$0xf]
  %v8465 = vld [vmem:[%s6 + $0x1c] sm:$0xf]
  %v8466 = vld [vmem:[%s6 + $0x20] sm:$0xf]
  %v8467 = vld [vmem:[%s6 + $0x24] sm:$0xf]
  %v8468 = vld [vmem:[%s6 + $0x28] sm:$0xf]
  %v8469 = vld [vmem:[%s6 + $0x2c] sm:$0xf]
  %v8470 = vld [vmem:[%s6 + $0x30] sm:$0xf]
  %v8471 = vld [vmem:[%s6 + $0x34] sm:$0xf]
  %v8472 = vld [vmem:[%s6 + $0x38] sm:$0xf]
  %v8473 = vld [vmem:[%s6 + $0x3c] sm:$0xf]
  %v8474 = vld [vmem:[%s6 + $0x40] sm:$0xf]
  %v8475 = vld [vmem:[%s6 + $0x44] sm:$0xf]
  %v8476 = vld [vmem:[%s6 + $0x48] sm:$0xf]
  %v8477 = vld [vmem:[%s6 + $0x4c] sm:$0xf]
  %v8478 = vld [vmem:[%s6 + $0x50] sm:$0xf]
  %v8479 = vld [vmem:[%s6 + $0x54] sm:$0xf]
  %v8480 = vld [vmem:[%s6 + $0x58] sm:$0xf]
  %v8481 = vld [vmem:[%s6 + $0x5c] sm:$0xf]
  %v8482 = vld [vmem:[%s6 + $0x60] sm:$0xf]
  %v8483 = vld [vmem:[%s6 + $0x64] sm:$0xf]
  %v8484 = vld [vmem:[%s6 + $0x68] sm:$0xf]
  %v8485 = vld [vmem:[%s6 + $0x6c] sm:$0xf]
  %v8486 = vld [vmem:[%s6 + $0x70] sm:$0xf]
  %v8487 = vld [vmem:[%s6 + $0x74] sm:$0xf]
  %v8488 = vld [vmem:[%s6 + $0x78] sm:$0xf]
  %v8489 = vld [vmem:[%s6 + $0x7c] sm:$0xf]
  %v8490 = vld [vmem:[%s7] sm:$0x1]
  %v8492 = vperm.slane %v8490, 0
  %v8526 = vunpack.c.l.b16 %v8458
  %v8527 = vunpack.c.l.b16 %v8459
  %v8528 = vunpack.c.l.b16 %v8460
  %v8529 = vunpack.c.l.b16 %v8461
  %v8530 = vunpack.c.l.b16 %v8462
  %v8531 = vunpack.c.l.b16 %v8463
  %v8532 = vunpack.c.l.b16 %v8464
  %v8533 = vunpack.c.l.b16 %v8465
  %v8534 = vunpack.c.l.b16 %v8466
  %v8535 = vunpack.c.l.b16 %v8467
  %v8536 = vunpack.c.l.b16 %v8468
  %v8537 = vunpack.c.l.b16 %v8469
  %v8538 = vunpack.c.l.b16 %v8470
  %v8539 = vunpack.c.l.b16 %v8471
  %v8540 = vunpack.c.l.b16 %v8472
  %v8541 = vunpack.c.l.b16 %v8473
  %v8542 = vunpack.c.l.b16 %v8474
  %v8543 = vunpack.c.l.b16 %v8475
  %v8544 = vunpack.c.l.b16 %v8476
  %v8545 = vunpack.c.l.b16 %v8477
  %v8546 = vunpack.c.l.b16 %v8478
  %v8547 = vunpack.c.l.b16 %v8479
  %v8548 = vunpack.c.l.b16 %v8480
  %v8549 = vunpack.c.l.b16 %v8481
  %v8550 = vunpack.c.l.b16 %v8482
  %v8551 = vunpack.c.l.b16 %v8483
  %v8552 = vunpack.c.l.b16 %v8484
  %v8553 = vunpack.c.l.b16 %v8485
  %v8554 = vunpack.c.l.b16 %v8486
  %v8555 = vunpack.c.l.b16 %v8487
  %v8556 = vunpack.c.l.b16 %v8488
  %v8557 = vunpack.c.l.b16 %v8489
  %v8558 = vpack.c.b16 %v8527, %v8526
  %v8559 = vpack.c.b16 %v8529, %v8528
  %v8560 = vpack.c.b16 %v8531, %v8530
  %v8561 = vpack.c.b16 %v8533, %v8532
  %v8562 = vpack.c.b16 %v8535, %v8534
  %v8563 = vpack.c.b16 %v8537, %v8536
  %v8564 = vpack.c.b16 %v8539, %v8538
  %v8565 = vpack.c.b16 %v8541, %v8540
  %v8566 = vpack.c.b16 %v8543, %v8542
  %v8567 = vpack.c.b16 %v8545, %v8544
  %v8568 = vpack.c.b16 %v8547, %v8546
  %v8569 = vpack.c.b16 %v8549, %v8548
  %v8570 = vpack.c.b16 %v8551, %v8550
  %v8571 = vpack.c.b16 %v8553, %v8552
  %v8572 = vpack.c.b16 %v8555, %v8554
  %v8573 = vpack.c.b16 %v8557, %v8556
  %8590 = vmatpush.bf16.msra.mxu0 %v8565
  %8591 = vmatpush.bf16.msra.mxu0 %v8564
  %8592 = vmatpush.bf16.msra.mxu0 %v8563
  %8593 = vmatpush.bf16.msra.mxu0 %v8562
  %8594 = vmatpush.bf16.msra.mxu0 %v8561
  %8595 = vmatpush.bf16.msra.mxu0 %v8560
  %8596 = vmatpush.bf16.msra.mxu0 %v8559
  %8597 = vmatpush.bf16.msra.mxu0 %v8558
  %8598 = vmatmul.bf16.gmra.mxu0 %v8426
  %v8599 = vpop.f32.mrf.mxu0
  %v8600 = vadd.f32 %v8492, %v8599
  %v8601 = vpop.f32.mrf.mxu0
  %v8602 = vadd.f32 %v8492, %v8601
  %8603 = vmatmul.bf16.gmra.mxu0 %v8428
  %v8604 = vpop.f32.mrf.mxu0
  %v8605 = vadd.f32 %v8492, %v8604
  %v8606 = vpop.f32.mrf.mxu0
  %v8607 = vadd.f32 %v8492, %v8606
  %8608 = vmatmul.bf16.gmra.mxu0 %v8430
  %v8609 = vpop.f32.mrf.mxu0
  %v8610 = vadd.f32 %v8492, %v8609
  %v8611 = vpop.f32.mrf.mxu0
  %v8612 = vadd.f32 %v8492, %v8611
  %8613 = vmatmul.bf16.gmra.mxu0 %v8432
  %v8614 = vpop.f32.mrf.mxu0
  %v8615 = vadd.f32 %v8492, %v8614
  %v8616 = vpop.f32.mrf.mxu0
  %v8617 = vadd.f32 %v8492, %v8616
  %8618 = vmatmul.bf16.gmra.mxu0 %v8434
  %v8619 = vpop.f32.mrf.mxu0
  %v8620 = vadd.f32 %v8492, %v8619
  %v8621 = vpop.f32.mrf.mxu0
  %v8622 = vadd.f32 %v8492, %v8621
  %8623 = vmatmul.bf16.gmra.mxu0 %v8436
  %v8624 = vpop.f32.mrf.mxu0
  %v8625 = vadd.f32 %v8492, %v8624
  %v8626 = vpop.f32.mrf.mxu0
  %v8627 = vadd.f32 %v8492, %v8626
  %8628 = vmatmul.bf16.gmra.mxu0 %v8438
  %v8629 = vpop.f32.mrf.mxu0
  %v8630 = vadd.f32 %v8492, %v8629
  %v8631 = vpop.f32.mrf.mxu0
  %v8632 = vadd.f32 %v8492, %v8631
  %8633 = vmatmul.bf16.gmra.mxu0 %v8440
  %v8634 = vpop.f32.mrf.mxu0
  %v8635 = vadd.f32 %v8492, %v8634
  %v8636 = vpop.f32.mrf.mxu0
  %v8637 = vadd.f32 %v8492, %v8636
  %8638 = vmatmul.bf16.gmra.mxu0 %v8442
  %v8639 = vpop.f32.mrf.mxu0
  %v8640 = vadd.f32 %v8492, %v8639
  %v8641 = vpop.f32.mrf.mxu0
  %v8642 = vadd.f32 %v8492, %v8641
  %8643 = vmatmul.bf16.gmra.mxu0 %v8444
  %v8644 = vpop.f32.mrf.mxu0
  %v8645 = vadd.f32 %v8492, %v8644
  %v8646 = vpop.f32.mrf.mxu0
  %v8647 = vadd.f32 %v8492, %v8646
  %8648 = vmatmul.bf16.gmra.mxu0 %v8446
  %v8649 = vpop.f32.mrf.mxu0
  %v8650 = vadd.f32 %v8492, %v8649
  %v8651 = vpop.f32.mrf.mxu0
  %v8652 = vadd.f32 %v8492, %v8651
  %8653 = vmatmul.bf16.gmra.mxu0 %v8448
  %v8654 = vpop.f32.mrf.mxu0
  %v8655 = vadd.f32 %v8492, %v8654
  %v8656 = vpop.f32.mrf.mxu0
  %v8657 = vadd.f32 %v8492, %v8656
  %8658 = vmatmul.bf16.gmra.mxu0 %v8450
  %v8659 = vpop.f32.mrf.mxu0
  %v8660 = vadd.f32 %v8492, %v8659
  %v8661 = vpop.f32.mrf.mxu0
  %v8662 = vadd.f32 %v8492, %v8661
  %8663 = vmatmul.bf16.gmra.mxu0 %v8452
  %v8664 = vpop.f32.mrf.mxu0
  %v8665 = vadd.f32 %v8492, %v8664
  %v8666 = vpop.f32.mrf.mxu0
  %v8667 = vadd.f32 %v8492, %v8666
  %8668 = vmatmul.bf16.gmra.mxu0 %v8454
  %v8669 = vpop.f32.mrf.mxu0
  %v8670 = vadd.f32 %v8492, %v8669
  %v8671 = vpop.f32.mrf.mxu0
  %v8672 = vadd.f32 %v8492, %v8671
  %8673 = vmatmul.bf16.gmra.mxu0 %v8456
  %v8674 = vpop.f32.mrf.mxu0
  %v8675 = vadd.f32 %v8492, %v8674
  %v8676 = vpop.f32.mrf.mxu0
  %v8677 = vadd.f32 %v8492, %v8676
  %8678 = vdwg.mxu0
  %8679 = vmatpush.bf16.msra.mxu0 %v8573
  %8680 = vmatpush.bf16.msra.mxu0 %v8572
  %8681 = vmatpush.bf16.msra.mxu0 %v8571
  %8682 = vmatpush.bf16.msra.mxu0 %v8570
  %8683 = vmatpush.bf16.msra.mxu0 %v8569
  %8684 = vmatpush.bf16.msra.mxu0 %v8568
  %8685 = vmatpush.bf16.msra.mxu0 %v8567
  %8686 = vmatpush.bf16.msra.mxu0 %v8566
  %8687 = vmatmul.bf16.gmra.mxu0 %v8427
  %v8688 = vpop.f32.mrf.mxu0
  %v8689 = vadd.f32 %v8600, %v8688
  %v8690 = vpop.f32.mrf.mxu0
  %v8691 = vadd.f32 %v8602, %v8690
  %8692 = vmatmul.bf16.gmra.mxu0 %v8429
  %v8693 = vpop.f32.mrf.mxu0
  %v8694 = vadd.f32 %v8605, %v8693
  %v8695 = vpop.f32.mrf.mxu0
  %v8696 = vadd.f32 %v8607, %v8695
  %8697 = vmatmul.bf16.gmra.mxu0 %v8431
  %v8698 = vpop.f32.mrf.mxu0
  %v8699 = vadd.f32 %v8610, %v8698
  %v8700 = vpop.f32.mrf.mxu0
  %v8701 = vadd.f32 %v8612, %v8700
  %8702 = vmatmul.bf16.gmra.mxu0 %v8433
  %v8703 = vpop.f32.mrf.mxu0
  %v8704 = vadd.f32 %v8615, %v8703
  %v8705 = vpop.f32.mrf.mxu0
  %v8706 = vadd.f32 %v8617, %v8705
  %8707 = vmatmul.bf16.gmra.mxu0 %v8435
  %v8708 = vpop.f32.mrf.mxu0
  %v8709 = vadd.f32 %v8620, %v8708
  %v8710 = vpop.f32.mrf.mxu0
  %v8711 = vadd.f32 %v8622, %v8710
  %8712 = vmatmul.bf16.gmra.mxu0 %v8437
  %v8713 = vpop.f32.mrf.mxu0
  %v8714 = vadd.f32 %v8625, %v8713
  %v8715 = vpop.f32.mrf.mxu0
  %v8716 = vadd.f32 %v8627, %v8715
  %8717 = vmatmul.bf16.gmra.mxu0 %v8439
  %v8718 = vpop.f32.mrf.mxu0
  %v8719 = vadd.f32 %v8630, %v8718
  %v8720 = vpop.f32.mrf.mxu0
  %v8721 = vadd.f32 %v8632, %v8720
  %8722 = vmatmul.bf16.gmra.mxu0 %v8441
  %v8723 = vpop.f32.mrf.mxu0
  %v8724 = vadd.f32 %v8635, %v8723
  %v8725 = vpop.f32.mrf.mxu0
  %v8726 = vadd.f32 %v8637, %v8725
  %8727 = vmatmul.bf16.gmra.mxu0 %v8443
  %v8728 = vpop.f32.mrf.mxu0
  %v8729 = vadd.f32 %v8640, %v8728
  %v8730 = vpop.f32.mrf.mxu0
  %v8731 = vadd.f32 %v8642, %v8730
  %8732 = vmatmul.bf16.gmra.mxu0 %v8445
  %v8733 = vpop.f32.mrf.mxu0
  %v8734 = vadd.f32 %v8645, %v8733
  %v8735 = vpop.f32.mrf.mxu0
  %v8736 = vadd.f32 %v8647, %v8735
  %8737 = vmatmul.bf16.gmra.mxu0 %v8447
  %v8738 = vpop.f32.mrf.mxu0
  %v8739 = vadd.f32 %v8650, %v8738
  %v8740 = vpop.f32.mrf.mxu0
  %v8741 = vadd.f32 %v8652, %v8740
  %8742 = vmatmul.bf16.gmra.mxu0 %v8449
  %v8743 = vpop.f32.mrf.mxu0
  %v8744 = vadd.f32 %v8655, %v8743
  %v8745 = vpop.f32.mrf.mxu0
  %v8746 = vadd.f32 %v8657, %v8745
  %8747 = vmatmul.bf16.gmra.mxu0 %v8451
  %v8748 = vpop.f32.mrf.mxu0
  %v8749 = vadd.f32 %v8660, %v8748
  %v8750 = vpop.f32.mrf.mxu0
  %v8751 = vadd.f32 %v8662, %v8750
  %8752 = vmatmul.bf16.gmra.mxu0 %v8453
  %v8753 = vpop.f32.mrf.mxu0
  %v8754 = vadd.f32 %v8665, %v8753
  %v8755 = vpop.f32.mrf.mxu0
  %v8756 = vadd.f32 %v8667, %v8755
  %8757 = vmatmul.bf16.gmra.mxu0 %v8455
  %v8758 = vpop.f32.mrf.mxu0
  %v8759 = vadd.f32 %v8670, %v8758
  %v8760 = vpop.f32.mrf.mxu0
  %v8761 = vadd.f32 %v8672, %v8760
  %8762 = vmatmul.bf16.gmra.mxu0 %v8457
  %v8763 = vpop.f32.mrf.mxu0
  %v8764 = vadd.f32 %v8675, %v8763
  %v8765 = vpop.f32.mrf.mxu0
  %v8766 = vadd.f32 %v8677, %v8765
  %8767 = vdwg.mxu0
  %v8768 = vpack.c.bf16 %v8689, %v8689
  %v8769 = vpack.c.bf16 %v8691, %v8691
  %v8770 = vpack.c.bf16 %v8694, %v8694
  %v8771 = vpack.c.bf16 %v8696, %v8696
  %v8772 = vpack.c.bf16 %v8699, %v8699
  %v8773 = vpack.c.bf16 %v8701, %v8701
  %v8774 = vpack.c.bf16 %v8704, %v8704
  %v8775 = vpack.c.bf16 %v8706, %v8706
  %v8776 = vpack.c.bf16 %v8709, %v8709
  %v8777 = vpack.c.bf16 %v8711, %v8711
  %v8778 = vpack.c.bf16 %v8714, %v8714
  %v8779 = vpack.c.bf16 %v8716, %v8716
  %v8780 = vpack.c.bf16 %v8719, %v8719
  %v8781 = vpack.c.bf16 %v8721, %v8721
  %v8782 = vpack.c.bf16 %v8724, %v8724
  %v8783 = vpack.c.bf16 %v8726, %v8726
  %v8784 = vpack.c.bf16 %v8729, %v8729
  %v8785 = vpack.c.bf16 %v8731, %v8731
  %v8786 = vpack.c.bf16 %v8734, %v8734
  %v8787 = vpack.c.bf16 %v8736, %v8736
  %v8788 = vpack.c.bf16 %v8739, %v8739
  %v8789 = vpack.c.bf16 %v8741, %v8741
  %v8790 = vpack.c.bf16 %v8744, %v8744
  %v8791 = vpack.c.bf16 %v8746, %v8746
  %v8792 = vpack.c.bf16 %v8749, %v8749
  %v8793 = vpack.c.bf16 %v8751, %v8751
  %v8794 = vpack.c.bf16 %v8754, %v8754
  %v8795 = vpack.c.bf16 %v8756, %v8756
  %v8796 = vpack.c.bf16 %v8759, %v8759
  %v8797 = vpack.c.bf16 %v8761, %v8761
  %v8798 = vpack.c.bf16 %v8764, %v8764
  %v8799 = vpack.c.bf16 %v8766, %v8766
  %8800 = vst [vmem:[%s8] sm:$0xf] %v8768
  %8801 = vst [vmem:[%s8 + $0x4] sm:$0xf] %v8769
  %8802 = vst [vmem:[%s8 + $0x8] sm:$0xf] %v8770
  %8803 = vst [vmem:[%s8 + $0xc] sm:$0xf] %v8771
  %8804 = vst [vmem:[%s8 + $0x10] sm:$0xf] %v8772
  %8805 = vst [vmem:[%s8 + $0x14] sm:$0xf] %v8773
  %8806 = vst [vmem:[%s8 + $0x18] sm:$0xf] %v8774
  %8807 = vst [vmem:[%s8 + $0x1c] sm:$0xf] %v8775
  %8808 = vst [vmem:[%s8 + $0x20] sm:$0xf] %v8776
  %8809 = vst [vmem:[%s8 + $0x24] sm:$0xf] %v8777
  %8810 = vst [vmem:[%s8 + $0x28] sm:$0xf] %v8778
  %8811 = vst [vmem:[%s8 + $0x2c] sm:$0xf] %v8779
  %8812 = vst [vmem:[%s8 + $0x30] sm:$0xf] %v8780
  %8813 = vst [vmem:[%s8 + $0x34] sm:$0xf] %v8781
  %8814 = vst [vmem:[%s8 + $0x38] sm:$0xf] %v8782
  %8815 = vst [vmem:[%s8 + $0x3c] sm:$0xf] %v8783
  %8816 = vst [vmem:[%s8 + $0x40] sm:$0xf] %v8784
  %8817 = vst [vmem:[%s8 + $0x44] sm:$0xf] %v8785
  %8818 = vst [vmem:[%s8 + $0x48] sm:$0xf] %v8786
  %8819 = vst [vmem:[%s8 + $0x4c] sm:$0xf] %v8787
  %8820 = vst [vmem:[%s8 + $0x50] sm:$0xf] %v8788
  %8821 = vst [vmem:[%s8 + $0x54] sm:$0xf] %v8789
  %8822 = vst [vmem:[%s8 + $0x58] sm:$0xf] %v8790
  %8823 = vst [vmem:[%s8 + $0x5c] sm:$0xf] %v8791
  %8824 = vst [vmem:[%s8 + $0x60] sm:$0xf] %v8792
  %8825 = vst [vmem:[%s8 + $0x64] sm:$0xf] %v8793
  %8826 = vst [vmem:[%s8 + $0x68] sm:$0xf] %v8794
  %8827 = vst [vmem:[%s8 + $0x6c] sm:$0xf] %v8795
  %8828 = vst [vmem:[%s8 + $0x70] sm:$0xf] %v8796
  %8829 = vst [vmem:[%s8 + $0x74] sm:$0xf] %v8797
  %8830 = vst [vmem:[%s8 + $0x78] sm:$0xf] %v8798
  %8831 = vst [vmem:[%s8 + $0x7c] sm:$0xf] %v8799
  // Predicated region
  $region34: #{nmlp_forward.1} parent=0 // pred_check
    _
  $region35: #{nmlp_forward.1} parent=0 // pred_check_branch
    %8833 = sbr.rel (0) target = $region37
  $region36: #{nmlp_forward.1} parent=0 // pred_region
    _
  $region37: #{nmlp_forward.1} parent=0 // pred_fallthru
    _
  // Predicated region
  $region38: #{nmlp_forward.1} parent=0 // pred_check
    _
  $region39: #{nmlp_forward.1} parent=0 // pred_check_branch
    %8835 = sbr.rel (0) target = $region41
  $region40: #{nmlp_forward.1} parent=0 // pred_region
    _
  $region41: #{nmlp_forward.1} parent=0 // pred_fallthru
    _

</llo_original>
